<compile_context>
chip_gen: v7x
topology: tpu7x:2x2x1
jax: 0.10.0
libtpu: 0.0.40
codegen_flags: <defaults>
</compile_context>

<pallas_src>
import functools

import numpy as np
import jax
import jax.numpy as jnp
from jax.experimental import pallas as pl
from jax.experimental.pallas import tpu as pltpu


COUT = 88            # 16 + 24 + 24 + 24 real output channels
COUT_PAD = 128       # lane-dense output width (one full vreg lane span)
COL_OFF = 8          # interior column offset inside padded scratch (8-aligned)
_OFF = {"b1": 0, "b2": 16, "b3": 40, "b4": 64}

# lane layout of the shared padded scratch
_T2_LO, _T2_HI = 0, 16      # branch-2 1x1 output
_T3_LO, _T3_HI = 16, 32     # branch-3 1x1 output
_X_LO = 32                  # raw input (avg-pool source), width Cin


# ------------------------------ Pallas kernel -------------------------------

def _inception_kernel(x_ref,
                      w23a_ref, b23a_ref,     # fused b2|b3 first 1x1 convs
                      w2p_ref,                # b2 5x5, im2col (400, 128)
                      w3m_ref, b3m_ref,       # b3 first 3x3, im2col (144, 24)
                      w3p_ref,                # b3 second 3x3, im2col (216, 128)
                      w14_ref,                # fused b1 1x1 + b4 1x1 (2*Cin, 128)
                      bias_ref,               # (1, 128) all branch-final biases
                      o_ref,                  # (Bt*H*W, 128)
                      pad_a_ref,              # (Bt, H+4, COL_OFF+W+2, 32+Cin)
                      pad_b_ref,              # (Bt, H+2, COL_OFF+W+1, 24)
                      *, H, W, Cin, Bt):
    HW = H * W
    M = Bt * HW
    f32 = jnp.float32
    dot = functools.partial(jnp.dot, preferred_element_type=f32)

    xf = x_ref[...]                                    # (M, Cin), already flat

    # Zero only the thin border strips of the padded scratches; the interior
    # is fully overwritten below.  Done every step so it is correct per-core
    # under dimension_semantics=("parallel",) on v7x.
    def zero_border(ref, p):
        _, Hp, Wp, C = ref.shape
        z = lambda *s: jnp.zeros(s, f32)
        ref[:, 0:p, :, :] = z(Bt, p, Wp, C)                                # top
        ref[:, p + H:Hp, :, :] = z(Bt, Hp - (p + H), Wp, C)                # bottom
        ref[:, p:p + H, 0:COL_OFF, :] = z(Bt, H, COL_OFF, C)               # left
        ref[:, p:p + H, COL_OFF + W:Wp, :] = z(Bt, H, Wp - (COL_OFF + W), C)  # right

    zero_border(pad_a_ref, 2)
    zero_border(pad_b_ref, 1)

    # Fused branch-2 / branch-3 first 1x1 convs: one (M,Cin)x(Cin,32) matmul.
    t23 = dot(xf, w23a_ref[...]) + b23a_ref[...]       # (M, 32)

    # Single interior fill of the shared scratch:
    # lanes [0,16)=branch-2 1x1, [16,32)=branch-3 1x1, [32,32+Cin)=raw x.
    cat = jnp.concatenate([t23, xf], axis=-1)          # (M, 32 + Cin)
    pad_a_ref[:, 2:2 + H, COL_OFF:COL_OFF + W, :] = cat.reshape(Bt, H, W, 32 + Cin)

    # im2col: lane-concat the K*K shifted windows into one (M, K*K*C) patch
    # matrix so each conv is a single large-K MXU matmul.
    def patches(ref, P, K, lo, hi):
        pk = K // 2
        cols = []
        for kh in range(K):
            for kw in range(K):
                win = ref[:, P - pk + kh:P - pk + kh + H,
                          COL_OFF - pk + kw:COL_OFF - pk + kw + W, lo:hi]
                cols.append(win.reshape(M, hi - lo))
        return jnp.concatenate(cols, axis=-1)

    # Branch 2: 5x5 conv (pad 2) -> lanes [16,40) of the output slab.
    p2 = patches(pad_a_ref, 2, 5, _T2_LO, _T2_HI)      # (M, 400)

    # Branch 3: 3x3 (pad 1) -> 24-ch intermediate -> 3x3 (pad 1) -> lanes [40,64).
    p3a = patches(pad_a_ref, 2, 3, _T3_LO, _T3_HI)     # (M, 144)
    t3b = dot(p3a, w3m_ref[...]) + b3m_ref[...]        # (M, 24)
    pad_b_ref[:, 1:1 + H, COL_OFF:COL_OFF + W, :] = t3b.reshape(Bt, H, W, 24)
    p3b = patches(pad_b_ref, 1, 3, 0, 24)              # (M, 216)

    # Branch 4: 3x3 avg-pool (stride 1, pad 1, count_include_pad) as a
    # separable 3+3 sum; the 1/9 factor is folded into the packed b4 weights.
    xlo, xhi = _X_LO, _X_LO + Cin
    colsum = (pad_a_ref[:, 1:3 + H, COL_OFF - 1:COL_OFF - 1 + W, xlo:xhi]
              + pad_a_ref[:, 1:3 + H, COL_OFF:COL_OFF + W, xlo:xhi]
              + pad_a_ref[:, 1:3 + H, COL_OFF + 1:COL_OFF + 1 + W, xlo:xhi])
    pooled = (colsum[:, 0:H] + colsum[:, 1:1 + H] + colsum[:, 2:2 + H]
              ).reshape(M, Cin)                        # (M, Cin) 3x3 window sums

    # Branches 1 & 4 share one stacked-K matmul; all final-conv biases are
    # pre-placed in bias_ref, so the accumulator starts from them.  Every
    # branch lands in its pre-placed lane range, so the only output write is
    # one dense 128-wide store.
    cat14 = jnp.concatenate([xf, pooled], axis=-1)     # (M, 2*Cin)
    acc = (bias_ref[...]
           + dot(cat14, w14_ref[...])
           + dot(p2, w2p_ref[...])
           + dot(p3b, w3p_ref[...]))
    o_ref[...] = acc.astype(o_ref.dtype)


# ------------------------------- Weight packing ------------------------------

def _pack_params(params):
    """Reshape PyTorch OIHW weights into im2col / MXU-friendly operands and
    zero-place every branch-final conv (and its bias) into its lane range of
    the 128-wide output slab, so the kernel never does a channel concat."""
    def w1x1(w):                               # (Cout, Cin, 1, 1) -> (Cin, Cout)
        return jnp.transpose(w[:, :, 0, 0], (1, 0))

    def wkxk(w):                               # (Cout, Cin, K, K) -> (K*K*Cin, Cout)
        co, ci, k, _ = w.shape                 # row order = (kh, kw, ci) -> matches patches()
        return jnp.transpose(w, (2, 3, 1, 0)).reshape(k * k * ci, co)

    def place(w, off):                         # zero-place last dim into [off, off+Cout) of 128
        widths = [(0, 0)] * (w.ndim - 1) + [(off, COUT_PAD - off - w.shape[-1])]
        return jnp.pad(w, widths)

    w1, b1 = params["b1_1x1"]
    w2a, b2a = params["b2_1x1"]
    w2b, b2b = params["b2_5x5"]
    w3a, b3a = params["b3_1x1"]
    w3m, b3m = params["b3_3x3_1"]
    w3b, b3b = params["b3_3x3_2"]
    w4, b4 = params["b4_1x1"]

    # Fused branch-2 | branch-3 first 1x1 convs.
    w23a = jnp.concatenate([w1x1(w2a), w1x1(w3a)], axis=1)          # (Cin, 32)
    b23a = jnp.concatenate([b2a, b3a]).reshape(1, 32)

    # Fused branch-1 1x1 + branch-4 1x1 (avg-pool 1/9 folded into weights).
    w14 = jnp.concatenate([place(w1x1(w1), _OFF["b1"]),
                           place(w1x1(w4) * (1.0 / 9.0), _OFF["b4"])],
                          axis=0)                                    # (2*Cin, 128)

    bias = jnp.concatenate(
        [b1, b2b, b3b, b4, jnp.zeros((COUT_PAD - COUT,), jnp.float32)]
    ).reshape(1, COUT_PAD)

    return (
        w23a, b23a,                            # (Cin, 32), (1, 32)
        place(wkxk(w2b), _OFF["b2"]),          # (400, 128)  b2 5x5
        wkxk(w3m), b3m.reshape(1, -1),         # (144, 24), (1, 24)  b3 3x3 #1
        place(wkxk(w3b), _OFF["b3"]),          # (216, 128)  b3 3x3 #2
        w14,                                   # (2*Cin, 128)
        bias,                                  # (1, 128)
    )


# ------------------------------- Wrapper -------------------------------------

def inception_block_a(x_nchw, params, *, batch_tile=None):
    """InceptionBlockA.forward; NCHW in / NCHW out to match PyTorch."""
    x = jnp.transpose(x_nchw, (0, 2, 3, 1))             # NCHW -> NHWC
    B, H, W, Cin = x.shape
    HW = H * W
    if batch_tile is None:
        # Two grid steps: one image-group per v7x TensorCore, only one extra
        # (cheap) pipeline step on single-core v5e/v6e.
        batch_tile = B // 2 if (B % 2 == 0 and B >= 2) else 1
    assert B % batch_tile == 0
    xf = x.reshape(B * HW, Cin)                          # free view of contiguous NHWC
    weights = _pack_params(params)

    def full_spec(a):                                    # whole array, every step
        nd = a.ndim
        return pl.BlockSpec(a.shape, lambda b, _nd=nd: (0,) * _nd)

    out = pl.pallas_call(
        functools.partial(_inception_kernel, H=H, W=W, Cin=Cin, Bt=batch_tile),
        out_shape=jax.ShapeDtypeStruct((B * HW, COUT_PAD), jnp.float32),
        grid=(B // batch_tile,),
        in_specs=[pl.BlockSpec((batch_tile * HW, Cin), lambda b: (b, 0))]
        + [full_spec(a) for a in weights],
        out_specs=pl.BlockSpec((batch_tile * HW, COUT_PAD), lambda b: (b, 0)),
        scratch_shapes=[
            # shared padded scratch: t2 | t3 | x, sized for 5x5 (pad=2)
            pltpu.VMEM((batch_tile, H + 4, COL_OFF + W + 2, 32 + Cin), jnp.float32),
            # branch-3 intermediate, sized for 3x3 (pad=1)
            pltpu.VMEM((batch_tile, H + 2, COL_OFF + W + 1, 24), jnp.float32),
        ],
        compiler_params=pltpu.CompilerParams(
            dimension_semantics=("parallel",),           # both TCs on v7x
            vmem_limit_bytes=32 * 1024 * 1024,
        ),
    )(xf, *weights)

    out = out.reshape(B, H, W, COUT_PAD)[..., :COUT]
    return jnp.transpose(out, (0, 3, 1, 2))              # NHWC -> NCHW


# --------------------------- Parameters / model -----------------------------

def init_params(key, in_channels):
    """Deterministic synthetic init with PyTorch Conv2d shapes (OIHW weights)."""
    def conv_init(k, cout, cin, ksize):
        kw, kb = jax.random.split(k)
        bound = 1.0 / np.sqrt(cin * ksize * ksize)
        w = jax.random.uniform(kw, (cout, cin, ksize, ksize), jnp.float32,
                               -bound, bound)
        b = jax.random.uniform(kb, (cout,), jnp.float32, -bound, bound)
        return w, b

    keys = jax.random.split(key, 7)
    return {
        "b1_1x1":   conv_init(keys[0], 16, in_channels, 1),
        "b2_1x1":   conv_init(keys[1], 16, in_channels, 1),
        "b2_5x5":   conv_init(keys[2], 24, 16, 5),
        "b3_1x1":   conv_init(keys[3], 16, in_channels, 1),
        "b3_3x3_1": conv_init(keys[4], 24, 16, 3),
        "b3_3x3_2": conv_init(keys[5], 24, 24, 3),
        "b4_1x1":   conv_init(keys[6], 24, in_channels, 1),
    }


# --------------------------- Pure-JAX reference -----------------------------

def _ref_conv(x, w, b, pad):
    y = jax.lax.conv_general_dilated(
        x, w, window_strides=(1, 1), padding=[(pad, pad), (pad, pad)],
        dimension_numbers=("NCHW", "OIHW", "NCHW"),
        precision=jax.lax.Precision.HIGHEST)
    return y + b[None, :, None, None]


def inception_ref(x, p):
    b1 = _ref_conv(x, *p["b1_1x1"], 0)
    b2 = _ref_conv(_ref_conv(x, *p["b2_1x1"], 0), *p["b2_5x5"], 2)
    b3 = _ref_conv(
        _ref_conv(_ref_conv(x, *p["b3_1x1"], 0), *p["b3_3x3_1"], 1),
        *p["b3_3x3_2"], 1)
    pooled = jax.lax.reduce_window(
        x, 0.0, jax.lax.add, (1, 1, 3, 3), (1, 1, 1, 1),
        [(0, 0), (0, 0), (1, 1), (1, 1)]) / 9.0
    b4 = _ref_conv(pooled, *p["b4_1x1"], 0)
    return jnp.concatenate([b1, b2, b3, b4], axis=1)


# ---------------------------------- Main ------------------------------------

if __name__ == "__main__":
    key = jax.random.PRNGKey(0)
    kx, kp = jax.random.split(key)

    in_channels = 4
    x = jax.random.normal(kx, (2, in_channels, 16, 16), jnp.float32)
    params = init_params(kp, in_channels)

    fwd = jax.jit(inception_block_a)
    out = jax.block_until_ready(fwd(x, params))
    assert out.shape == (2, COUT, 16, 16), out.shape

    ref = jax.block_until_ready(inception_ref(x, params))
    out_np, ref_np = np.asarray(out), np.asarray(ref)
    diff = float(np.max(np.abs(out_np - ref_np)))
    if not np.allclose(out_np, ref_np, rtol=5e-3, atol=5e-3):
        raise AssertionError(f"mismatch vs reference, max |diff| = {diff}")

    print("KERNEL_OK")
</pallas_src>

<mosaic_0001>
module attributes {stable_mosaic.version = 11 : i64} {
  func.func @_inception_kernel(%arg0: i32, %arg1: memref<256x4xf32, #tpu.memory_space<vmem>>, %arg2: memref<4x32xf32, #tpu.memory_space<vmem>>, %arg3: memref<1x32xf32, #tpu.memory_space<vmem>>, %arg4: memref<400x128xf32, #tpu.memory_space<vmem>>, %arg5: memref<144x24xf32, #tpu.memory_space<vmem>>, %arg6: memref<1x24xf32, #tpu.memory_space<vmem>>, %arg7: memref<216x128xf32, #tpu.memory_space<vmem>>, %arg8: memref<8x128xf32, #tpu.memory_space<vmem>>, %arg9: memref<1x128xf32, #tpu.memory_space<vmem>>, %arg10: memref<256x128xf32, #tpu.memory_space<vmem>>, %arg11: memref<1x20x26x36xf32, #tpu.memory_space<vmem>>, %arg12: memref<1x18x25x24xf32, #tpu.memory_space<vmem>>) attributes {dimension_semantics = [#tpu.dimension_semantics<parallel>], iteration_bounds = array<i64: 2>, scalar_prefetch = 0 : i64, scratch_operands = 2 : i64, tpu.core_type = #tpu.core_type<tc>, window_params = [{transform_indices = @transform_0, window_bounds = array<i64: 256, 4>}, {pipeline_mode = #tpu.pipeline_mode<synchronous>, transform_indices = @transform_1, window_bounds = array<i64: 4, 32>}, {pipeline_mode = #tpu.pipeline_mode<synchronous>, transform_indices = @transform_2, window_bounds = array<i64: 1, 32>}, {pipeline_mode = #tpu.pipeline_mode<synchronous>, transform_indices = @transform_3, window_bounds = array<i64: 400, 128>}, {pipeline_mode = #tpu.pipeline_mode<synchronous>, transform_indices = @transform_4, window_bounds = array<i64: 144, 24>}, {pipeline_mode = #tpu.pipeline_mode<synchronous>, transform_indices = @transform_5, window_bounds = array<i64: 1, 24>}, {pipeline_mode = #tpu.pipeline_mode<synchronous>, transform_indices = @transform_6, window_bounds = array<i64: 216, 128>}, {pipeline_mode = #tpu.pipeline_mode<synchronous>, transform_indices = @transform_7, window_bounds = array<i64: 8, 128>}, {pipeline_mode = #tpu.pipeline_mode<synchronous>, transform_indices = @transform_8, window_bounds = array<i64: 1, 128>}, {transform_indices = @transform_9, window_bounds = array<i64: 256, 128>}]} {
    %c0 = arith.constant 0 : index
    %c0_0 = arith.constant 0 : index
    %0 = vector.load %arg1[%c0, %c0_0] : memref<256x4xf32, #tpu.memory_space<vmem>>, vector<256x4xf32>
    %cst = arith.constant 0.000000e+00 : f32
    %1 = vector.broadcast %cst : f32 to vector<1x2x26x36xf32>
    %c0_1 = arith.constant 0 : index
    %c0_2 = arith.constant 0 : index
    %c0_3 = arith.constant 0 : index
    %c0_4 = arith.constant 0 : index
    %2 = vector.load %arg11[%c0_1, %c0_2, %c0_3, %c0_4] : memref<1x20x26x36xf32, #tpu.memory_space<vmem>>, vector<1x2x26x36xf32>
    tpu.vector_store %arg11[%c0_1, %c0_2, %c0_3, %c0_4], %1 {strides = array<i32>} : memref<1x20x26x36xf32, #tpu.memory_space<vmem>>, vector<1x2x26x36xf32>,
    %cst_5 = arith.constant 0.000000e+00 : f32
    %3 = vector.broadcast %cst_5 : f32 to vector<1x2x26x36xf32>
    %c0_6 = arith.constant 0 : index
    %c18 = arith.constant 18 : index
    %c0_7 = arith.constant 0 : index
    %c0_8 = arith.constant 0 : index
    %4 = vector.load %arg11[%c0_6, %c18, %c0_7, %c0_8] : memref<1x20x26x36xf32, #tpu.memory_space<vmem>>, vector<1x2x26x36xf32>
    tpu.vector_store %arg11[%c0_6, %c18, %c0_7, %c0_8], %3 {strides = array<i32>} : memref<1x20x26x36xf32, #tpu.memory_space<vmem>>, vector<1x2x26x36xf32>,
    %cst_9 = arith.constant 0.000000e+00 : f32
    %5 = vector.broadcast %cst_9 : f32 to vector<1x16x8x36xf32>
    %c0_10 = arith.constant 0 : index
    %c2 = arith.constant 2 : index
    %c0_11 = arith.constant 0 : index
    %c0_12 = arith.constant 0 : index
    %6 = vector.load %arg11[%c0_10, %c2, %c0_11, %c0_12] : memref<1x20x26x36xf32, #tpu.memory_space<vmem>>, vector<1x16x8x36xf32>
    tpu.vector_store %arg11[%c0_10, %c2, %c0_11, %c0_12], %5 {strides = array<i32>} : memref<1x20x26x36xf32, #tpu.memory_space<vmem>>, vector<1x16x8x36xf32>,
    %cst_13 = arith.constant 0.000000e+00 : f32
    %7 = vector.broadcast %cst_13 : f32 to vector<1x16x2x36xf32>
    %c0_14 = arith.constant 0 : index
    %c2_15 = arith.constant 2 : index
    %c24 = arith.constant 24 : index
    %c0_16 = arith.constant 0 : index
    %8 = vector.load %arg11[%c0_14, %c2_15, %c24, %c0_16] : memref<1x20x26x36xf32, #tpu.memory_space<vmem>>, vector<1x16x2x36xf32>
    tpu.vector_store %arg11[%c0_14, %c2_15, %c24, %c0_16], %7 {strides = array<i32>} : memref<1x20x26x36xf32, #tpu.memory_space<vmem>>, vector<1x16x2x36xf32>,
    %cst_17 = arith.constant 0.000000e+00 : f32
    %9 = vector.broadcast %cst_17 : f32 to vector<1x1x25x24xf32>
    %c0_18 = arith.constant 0 : index
    %c0_19 = arith.constant 0 : index
    %c0_20 = arith.constant 0 : index
    %c0_21 = arith.constant 0 : index
    %10 = vector.load %arg12[%c0_18, %c0_19, %c0_20, %c0_21] : memref<1x18x25x24xf32, #tpu.memory_space<vmem>>, vector<1x1x25x24xf32>
    tpu.vector_store %arg12[%c0_18, %c0_19, %c0_20, %c0_21], %9 {strides = array<i32>} : memref<1x18x25x24xf32, #tpu.memory_space<vmem>>, vector<1x1x25x24xf32>,
    %cst_22 = arith.constant 0.000000e+00 : f32
    %11 = vector.broadcast %cst_22 : f32 to vector<1x1x25x24xf32>
    %c0_23 = arith.constant 0 : index
    %c17 = arith.constant 17 : index
    %c0_24 = arith.constant 0 : index
    %c0_25 = arith.constant 0 : index
    %12 = vector.load %arg12[%c0_23, %c17, %c0_24, %c0_25] : memref<1x18x25x24xf32, #tpu.memory_space<vmem>>, vector<1x1x25x24xf32>
    tpu.vector_store %arg12[%c0_23, %c17, %c0_24, %c0_25], %11 {strides = array<i32>} : memref<1x18x25x24xf32, #tpu.memory_space<vmem>>, vector<1x1x25x24xf32>,
    %cst_26 = arith.constant 0.000000e+00 : f32
    %13 = vector.broadcast %cst_26 : f32 to vector<1x16x8x24xf32>
    %c0_27 = arith.constant 0 : index
    %c1 = arith.constant 1 : index
    %c0_28 = arith.constant 0 : index
    %c0_29 = arith.constant 0 : index
    %14 = vector.load %arg12[%c0_27, %c1, %c0_28, %c0_29] : memref<1x18x25x24xf32, #tpu.memory_space<vmem>>, vector<1x16x8x24xf32>
    tpu.vector_store %arg12[%c0_27, %c1, %c0_28, %c0_29], %13 {strides = array<i32>} : memref<1x18x25x24xf32, #tpu.memory_space<vmem>>, vector<1x16x8x24xf32>,
    %cst_30 = arith.constant 0.000000e+00 : f32
    %15 = vector.broadcast %cst_30 : f32 to vector<1x16x1x24xf32>
    %c0_31 = arith.constant 0 : index
    %c1_32 = arith.constant 1 : index
    %c24_33 = arith.constant 24 : index
    %c0_34 = arith.constant 0 : index
    %16 = vector.load %arg12[%c0_31, %c1_32, %c24_33, %c0_34] : memref<1x18x25x24xf32, #tpu.memory_space<vmem>>, vector<1x16x1x24xf32>
    tpu.vector_store %arg12[%c0_31, %c1_32, %c24_33, %c0_34], %15 {strides = array<i32>} : memref<1x18x25x24xf32, #tpu.memory_space<vmem>>, vector<1x16x1x24xf32>,
    %c0_35 = arith.constant 0 : index
    %c0_36 = arith.constant 0 : index
    %17 = vector.load %arg2[%c0_35, %c0_36] : memref<4x32xf32, #tpu.memory_space<vmem>>, vector<4x32xf32>
    %cst_37 = arith.constant dense<0.000000e+00> : vector<256x32xf32>
    %18 = tpu.matmul %0, %17, %cst_37 {dimension_numbers = #tpu.dot_dimension_numbers<[1], [0], [0], [1], [0, 0, 1, 1], [], []>} : vector<256x4xf32>, vector<4x32xf32>, vector<256x32xf32> -> vector<256x32xf32>
    %c0_38 = arith.constant 0 : index
    %c0_39 = arith.constant 0 : index
    %19 = vector.load %arg3[%c0_38, %c0_39] : memref<1x32xf32, #tpu.memory_space<vmem>>, vector<1x32xf32>
    %20 = vector.broadcast %19 : vector<1x32xf32> to vector<256x32xf32>
    %21 = arith.addf %18, %20 : vector<256x32xf32>
    %22 = tpu.concatenate %21, %0 in 1 : vector<256x32xf32>, vector<256x4xf32> -> vector<256x36xf32>
    %23 = vector.shape_cast %22 : vector<256x36xf32> to vector<1x16x16x36xf32>
    %c0_40 = arith.constant 0 : index
    %c2_41 = arith.constant 2 : index
    %c8 = arith.constant 8 : index
    %c0_42 = arith.constant 0 : index
    %24 = vector.load %arg11[%c0_40, %c2_41, %c8, %c0_42] : memref<1x20x26x36xf32, #tpu.memory_space<vmem>>, vector<1x16x16x36xf32>
    tpu.vector_store %arg11[%c0_40, %c2_41, %c8, %c0_42], %23 {strides = array<i32>} : memref<1x20x26x36xf32, #tpu.memory_space<vmem>>, vector<1x16x16x36xf32>,
    %c0_43 = arith.constant 0 : index
    %c0_44 = arith.constant 0 : index
    %c6 = arith.constant 6 : index
    %c0_45 = arith.constant 0 : index
    %25 = vector.load %arg11[%c0_43, %c0_44, %c6, %c0_45] : memref<1x20x26x36xf32, #tpu.memory_space<vmem>>, vector<1x16x16x16xf32>
    %26 = vector.shape_cast %25 : vector<1x16x16x16xf32> to vector<256x16xf32>
    %c0_46 = arith.constant 0 : index
    %c0_47 = arith.constant 0 : index
    %c7 = arith.constant 7 : index
    %c0_48 = arith.constant 0 : index
    %27 = vector.load %arg11[%c0_46, %c0_47, %c7, %c0_48] : memref<1x20x26x36xf32, #tpu.memory_space<vmem>>, vector<1x16x16x16xf32>
    %28 = vector.shape_cast %27 : vector<1x16x16x16xf32> to vector<256x16xf32>
    %c0_49 = arith.constant 0 : index
    %c0_50 = arith.constant 0 : index
    %c8_51 = arith.constant 8 : index
    %c0_52 = arith.constant 0 : index
    %29 = vector.load %arg11[%c0_49, %c0_50, %c8_51, %c0_52] : memref<1x20x26x36xf32, #tpu.memory_space<vmem>>, vector<1x16x16x16xf32>
    %30 = vector.shape_cast %29 : vector<1x16x16x16xf32> to vector<256x16xf32>
    %c0_53 = arith.constant 0 : index
    %c0_54 = arith.constant 0 : index
    %c9 = arith.constant 9 : index
    %c0_55 = arith.constant 0 : index
    %31 = vector.load %arg11[%c0_53, %c0_54, %c9, %c0_55] : memref<1x20x26x36xf32, #tpu.memory_space<vmem>>, vector<1x16x16x16xf32>
    %32 = vector.shape_cast %31 : vector<1x16x16x16xf32> to vector<256x16xf32>
    %c0_56 = arith.constant 0 : index
    %c0_57 = arith.constant 0 : index
    %c10 = arith.constant 10 : index
    %c0_58 = arith.constant 0 : index
    %33 = vector.load %arg11[%c0_56, %c0_57, %c10, %c0_58] : memref<1x20x26x36xf32, #tpu.memory_space<vmem>>, vector<1x16x16x16xf32>
    %34 = vector.shape_cast %33 : vector<1x16x16x16xf32> to vector<256x16xf32>
    %c0_59 = arith.constant 0 : index
    %c1_60 = arith.constant 1 : index
    %c6_61 = arith.constant 6 : index
    %c0_62 = arith.constant 0 : index
    %35 = vector.load %arg11[%c0_59, %c1_60, %c6_61, %c0_62] : memref<1x20x26x36xf32, #tpu.memory_space<vmem>>, vector<1x16x16x16xf32>
    %36 = vector.shape_cast %35 : vector<1x16x16x16xf32> to vector<256x16xf32>
    %c0_63 = arith.constant 0 : index
    %c1_64 = arith.constant 1 : index
    %c7_65 = arith.constant 7 : index
    %c0_66 = arith.constant 0 : index
    %37 = vector.load %arg11[%c0_63, %c1_64, %c7_65, %c0_66] : memref<1x20x26x36xf32, #tpu.memory_space<vmem>>, vector<1x16x16x16xf32>
    %38 = vector.shape_cast %37 : vector<1x16x16x16xf32> to vector<256x16xf32>
    %c0_67 = arith.constant 0 : index
    %c1_68 = arith.constant 1 : index
    %c8_69 = arith.constant 8 : index
    %c0_70 = arith.constant 0 : index
    %39 = vector.load %arg11[%c0_67, %c1_68, %c8_69, %c0_70] : memref<1x20x26x36xf32, #tpu.memory_space<vmem>>, vector<1x16x16x16xf32>
    %40 = vector.shape_cast %39 : vector<1x16x16x16xf32> to vector<256x16xf32>
    %c0_71 = arith.constant 0 : index
    %c1_72 = arith.constant 1 : index
    %c9_73 = arith.constant 9 : index
    %c0_74 = arith.constant 0 : index
    %41 = vector.load %arg11[%c0_71, %c1_72, %c9_73, %c0_74] : memref<1x20x26x36xf32, #tpu.memory_space<vmem>>, vector<1x16x16x16xf32>
    %42 = vector.shape_cast %41 : vector<1x16x16x16xf32> to vector<256x16xf32>
    %c0_75 = arith.constant 0 : index
    %c1_76 = arith.constant 1 : index
    %c10_77 = arith.constant 10 : index
    %c0_78 = arith.constant 0 : index
    %43 = vector.load %arg11[%c0_75, %c1_76, %c10_77, %c0_78] : memref<1x20x26x36xf32, #tpu.memory_space<vmem>>, vector<1x16x16x16xf32>
    %44 = vector.shape_cast %43 : vector<1x16x16x16xf32> to vector<256x16xf32>
    %c0_79 = arith.constant 0 : index
    %c2_80 = arith.constant 2 : index
    %c6_81 = arith.constant 6 : index
    %c0_82 = arith.constant 0 : index
    %45 = vector.load %arg11[%c0_79, %c2_80, %c6_81, %c0_82] : memref<1x20x26x36xf32, #tpu.memory_space<vmem>>, vector<1x16x16x16xf32>
    %46 = vector.shape_cast %45 : vector<1x16x16x16xf32> to vector<256x16xf32>
    %c0_83 = arith.constant 0 : index
    %c2_84 = arith.constant 2 : index
    %c7_85 = arith.constant 7 : index
    %c0_86 = arith.constant 0 : index
    %47 = vector.load %arg11[%c0_83, %c2_84, %c7_85, %c0_86] : memref<1x20x26x36xf32, #tpu.memory_space<vmem>>, vector<1x16x16x16xf32>
    %48 = vector.shape_cast %47 : vector<1x16x16x16xf32> to vector<256x16xf32>
    %c0_87 = arith.constant 0 : index
    %c2_88 = arith.constant 2 : index
    %c8_89 = arith.constant 8 : index
    %c0_90 = arith.constant 0 : index
    %49 = vector.load %arg11[%c0_87, %c2_88, %c8_89, %c0_90] : memref<1x20x26x36xf32, #tpu.memory_space<vmem>>, vector<1x16x16x16xf32>
    %50 = vector.shape_cast %49 : vector<1x16x16x16xf32> to vector<256x16xf32>
    %c0_91 = arith.constant 0 : index
    %c2_92 = arith.constant 2 : index
    %c9_93 = arith.constant 9 : index
    %c0_94 = arith.constant 0 : index
    %51 = vector.load %arg11[%c0_91, %c2_92, %c9_93, %c0_94] : memref<1x20x26x36xf32, #tpu.memory_space<vmem>>, vector<1x16x16x16xf32>
    %52 = vector.shape_cast %51 : vector<1x16x16x16xf32> to vector<256x16xf32>
    %c0_95 = arith.constant 0 : index
    %c2_96 = arith.constant 2 : index
    %c10_97 = arith.constant 10 : index
    %c0_98 = arith.constant 0 : index
    %53 = vector.load %arg11[%c0_95, %c2_96, %c10_97, %c0_98] : memref<1x20x26x36xf32, #tpu.memory_space<vmem>>, vector<1x16x16x16xf32>
    %54 = vector.shape_cast %53 : vector<1x16x16x16xf32> to vector<256x16xf32>
    %c0_99 = arith.constant 0 : index
    %c3 = arith.constant 3 : index
    %c6_100 = arith.constant 6 : index
    %c0_101 = arith.constant 0 : index
    %55 = vector.load %arg11[%c0_99, %c3, %c6_100, %c0_101] : memref<1x20x26x36xf32, #tpu.memory_space<vmem>>, vector<1x16x16x16xf32>
    %56 = vector.shape_cast %55 : vector<1x16x16x16xf32> to vector<256x16xf32>
    %c0_102 = arith.constant 0 : index
    %c3_103 = arith.constant 3 : index
    %c7_104 = arith.constant 7 : index
    %c0_105 = arith.constant 0 : index
    %57 = vector.load %arg11[%c0_102, %c3_103, %c7_104, %c0_105] : memref<1x20x26x36xf32, #tpu.memory_space<vmem>>, vector<1x16x16x16xf32>
    %58 = vector.shape_cast %57 : vector<1x16x16x16xf32> to vector<256x16xf32>
    %c0_106 = arith.constant 0 : index
    %c3_107 = arith.constant 3 : index
    %c8_108 = arith.constant 8 : index
    %c0_109 = arith.constant 0 : index
    %59 = vector.load %arg11[%c0_106, %c3_107, %c8_108, %c0_109] : memref<1x20x26x36xf32, #tpu.memory_space<vmem>>, vector<1x16x16x16xf32>
    %60 = vector.shape_cast %59 : vector<1x16x16x16xf32> to vector<256x16xf32>
    %c0_110 = arith.constant 0 : index
    %c3_111 = arith.constant 3 : index
    %c9_112 = arith.constant 9 : index
    %c0_113 = arith.constant 0 : index
    %61 = vector.load %arg11[%c0_110, %c3_111, %c9_112, %c0_113] : memref<1x20x26x36xf32, #tpu.memory_space<vmem>>, vector<1x16x16x16xf32>
    %62 = vector.shape_cast %61 : vector<1x16x16x16xf32> to vector<256x16xf32>
    %c0_114 = arith.constant 0 : index
    %c3_115 = arith.constant 3 : index
    %c10_116 = arith.constant 10 : index
    %c0_117 = arith.constant 0 : index
    %63 = vector.load %arg11[%c0_114, %c3_115, %c10_116, %c0_117] : memref<1x20x26x36xf32, #tpu.memory_space<vmem>>, vector<1x16x16x16xf32>
    %64 = vector.shape_cast %63 : vector<1x16x16x16xf32> to vector<256x16xf32>
    %c0_118 = arith.constant 0 : index
    %c4 = arith.constant 4 : index
    %c6_119 = arith.constant 6 : index
    %c0_120 = arith.constant 0 : index
    %65 = vector.load %arg11[%c0_118, %c4, %c6_119, %c0_120] : memref<1x20x26x36xf32, #tpu.memory_space<vmem>>, vector<1x16x16x16xf32>
    %66 = vector.shape_cast %65 : vector<1x16x16x16xf32> to vector<256x16xf32>
    %c0_121 = arith.constant 0 : index
    %c4_122 = arith.constant 4 : index
    %c7_123 = arith.constant 7 : index
    %c0_124 = arith.constant 0 : index
    %67 = vector.load %arg11[%c0_121, %c4_122, %c7_123, %c0_124] : memref<1x20x26x36xf32, #tpu.memory_space<vmem>>, vector<1x16x16x16xf32>
    %68 = vector.shape_cast %67 : vector<1x16x16x16xf32> to vector<256x16xf32>
    %c0_125 = arith.constant 0 : index
    %c4_126 = arith.constant 4 : index
    %c8_127 = arith.constant 8 : index
    %c0_128 = arith.constant 0 : index
    %69 = vector.load %arg11[%c0_125, %c4_126, %c8_127, %c0_128] : memref<1x20x26x36xf32, #tpu.memory_space<vmem>>, vector<1x16x16x16xf32>
    %70 = vector.shape_cast %69 : vector<1x16x16x16xf32> to vector<256x16xf32>
    %c0_129 = arith.constant 0 : index
    %c4_130 = arith.constant 4 : index
    %c9_131 = arith.constant 9 : index
    %c0_132 = arith.constant 0 : index
    %71 = vector.load %arg11[%c0_129, %c4_130, %c9_131, %c0_132] : memref<1x20x26x36xf32, #tpu.memory_space<vmem>>, vector<1x16x16x16xf32>
    %72 = vector.shape_cast %71 : vector<1x16x16x16xf32> to vector<256x16xf32>
    %c0_133 = arith.constant 0 : index
    %c4_134 = arith.constant 4 : index
    %c10_135 = arith.constant 10 : index
    %c0_136 = arith.constant 0 : index
    %73 = vector.load %arg11[%c0_133, %c4_134, %c10_135, %c0_136] : memref<1x20x26x36xf32, #tpu.memory_space<vmem>>, vector<1x16x16x16xf32>
    %74 = vector.shape_cast %73 : vector<1x16x16x16xf32> to vector<256x16xf32>
    %75 = tpu.concatenate %26, %28, %30, %32, %34, %36, %38, %40, %42, %44, %46, %48, %50, %52, %54, %56 in 1 : vector<256x16xf32>, vector<256x16xf32>, vector<256x16xf32>, vector<256x16xf32>, vector<256x16xf32>, vector<256x16xf32>, vector<256x16xf32>, vector<256x16xf32>, vector<256x16xf32>, vector<256x16xf32>, vector<256x16xf32>, vector<256x16xf32>, vector<256x16xf32>, vector<256x16xf32>, vector<256x16xf32>, vector<256x16xf32> -> vector<256x256xf32>
    %76 = tpu.concatenate %58, %60, %62, %64, %66, %68, %70, %72, %74 in 1 : vector<256x16xf32>, vector<256x16xf32>, vector<256x16xf32>, vector<256x16xf32>, vector<256x16xf32>, vector<256x16xf32>, vector<256x16xf32>, vector<256x16xf32>, vector<256x16xf32> -> vector<256x144xf32>
    %77 = tpu.concatenate %75, %76 in 1 : vector<256x256xf32>, vector<256x144xf32> -> vector<256x400xf32>
    %c0_137 = arith.constant 0 : index
    %c1_138 = arith.constant 1 : index
    %c7_139 = arith.constant 7 : index
    %c16 = arith.constant 16 : index
    %78 = vector.load %arg11[%c0_137, %c1_138, %c7_139, %c16] : memref<1x20x26x36xf32, #tpu.memory_space<vmem>>, vector<1x16x16x16xf32>
    %79 = vector.shape_cast %78 : vector<1x16x16x16xf32> to vector<256x16xf32>
    %c0_140 = arith.constant 0 : index
    %c1_141 = arith.constant 1 : index
    %c8_142 = arith.constant 8 : index
    %c16_143 = arith.constant 16 : index
    %80 = vector.load %arg11[%c0_140, %c1_141, %c8_142, %c16_143] : memref<1x20x26x36xf32, #tpu.memory_space<vmem>>, vector<1x16x16x16xf32>
    %81 = vector.shape_cast %80 : vector<1x16x16x16xf32> to vector<256x16xf32>
    %c0_144 = arith.constant 0 : index
    %c1_145 = arith.constant 1 : index
    %c9_146 = arith.constant 9 : index
    %c16_147 = arith.constant 16 : index
    %82 = vector.load %arg11[%c0_144, %c1_145, %c9_146, %c16_147] : memref<1x20x26x36xf32, #tpu.memory_space<vmem>>, vector<1x16x16x16xf32>
    %83 = vector.shape_cast %82 : vector<1x16x16x16xf32> to vector<256x16xf32>
    %c0_148 = arith.constant 0 : index
    %c2_149 = arith.constant 2 : index
    %c7_150 = arith.constant 7 : index
    %c16_151 = arith.constant 16 : index
    %84 = vector.load %arg11[%c0_148, %c2_149, %c7_150, %c16_151] : memref<1x20x26x36xf32, #tpu.memory_space<vmem>>, vector<1x16x16x16xf32>
    %85 = vector.shape_cast %84 : vector<1x16x16x16xf32> to vector<256x16xf32>
    %c0_152 = arith.constant 0 : index
    %c2_153 = arith.constant 2 : index
    %c8_154 = arith.constant 8 : index
    %c16_155 = arith.constant 16 : index
    %86 = vector.load %arg11[%c0_152, %c2_153, %c8_154, %c16_155] : memref<1x20x26x36xf32, #tpu.memory_space<vmem>>, vector<1x16x16x16xf32>
    %87 = vector.shape_cast %86 : vector<1x16x16x16xf32> to vector<256x16xf32>
    %c0_156 = arith.constant 0 : index
    %c2_157 = arith.constant 2 : index
    %c9_158 = arith.constant 9 : index
    %c16_159 = arith.constant 16 : index
    %88 = vector.load %arg11[%c0_156, %c2_157, %c9_158, %c16_159] : memref<1x20x26x36xf32, #tpu.memory_space<vmem>>, vector<1x16x16x16xf32>
    %89 = vector.shape_cast %88 : vector<1x16x16x16xf32> to vector<256x16xf32>
    %c0_160 = arith.constant 0 : index
    %c3_161 = arith.constant 3 : index
    %c7_162 = arith.constant 7 : index
    %c16_163 = arith.constant 16 : index
    %90 = vector.load %arg11[%c0_160, %c3_161, %c7_162, %c16_163] : memref<1x20x26x36xf32, #tpu.memory_space<vmem>>, vector<1x16x16x16xf32>
    %91 = vector.shape_cast %90 : vector<1x16x16x16xf32> to vector<256x16xf32>
    %c0_164 = arith.constant 0 : index
    %c3_165 = arith.constant 3 : index
    %c8_166 = arith.constant 8 : index
    %c16_167 = arith.constant 16 : index
    %92 = vector.load %arg11[%c0_164, %c3_165, %c8_166, %c16_167] : memref<1x20x26x36xf32, #tpu.memory_space<vmem>>, vector<1x16x16x16xf32>
    %93 = vector.shape_cast %92 : vector<1x16x16x16xf32> to vector<256x16xf32>
    %c0_168 = arith.constant 0 : index
    %c3_169 = arith.constant 3 : index
    %c9_170 = arith.constant 9 : index
    %c16_171 = arith.constant 16 : index
    %94 = vector.load %arg11[%c0_168, %c3_169, %c9_170, %c16_171] : memref<1x20x26x36xf32, #tpu.memory_space<vmem>>, vector<1x16x16x16xf32>
    %95 = vector.shape_cast %94 : vector<1x16x16x16xf32> to vector<256x16xf32>
    %96 = tpu.concatenate %79, %81, %83, %85, %87, %89, %91, %93, %95 in 1 : vector<256x16xf32>, vector<256x16xf32>, vector<256x16xf32>, vector<256x16xf32>, vector<256x16xf32>, vector<256x16xf32>, vector<256x16xf32>, vector<256x16xf32>, vector<256x16xf32> -> vector<256x144xf32>
    %c0_172 = arith.constant 0 : index
    %c0_173 = arith.constant 0 : index
    %97 = vector.load %arg5[%c0_172, %c0_173] : memref<144x24xf32, #tpu.memory_space<vmem>>, vector<144x24xf32>
    %cst_174 = arith.constant dense<0.000000e+00> : vector<256x24xf32>
    %98 = tpu.matmul %96, %97, %cst_174 {dimension_numbers = #tpu.dot_dimension_numbers<[1], [0], [0], [1], [0, 0, 1, 1], [], []>} : vector<256x144xf32>, vector<144x24xf32>, vector<256x24xf32> -> vector<256x24xf32>
    %c0_175 = arith.constant 0 : index
    %c0_176 = arith.constant 0 : index
    %99 = vector.load %arg6[%c0_175, %c0_176] : memref<1x24xf32, #tpu.memory_space<vmem>>, vector<1x24xf32>
    %100 = vector.broadcast %99 : vector<1x24xf32> to vector<256x24xf32>
    %101 = arith.addf %98, %100 : vector<256x24xf32>
    %102 = vector.shape_cast %101 : vector<256x24xf32> to vector<1x16x16x24xf32>
    %c0_177 = arith.constant 0 : index
    %c1_178 = arith.constant 1 : index
    %c8_179 = arith.constant 8 : index
    %c0_180 = arith.constant 0 : index
    %103 = vector.load %arg12[%c0_177, %c1_178, %c8_179, %c0_180] : memref<1x18x25x24xf32, #tpu.memory_space<vmem>>, vector<1x16x16x24xf32>
    tpu.vector_store %arg12[%c0_177, %c1_178, %c8_179, %c0_180], %102 {strides = array<i32>} : memref<1x18x25x24xf32, #tpu.memory_space<vmem>>, vector<1x16x16x24xf32>,
    %c0_181 = arith.constant 0 : index
    %c0_182 = arith.constant 0 : index
    %c7_183 = arith.constant 7 : index
    %c0_184 = arith.constant 0 : index
    %104 = vector.load %arg12[%c0_181, %c0_182, %c7_183, %c0_184] : memref<1x18x25x24xf32, #tpu.memory_space<vmem>>, vector<1x16x16x24xf32>
    %105 = vector.shape_cast %104 : vector<1x16x16x24xf32> to vector<256x24xf32>
    %c0_185 = arith.constant 0 : index
    %c0_186 = arith.constant 0 : index
    %c8_187 = arith.constant 8 : index
    %c0_188 = arith.constant 0 : index
    %106 = vector.load %arg12[%c0_185, %c0_186, %c8_187, %c0_188] : memref<1x18x25x24xf32, #tpu.memory_space<vmem>>, vector<1x16x16x24xf32>
    %107 = vector.shape_cast %106 : vector<1x16x16x24xf32> to vector<256x24xf32>
    %c0_189 = arith.constant 0 : index
    %c0_190 = arith.constant 0 : index
    %c9_191 = arith.constant 9 : index
    %c0_192 = arith.constant 0 : index
    %108 = vector.load %arg12[%c0_189, %c0_190, %c9_191, %c0_192] : memref<1x18x25x24xf32, #tpu.memory_space<vmem>>, vector<1x16x16x24xf32>
    %109 = vector.shape_cast %108 : vector<1x16x16x24xf32> to vector<256x24xf32>
    %c0_193 = arith.constant 0 : index
    %c1_194 = arith.constant 1 : index
    %c7_195 = arith.constant 7 : index
    %c0_196 = arith.constant 0 : index
    %110 = vector.load %arg12[%c0_193, %c1_194, %c7_195, %c0_196] : memref<1x18x25x24xf32, #tpu.memory_space<vmem>>, vector<1x16x16x24xf32>
    %111 = vector.shape_cast %110 : vector<1x16x16x24xf32> to vector<256x24xf32>
    %c0_197 = arith.constant 0 : index
    %c1_198 = arith.constant 1 : index
    %c8_199 = arith.constant 8 : index
    %c0_200 = arith.constant 0 : index
    %112 = vector.load %arg12[%c0_197, %c1_198, %c8_199, %c0_200] : memref<1x18x25x24xf32, #tpu.memory_space<vmem>>, vector<1x16x16x24xf32>
    %113 = vector.shape_cast %112 : vector<1x16x16x24xf32> to vector<256x24xf32>
    %c0_201 = arith.constant 0 : index
    %c1_202 = arith.constant 1 : index
    %c9_203 = arith.constant 9 : index
    %c0_204 = arith.constant 0 : index
    %114 = vector.load %arg12[%c0_201, %c1_202, %c9_203, %c0_204] : memref<1x18x25x24xf32, #tpu.memory_space<vmem>>, vector<1x16x16x24xf32>
    %115 = vector.shape_cast %114 : vector<1x16x16x24xf32> to vector<256x24xf32>
    %c0_205 = arith.constant 0 : index
    %c2_206 = arith.constant 2 : index
    %c7_207 = arith.constant 7 : index
    %c0_208 = arith.constant 0 : index
    %116 = vector.load %arg12[%c0_205, %c2_206, %c7_207, %c0_208] : memref<1x18x25x24xf32, #tpu.memory_space<vmem>>, vector<1x16x16x24xf32>
    %117 = vector.shape_cast %116 : vector<1x16x16x24xf32> to vector<256x24xf32>
    %c0_209 = arith.constant 0 : index
    %c2_210 = arith.constant 2 : index
    %c8_211 = arith.constant 8 : index
    %c0_212 = arith.constant 0 : index
    %118 = vector.load %arg12[%c0_209, %c2_210, %c8_211, %c0_212] : memref<1x18x25x24xf32, #tpu.memory_space<vmem>>, vector<1x16x16x24xf32>
    %119 = vector.shape_cast %118 : vector<1x16x16x24xf32> to vector<256x24xf32>
    %c0_213 = arith.constant 0 : index
    %c2_214 = arith.constant 2 : index
    %c9_215 = arith.constant 9 : index
    %c0_216 = arith.constant 0 : index
    %120 = vector.load %arg12[%c0_213, %c2_214, %c9_215, %c0_216] : memref<1x18x25x24xf32, #tpu.memory_space<vmem>>, vector<1x16x16x24xf32>
    %121 = vector.shape_cast %120 : vector<1x16x16x24xf32> to vector<256x24xf32>
    %122 = tpu.concatenate %105, %107, %109, %111, %113, %115, %117, %119, %121 in 1 : vector<256x24xf32>, vector<256x24xf32>, vector<256x24xf32>, vector<256x24xf32>, vector<256x24xf32>, vector<256x24xf32>, vector<256x24xf32>, vector<256x24xf32>, vector<256x24xf32> -> vector<256x216xf32>
    %c0_217 = arith.constant 0 : index
    %c1_218 = arith.constant 1 : index
    %c7_219 = arith.constant 7 : index
    %c32 = arith.constant 32 : index
    %123 = vector.load %arg11[%c0_217, %c1_218, %c7_219, %c32] : memref<1x20x26x36xf32, #tpu.memory_space<vmem>>, vector<1x18x16x4xf32>
    %c0_220 = arith.constant 0 : index
    %c1_221 = arith.constant 1 : index
    %c8_222 = arith.constant 8 : index
    %c32_223 = arith.constant 32 : index
    %124 = vector.load %arg11[%c0_220, %c1_221, %c8_222, %c32_223] : memref<1x20x26x36xf32, #tpu.memory_space<vmem>>, vector<1x18x16x4xf32>
    %125 = arith.addf %123, %124 : vector<1x18x16x4xf32>
    %c0_224 = arith.constant 0 : index
    %c1_225 = arith.constant 1 : index
    %c9_226 = arith.constant 9 : index
    %c32_227 = arith.constant 32 : index
    %126 = vector.load %arg11[%c0_224, %c1_225, %c9_226, %c32_227] : memref<1x20x26x36xf32, #tpu.memory_space<vmem>>, vector<1x18x16x4xf32>
    %127 = arith.addf %125, %126 : vector<1x18x16x4xf32>
    %128 = vector.extract_strided_slice %127 {offsets = [0, 0, 0, 0], sizes = [1, 16, 16, 4], strides = [1, 1, 1, 1]} : vector<1x18x16x4xf32> to vector<1x16x16x4xf32>
    %129 = vector.extract_strided_slice %127 {offsets = [0, 1, 0, 0], sizes = [1, 16, 16, 4], strides = [1, 1, 1, 1]} : vector<1x18x16x4xf32> to vector<1x16x16x4xf32>
    %130 = arith.addf %128, %129 : vector<1x16x16x4xf32>
    %131 = vector.extract_strided_slice %127 {offsets = [0, 2, 0, 0], sizes = [1, 16, 16, 4], strides = [1, 1, 1, 1]} : vector<1x18x16x4xf32> to vector<1x16x16x4xf32>
    %132 = arith.addf %130, %131 : vector<1x16x16x4xf32>
    %133 = vector.shape_cast %132 : vector<1x16x16x4xf32> to vector<256x4xf32>
    %134 = tpu.concatenate %0, %133 in 1 : vector<256x4xf32>, vector<256x4xf32> -> vector<256x8xf32>
    %c0_228 = arith.constant 0 : index
    %c0_229 = arith.constant 0 : index
    %135 = vector.load %arg9[%c0_228, %c0_229] : memref<1x128xf32, #tpu.memory_space<vmem>>, vector<1x128xf32>
    %c0_230 = arith.constant 0 : index
    %c0_231 = arith.constant 0 : index
    %136 = vector.load %arg8[%c0_230, %c0_231] : memref<8x128xf32, #tpu.memory_space<vmem>>, vector<8x128xf32>
    %cst_232 = arith.constant dense<0.000000e+00> : vector<256x128xf32>
    %137 = tpu.matmul %134, %136, %cst_232 {dimension_numbers = #tpu.dot_dimension_numbers<[1], [0], [0], [1], [0, 0, 1, 1], [], []>} : vector<256x8xf32>, vector<8x128xf32>, vector<256x128xf32> -> vector<256x128xf32>
    %138 = vector.broadcast %135 : vector<1x128xf32> to vector<256x128xf32>
    %139 = arith.addf %138, %137 : vector<256x128xf32>
    %c0_233 = arith.constant 0 : index
    %c0_234 = arith.constant 0 : index
    %140 = vector.load %arg4[%c0_233, %c0_234] : memref<400x128xf32, #tpu.memory_space<vmem>>, vector<400x128xf32>
    %cst_235 = arith.constant dense<0.000000e+00> : vector<256x128xf32>
    %141 = tpu.matmul %77, %140, %cst_235 {dimension_numbers = #tpu.dot_dimension_numbers<[1], [0], [0], [1], [0, 0, 1, 1], [], []>} : vector<256x400xf32>, vector<400x128xf32>, vector<256x128xf32> -> vector<256x128xf32>
    %142 = arith.addf %139, %141 : vector<256x128xf32>
    %c0_236 = arith.constant 0 : index
    %c0_237 = arith.constant 0 : index
    %143 = vector.load %arg7[%c0_236, %c0_237] : memref<216x128xf32, #tpu.memory_space<vmem>>, vector<216x128xf32>
    %cst_238 = arith.constant dense<0.000000e+00> : vector<256x128xf32>
    %144 = tpu.matmul %122, %143, %cst_238 {dimension_numbers = #tpu.dot_dimension_numbers<[1], [0], [0], [1], [0, 0, 1, 1], [], []>} : vector<256x216xf32>, vector<216x128xf32>, vector<256x128xf32> -> vector<256x128xf32>
    %145 = arith.addf %142, %144 : vector<256x128xf32>
    %c0_239 = arith.constant 0 : index
    %c0_240 = arith.constant 0 : index
    %146 = vector.load %arg10[%c0_239, %c0_240] : memref<256x128xf32, #tpu.memory_space<vmem>>, vector<256x128xf32>
    tpu.vector_store %arg10[%c0_239, %c0_240], %145 {strides = array<i32>} : memref<256x128xf32, #tpu.memory_space<vmem>>, vector<256x128xf32>,
    return
  }
  func.func @transform_0(%arg0: i32) -> (i32, i32) {
    %c0_i32 = arith.constant 0 : i32
    %c0_i32_0 = arith.constant 0 : i32
    return %arg0, %c0_i32 : i32, i32
  }
  func.func @transform_1(%arg0: i32) -> (i32, i32) {
    %c0_i32 = arith.constant 0 : i32
    %c0_i32_0 = arith.constant 0 : i32
    %c0_i32_1 = arith.constant 0 : i32
    return %c0_i32, %c0_i32_0 : i32, i32
  }
  func.func @transform_2(%arg0: i32) -> (i32, i32) {
    %c0_i32 = arith.constant 0 : i32
    %c0_i32_0 = arith.constant 0 : i32
    %c0_i32_1 = arith.constant 0 : i32
    return %c0_i32, %c0_i32_0 : i32, i32
  }
  func.func @transform_3(%arg0: i32) -> (i32, i32) {
    %c0_i32 = arith.constant 0 : i32
    %c0_i32_0 = arith.constant 0 : i32
    %c0_i32_1 = arith.constant 0 : i32
    return %c0_i32, %c0_i32_0 : i32, i32
  }
  func.func @transform_4(%arg0: i32) -> (i32, i32) {
    %c0_i32 = arith.constant 0 : i32
    %c0_i32_0 = arith.constant 0 : i32
    %c0_i32_1 = arith.constant 0 : i32
    return %c0_i32, %c0_i32_0 : i32, i32
  }
  func.func @transform_5(%arg0: i32) -> (i32, i32) {
    %c0_i32 = arith.constant 0 : i32
    %c0_i32_0 = arith.constant 0 : i32
    %c0_i32_1 = arith.constant 0 : i32
    return %c0_i32, %c0_i32_0 : i32, i32
  }
  func.func @transform_6(%arg0: i32) -> (i32, i32) {
    %c0_i32 = arith.constant 0 : i32
    %c0_i32_0 = arith.constant 0 : i32
    %c0_i32_1 = arith.constant 0 : i32
    return %c0_i32, %c0_i32_0 : i32, i32
  }
  func.func @transform_7(%arg0: i32) -> (i32, i32) {
    %c0_i32 = arith.constant 0 : i32
    %c0_i32_0 = arith.constant 0 : i32
    %c0_i32_1 = arith.constant 0 : i32
    return %c0_i32, %c0_i32_0 : i32, i32
  }
  func.func @transform_8(%arg0: i32) -> (i32, i32) {
    %c0_i32 = arith.constant 0 : i32
    %c0_i32_0 = arith.constant 0 : i32
    %c0_i32_1 = arith.constant 0 : i32
    return %c0_i32, %c0_i32_0 : i32, i32
  }
  func.func @transform_9(%arg0: i32) -> (i32, i32) {
    %c0_i32 = arith.constant 0 : i32
    %c0_i32_0 = arith.constant 0 : i32
    return %arg0, %c0_i32 : i32, i32
  }
}

</mosaic_0001>

<llo_original>
// kernel: inception_block_a.1
$region0: #{inception_block_a.1}
  #allocation0 [shape = 'u32[]', space=smem, size = 0x4, offset = 0x4, fixed_abs, tag = 'smem constant byte address 0x4 - core index']
  #allocation1 [shape = 'u32[144,128]{1,0:T(1,128)}', space=vmem, size = 0x12000, scoped, tag = 'internal scratch']
  #allocation2 [shape = 'f32[1,20,26,36]{3,2,1,0:T(8,128)}', space=vmem, size = 0x50000, scoped, tag = 'scratch operand']
  #allocation3 [shape = 'f32[1,18,25,24]{3,2,1,0:T(8,128)}', space=vmem, size = 0x48000, scoped, tag = 'scratch operand']
  %s0 = inlined_call_operand.vmem [shape: f32[512,4], index: 0, kind: input, shape index: {}]
  %s1 = inlined_call_operand.vmem [shape: f32[4,32], index: 1, kind: input, shape index: {}]
  %s2 = inlined_call_operand.vmem [shape: f32[1,32], index: 2, kind: input, shape index: {}]
  %s3 = inlined_call_operand.vmem [shape: f32[400,128], index: 3, kind: input, shape index: {}]
  %s4 = inlined_call_operand.vmem [shape: f32[144,24], index: 4, kind: input, shape index: {}]
  %s5 = inlined_call_operand.vmem [shape: f32[1,24], index: 5, kind: input, shape index: {}]
  %s6 = inlined_call_operand.vmem [shape: f32[216,128], index: 6, kind: input, shape index: {}]
  %s7 = inlined_call_operand.vmem [shape: f32[8,128], index: 7, kind: input, shape index: {}]
  %s8 = inlined_call_operand.vmem [shape: f32[1,128], index: 8, kind: input, shape index: {}]
  %s9 = inlined_call_operand.vmem [shape: f32[512,128], index: 9, kind: output, shape index: {}]
  %s10 = sld [smem:[#allocation0]]
  $region69: #{inception_block_a.1} parent=0
    _
  %s12 = ssub.s32 1, %s10
  %s13 = scalar_select 0, %s12, %s10
  loop: start=0, step=1, limit=4
  $region2: #{inception_block_a.1} parent=0 // loop_pre_header
    _
  $region3: #{inception_block_a.1} parent=0 // loop_header
    %s15 = sphi 0, %s19
    %p16 = scmp.ge.s32.totalorder %s15, 4
    %s25 = sphi 0, %s27
    %s28 = sphi 0, %s25
    %s29 = sphi 0, %s28
    %s45 = sphi 0, %s29
    %s49 = sphi 0, %s49
    %s51 = sphi 0, %s49
    %s52 = sphi 0, %s51
    %s66 = sphi 0, %s52
    %s70 = sphi 0, %s70
    %s72 = sphi 0, %s70
    %s73 = sphi 0, %s72
    %s87 = sphi 0, %s73
    %s91 = sphi 0, %s91
    %s93 = sphi 0, %s91
    %s94 = sphi 0, %s93
    %s108 = sphi 0, %s94
    %s112 = sphi 0, %s112
    %s114 = sphi 0, %s112
    %s115 = sphi 0, %s114
    %s129 = sphi 0, %s115
    %s133 = sphi 0, %s133
    %s135 = sphi 0, %s133
    %s136 = sphi 0, %s135
    %s150 = sphi 0, %s136
    %s154 = sphi 0, %s154
    %s156 = sphi 0, %s154
    %s157 = sphi 0, %s156
    %s171 = sphi 0, %s157
    %s175 = sphi 0, %s175
    %s177 = sphi 0, %s175
    %s178 = sphi 0, %s177
    %s192 = sphi 0, %s178
    %s196 = sphi 0, %s196
    %s198 = sphi 0, %s196
    %s199 = sphi 0, %s198
    %s213 = sphi 0, %s199
    %s219 = sphi 0, %s221
    %s222 = sphi 0, %s219
    %s223 = sphi 0, %s222
    %s239 = sphi 0, %s223
  $region4: #{inception_block_a.1} parent=0 // loop_header_branch
    %18 = sbr.rel (%p16) target = $region8
  $region5: #{inception_block_a.1} parent=0 // loop_body
    %s20 = ssub.s32 %s15, 1
    %s21 = ssub.s32 %s15, 2
    %s22 = sadd.s32 %s15, 1
    %s23 = ssub.s32 %s15, %s22
    %p24 = scmp.eq.s32.totalorder %s23, 0
    %s26 = sadd.s32 %s25, 1
    %s27 = scalar_select %p24, %s25, %s26
    %p30 = pneg %p24
    %p31 = scmp.eq.s32.totalorder %s15, 1
    %p32 = por %p30, %p31
    %p33 = scmp.ne.s32.totalorder %s25, %s28
    %p34 = scmp.eq.s32.totalorder %s15, 0
    %p35 = por %p33, %p34
    %p36 = scmp.ne.s32.totalorder %s25, %s28
    %p37 = scmp.eq.s32.totalorder %s20, 1
    %p38 = por %p36, %p37
    %p39 = scmp.ne.s32.totalorder %s28, %s29
    %p40 = scmp.eq.s32.totalorder %s20, 0
    %p41 = por %p39, %p40
    %p42 = scmp.ne.s32.totalorder %s28, %s29
    %p43 = scmp.eq.s32.totalorder %s21, 1
    %p44 = por %p42, %p43
    %p46 = scmp.ne.s32.totalorder %s29, %s45
    %p47 = scmp.eq.s32.totalorder %s21, 0
    %p48 = por %p46, %p47
    %s50 = sadd.s32 %s49, 1
    %p53 = scmp.eq.s32.totalorder %s15, 1
    %p54 = scmp.ne.s32.totalorder %s49, %s51
    %p55 = scmp.eq.s32.totalorder %s15, 0
    %p56 = por %p54, %p55
    %p57 = scmp.ne.s32.totalorder %s49, %s51
    %p58 = scmp.eq.s32.totalorder %s20, 1
    %p59 = por %p57, %p58
    %p60 = scmp.ne.s32.totalorder %s51, %s52
    %p61 = scmp.eq.s32.totalorder %s20, 0
    %p62 = por %p60, %p61
    %p63 = scmp.ne.s32.totalorder %s51, %s52
    %p64 = scmp.eq.s32.totalorder %s21, 1
    %p65 = por %p63, %p64
    %p67 = scmp.ne.s32.totalorder %s52, %s66
    %p68 = scmp.eq.s32.totalorder %s21, 0
    %p69 = por %p67, %p68
    %s71 = sadd.s32 %s70, 1
    %p74 = scmp.eq.s32.totalorder %s15, 1
    %p75 = scmp.ne.s32.totalorder %s70, %s72
    %p76 = scmp.eq.s32.totalorder %s15, 0
    %p77 = por %p75, %p76
    %p78 = scmp.ne.s32.totalorder %s70, %s72
    %p79 = scmp.eq.s32.totalorder %s20, 1
    %p80 = por %p78, %p79
    %p81 = scmp.ne.s32.totalorder %s72, %s73
    %p82 = scmp.eq.s32.totalorder %s20, 0
    %p83 = por %p81, %p82
    %p84 = scmp.ne.s32.totalorder %s72, %s73
    %p85 = scmp.eq.s32.totalorder %s21, 1
    %p86 = por %p84, %p85
    %p88 = scmp.ne.s32.totalorder %s73, %s87
    %p89 = scmp.eq.s32.totalorder %s21, 0
    %p90 = por %p88, %p89
    %s92 = sadd.s32 %s91, 1
    %p95 = scmp.eq.s32.totalorder %s15, 1
    %p96 = scmp.ne.s32.totalorder %s91, %s93
    %p97 = scmp.eq.s32.totalorder %s15, 0
    %p98 = por %p96, %p97
    %p99 = scmp.ne.s32.totalorder %s91, %s93
    %p100 = scmp.eq.s32.totalorder %s20, 1
    %p101 = por %p99, %p100
    %p102 = scmp.ne.s32.totalorder %s93, %s94
    %p103 = scmp.eq.s32.totalorder %s20, 0
    %p104 = por %p102, %p103
    %p105 = scmp.ne.s32.totalorder %s93, %s94
    %p106 = scmp.eq.s32.totalorder %s21, 1
    %p107 = por %p105, %p106
    %p109 = scmp.ne.s32.totalorder %s94, %s108
    %p110 = scmp.eq.s32.totalorder %s21, 0
    %p111 = por %p109, %p110
    %s113 = sadd.s32 %s112, 1
    %p116 = scmp.eq.s32.totalorder %s15, 1
    %p117 = scmp.ne.s32.totalorder %s112, %s114
    %p118 = scmp.eq.s32.totalorder %s15, 0
    %p119 = por %p117, %p118
    %p120 = scmp.ne.s32.totalorder %s112, %s114
    %p121 = scmp.eq.s32.totalorder %s20, 1
    %p122 = por %p120, %p121
    %p123 = scmp.ne.s32.totalorder %s114, %s115
    %p124 = scmp.eq.s32.totalorder %s20, 0
    %p125 = por %p123, %p124
    %p126 = scmp.ne.s32.totalorder %s114, %s115
    %p127 = scmp.eq.s32.totalorder %s21, 1
    %p128 = por %p126, %p127
    %p130 = scmp.ne.s32.totalorder %s115, %s129
    %p131 = scmp.eq.s32.totalorder %s21, 0
    %p132 = por %p130, %p131
    %s134 = sadd.s32 %s133, 1
    %p137 = scmp.eq.s32.totalorder %s15, 1
    %p138 = scmp.ne.s32.totalorder %s133, %s135
    %p139 = scmp.eq.s32.totalorder %s15, 0
    %p140 = por %p138, %p139
    %p141 = scmp.ne.s32.totalorder %s133, %s135
    %p142 = scmp.eq.s32.totalorder %s20, 1
    %p143 = por %p141, %p142
    %p144 = scmp.ne.s32.totalorder %s135, %s136
    %p145 = scmp.eq.s32.totalorder %s20, 0
    %p146 = por %p144, %p145
    %p147 = scmp.ne.s32.totalorder %s135, %s136
    %p148 = scmp.eq.s32.totalorder %s21, 1
    %p149 = por %p147, %p148
    %p151 = scmp.ne.s32.totalorder %s136, %s150
    %p152 = scmp.eq.s32.totalorder %s21, 0
    %p153 = por %p151, %p152
    %s155 = sadd.s32 %s154, 1
    %p158 = scmp.eq.s32.totalorder %s15, 1
    %p159 = scmp.ne.s32.totalorder %s154, %s156
    %p160 = scmp.eq.s32.totalorder %s15, 0
    %p161 = por %p159, %p160
    %p162 = scmp.ne.s32.totalorder %s154, %s156
    %p163 = scmp.eq.s32.totalorder %s20, 1
    %p164 = por %p162, %p163
    %p165 = scmp.ne.s32.totalorder %s156, %s157
    %p166 = scmp.eq.s32.totalorder %s20, 0
    %p167 = por %p165, %p166
    %p168 = scmp.ne.s32.totalorder %s156, %s157
    %p169 = scmp.eq.s32.totalorder %s21, 1
    %p170 = por %p168, %p169
    %p172 = scmp.ne.s32.totalorder %s157, %s171
    %p173 = scmp.eq.s32.totalorder %s21, 0
    %p174 = por %p172, %p173
    %s176 = sadd.s32 %s175, 1
    %p179 = scmp.eq.s32.totalorder %s15, 1
    %p180 = scmp.ne.s32.totalorder %s175, %s177
    %p181 = scmp.eq.s32.totalorder %s15, 0
    %p182 = por %p180, %p181
    %p183 = scmp.ne.s32.totalorder %s175, %s177
    %p184 = scmp.eq.s32.totalorder %s20, 1
    %p185 = por %p183, %p184
    %p186 = scmp.ne.s32.totalorder %s177, %s178
    %p187 = scmp.eq.s32.totalorder %s20, 0
    %p188 = por %p186, %p187
    %p189 = scmp.ne.s32.totalorder %s177, %s178
    %p190 = scmp.eq.s32.totalorder %s21, 1
    %p191 = por %p189, %p190
    %p193 = scmp.ne.s32.totalorder %s178, %s192
    %p194 = scmp.eq.s32.totalorder %s21, 0
    %p195 = por %p193, %p194
    %s197 = sadd.s32 %s196, 1
    %p200 = scmp.eq.s32.totalorder %s15, 1
    %p201 = scmp.ne.s32.totalorder %s196, %s198
    %p202 = scmp.eq.s32.totalorder %s15, 0
    %p203 = por %p201, %p202
    %p204 = scmp.ne.s32.totalorder %s196, %s198
    %p205 = scmp.eq.s32.totalorder %s20, 1
    %p206 = por %p204, %p205
    %p207 = scmp.ne.s32.totalorder %s198, %s199
    %p208 = scmp.eq.s32.totalorder %s20, 0
    %p209 = por %p207, %p208
    %p210 = scmp.ne.s32.totalorder %s198, %s199
    %p211 = scmp.eq.s32.totalorder %s21, 1
    %p212 = por %p210, %p211
    %p214 = scmp.ne.s32.totalorder %s199, %s213
    %p215 = scmp.eq.s32.totalorder %s21, 0
    %p216 = por %p214, %p215
    %s217 = ssub.s32 %s15, %s22
    %p218 = scmp.eq.s32.totalorder %s217, 0
    %s220 = sadd.s32 %s219, 1
    %s221 = scalar_select %p218, %s219, %s220
    %p224 = pneg %p218
    %p225 = scmp.eq.s32.totalorder %s15, 1
    %p226 = por %p224, %p225
    %p227 = scmp.ne.s32.totalorder %s219, %s222
    %p228 = scmp.eq.s32.totalorder %s15, 0
    %p229 = por %p227, %p228
    %p230 = scmp.ne.s32.totalorder %s219, %s222
    %p231 = scmp.eq.s32.totalorder %s20, 1
    %p232 = por %p230, %p231
    %p233 = scmp.ne.s32.totalorder %s222, %s223
    %p234 = scmp.eq.s32.totalorder %s20, 0
    %p235 = por %p233, %p234
    %p236 = scmp.ne.s32.totalorder %s222, %s223
    %p237 = scmp.eq.s32.totalorder %s21, 1
    %p238 = por %p236, %p237
    %p240 = scmp.ne.s32.totalorder %s223, %s239
    %p241 = scmp.eq.s32.totalorder %s21, 0
    %p242 = por %p240, %p241
    %p243 = scmp.le.s32.totalorder 1, %s15
    %p244 = scmp.lt.s32.totalorder %s15, 3
    %p245 = pnand %p243, %p244
    %p246 = pneg %p245
    // Predicated region
    $region9: #{inception_block_a.1} parent=5 // pred_check
      _
    $region10: #{inception_block_a.1} parent=5 // pred_check_branch
      %248 = sbr.rel (%p245) target = $region12
    $region11: #{inception_block_a.1} parent=5 // pred_region
      %s249 = ssub.s32 %s15, 1
      // Predicated region
      $region13: #{inception_block_a.1} parent=11 // pred_check
        %p250 = pneg %p62
      $region14: #{inception_block_a.1} parent=11 // pred_check_branch
        %252 = sbr.rel (%p250) target = $region16
      $region15: #{inception_block_a.1} parent=11 // pred_region
        _
      $region16: #{inception_block_a.1} parent=11 // pred_fallthru
        _
      // Predicated region
      $region17: #{inception_block_a.1} parent=11 // pred_check
        %p253 = pneg %p83
      $region18: #{inception_block_a.1} parent=11 // pred_check_branch
        %255 = sbr.rel (%p253) target = $region20
      $region19: #{inception_block_a.1} parent=11 // pred_region
        _
      $region20: #{inception_block_a.1} parent=11 // pred_fallthru
        _
      // Predicated region
      $region21: #{inception_block_a.1} parent=11 // pred_check
        %p256 = pneg %p104
      $region22: #{inception_block_a.1} parent=11 // pred_check_branch
        %258 = sbr.rel (%p256) target = $region24
      $region23: #{inception_block_a.1} parent=11 // pred_region
        _
      $region24: #{inception_block_a.1} parent=11 // pred_fallthru
        _
      // Predicated region
      $region25: #{inception_block_a.1} parent=11 // pred_check
        %p259 = pneg %p125
      $region26: #{inception_block_a.1} parent=11 // pred_check_branch
        %261 = sbr.rel (%p259) target = $region28
      $region27: #{inception_block_a.1} parent=11 // pred_region
        _
      $region28: #{inception_block_a.1} parent=11 // pred_fallthru
        _
      // Predicated region
      $region29: #{inception_block_a.1} parent=11 // pred_check
        %p262 = pneg %p146
      $region30: #{inception_block_a.1} parent=11 // pred_check_branch
        %264 = sbr.rel (%p262) target = $region32
      $region31: #{inception_block_a.1} parent=11 // pred_region
        _
      $region32: #{inception_block_a.1} parent=11 // pred_fallthru
        _
      // Predicated region
      $region33: #{inception_block_a.1} parent=11 // pred_check
        %p265 = pneg %p167
      $region34: #{inception_block_a.1} parent=11 // pred_check_branch
        %267 = sbr.rel (%p265) target = $region36
      $region35: #{inception_block_a.1} parent=11 // pred_region
        _
      $region36: #{inception_block_a.1} parent=11 // pred_fallthru
        _
      // Predicated region
      $region37: #{inception_block_a.1} parent=11 // pred_check
        %p268 = pneg %p188
      $region38: #{inception_block_a.1} parent=11 // pred_check_branch
        %270 = sbr.rel (%p268) target = $region40
      $region39: #{inception_block_a.1} parent=11 // pred_region
        _
      $region40: #{inception_block_a.1} parent=11 // pred_fallthru
        _
      // Predicated region
      $region41: #{inception_block_a.1} parent=11 // pred_check
        %p271 = pneg %p209
      $region42: #{inception_block_a.1} parent=11 // pred_check_branch
        %273 = sbr.rel (%p271) target = $region44
      $region43: #{inception_block_a.1} parent=11 // pred_region
        _
      $region44: #{inception_block_a.1} parent=11 // pred_fallthru
        _
    $region12: #{inception_block_a.1} parent=5 // pred_fallthru
      _
    %p274 = scmp.lt.s32.totalorder %s15, 2
    // Predicated region
    $region45: #{inception_block_a.1} parent=5 // pred_check
      %p275 = pneg %p274
    $region46: #{inception_block_a.1} parent=5 // pred_check_branch
      %277 = sbr.rel (%p275) target = $region48
    $region47: #{inception_block_a.1} parent=5 // pred_region
      // Predicated region
      $region49: #{inception_block_a.1} parent=47 // pred_check
        %p278 = pneg %p35
      $region50: #{inception_block_a.1} parent=47 // pred_check_branch
        %280 = sbr.rel (%p278) target = $region52
      $region51: #{inception_block_a.1} parent=47 // pred_region
        %s281 = smul.u32 32, %s15
        %p282 = scmp.lt.s32.totalorder %s281, 63
        %s283 = scalar_select %p282, %s281, 63
        %s284 = smul.addr %s283, 8
        %s285 = scalar_lea.vmem %s0, %s284
        %s286 = smul.u32 32, %s15
      $region52: #{inception_block_a.1} parent=47 // pred_fallthru
        _
    $region48: #{inception_block_a.1} parent=5 // pred_fallthru
      _
    %p287 = scmp.le.s32.totalorder 1, %s15
    %p288 = scmp.lt.s32.totalorder %s15, 3
    %p289 = pnand %p287, %p288
    %p290 = pneg %p289
    // Predicated region
    $region53: #{inception_block_a.1} parent=5 // pred_check
      _
    $region54: #{inception_block_a.1} parent=5 // pred_check_branch
      %292 = sbr.rel (%p289) target = $region56
    $region55: #{inception_block_a.1} parent=5 // pred_region
      %s293 = ssub.s32 %s15, 1
      %s294 = smul.u32 32, %s20
      %p295 = scmp.lt.s32.totalorder %s294, 63
      %s296 = scalar_select %p295, %s294, 63
      %s297 = smul.addr %s296, 8
      %s298 = scalar_lea.vmem %s0, %s297
      %p299 = pneg %p41
      %p300 = pneg %p38
      %p301 = pneg %p62
      %p302 = pneg %p59
      %p303 = pneg %p83
      %p304 = pneg %p80
      %p305 = pneg %p104
      %p306 = pneg %p101
      %p307 = pneg %p125
      %p308 = pneg %p122
      %p309 = pneg %p146
      %p310 = pneg %p143
      %p311 = pneg %p167
      %p312 = pneg %p164
      %p313 = pneg %p188
      %p314 = pneg %p185
      %p315 = pneg %p209
      %p316 = pneg %p206
      %p317 = pneg %p235
      %p318 = pneg %p232
      %s319 = smul.u32 32, %s20
      %p320 = scmp.lt.s32.totalorder %s319, 63
      %s321 = scalar_select %p320, %s319, 63
      %s322 = smul.addr %s321, 8
      %s323 = scalar_lea.vmem %s9, %s322
      %s324 = smul.u32 32, %s20
      %p325 = scmp.lt.s32.totalorder %s324, 63
      %s326 = scalar_select %p325, %s324, 63
      %s327 = smul.addr %s326, 8
      %s328 = scalar_lea.vmem %s0, %s327
      %s329 = smul.u32 32, %s20
      %s330 = smul.u32 32, %s20
      %p331 = scmp.lt.s32.totalorder %s330, 63
      %s332 = scalar_select %p331, %s330, 63
      %s333 = smul.addr %s332, 8
      %s334 = scalar_lea.vmem %s9, %s333
      %s335 = smul.u32 32, %s20
      %v336 = vld [vmem:[%s328] sm:$0xff]
      %v337 = vld [vmem:[%s328 + $0x8] sm:$0xff]
      %v338 = vld [vmem:[%s328 + $0x10] sm:$0xff]
      %v339 = vld [vmem:[%s328 + $0x18] sm:$0xff]
      %v340 = vld [vmem:[%s328 + $0x20] sm:$0xff]
      %v341 = vld [vmem:[%s328 + $0x28] sm:$0xff]
      %v342 = vld [vmem:[%s328 + $0x30] sm:$0xff]
      %v343 = vld [vmem:[%s328 + $0x38] sm:$0xff]
      %v344 = vld [vmem:[%s328 + $0x40] sm:$0xff]
      %v345 = vld [vmem:[%s328 + $0x48] sm:$0xff]
      %v346 = vld [vmem:[%s328 + $0x50] sm:$0xff]
      %v347 = vld [vmem:[%s328 + $0x58] sm:$0xff]
      %v348 = vld [vmem:[%s328 + $0x60] sm:$0xff]
      %v349 = vld [vmem:[%s328 + $0x68] sm:$0xff]
      %v350 = vld [vmem:[%s328 + $0x70] sm:$0xff]
      %v351 = vld [vmem:[%s328 + $0x78] sm:$0xff]
      %v352 = vld [vmem:[%s328 + $0x80] sm:$0xff]
      %v353 = vld [vmem:[%s328 + $0x88] sm:$0xff]
      %v354 = vld [vmem:[%s328 + $0x90] sm:$0xff]
      %v355 = vld [vmem:[%s328 + $0x98] sm:$0xff]
      %v356 = vld [vmem:[%s328 + $0xa0] sm:$0xff]
      %v357 = vld [vmem:[%s328 + $0xa8] sm:$0xff]
      %v358 = vld [vmem:[%s328 + $0xb0] sm:$0xff]
      %v359 = vld [vmem:[%s328 + $0xb8] sm:$0xff]
      %v360 = vld [vmem:[%s328 + $0xc0] sm:$0xff]
      %v361 = vld [vmem:[%s328 + $0xc8] sm:$0xff]
      %v362 = vld [vmem:[%s328 + $0xd0] sm:$0xff]
      %v363 = vld [vmem:[%s328 + $0xd8] sm:$0xff]
      %v364 = vld [vmem:[%s328 + $0xe0] sm:$0xff]
      %v365 = vld [vmem:[%s328 + $0xe8] sm:$0xff]
      %v366 = vld [vmem:[%s328 + $0xf0] sm:$0xff]
      %v367 = vld [vmem:[%s328 + $0xf8] sm:$0xff]
      %vm368 = vcmask 293888
      %369 = vst.msk [vmem:[#allocation2] sm:$0xff] %vm368, 0.0
      %370 = vst.msk [vmem:[#allocation2 + $0x8] sm:$0xff] %vm368, 0.0
      %371 = vst.msk [vmem:[#allocation2 + $0x10] sm:$0xff] %vm368, 0.0
      %vm372 = vcmask 287744
      %373 = vst.msk [vmem:[#allocation2 + $0x18] sm:$0x3] %vm372, 0.0
      %374 = vst.msk [vmem:[#allocation2 + $0x20] sm:$0xff] %vm368, 0.0
      %375 = vst.msk [vmem:[#allocation2 + $0x28] sm:$0xff] %vm368, 0.0
      %376 = vst.msk [vmem:[#allocation2 + $0x30] sm:$0xff] %vm368, 0.0
      %377 = vst.msk [vmem:[#allocation2 + $0x38] sm:$0x3] %vm372, 0.0
      %s378 = scalar_lea.vmem [#allocation2], 576
      %379 = vst.msk [vmem:[%s378] sm:$0xff] %vm368, 0.0
      %380 = vst.msk [vmem:[%s378 + $0x8] sm:$0xff] %vm368, 0.0
      %381 = vst.msk [vmem:[%s378 + $0x10] sm:$0xff] %vm368, 0.0
      %382 = vst.msk [vmem:[%s378 + $0x18] sm:$0x3] %vm372, 0.0
      %383 = vst.msk [vmem:[%s378 + $0x20] sm:$0xff] %vm368, 0.0
      %384 = vst.msk [vmem:[%s378 + $0x28] sm:$0xff] %vm368, 0.0
      %385 = vst.msk [vmem:[%s378 + $0x30] sm:$0xff] %vm368, 0.0
      %386 = vst.msk [vmem:[%s378 + $0x38] sm:$0x3] %vm372, 0.0
      %s387 = scalar_lea.vmem [#allocation2], 64
      %388 = vst.msk [vmem:[%s387] sm:$0xff] %vm368, 0.0
      %389 = vst.msk [vmem:[%s387 + $0x20] sm:$0xff] %vm368, 0.0
      %390 = vst.msk [vmem:[%s387 + $0x40] sm:$0xff] %vm368, 0.0
      %391 = vst.msk [vmem:[%s387 + $0x60] sm:$0xff] %vm368, 0.0
      %392 = vst.msk [vmem:[%s387 + $0x80] sm:$0xff] %vm368, 0.0
      %393 = vst.msk [vmem:[%s387 + $0xa0] sm:$0xff] %vm368, 0.0
      %394 = vst.msk [vmem:[%s387 + $0xc0] sm:$0xff] %vm368, 0.0
      %395 = vst.msk [vmem:[%s387 + $0xe0] sm:$0xff] %vm368, 0.0
      %396 = vst.msk [vmem:[%s387 + $0x100] sm:$0xff] %vm368, 0.0
      %397 = vst.msk [vmem:[%s387 + $0x120] sm:$0xff] %vm368, 0.0
      %398 = vst.msk [vmem:[%s387 + $0x140] sm:$0xff] %vm368, 0.0
      %399 = vst.msk [vmem:[%s387 + $0x160] sm:$0xff] %vm368, 0.0
      %400 = vst.msk [vmem:[%s387 + $0x180] sm:$0xff] %vm368, 0.0
      %401 = vst.msk [vmem:[%s387 + $0x1a0] sm:$0xff] %vm368, 0.0
      %402 = vst.msk [vmem:[%s387 + $0x1c0] sm:$0xff] %vm368, 0.0
      %403 = vst.msk [vmem:[%s387 + $0x1e0] sm:$0xff] %vm368, 0.0
      %404 = vst.msk [vmem:[%s387 + $0x18] sm:$0x3] %vm372, 0.0
      %405 = vst.msk [vmem:[%s387 + $0x38] sm:$0x3] %vm372, 0.0
      %406 = vst.msk [vmem:[%s387 + $0x58] sm:$0x3] %vm372, 0.0
      %407 = vst.msk [vmem:[%s387 + $0x78] sm:$0x3] %vm372, 0.0
      %408 = vst.msk [vmem:[%s387 + $0x98] sm:$0x3] %vm372, 0.0
      %409 = vst.msk [vmem:[%s387 + $0xb8] sm:$0x3] %vm372, 0.0
      %410 = vst.msk [vmem:[%s387 + $0xd8] sm:$0x3] %vm372, 0.0
      %411 = vst.msk [vmem:[%s387 + $0xf8] sm:$0x3] %vm372, 0.0
      %412 = vst.msk [vmem:[%s387 + $0x118] sm:$0x3] %vm372, 0.0
      %413 = vst.msk [vmem:[%s387 + $0x138] sm:$0x3] %vm372, 0.0
      %414 = vst.msk [vmem:[%s387 + $0x158] sm:$0x3] %vm372, 0.0
      %415 = vst.msk [vmem:[%s387 + $0x178] sm:$0x3] %vm372, 0.0
      %416 = vst.msk [vmem:[%s387 + $0x198] sm:$0x3] %vm372, 0.0
      %417 = vst.msk [vmem:[%s387 + $0x1b8] sm:$0x3] %vm372, 0.0
      %418 = vst.msk [vmem:[%s387 + $0x1d8] sm:$0x3] %vm372, 0.0
      %419 = vst.msk [vmem:[%s387 + $0x1f8] sm:$0x3] %vm372, 0.0
      %vm420 = vcmask 195584
      %421 = vst.msk [vmem:[#allocation3] sm:$0xff] %vm420, 0.0
      %422 = vst.msk [vmem:[#allocation3 + $0x8] sm:$0xff] %vm420, 0.0
      %423 = vst.msk [vmem:[#allocation3 + $0x10] sm:$0xff] %vm420, 0.0
      %vm424 = vcmask 188416
      %425 = vst.msk [vmem:[#allocation3 + $0x18] sm:$0x1] %vm424, 0.0
      %s426 = scalar_lea.vmem [#allocation3], 544
      %427 = vst.msk [vmem:[%s426] sm:$0xff] %vm420, 0.0
      %428 = vst.msk [vmem:[%s426 + $0x8] sm:$0xff] %vm420, 0.0
      %429 = vst.msk [vmem:[%s426 + $0x10] sm:$0xff] %vm420, 0.0
      %430 = vst.msk [vmem:[%s426 + $0x18] sm:$0x1] %vm424, 0.0
      %s431 = scalar_lea.vmem [#allocation3], 32
      %432 = vst.msk [vmem:[%s431] sm:$0xff] %vm420, 0.0
      %433 = vst.msk [vmem:[%s431 + $0x20] sm:$0xff] %vm420, 0.0
      %434 = vst.msk [vmem:[%s431 + $0x40] sm:$0xff] %vm420, 0.0
      %435 = vst.msk [vmem:[%s431 + $0x60] sm:$0xff] %vm420, 0.0
      %436 = vst.msk [vmem:[%s431 + $0x80] sm:$0xff] %vm420, 0.0
      %437 = vst.msk [vmem:[%s431 + $0xa0] sm:$0xff] %vm420, 0.0
      %438 = vst.msk [vmem:[%s431 + $0xc0] sm:$0xff] %vm420, 0.0
      %439 = vst.msk [vmem:[%s431 + $0xe0] sm:$0xff] %vm420, 0.0
      %440 = vst.msk [vmem:[%s431 + $0x100] sm:$0xff] %vm420, 0.0
      %441 = vst.msk [vmem:[%s431 + $0x120] sm:$0xff] %vm420, 0.0
      %442 = vst.msk [vmem:[%s431 + $0x140] sm:$0xff] %vm420, 0.0
      %443 = vst.msk [vmem:[%s431 + $0x160] sm:$0xff] %vm420, 0.0
      %444 = vst.msk [vmem:[%s431 + $0x180] sm:$0xff] %vm420, 0.0
      %445 = vst.msk [vmem:[%s431 + $0x1a0] sm:$0xff] %vm420, 0.0
      %446 = vst.msk [vmem:[%s431 + $0x1c0] sm:$0xff] %vm420, 0.0
      %447 = vst.msk [vmem:[%s431 + $0x1e0] sm:$0xff] %vm420, 0.0
      %448 = vst.msk [vmem:[%s431 + $0x18] sm:$0x1] %vm424, 0.0
      %449 = vst.msk [vmem:[%s431 + $0x38] sm:$0x1] %vm424, 0.0
      %450 = vst.msk [vmem:[%s431 + $0x58] sm:$0x1] %vm424, 0.0
      %451 = vst.msk [vmem:[%s431 + $0x78] sm:$0x1] %vm424, 0.0
      %452 = vst.msk [vmem:[%s431 + $0x98] sm:$0x1] %vm424, 0.0
      %453 = vst.msk [vmem:[%s431 + $0xb8] sm:$0x1] %vm424, 0.0
      %454 = vst.msk [vmem:[%s431 + $0xd8] sm:$0x1] %vm424, 0.0
      %455 = vst.msk [vmem:[%s431 + $0xf8] sm:$0x1] %vm424, 0.0
      %456 = vst.msk [vmem:[%s431 + $0x118] sm:$0x1] %vm424, 0.0
      %457 = vst.msk [vmem:[%s431 + $0x138] sm:$0x1] %vm424, 0.0
      %458 = vst.msk [vmem:[%s431 + $0x158] sm:$0x1] %vm424, 0.0
      %459 = vst.msk [vmem:[%s431 + $0x178] sm:$0x1] %vm424, 0.0
      %460 = vst.msk [vmem:[%s431 + $0x198] sm:$0x1] %vm424, 0.0
      %461 = vst.msk [vmem:[%s431 + $0x1b8] sm:$0x1] %vm424, 0.0
      %462 = vst.msk [vmem:[%s431 + $0x1d8] sm:$0x1] %vm424, 0.0
      %463 = vst.msk [vmem:[%s431 + $0x1f8] sm:$0x1] %vm424, 0.0
      %v464 = vld [vmem:[%s1] sm:$0xf]
      %v465 = vld [vmem:[%s2] sm:$0x1]
      %v467 = vlaneseq
      %v468 = vshrl.u32 %v467, 7
      %v469 = vsub.s32 0, %v468
      %v470 = vrot.slane %v465, %v469
      %vm472 = vcmask 31744
      %v474 = vsel %vm472, %v336, 0
      %v477 = vsel %vm472, %v337, 0
      %v480 = vsel %vm472, %v338, 0
      %v483 = vsel %vm472, %v339, 0
      %v486 = vsel %vm472, %v340, 0
      %v489 = vsel %vm472, %v341, 0
      %v492 = vsel %vm472, %v342, 0
      %v495 = vsel %vm472, %v343, 0
      %v498 = vsel %vm472, %v344, 0
      %v501 = vsel %vm472, %v345, 0
      %v504 = vsel %vm472, %v346, 0
      %v507 = vsel %vm472, %v347, 0
      %v510 = vsel %vm472, %v348, 0
      %v513 = vsel %vm472, %v349, 0
      %v516 = vsel %vm472, %v350, 0
      %v519 = vsel %vm472, %v351, 0
      %v522 = vsel %vm472, %v352, 0
      %v525 = vsel %vm472, %v353, 0
      %v528 = vsel %vm472, %v354, 0
      %v531 = vsel %vm472, %v355, 0
      %v534 = vsel %vm472, %v356, 0
      %v537 = vsel %vm472, %v357, 0
      %v540 = vsel %vm472, %v358, 0
      %v543 = vsel %vm472, %v359, 0
      %v546 = vsel %vm472, %v360, 0
      %v549 = vsel %vm472, %v361, 0
      %v552 = vsel %vm472, %v362, 0
      %v555 = vsel %vm472, %v363, 0
      %v558 = vsel %vm472, %v364, 0
      %v561 = vsel %vm472, %v365, 0
      %v564 = vsel %vm472, %v366, 0
      %v567 = vsel %vm472, %v367, 0
      %vm569 = vcmask 1043456
      %v571 = vsel %vm569, %v464, 0
      %573 = vmatprep.subr.mxu0 0.0
      %574 = vmatpush1.msra.mxu0 %v571
      %575 = vmatprep.subr.mxu0 0.0
      %576 = vmatpush1.msra.mxu0 0.0
      %577 = vmatprep.subr.mxu0 0.0
      %578 = vmatpush1.msra.mxu0 0.0
      %579 = vmatprep.subr.mxu0 0.0
      %580 = vmatpush1.msra.mxu0 0.0
      %581 = vmatprep.subr.mxu0 0.0
      %582 = vmatpush1.msra.mxu0 0.0
      %583 = vmatprep.subr.mxu0 0.0
      %584 = vmatpush1.msra.mxu0 0.0
      %585 = vmatprep.subr.mxu0 0.0
      %586 = vmatpush1.msra.mxu0 0.0
      %587 = vmatprep.subr.mxu0 0.0
      %588 = vmatpush1.msra.mxu0 0.0
      %589 = vmatprep.subr.mxu0 0.0
      %590 = vmatpush1.msra.mxu0 0.0
      %591 = vmatprep.subr.mxu0 0.0
      %592 = vmatpush1.msra.mxu0 0.0
      %593 = vmatprep.subr.mxu0 0.0
      %594 = vmatpush1.msra.mxu0 0.0
      %595 = vmatprep.subr.mxu0 0.0
      %596 = vmatpush1.msra.mxu0 0.0
      %597 = vmatprep.subr.mxu0 0.0
      %598 = vmatpush1.msra.mxu0 0.0
      %599 = vmatprep.subr.mxu0 0.0
      %600 = vmatpush1.msra.mxu0 0.0
      %601 = vmatprep.subr.mxu0 0.0
      %602 = vmatpush1.msra.mxu0 0.0
      %603 = vmatprep.subr.mxu0 0.0
      %604 = vmatpush1.msra.mxu0 0.0
      %605 = vmatprep.subr.mxu0 0.0
      %606 = vmatpush1.msra.mxu0 0.0
      %607 = vmatprep.subr.mxu0 0.0
      %608 = vmatpush1.msra.mxu0 0.0
      %609 = vmatprep.subr.mxu0 0.0
      %610 = vmatpush1.msra.mxu0 0.0
      %611 = vmatprep.subr.mxu0 0.0
      %612 = vmatpush1.msra.mxu0 0.0
      %613 = vmatprep.subr.mxu0 0.0
      %614 = vmatpush1.msra.mxu0 0.0
      %615 = vmatprep.subr.mxu0 0.0
      %616 = vmatpush1.msra.mxu0 0.0
      %617 = vmatprep.subr.mxu0 0.0
      %618 = vmatpush1.msra.mxu0 0.0
      %619 = vmatprep.subr.mxu0 0.0
      %620 = vmatpush1.msra.mxu0 0.0
      %621 = vmatprep.subr.mxu0 0.0
      %622 = vmatpush1.msra.mxu0 0.0
      %623 = vmatprep.subr.mxu0 0.0
      %624 = vmatpush1.msra.mxu0 0.0
      %625 = vmatprep.subr.mxu0 0.0
      %626 = vmatpush1.msra.mxu0 0.0
      %627 = vmatprep.subr.mxu0 0.0
      %628 = vmatpush1.msra.mxu0 0.0
      %629 = vmatprep.subr.mxu0 0.0
      %630 = vmatpush1.msra.mxu0 0.0
      %631 = vmatprep.subr.mxu0 0.0
      %632 = vmatpush1.msra.mxu0 0.0
      %633 = vmatprep.subr.mxu0 0.0
      %634 = vmatpush1.msra.mxu0 0.0
      %635 = vmatprep.subr.mxu0 0.0
      %636 = vmatpush1.msra.mxu0 0.0
      %637 = vmatprep.mubr.f32.mxu0 0.0
      %638 = vmatmul.mubr.f32.gmra.mrb[0].mxu0 %v474
      %v639 = vpop.f32.mrb[0].mxu0
      %v640 = vadd.f32 %v470, %v639
      %v641 = vpop.f32.mrb[0].mxu0
      %642 = vmatprep.mubr.f32.mxu0 0.0
      %643 = vmatmul.mubr.f32.gmra.mrb[0].mxu0 %v477
      %v644 = vpop.f32.mrb[0].mxu0
      %v645 = vadd.f32 %v470, %v644
      %v646 = vpop.f32.mrb[0].mxu0
      %647 = vmatprep.mubr.f32.mxu0 0.0
      %648 = vmatmul.mubr.f32.gmra.mrb[0].mxu0 %v480
      %v649 = vpop.f32.mrb[0].mxu0
      %v650 = vadd.f32 %v470, %v649
      %v651 = vpop.f32.mrb[0].mxu0
      %652 = vmatprep.mubr.f32.mxu0 0.0
      %653 = vmatmul.mubr.f32.gmra.mrb[0].mxu0 %v483
      %v654 = vpop.f32.mrb[0].mxu0
      %v655 = vadd.f32 %v470, %v654
      %v656 = vpop.f32.mrb[0].mxu0
      %657 = vmatprep.mubr.f32.mxu0 0.0
      %658 = vmatmul.mubr.f32.gmra.mrb[0].mxu0 %v486
      %v659 = vpop.f32.mrb[0].mxu0
      %v660 = vadd.f32 %v470, %v659
      %v661 = vpop.f32.mrb[0].mxu0
      %662 = vmatprep.mubr.f32.mxu0 0.0
      %663 = vmatmul.mubr.f32.gmra.mrb[0].mxu0 %v489
      %v664 = vpop.f32.mrb[0].mxu0
      %v665 = vadd.f32 %v470, %v664
      %v666 = vpop.f32.mrb[0].mxu0
      %667 = vmatprep.mubr.f32.mxu0 0.0
      %668 = vmatmul.mubr.f32.gmra.mrb[0].mxu0 %v492
      %v669 = vpop.f32.mrb[0].mxu0
      %v670 = vadd.f32 %v470, %v669
      %v671 = vpop.f32.mrb[0].mxu0
      %672 = vmatprep.mubr.f32.mxu0 0.0
      %673 = vmatmul.mubr.f32.gmra.mrb[0].mxu0 %v495
      %v674 = vpop.f32.mrb[0].mxu0
      %v675 = vadd.f32 %v470, %v674
      %v676 = vpop.f32.mrb[0].mxu0
      %677 = vmatprep.mubr.f32.mxu0 0.0
      %678 = vmatmul.mubr.f32.gmra.mrb[0].mxu0 %v498
      %v679 = vpop.f32.mrb[0].mxu0
      %v680 = vadd.f32 %v470, %v679
      %v681 = vpop.f32.mrb[0].mxu0
      %682 = vmatprep.mubr.f32.mxu0 0.0
      %683 = vmatmul.mubr.f32.gmra.mrb[0].mxu0 %v501
      %v684 = vpop.f32.mrb[0].mxu0
      %v685 = vadd.f32 %v470, %v684
      %v686 = vpop.f32.mrb[0].mxu0
      %687 = vmatprep.mubr.f32.mxu0 0.0
      %688 = vmatmul.mubr.f32.gmra.mrb[0].mxu0 %v504
      %v689 = vpop.f32.mrb[0].mxu0
      %v690 = vadd.f32 %v470, %v689
      %v691 = vpop.f32.mrb[0].mxu0
      %692 = vmatprep.mubr.f32.mxu0 0.0
      %693 = vmatmul.mubr.f32.gmra.mrb[0].mxu0 %v507
      %v694 = vpop.f32.mrb[0].mxu0
      %v695 = vadd.f32 %v470, %v694
      %v696 = vpop.f32.mrb[0].mxu0
      %697 = vmatprep.mubr.f32.mxu0 0.0
      %698 = vmatmul.mubr.f32.gmra.mrb[0].mxu0 %v510
      %v699 = vpop.f32.mrb[0].mxu0
      %v700 = vadd.f32 %v470, %v699
      %v701 = vpop.f32.mrb[0].mxu0
      %702 = vmatprep.mubr.f32.mxu0 0.0
      %703 = vmatmul.mubr.f32.gmra.mrb[0].mxu0 %v513
      %v704 = vpop.f32.mrb[0].mxu0
      %v705 = vadd.f32 %v470, %v704
      %v706 = vpop.f32.mrb[0].mxu0
      %707 = vmatprep.mubr.f32.mxu0 0.0
      %708 = vmatmul.mubr.f32.gmra.mrb[0].mxu0 %v516
      %v709 = vpop.f32.mrb[0].mxu0
      %v710 = vadd.f32 %v470, %v709
      %v711 = vpop.f32.mrb[0].mxu0
      %712 = vmatprep.mubr.f32.mxu0 0.0
      %713 = vmatmul.mubr.f32.gmra.mrb[0].mxu0 %v519
      %v714 = vpop.f32.mrb[0].mxu0
      %v715 = vadd.f32 %v470, %v714
      %v716 = vpop.f32.mrb[0].mxu0
      %717 = vmatprep.mubr.f32.mxu0 0.0
      %718 = vmatmul.mubr.f32.gmra.mrb[0].mxu0 %v522
      %v719 = vpop.f32.mrb[0].mxu0
      %v720 = vadd.f32 %v470, %v719
      %v721 = vpop.f32.mrb[0].mxu0
      %722 = vmatprep.mubr.f32.mxu0 0.0
      %723 = vmatmul.mubr.f32.gmra.mrb[0].mxu0 %v525
      %v724 = vpop.f32.mrb[0].mxu0
      %v725 = vadd.f32 %v470, %v724
      %v726 = vpop.f32.mrb[0].mxu0
      %727 = vmatprep.mubr.f32.mxu0 0.0
      %728 = vmatmul.mubr.f32.gmra.mrb[0].mxu0 %v528
      %v729 = vpop.f32.mrb[0].mxu0
      %v730 = vadd.f32 %v470, %v729
      %v731 = vpop.f32.mrb[0].mxu0
      %732 = vmatprep.mubr.f32.mxu0 0.0
      %733 = vmatmul.mubr.f32.gmra.mrb[0].mxu0 %v531
      %v734 = vpop.f32.mrb[0].mxu0
      %v735 = vadd.f32 %v470, %v734
      %v736 = vpop.f32.mrb[0].mxu0
      %737 = vmatprep.mubr.f32.mxu0 0.0
      %738 = vmatmul.mubr.f32.gmra.mrb[0].mxu0 %v534
      %v739 = vpop.f32.mrb[0].mxu0
      %v740 = vadd.f32 %v470, %v739
      %v741 = vpop.f32.mrb[0].mxu0
      %742 = vmatprep.mubr.f32.mxu0 0.0
      %743 = vmatmul.mubr.f32.gmra.mrb[0].mxu0 %v537
      %v744 = vpop.f32.mrb[0].mxu0
      %v745 = vadd.f32 %v470, %v744
      %v746 = vpop.f32.mrb[0].mxu0
      %747 = vmatprep.mubr.f32.mxu0 0.0
      %748 = vmatmul.mubr.f32.gmra.mrb[0].mxu0 %v540
      %v749 = vpop.f32.mrb[0].mxu0
      %v750 = vadd.f32 %v470, %v749
      %v751 = vpop.f32.mrb[0].mxu0
      %752 = vmatprep.mubr.f32.mxu0 0.0
      %753 = vmatmul.mubr.f32.gmra.mrb[0].mxu0 %v543
      %v754 = vpop.f32.mrb[0].mxu0
      %v755 = vadd.f32 %v470, %v754
      %v756 = vpop.f32.mrb[0].mxu0
      %757 = vmatprep.mubr.f32.mxu0 0.0
      %758 = vmatmul.mubr.f32.gmra.mrb[0].mxu0 %v546
      %v759 = vpop.f32.mrb[0].mxu0
      %v760 = vadd.f32 %v470, %v759
      %v761 = vpop.f32.mrb[0].mxu0
      %762 = vmatprep.mubr.f32.mxu0 0.0
      %763 = vmatmul.mubr.f32.gmra.mrb[0].mxu0 %v549
      %v764 = vpop.f32.mrb[0].mxu0
      %v765 = vadd.f32 %v470, %v764
      %v766 = vpop.f32.mrb[0].mxu0
      %767 = vmatprep.mubr.f32.mxu0 0.0
      %768 = vmatmul.mubr.f32.gmra.mrb[0].mxu0 %v552
      %v769 = vpop.f32.mrb[0].mxu0
      %v770 = vadd.f32 %v470, %v769
      %v771 = vpop.f32.mrb[0].mxu0
      %772 = vmatprep.mubr.f32.mxu0 0.0
      %773 = vmatmul.mubr.f32.gmra.mrb[0].mxu0 %v555
      %v774 = vpop.f32.mrb[0].mxu0
      %v775 = vadd.f32 %v470, %v774
      %v776 = vpop.f32.mrb[0].mxu0
      %777 = vmatprep.mubr.f32.mxu0 0.0
      %778 = vmatmul.mubr.f32.gmra.mrb[0].mxu0 %v558
      %v779 = vpop.f32.mrb[0].mxu0
      %v780 = vadd.f32 %v470, %v779
      %v781 = vpop.f32.mrb[0].mxu0
      %782 = vmatprep.mubr.f32.mxu0 0.0
      %783 = vmatmul.mubr.f32.gmra.mrb[0].mxu0 %v561
      %v784 = vpop.f32.mrb[0].mxu0
      %v785 = vadd.f32 %v470, %v784
      %v786 = vpop.f32.mrb[0].mxu0
      %787 = vmatprep.mubr.f32.mxu0 0.0
      %788 = vmatmul.mubr.f32.gmra.mrb[0].mxu0 %v564
      %v789 = vpop.f32.mrb[0].mxu0
      %v790 = vadd.f32 %v470, %v789
      %v791 = vpop.f32.mrb[0].mxu0
      %792 = vmatprep.mubr.f32.mxu0 0.0
      %793 = vmatmul.mubr.f32.gmra.mrb[0].mxu0 %v567
      %v794 = vpop.f32.mrb[0].mxu0
      %v795 = vadd.f32 %v470, %v794
      %v796 = vpop.f32.mrb[0].mxu0
      %797 = vdwg.mxu0
      %798 = vrot.lane.b32.xlu0 %v336, 32
      %v799 = vpop.permute.xlu0 %798
      %800 = vrot.lane.b32.xlu0 %v337, 32
      %v801 = vpop.permute.xlu0 %800
      %802 = vrot.lane.b32.xlu0 %v338, 32
      %v803 = vpop.permute.xlu0 %802
      %804 = vrot.lane.b32.xlu0 %v339, 32
      %v805 = vpop.permute.xlu0 %804
      %806 = vrot.lane.b32.xlu0 %v340, 32
      %v807 = vpop.permute.xlu0 %806
      %808 = vrot.lane.b32.xlu0 %v341, 32
      %v809 = vpop.permute.xlu0 %808
      %810 = vrot.lane.b32.xlu0 %v342, 32
      %v811 = vpop.permute.xlu0 %810
      %812 = vrot.lane.b32.xlu0 %v343, 32
      %v813 = vpop.permute.xlu0 %812
      %814 = vrot.lane.b32.xlu0 %v344, 32
      %v815 = vpop.permute.xlu0 %814
      %816 = vrot.lane.b32.xlu0 %v345, 32
      %v817 = vpop.permute.xlu0 %816
      %818 = vrot.lane.b32.xlu0 %v346, 32
      %v819 = vpop.permute.xlu0 %818
      %820 = vrot.lane.b32.xlu0 %v347, 32
      %v821 = vpop.permute.xlu0 %820
      %822 = vrot.lane.b32.xlu0 %v348, 32
      %v823 = vpop.permute.xlu0 %822
      %824 = vrot.lane.b32.xlu0 %v349, 32
      %v825 = vpop.permute.xlu0 %824
      %826 = vrot.lane.b32.xlu0 %v350, 32
      %v827 = vpop.permute.xlu0 %826
      %828 = vrot.lane.b32.xlu0 %v351, 32
      %v829 = vpop.permute.xlu0 %828
      %830 = vrot.lane.b32.xlu0 %v352, 32
      %v831 = vpop.permute.xlu0 %830
      %832 = vrot.lane.b32.xlu0 %v353, 32
      %v833 = vpop.permute.xlu0 %832
      %834 = vrot.lane.b32.xlu0 %v354, 32
      %v835 = vpop.permute.xlu0 %834
      %836 = vrot.lane.b32.xlu0 %v355, 32
      %v837 = vpop.permute.xlu0 %836
      %838 = vrot.lane.b32.xlu0 %v356, 32
      %v839 = vpop.permute.xlu0 %838
      %840 = vrot.lane.b32.xlu0 %v357, 32
      %v841 = vpop.permute.xlu0 %840
      %842 = vrot.lane.b32.xlu0 %v358, 32
      %v843 = vpop.permute.xlu0 %842
      %844 = vrot.lane.b32.xlu0 %v359, 32
      %v845 = vpop.permute.xlu0 %844
      %846 = vrot.lane.b32.xlu0 %v360, 32
      %v847 = vpop.permute.xlu0 %846
      %848 = vrot.lane.b32.xlu0 %v361, 32
      %v849 = vpop.permute.xlu0 %848
      %850 = vrot.lane.b32.xlu0 %v362, 32
      %v851 = vpop.permute.xlu0 %850
      %852 = vrot.lane.b32.xlu0 %v363, 32
      %v853 = vpop.permute.xlu0 %852
      %854 = vrot.lane.b32.xlu0 %v364, 32
      %v855 = vpop.permute.xlu0 %854
      %856 = vrot.lane.b32.xlu0 %v365, 32
      %v857 = vpop.permute.xlu0 %856
      %858 = vrot.lane.b32.xlu0 %v366, 32
      %v859 = vpop.permute.xlu0 %858
      %860 = vrot.lane.b32.xlu0 %v367, 32
      %v861 = vpop.permute.xlu0 %860
      %vm894 = vcmask 261120
      %v895 = vsel %vm894, %v640, %v799
      %v896 = vsel %vm894, %v645, %v801
      %v897 = vsel %vm894, %v650, %v803
      %v898 = vsel %vm894, %v655, %v805
      %v899 = vsel %vm894, %v660, %v807
      %v900 = vsel %vm894, %v665, %v809
      %v901 = vsel %vm894, %v670, %v811
      %v902 = vsel %vm894, %v675, %v813
      %v903 = vsel %vm894, %v680, %v815
      %v904 = vsel %vm894, %v685, %v817
      %v905 = vsel %vm894, %v690, %v819
      %v906 = vsel %vm894, %v695, %v821
      %v907 = vsel %vm894, %v700, %v823
      %v908 = vsel %vm894, %v705, %v825
      %v909 = vsel %vm894, %v710, %v827
      %v910 = vsel %vm894, %v715, %v829
      %v911 = vsel %vm894, %v720, %v831
      %v912 = vsel %vm894, %v725, %v833
      %v913 = vsel %vm894, %v730, %v835
      %v914 = vsel %vm894, %v735, %v837
      %v915 = vsel %vm894, %v740, %v839
      %v916 = vsel %vm894, %v745, %v841
      %v917 = vsel %vm894, %v750, %v843
      %v918 = vsel %vm894, %v755, %v845
      %v919 = vsel %vm894, %v760, %v847
      %v920 = vsel %vm894, %v765, %v849
      %v921 = vsel %vm894, %v770, %v851
      %v922 = vsel %vm894, %v775, %v853
      %v923 = vsel %vm894, %v780, %v855
      %v924 = vsel %vm894, %v785, %v857
      %v925 = vsel %vm894, %v790, %v859
      %v926 = vsel %vm894, %v795, %v861
      %927 = vst.msk [vmem:[%s387 + $0x8] sm:$0xff] %vm368, %v895
      %928 = vst.msk [vmem:[%s387 + $0x10] sm:$0xff] %vm368, %v896
      %929 = vst.msk [vmem:[%s387 + $0x28] sm:$0xff] %vm368, %v897
      %930 = vst.msk [vmem:[%s387 + $0x30] sm:$0xff] %vm368, %v898
      %931 = vst.msk [vmem:[%s387 + $0x48] sm:$0xff] %vm368, %v899
      %932 = vst.msk [vmem:[%s387 + $0x50] sm:$0xff] %vm368, %v900
      %933 = vst.msk [vmem:[%s387 + $0x68] sm:$0xff] %vm368, %v901
      %934 = vst.msk [vmem:[%s387 + $0x70] sm:$0xff] %vm368, %v902
      %935 = vst.msk [vmem:[%s387 + $0x88] sm:$0xff] %vm368, %v903
      %936 = vst.msk [vmem:[%s387 + $0x90] sm:$0xff] %vm368, %v904
      %937 = vst.msk [vmem:[%s387 + $0xa8] sm:$0xff] %vm368, %v905
      %938 = vst.msk [vmem:[%s387 + $0xb0] sm:$0xff] %vm368, %v906
      %939 = vst.msk [vmem:[%s387 + $0xc8] sm:$0xff] %vm368, %v907
      %940 = vst.msk [vmem:[%s387 + $0xd0] sm:$0xff] %vm368, %v908
      %941 = vst.msk [vmem:[%s387 + $0xe8] sm:$0xff] %vm368, %v909
      %942 = vst.msk [vmem:[%s387 + $0xf0] sm:$0xff] %vm368, %v910
      %943 = vst.msk [vmem:[%s387 + $0x108] sm:$0xff] %vm368, %v911
      %944 = vst.msk [vmem:[%s387 + $0x110] sm:$0xff] %vm368, %v912
      %945 = vst.msk [vmem:[%s387 + $0x128] sm:$0xff] %vm368, %v913
      %946 = vst.msk [vmem:[%s387 + $0x130] sm:$0xff] %vm368, %v914
      %947 = vst.msk [vmem:[%s387 + $0x148] sm:$0xff] %vm368, %v915
      %948 = vst.msk [vmem:[%s387 + $0x150] sm:$0xff] %vm368, %v916
      %949 = vst.msk [vmem:[%s387 + $0x168] sm:$0xff] %vm368, %v917
      %950 = vst.msk [vmem:[%s387 + $0x170] sm:$0xff] %vm368, %v918
      %951 = vst.msk [vmem:[%s387 + $0x188] sm:$0xff] %vm368, %v919
      %952 = vst.msk [vmem:[%s387 + $0x190] sm:$0xff] %vm368, %v920
      %953 = vst.msk [vmem:[%s387 + $0x1a8] sm:$0xff] %vm368, %v921
      %954 = vst.msk [vmem:[%s387 + $0x1b0] sm:$0xff] %vm368, %v922
      %955 = vst.msk [vmem:[%s387 + $0x1c8] sm:$0xff] %vm368, %v923
      %956 = vst.msk [vmem:[%s387 + $0x1d0] sm:$0xff] %vm368, %v924
      %957 = vst.msk [vmem:[%s387 + $0x1e8] sm:$0xff] %vm368, %v925
      %958 = vst.msk [vmem:[%s387 + $0x1f0] sm:$0xff] %vm368, %v926
      %v959 = vld [vmem:[#allocation2 + $0x6] sm:$0xff]
      %v960 = vld [vmem:[#allocation2 + $0xe] sm:$0xff]
      %v961 = vld [vmem:[#allocation2 + $0x26] sm:$0xff]
      %v962 = vld [vmem:[#allocation2 + $0x2e] sm:$0xff]
      %v963 = vld [vmem:[#allocation2 + $0x46] sm:$0xff]
      %v964 = vld [vmem:[#allocation2 + $0x4e] sm:$0xff]
      %v965 = vld [vmem:[#allocation2 + $0x66] sm:$0xff]
      %v966 = vld [vmem:[#allocation2 + $0x6e] sm:$0xff]
      %v967 = vld [vmem:[#allocation2 + $0x86] sm:$0xff]
      %v968 = vld [vmem:[#allocation2 + $0x8e] sm:$0xff]
      %v969 = vld [vmem:[#allocation2 + $0xa6] sm:$0xff]
      %v970 = vld [vmem:[#allocation2 + $0xae] sm:$0xff]
      %v971 = vld [vmem:[#allocation2 + $0xc6] sm:$0xff]
      %v972 = vld [vmem:[#allocation2 + $0xce] sm:$0xff]
      %v973 = vld [vmem:[#allocation2 + $0xe6] sm:$0xff]
      %v974 = vld [vmem:[#allocation2 + $0xee] sm:$0xff]
      %v975 = vld [vmem:[#allocation2 + $0x106] sm:$0xff]
      %v976 = vld [vmem:[#allocation2 + $0x10e] sm:$0xff]
      %v977 = vld [vmem:[#allocation2 + $0x126] sm:$0xff]
      %v978 = vld [vmem:[#allocation2 + $0x12e] sm:$0xff]
      %v979 = vld [vmem:[#allocation2 + $0x146] sm:$0xff]
      %v980 = vld [vmem:[#allocation2 + $0x14e] sm:$0xff]
      %v981 = vld [vmem:[#allocation2 + $0x166] sm:$0xff]
      %v982 = vld [vmem:[#allocation2 + $0x16e] sm:$0xff]
      %v983 = vld [vmem:[#allocation2 + $0x186] sm:$0xff]
      %v984 = vld [vmem:[#allocation2 + $0x18e] sm:$0xff]
      %v985 = vld [vmem:[#allocation2 + $0x1a6] sm:$0xff]
      %v986 = vld [vmem:[#allocation2 + $0x1ae] sm:$0xff]
      %v987 = vld [vmem:[#allocation2 + $0x1c6] sm:$0xff]
      %v988 = vld [vmem:[#allocation2 + $0x1ce] sm:$0xff]
      %v989 = vld [vmem:[#allocation2 + $0x1e6] sm:$0xff]
      %v990 = vld [vmem:[#allocation2 + $0x1ee] sm:$0xff]
      %v991 = vld [vmem:[#allocation2 + $0x7] sm:$0xff]
      %v992 = vld [vmem:[#allocation2 + $0xf] sm:$0xff]
      %v993 = vld [vmem:[#allocation2 + $0x27] sm:$0xff]
      %v994 = vld [vmem:[#allocation2 + $0x2f] sm:$0xff]
      %v995 = vld [vmem:[#allocation2 + $0x47] sm:$0xff]
      %v996 = vld [vmem:[#allocation2 + $0x4f] sm:$0xff]
      %v997 = vld [vmem:[#allocation2 + $0x67] sm:$0xff]
      %v998 = vld [vmem:[#allocation2 + $0x6f] sm:$0xff]
      %v999 = vld [vmem:[#allocation2 + $0x87] sm:$0xff]
      %v1000 = vld [vmem:[#allocation2 + $0x8f] sm:$0xff]
      %v1001 = vld [vmem:[#allocation2 + $0xa7] sm:$0xff]
      %v1002 = vld [vmem:[#allocation2 + $0xaf] sm:$0xff]
      %v1003 = vld [vmem:[#allocation2 + $0xc7] sm:$0xff]
      %v1004 = vld [vmem:[#allocation2 + $0xcf] sm:$0xff]
      %v1005 = vld [vmem:[#allocation2 + $0xe7] sm:$0xff]
      %v1006 = vld [vmem:[#allocation2 + $0xef] sm:$0xff]
      %v1007 = vld [vmem:[#allocation2 + $0x107] sm:$0xff]
      %v1008 = vld [vmem:[#allocation2 + $0x10f] sm:$0xff]
      %v1009 = vld [vmem:[#allocation2 + $0x127] sm:$0xff]
      %v1010 = vld [vmem:[#allocation2 + $0x12f] sm:$0xff]
      %v1011 = vld [vmem:[#allocation2 + $0x147] sm:$0xff]
      %v1012 = vld [vmem:[#allocation2 + $0x14f] sm:$0xff]
      %v1013 = vld [vmem:[#allocation2 + $0x167] sm:$0xff]
      %v1014 = vld [vmem:[#allocation2 + $0x16f] sm:$0xff]
      %v1015 = vld [vmem:[#allocation2 + $0x187] sm:$0xff]
      %v1016 = vld [vmem:[#allocation2 + $0x18f] sm:$0xff]
      %v1017 = vld [vmem:[#allocation2 + $0x1a7] sm:$0xff]
      %v1018 = vld [vmem:[#allocation2 + $0x1af] sm:$0xff]
      %v1019 = vld [vmem:[#allocation2 + $0x1c7] sm:$0xff]
      %v1020 = vld [vmem:[#allocation2 + $0x1cf] sm:$0xff]
      %v1021 = vld [vmem:[#allocation2 + $0x1e7] sm:$0xff]
      %v1022 = vld [vmem:[#allocation2 + $0x1ef] sm:$0xff]
      %v1023 = vld [vmem:[#allocation2 + $0x8] sm:$0xff]
      %v1024 = vld [vmem:[#allocation2 + $0x10] sm:$0xff]
      %v1025 = vld [vmem:[#allocation2 + $0x28] sm:$0xff]
      %v1026 = vld [vmem:[#allocation2 + $0x30] sm:$0xff]
      %v1027 = vld [vmem:[#allocation2 + $0x48] sm:$0xff]
      %v1028 = vld [vmem:[#allocation2 + $0x50] sm:$0xff]
      %v1029 = vld [vmem:[#allocation2 + $0x68] sm:$0xff]
      %v1030 = vld [vmem:[#allocation2 + $0x70] sm:$0xff]
      %v1031 = vld [vmem:[#allocation2 + $0x88] sm:$0xff]
      %v1032 = vld [vmem:[#allocation2 + $0x90] sm:$0xff]
      %v1033 = vld [vmem:[#allocation2 + $0xa8] sm:$0xff]
      %v1034 = vld [vmem:[#allocation2 + $0xb0] sm:$0xff]
      %v1035 = vld [vmem:[#allocation2 + $0xc8] sm:$0xff]
      %v1036 = vld [vmem:[#allocation2 + $0xd0] sm:$0xff]
      %v1037 = vld [vmem:[#allocation2 + $0xe8] sm:$0xff]
      %v1038 = vld [vmem:[#allocation2 + $0xf0] sm:$0xff]
      %v1039 = vld [vmem:[#allocation2 + $0x108] sm:$0xff]
      %v1040 = vld [vmem:[#allocation2 + $0x110] sm:$0xff]
      %v1041 = vld [vmem:[#allocation2 + $0x128] sm:$0xff]
      %v1042 = vld [vmem:[#allocation2 + $0x130] sm:$0xff]
      %v1043 = vld [vmem:[#allocation2 + $0x148] sm:$0xff]
      %v1044 = vld [vmem:[#allocation2 + $0x150] sm:$0xff]
      %v1045 = vld [vmem:[#allocation2 + $0x168] sm:$0xff]
      %v1046 = vld [vmem:[#allocation2 + $0x170] sm:$0xff]
      %v1047 = vld [vmem:[#allocation2 + $0x188] sm:$0xff]
      %v1048 = vld [vmem:[#allocation2 + $0x190] sm:$0xff]
      %v1049 = vld [vmem:[#allocation2 + $0x1a8] sm:$0xff]
      %v1050 = vld [vmem:[#allocation2 + $0x1b0] sm:$0xff]
      %v1051 = vld [vmem:[#allocation2 + $0x1c8] sm:$0xff]
      %v1052 = vld [vmem:[#allocation2 + $0x1d0] sm:$0xff]
      %v1053 = vld [vmem:[#allocation2 + $0x1e8] sm:$0xff]
      %v1054 = vld [vmem:[#allocation2 + $0x1f0] sm:$0xff]
      %v1055 = vld [vmem:[#allocation2 + $0x9] sm:$0xff]
      %v1056 = vld [vmem:[#allocation2 + $0x11] sm:$0xff]
      %v1057 = vld [vmem:[#allocation2 + $0x29] sm:$0xff]
      %v1058 = vld [vmem:[#allocation2 + $0x31] sm:$0xff]
      %v1059 = vld [vmem:[#allocation2 + $0x49] sm:$0xff]
      %v1060 = vld [vmem:[#allocation2 + $0x51] sm:$0xff]
      %v1061 = vld [vmem:[#allocation2 + $0x69] sm:$0xff]
      %v1062 = vld [vmem:[#allocation2 + $0x71] sm:$0xff]
      %v1063 = vld [vmem:[#allocation2 + $0x89] sm:$0xff]
      %v1064 = vld [vmem:[#allocation2 + $0x91] sm:$0xff]
      %v1065 = vld [vmem:[#allocation2 + $0xa9] sm:$0xff]
      %v1066 = vld [vmem:[#allocation2 + $0xb1] sm:$0xff]
      %v1067 = vld [vmem:[#allocation2 + $0xc9] sm:$0xff]
      %v1068 = vld [vmem:[#allocation2 + $0xd1] sm:$0xff]
      %v1069 = vld [vmem:[#allocation2 + $0xe9] sm:$0xff]
      %v1070 = vld [vmem:[#allocation2 + $0xf1] sm:$0xff]
      %v1071 = vld [vmem:[#allocation2 + $0x109] sm:$0xff]
      %v1072 = vld [vmem:[#allocation2 + $0x111] sm:$0xff]
      %v1073 = vld [vmem:[#allocation2 + $0x129] sm:$0xff]
      %v1074 = vld [vmem:[#allocation2 + $0x131] sm:$0xff]
      %v1075 = vld [vmem:[#allocation2 + $0x149] sm:$0xff]
      %v1076 = vld [vmem:[#allocation2 + $0x151] sm:$0xff]
      %v1077 = vld [vmem:[#allocation2 + $0x169] sm:$0xff]
      %v1078 = vld [vmem:[#allocation2 + $0x171] sm:$0xff]
      %v1079 = vld [vmem:[#allocation2 + $0x189] sm:$0xff]
      %v1080 = vld [vmem:[#allocation2 + $0x191] sm:$0xff]
      %v1081 = vld [vmem:[#allocation2 + $0x1a9] sm:$0xff]
      %v1082 = vld [vmem:[#allocation2 + $0x1b1] sm:$0xff]
      %v1083 = vld [vmem:[#allocation2 + $0x1c9] sm:$0xff]
      %v1084 = vld [vmem:[#allocation2 + $0x1d1] sm:$0xff]
      %v1085 = vld [vmem:[#allocation2 + $0x1e9] sm:$0xff]
      %v1086 = vld [vmem:[#allocation2 + $0x1f1] sm:$0xff]
      %v1087 = vld [vmem:[#allocation2 + $0xa] sm:$0xff]
      %v1088 = vld [vmem:[#allocation2 + $0x12] sm:$0xff]
      %v1089 = vld [vmem:[#allocation2 + $0x2a] sm:$0xff]
      %v1090 = vld [vmem:[#allocation2 + $0x32] sm:$0xff]
      %v1091 = vld [vmem:[#allocation2 + $0x4a] sm:$0xff]
      %v1092 = vld [vmem:[#allocation2 + $0x52] sm:$0xff]
      %v1093 = vld [vmem:[#allocation2 + $0x6a] sm:$0xff]
      %v1094 = vld [vmem:[#allocation2 + $0x72] sm:$0xff]
      %v1095 = vld [vmem:[#allocation2 + $0x8a] sm:$0xff]
      %v1096 = vld [vmem:[#allocation2 + $0x92] sm:$0xff]
      %v1097 = vld [vmem:[#allocation2 + $0xaa] sm:$0xff]
      %v1098 = vld [vmem:[#allocation2 + $0xb2] sm:$0xff]
      %v1099 = vld [vmem:[#allocation2 + $0xca] sm:$0xff]
      %v1100 = vld [vmem:[#allocation2 + $0xd2] sm:$0xff]
      %v1101 = vld [vmem:[#allocation2 + $0xea] sm:$0xff]
      %v1102 = vld [vmem:[#allocation2 + $0xf2] sm:$0xff]
      %v1103 = vld [vmem:[#allocation2 + $0x10a] sm:$0xff]
      %v1104 = vld [vmem:[#allocation2 + $0x112] sm:$0xff]
      %v1105 = vld [vmem:[#allocation2 + $0x12a] sm:$0xff]
      %v1106 = vld [vmem:[#allocation2 + $0x132] sm:$0xff]
      %v1107 = vld [vmem:[#allocation2 + $0x14a] sm:$0xff]
      %v1108 = vld [vmem:[#allocation2 + $0x152] sm:$0xff]
      %v1109 = vld [vmem:[#allocation2 + $0x16a] sm:$0xff]
      %v1110 = vld [vmem:[#allocation2 + $0x172] sm:$0xff]
      %v1111 = vld [vmem:[#allocation2 + $0x18a] sm:$0xff]
      %v1112 = vld [vmem:[#allocation2 + $0x192] sm:$0xff]
      %v1113 = vld [vmem:[#allocation2 + $0x1aa] sm:$0xff]
      %v1114 = vld [vmem:[#allocation2 + $0x1b2] sm:$0xff]
      %v1115 = vld [vmem:[#allocation2 + $0x1ca] sm:$0xff]
      %v1116 = vld [vmem:[#allocation2 + $0x1d2] sm:$0xff]
      %v1117 = vld [vmem:[#allocation2 + $0x1ea] sm:$0xff]
      %v1118 = vld [vmem:[#allocation2 + $0x1f2] sm:$0xff]
      %s1119 = scalar_lea.vmem [#allocation2], 32
      %v1120 = vld [vmem:[%s1119 + $0x6] sm:$0xff]
      %v1121 = vld [vmem:[%s1119 + $0xe] sm:$0xff]
      %v1122 = vld [vmem:[%s1119 + $0x26] sm:$0xff]
      %v1123 = vld [vmem:[%s1119 + $0x2e] sm:$0xff]
      %v1124 = vld [vmem:[%s1119 + $0x46] sm:$0xff]
      %v1125 = vld [vmem:[%s1119 + $0x4e] sm:$0xff]
      %v1126 = vld [vmem:[%s1119 + $0x66] sm:$0xff]
      %v1127 = vld [vmem:[%s1119 + $0x6e] sm:$0xff]
      %v1128 = vld [vmem:[%s1119 + $0x86] sm:$0xff]
      %v1129 = vld [vmem:[%s1119 + $0x8e] sm:$0xff]
      %v1130 = vld [vmem:[%s1119 + $0xa6] sm:$0xff]
      %v1131 = vld [vmem:[%s1119 + $0xae] sm:$0xff]
      %v1132 = vld [vmem:[%s1119 + $0xc6] sm:$0xff]
      %v1133 = vld [vmem:[%s1119 + $0xce] sm:$0xff]
      %v1134 = vld [vmem:[%s1119 + $0xe6] sm:$0xff]
      %v1135 = vld [vmem:[%s1119 + $0xee] sm:$0xff]
      %v1136 = vld [vmem:[%s1119 + $0x106] sm:$0xff]
      %v1137 = vld [vmem:[%s1119 + $0x10e] sm:$0xff]
      %v1138 = vld [vmem:[%s1119 + $0x126] sm:$0xff]
      %v1139 = vld [vmem:[%s1119 + $0x12e] sm:$0xff]
      %v1140 = vld [vmem:[%s1119 + $0x146] sm:$0xff]
      %v1141 = vld [vmem:[%s1119 + $0x14e] sm:$0xff]
      %v1142 = vld [vmem:[%s1119 + $0x166] sm:$0xff]
      %v1143 = vld [vmem:[%s1119 + $0x16e] sm:$0xff]
      %v1144 = vld [vmem:[%s1119 + $0x186] sm:$0xff]
      %v1145 = vld [vmem:[%s1119 + $0x18e] sm:$0xff]
      %v1146 = vld [vmem:[%s1119 + $0x1a6] sm:$0xff]
      %v1147 = vld [vmem:[%s1119 + $0x1ae] sm:$0xff]
      %v1148 = vld [vmem:[%s1119 + $0x1c6] sm:$0xff]
      %v1149 = vld [vmem:[%s1119 + $0x1ce] sm:$0xff]
      %v1150 = vld [vmem:[%s1119 + $0x1e6] sm:$0xff]
      %v1151 = vld [vmem:[%s1119 + $0x1ee] sm:$0xff]
      %v1152 = vld [vmem:[%s1119 + $0x7] sm:$0xff]
      %v1153 = vld [vmem:[%s1119 + $0xf] sm:$0xff]
      %v1154 = vld [vmem:[%s1119 + $0x27] sm:$0xff]
      %v1155 = vld [vmem:[%s1119 + $0x2f] sm:$0xff]
      %v1156 = vld [vmem:[%s1119 + $0x47] sm:$0xff]
      %v1157 = vld [vmem:[%s1119 + $0x4f] sm:$0xff]
      %v1158 = vld [vmem:[%s1119 + $0x67] sm:$0xff]
      %v1159 = vld [vmem:[%s1119 + $0x6f] sm:$0xff]
      %v1160 = vld [vmem:[%s1119 + $0x87] sm:$0xff]
      %v1161 = vld [vmem:[%s1119 + $0x8f] sm:$0xff]
      %v1162 = vld [vmem:[%s1119 + $0xa7] sm:$0xff]
      %v1163 = vld [vmem:[%s1119 + $0xaf] sm:$0xff]
      %v1164 = vld [vmem:[%s1119 + $0xc7] sm:$0xff]
      %v1165 = vld [vmem:[%s1119 + $0xcf] sm:$0xff]
      %v1166 = vld [vmem:[%s1119 + $0xe7] sm:$0xff]
      %v1167 = vld [vmem:[%s1119 + $0xef] sm:$0xff]
      %v1168 = vld [vmem:[%s1119 + $0x107] sm:$0xff]
      %v1169 = vld [vmem:[%s1119 + $0x10f] sm:$0xff]
      %v1170 = vld [vmem:[%s1119 + $0x127] sm:$0xff]
      %v1171 = vld [vmem:[%s1119 + $0x12f] sm:$0xff]
      %v1172 = vld [vmem:[%s1119 + $0x147] sm:$0xff]
      %v1173 = vld [vmem:[%s1119 + $0x14f] sm:$0xff]
      %v1174 = vld [vmem:[%s1119 + $0x167] sm:$0xff]
      %v1175 = vld [vmem:[%s1119 + $0x16f] sm:$0xff]
      %v1176 = vld [vmem:[%s1119 + $0x187] sm:$0xff]
      %v1177 = vld [vmem:[%s1119 + $0x18f] sm:$0xff]
      %v1178 = vld [vmem:[%s1119 + $0x1a7] sm:$0xff]
      %v1179 = vld [vmem:[%s1119 + $0x1af] sm:$0xff]
      %v1180 = vld [vmem:[%s1119 + $0x1c7] sm:$0xff]
      %v1181 = vld [vmem:[%s1119 + $0x1cf] sm:$0xff]
      %v1182 = vld [vmem:[%s1119 + $0x1e7] sm:$0xff]
      %v1183 = vld [vmem:[%s1119 + $0x1ef] sm:$0xff]
      %v1184 = vld [vmem:[%s1119 + $0x8] sm:$0xff]
      %v1185 = vld [vmem:[%s1119 + $0x10] sm:$0xff]
      %v1186 = vld [vmem:[%s1119 + $0x28] sm:$0xff]
      %v1187 = vld [vmem:[%s1119 + $0x30] sm:$0xff]
      %v1188 = vld [vmem:[%s1119 + $0x48] sm:$0xff]
      %v1189 = vld [vmem:[%s1119 + $0x50] sm:$0xff]
      %v1190 = vld [vmem:[%s1119 + $0x68] sm:$0xff]
      %v1191 = vld [vmem:[%s1119 + $0x70] sm:$0xff]
      %v1192 = vld [vmem:[%s1119 + $0x88] sm:$0xff]
      %v1193 = vld [vmem:[%s1119 + $0x90] sm:$0xff]
      %v1194 = vld [vmem:[%s1119 + $0xa8] sm:$0xff]
      %v1195 = vld [vmem:[%s1119 + $0xb0] sm:$0xff]
      %v1196 = vld [vmem:[%s1119 + $0xc8] sm:$0xff]
      %v1197 = vld [vmem:[%s1119 + $0xd0] sm:$0xff]
      %v1198 = vld [vmem:[%s1119 + $0xe8] sm:$0xff]
      %v1199 = vld [vmem:[%s1119 + $0xf0] sm:$0xff]
      %v1200 = vld [vmem:[%s1119 + $0x108] sm:$0xff]
      %v1201 = vld [vmem:[%s1119 + $0x110] sm:$0xff]
      %v1202 = vld [vmem:[%s1119 + $0x128] sm:$0xff]
      %v1203 = vld [vmem:[%s1119 + $0x130] sm:$0xff]
      %v1204 = vld [vmem:[%s1119 + $0x148] sm:$0xff]
      %v1205 = vld [vmem:[%s1119 + $0x150] sm:$0xff]
      %v1206 = vld [vmem:[%s1119 + $0x168] sm:$0xff]
      %v1207 = vld [vmem:[%s1119 + $0x170] sm:$0xff]
      %v1208 = vld [vmem:[%s1119 + $0x188] sm:$0xff]
      %v1209 = vld [vmem:[%s1119 + $0x190] sm:$0xff]
      %v1210 = vld [vmem:[%s1119 + $0x1a8] sm:$0xff]
      %v1211 = vld [vmem:[%s1119 + $0x1b0] sm:$0xff]
      %v1212 = vld [vmem:[%s1119 + $0x1c8] sm:$0xff]
      %v1213 = vld [vmem:[%s1119 + $0x1d0] sm:$0xff]
      %v1214 = vld [vmem:[%s1119 + $0x1e8] sm:$0xff]
      %v1215 = vld [vmem:[%s1119 + $0x1f0] sm:$0xff]
      %v1216 = vld [vmem:[%s1119 + $0x9] sm:$0xff]
      %v1217 = vld [vmem:[%s1119 + $0x11] sm:$0xff]
      %v1218 = vld [vmem:[%s1119 + $0x29] sm:$0xff]
      %v1219 = vld [vmem:[%s1119 + $0x31] sm:$0xff]
      %v1220 = vld [vmem:[%s1119 + $0x49] sm:$0xff]
      %v1221 = vld [vmem:[%s1119 + $0x51] sm:$0xff]
      %v1222 = vld [vmem:[%s1119 + $0x69] sm:$0xff]
      %v1223 = vld [vmem:[%s1119 + $0x71] sm:$0xff]
      %v1224 = vld [vmem:[%s1119 + $0x89] sm:$0xff]
      %v1225 = vld [vmem:[%s1119 + $0x91] sm:$0xff]
      %v1226 = vld [vmem:[%s1119 + $0xa9] sm:$0xff]
      %v1227 = vld [vmem:[%s1119 + $0xb1] sm:$0xff]
      %v1228 = vld [vmem:[%s1119 + $0xc9] sm:$0xff]
      %v1229 = vld [vmem:[%s1119 + $0xd1] sm:$0xff]
      %v1230 = vld [vmem:[%s1119 + $0xe9] sm:$0xff]
      %v1231 = vld [vmem:[%s1119 + $0xf1] sm:$0xff]
      %v1232 = vld [vmem:[%s1119 + $0x109] sm:$0xff]
      %v1233 = vld [vmem:[%s1119 + $0x111] sm:$0xff]
      %v1234 = vld [vmem:[%s1119 + $0x129] sm:$0xff]
      %v1235 = vld [vmem:[%s1119 + $0x131] sm:$0xff]
      %v1236 = vld [vmem:[%s1119 + $0x149] sm:$0xff]
      %v1237 = vld [vmem:[%s1119 + $0x151] sm:$0xff]
      %v1238 = vld [vmem:[%s1119 + $0x169] sm:$0xff]
      %v1239 = vld [vmem:[%s1119 + $0x171] sm:$0xff]
      %v1240 = vld [vmem:[%s1119 + $0x189] sm:$0xff]
      %v1241 = vld [vmem:[%s1119 + $0x191] sm:$0xff]
      %v1242 = vld [vmem:[%s1119 + $0x1a9] sm:$0xff]
      %v1243 = vld [vmem:[%s1119 + $0x1b1] sm:$0xff]
      %v1244 = vld [vmem:[%s1119 + $0x1c9] sm:$0xff]
      %v1245 = vld [vmem:[%s1119 + $0x1d1] sm:$0xff]
      %v1246 = vld [vmem:[%s1119 + $0x1e9] sm:$0xff]
      %v1247 = vld [vmem:[%s1119 + $0x1f1] sm:$0xff]
      %v1248 = vld [vmem:[%s1119 + $0xa] sm:$0xff]
      %v1249 = vld [vmem:[%s1119 + $0x12] sm:$0xff]
      %v1250 = vld [vmem:[%s1119 + $0x2a] sm:$0xff]
      %v1251 = vld [vmem:[%s1119 + $0x32] sm:$0xff]
      %v1252 = vld [vmem:[%s1119 + $0x4a] sm:$0xff]
      %v1253 = vld [vmem:[%s1119 + $0x52] sm:$0xff]
      %v1254 = vld [vmem:[%s1119 + $0x6a] sm:$0xff]
      %v1255 = vld [vmem:[%s1119 + $0x72] sm:$0xff]
      %v1256 = vld [vmem:[%s1119 + $0x8a] sm:$0xff]
      %v1257 = vld [vmem:[%s1119 + $0x92] sm:$0xff]
      %v1258 = vld [vmem:[%s1119 + $0xaa] sm:$0xff]
      %v1259 = vld [vmem:[%s1119 + $0xb2] sm:$0xff]
      %v1260 = vld [vmem:[%s1119 + $0xca] sm:$0xff]
      %v1261 = vld [vmem:[%s1119 + $0xd2] sm:$0xff]
      %v1262 = vld [vmem:[%s1119 + $0xea] sm:$0xff]
      %v1263 = vld [vmem:[%s1119 + $0xf2] sm:$0xff]
      %v1264 = vld [vmem:[%s1119 + $0x10a] sm:$0xff]
      %v1265 = vld [vmem:[%s1119 + $0x112] sm:$0xff]
      %v1266 = vld [vmem:[%s1119 + $0x12a] sm:$0xff]
      %v1267 = vld [vmem:[%s1119 + $0x132] sm:$0xff]
      %v1268 = vld [vmem:[%s1119 + $0x14a] sm:$0xff]
      %v1269 = vld [vmem:[%s1119 + $0x152] sm:$0xff]
      %v1270 = vld [vmem:[%s1119 + $0x16a] sm:$0xff]
      %v1271 = vld [vmem:[%s1119 + $0x172] sm:$0xff]
      %v1272 = vld [vmem:[%s1119 + $0x18a] sm:$0xff]
      %v1273 = vld [vmem:[%s1119 + $0x192] sm:$0xff]
      %v1274 = vld [vmem:[%s1119 + $0x1aa] sm:$0xff]
      %v1275 = vld [vmem:[%s1119 + $0x1b2] sm:$0xff]
      %v1276 = vld [vmem:[%s1119 + $0x1ca] sm:$0xff]
      %v1277 = vld [vmem:[%s1119 + $0x1d2] sm:$0xff]
      %v1278 = vld [vmem:[%s1119 + $0x1ea] sm:$0xff]
      %v1279 = vld [vmem:[%s1119 + $0x1f2] sm:$0xff]
      %v1280 = vld [vmem:[%s387 + $0x6] sm:$0xff]
      %v1281 = vld [vmem:[%s387 + $0xe] sm:$0xff]
      %v1282 = vld [vmem:[%s387 + $0x26] sm:$0xff]
      %v1283 = vld [vmem:[%s387 + $0x2e] sm:$0xff]
      %v1284 = vld [vmem:[%s387 + $0x46] sm:$0xff]
      %v1285 = vld [vmem:[%s387 + $0x4e] sm:$0xff]
      %v1286 = vld [vmem:[%s387 + $0x66] sm:$0xff]
      %v1287 = vld [vmem:[%s387 + $0x6e] sm:$0xff]
      %v1288 = vld [vmem:[%s387 + $0x86] sm:$0xff]
      %v1289 = vld [vmem:[%s387 + $0x8e] sm:$0xff]
      %v1290 = vld [vmem:[%s387 + $0xa6] sm:$0xff]
      %v1291 = vld [vmem:[%s387 + $0xae] sm:$0xff]
      %v1292 = vld [vmem:[%s387 + $0xc6] sm:$0xff]
      %v1293 = vld [vmem:[%s387 + $0xce] sm:$0xff]
      %v1294 = vld [vmem:[%s387 + $0xe6] sm:$0xff]
      %v1295 = vld [vmem:[%s387 + $0xee] sm:$0xff]
      %v1296 = vld [vmem:[%s387 + $0x106] sm:$0xff]
      %v1297 = vld [vmem:[%s387 + $0x10e] sm:$0xff]
      %v1298 = vld [vmem:[%s387 + $0x126] sm:$0xff]
      %v1299 = vld [vmem:[%s387 + $0x12e] sm:$0xff]
      %v1300 = vld [vmem:[%s387 + $0x146] sm:$0xff]
      %v1301 = vld [vmem:[%s387 + $0x14e] sm:$0xff]
      %v1302 = vld [vmem:[%s387 + $0x166] sm:$0xff]
      %v1303 = vld [vmem:[%s387 + $0x16e] sm:$0xff]
      %v1304 = vld [vmem:[%s387 + $0x186] sm:$0xff]
      %v1305 = vld [vmem:[%s387 + $0x18e] sm:$0xff]
      %v1306 = vld [vmem:[%s387 + $0x1a6] sm:$0xff]
      %v1307 = vld [vmem:[%s387 + $0x1ae] sm:$0xff]
      %v1308 = vld [vmem:[%s387 + $0x1c6] sm:$0xff]
      %v1309 = vld [vmem:[%s387 + $0x1ce] sm:$0xff]
      %v1310 = vld [vmem:[%s387 + $0x1e6] sm:$0xff]
      %v1311 = vld [vmem:[%s387 + $0x1ee] sm:$0xff]
      %v1312 = vld [vmem:[%s387 + $0x7] sm:$0xff]
      %v1313 = vld [vmem:[%s387 + $0xf] sm:$0xff]
      %v1314 = vld [vmem:[%s387 + $0x27] sm:$0xff]
      %v1315 = vld [vmem:[%s387 + $0x2f] sm:$0xff]
      %v1316 = vld [vmem:[%s387 + $0x47] sm:$0xff]
      %v1317 = vld [vmem:[%s387 + $0x4f] sm:$0xff]
      %v1318 = vld [vmem:[%s387 + $0x67] sm:$0xff]
      %v1319 = vld [vmem:[%s387 + $0x6f] sm:$0xff]
      %v1320 = vld [vmem:[%s387 + $0x87] sm:$0xff]
      %v1321 = vld [vmem:[%s387 + $0x8f] sm:$0xff]
      %v1322 = vld [vmem:[%s387 + $0xa7] sm:$0xff]
      %v1323 = vld [vmem:[%s387 + $0xaf] sm:$0xff]
      %v1324 = vld [vmem:[%s387 + $0xc7] sm:$0xff]
      %v1325 = vld [vmem:[%s387 + $0xcf] sm:$0xff]
      %v1326 = vld [vmem:[%s387 + $0xe7] sm:$0xff]
      %v1327 = vld [vmem:[%s387 + $0xef] sm:$0xff]
      %v1328 = vld [vmem:[%s387 + $0x107] sm:$0xff]
      %v1329 = vld [vmem:[%s387 + $0x10f] sm:$0xff]
      %v1330 = vld [vmem:[%s387 + $0x127] sm:$0xff]
      %v1331 = vld [vmem:[%s387 + $0x12f] sm:$0xff]
      %v1332 = vld [vmem:[%s387 + $0x147] sm:$0xff]
      %v1333 = vld [vmem:[%s387 + $0x14f] sm:$0xff]
      %v1334 = vld [vmem:[%s387 + $0x167] sm:$0xff]
      %v1335 = vld [vmem:[%s387 + $0x16f] sm:$0xff]
      %v1336 = vld [vmem:[%s387 + $0x187] sm:$0xff]
      %v1337 = vld [vmem:[%s387 + $0x18f] sm:$0xff]
      %v1338 = vld [vmem:[%s387 + $0x1a7] sm:$0xff]
      %v1339 = vld [vmem:[%s387 + $0x1af] sm:$0xff]
      %v1340 = vld [vmem:[%s387 + $0x1c7] sm:$0xff]
      %v1341 = vld [vmem:[%s387 + $0x1cf] sm:$0xff]
      %v1342 = vld [vmem:[%s387 + $0x1e7] sm:$0xff]
      %v1343 = vld [vmem:[%s387 + $0x1ef] sm:$0xff]
      %v1344 = vld [vmem:[%s387 + $0x8] sm:$0xff]
      %v1345 = vld [vmem:[%s387 + $0x10] sm:$0xff]
      %v1346 = vld [vmem:[%s387 + $0x28] sm:$0xff]
      %v1347 = vld [vmem:[%s387 + $0x30] sm:$0xff]
      %v1348 = vld [vmem:[%s387 + $0x48] sm:$0xff]
      %v1349 = vld [vmem:[%s387 + $0x50] sm:$0xff]
      %v1350 = vld [vmem:[%s387 + $0x68] sm:$0xff]
      %v1351 = vld [vmem:[%s387 + $0x70] sm:$0xff]
      %v1352 = vld [vmem:[%s387 + $0x88] sm:$0xff]
      %v1353 = vld [vmem:[%s387 + $0x90] sm:$0xff]
      %v1354 = vld [vmem:[%s387 + $0xa8] sm:$0xff]
      %v1355 = vld [vmem:[%s387 + $0xb0] sm:$0xff]
      %v1356 = vld [vmem:[%s387 + $0xc8] sm:$0xff]
      %v1357 = vld [vmem:[%s387 + $0xd0] sm:$0xff]
      %v1358 = vld [vmem:[%s387 + $0xe8] sm:$0xff]
      %v1359 = vld [vmem:[%s387 + $0xf0] sm:$0xff]
      %v1360 = vld [vmem:[%s387 + $0x108] sm:$0xff]
      %v1361 = vld [vmem:[%s387 + $0x110] sm:$0xff]
      %v1362 = vld [vmem:[%s387 + $0x128] sm:$0xff]
      %v1363 = vld [vmem:[%s387 + $0x130] sm:$0xff]
      %v1364 = vld [vmem:[%s387 + $0x148] sm:$0xff]
      %v1365 = vld [vmem:[%s387 + $0x150] sm:$0xff]
      %v1366 = vld [vmem:[%s387 + $0x168] sm:$0xff]
      %v1367 = vld [vmem:[%s387 + $0x170] sm:$0xff]
      %v1368 = vld [vmem:[%s387 + $0x188] sm:$0xff]
      %v1369 = vld [vmem:[%s387 + $0x190] sm:$0xff]
      %v1370 = vld [vmem:[%s387 + $0x1a8] sm:$0xff]
      %v1371 = vld [vmem:[%s387 + $0x1b0] sm:$0xff]
      %v1372 = vld [vmem:[%s387 + $0x1c8] sm:$0xff]
      %v1373 = vld [vmem:[%s387 + $0x1d0] sm:$0xff]
      %v1374 = vld [vmem:[%s387 + $0x1e8] sm:$0xff]
      %v1375 = vld [vmem:[%s387 + $0x1f0] sm:$0xff]
      %v1376 = vld [vmem:[%s387 + $0x9] sm:$0xff]
      %v1377 = vld [vmem:[%s387 + $0x11] sm:$0xff]
      %v1378 = vld [vmem:[%s387 + $0x29] sm:$0xff]
      %v1379 = vld [vmem:[%s387 + $0x31] sm:$0xff]
      %v1380 = vld [vmem:[%s387 + $0x49] sm:$0xff]
      %v1381 = vld [vmem:[%s387 + $0x51] sm:$0xff]
      %v1382 = vld [vmem:[%s387 + $0x69] sm:$0xff]
      %v1383 = vld [vmem:[%s387 + $0x71] sm:$0xff]
      %v1384 = vld [vmem:[%s387 + $0x89] sm:$0xff]
      %v1385 = vld [vmem:[%s387 + $0x91] sm:$0xff]
      %v1386 = vld [vmem:[%s387 + $0xa9] sm:$0xff]
      %v1387 = vld [vmem:[%s387 + $0xb1] sm:$0xff]
      %v1388 = vld [vmem:[%s387 + $0xc9] sm:$0xff]
      %v1389 = vld [vmem:[%s387 + $0xd1] sm:$0xff]
      %v1390 = vld [vmem:[%s387 + $0xe9] sm:$0xff]
      %v1391 = vld [vmem:[%s387 + $0xf1] sm:$0xff]
      %v1392 = vld [vmem:[%s387 + $0x109] sm:$0xff]
      %v1393 = vld [vmem:[%s387 + $0x111] sm:$0xff]
      %v1394 = vld [vmem:[%s387 + $0x129] sm:$0xff]
      %v1395 = vld [vmem:[%s387 + $0x131] sm:$0xff]
      %v1396 = vld [vmem:[%s387 + $0x149] sm:$0xff]
      %v1397 = vld [vmem:[%s387 + $0x151] sm:$0xff]
      %v1398 = vld [vmem:[%s387 + $0x169] sm:$0xff]
      %v1399 = vld [vmem:[%s387 + $0x171] sm:$0xff]
      %v1400 = vld [vmem:[%s387 + $0x189] sm:$0xff]
      %v1401 = vld [vmem:[%s387 + $0x191] sm:$0xff]
      %v1402 = vld [vmem:[%s387 + $0x1a9] sm:$0xff]
      %v1403 = vld [vmem:[%s387 + $0x1b1] sm:$0xff]
      %v1404 = vld [vmem:[%s387 + $0x1c9] sm:$0xff]
      %v1405 = vld [vmem:[%s387 + $0x1d1] sm:$0xff]
      %v1406 = vld [vmem:[%s387 + $0x1e9] sm:$0xff]
      %v1407 = vld [vmem:[%s387 + $0x1f1] sm:$0xff]
      %v1408 = vld [vmem:[%s387 + $0xa] sm:$0xff]
      %v1409 = vld [vmem:[%s387 + $0x12] sm:$0xff]
      %v1410 = vld [vmem:[%s387 + $0x2a] sm:$0xff]
      %v1411 = vld [vmem:[%s387 + $0x32] sm:$0xff]
      %v1412 = vld [vmem:[%s387 + $0x4a] sm:$0xff]
      %v1413 = vld [vmem:[%s387 + $0x52] sm:$0xff]
      %v1414 = vld [vmem:[%s387 + $0x6a] sm:$0xff]
      %v1415 = vld [vmem:[%s387 + $0x72] sm:$0xff]
      %v1416 = vld [vmem:[%s387 + $0x8a] sm:$0xff]
      %v1417 = vld [vmem:[%s387 + $0x92] sm:$0xff]
      %v1418 = vld [vmem:[%s387 + $0xaa] sm:$0xff]
      %v1419 = vld [vmem:[%s387 + $0xb2] sm:$0xff]
      %v1420 = vld [vmem:[%s387 + $0xca] sm:$0xff]
      %v1421 = vld [vmem:[%s387 + $0xd2] sm:$0xff]
      %v1422 = vld [vmem:[%s387 + $0xea] sm:$0xff]
      %v1423 = vld [vmem:[%s387 + $0xf2] sm:$0xff]
      %v1424 = vld [vmem:[%s387 + $0x10a] sm:$0xff]
      %v1425 = vld [vmem:[%s387 + $0x112] sm:$0xff]
      %v1426 = vld [vmem:[%s387 + $0x12a] sm:$0xff]
      %v1427 = vld [vmem:[%s387 + $0x132] sm:$0xff]
      %v1428 = vld [vmem:[%s387 + $0x14a] sm:$0xff]
      %v1429 = vld [vmem:[%s387 + $0x152] sm:$0xff]
      %v1430 = vld [vmem:[%s387 + $0x16a] sm:$0xff]
      %v1431 = vld [vmem:[%s387 + $0x172] sm:$0xff]
      %v1432 = vld [vmem:[%s387 + $0x18a] sm:$0xff]
      %v1433 = vld [vmem:[%s387 + $0x192] sm:$0xff]
      %v1434 = vld [vmem:[%s387 + $0x1aa] sm:$0xff]
      %v1435 = vld [vmem:[%s387 + $0x1b2] sm:$0xff]
      %v1436 = vld [vmem:[%s387 + $0x1ca] sm:$0xff]
      %v1437 = vld [vmem:[%s387 + $0x1d2] sm:$0xff]
      %v1438 = vld [vmem:[%s387 + $0x1ea] sm:$0xff]
      %v1439 = vld [vmem:[%s387 + $0x1f2] sm:$0xff]
      %s1440 = scalar_lea.vmem [#allocation2], 96
      %v1441 = vld [vmem:[%s1440 + $0x6] sm:$0xff]
      %v1442 = vld [vmem:[%s1440 + $0xe] sm:$0xff]
      %v1443 = vld [vmem:[%s1440 + $0x26] sm:$0xff]
      %v1444 = vld [vmem:[%s1440 + $0x2e] sm:$0xff]
      %v1445 = vld [vmem:[%s1440 + $0x46] sm:$0xff]
      %v1446 = vld [vmem:[%s1440 + $0x4e] sm:$0xff]
      %v1447 = vld [vmem:[%s1440 + $0x66] sm:$0xff]
      %v1448 = vld [vmem:[%s1440 + $0x6e] sm:$0xff]
      %v1449 = vld [vmem:[%s1440 + $0x86] sm:$0xff]
      %v1450 = vld [vmem:[%s1440 + $0x8e] sm:$0xff]
      %v1451 = vld [vmem:[%s1440 + $0xa6] sm:$0xff]
      %v1452 = vld [vmem:[%s1440 + $0xae] sm:$0xff]
      %v1453 = vld [vmem:[%s1440 + $0xc6] sm:$0xff]
      %v1454 = vld [vmem:[%s1440 + $0xce] sm:$0xff]
      %v1455 = vld [vmem:[%s1440 + $0xe6] sm:$0xff]
      %v1456 = vld [vmem:[%s1440 + $0xee] sm:$0xff]
      %v1457 = vld [vmem:[%s1440 + $0x106] sm:$0xff]
      %v1458 = vld [vmem:[%s1440 + $0x10e] sm:$0xff]
      %v1459 = vld [vmem:[%s1440 + $0x126] sm:$0xff]
      %v1460 = vld [vmem:[%s1440 + $0x12e] sm:$0xff]
      %v1461 = vld [vmem:[%s1440 + $0x146] sm:$0xff]
      %v1462 = vld [vmem:[%s1440 + $0x14e] sm:$0xff]
      %v1463 = vld [vmem:[%s1440 + $0x166] sm:$0xff]
      %v1464 = vld [vmem:[%s1440 + $0x16e] sm:$0xff]
      %v1465 = vld [vmem:[%s1440 + $0x186] sm:$0xff]
      %v1466 = vld [vmem:[%s1440 + $0x18e] sm:$0xff]
      %v1467 = vld [vmem:[%s1440 + $0x1a6] sm:$0xff]
      %v1468 = vld [vmem:[%s1440 + $0x1ae] sm:$0xff]
      %v1469 = vld [vmem:[%s1440 + $0x1c6] sm:$0xff]
      %v1470 = vld [vmem:[%s1440 + $0x1ce] sm:$0xff]
      %v1471 = vld [vmem:[%s1440 + $0x1e6] sm:$0xff]
      %v1472 = vld [vmem:[%s1440 + $0x1ee] sm:$0xff]
      %v1473 = vld [vmem:[%s1440 + $0x7] sm:$0xff]
      %v1474 = vld [vmem:[%s1440 + $0xf] sm:$0xff]
      %v1475 = vld [vmem:[%s1440 + $0x27] sm:$0xff]
      %v1476 = vld [vmem:[%s1440 + $0x2f] sm:$0xff]
      %v1477 = vld [vmem:[%s1440 + $0x47] sm:$0xff]
      %v1478 = vld [vmem:[%s1440 + $0x4f] sm:$0xff]
      %v1479 = vld [vmem:[%s1440 + $0x67] sm:$0xff]
      %v1480 = vld [vmem:[%s1440 + $0x6f] sm:$0xff]
      %v1481 = vld [vmem:[%s1440 + $0x87] sm:$0xff]
      %v1482 = vld [vmem:[%s1440 + $0x8f] sm:$0xff]
      %v1483 = vld [vmem:[%s1440 + $0xa7] sm:$0xff]
      %v1484 = vld [vmem:[%s1440 + $0xaf] sm:$0xff]
      %v1485 = vld [vmem:[%s1440 + $0xc7] sm:$0xff]
      %v1486 = vld [vmem:[%s1440 + $0xcf] sm:$0xff]
      %v1487 = vld [vmem:[%s1440 + $0xe7] sm:$0xff]
      %v1488 = vld [vmem:[%s1440 + $0xef] sm:$0xff]
      %v1489 = vld [vmem:[%s1440 + $0x107] sm:$0xff]
      %v1490 = vld [vmem:[%s1440 + $0x10f] sm:$0xff]
      %v1491 = vld [vmem:[%s1440 + $0x127] sm:$0xff]
      %v1492 = vld [vmem:[%s1440 + $0x12f] sm:$0xff]
      %v1493 = vld [vmem:[%s1440 + $0x147] sm:$0xff]
      %v1494 = vld [vmem:[%s1440 + $0x14f] sm:$0xff]
      %v1495 = vld [vmem:[%s1440 + $0x167] sm:$0xff]
      %v1496 = vld [vmem:[%s1440 + $0x16f] sm:$0xff]
      %v1497 = vld [vmem:[%s1440 + $0x187] sm:$0xff]
      %v1498 = vld [vmem:[%s1440 + $0x18f] sm:$0xff]
      %v1499 = vld [vmem:[%s1440 + $0x1a7] sm:$0xff]
      %v1500 = vld [vmem:[%s1440 + $0x1af] sm:$0xff]
      %v1501 = vld [vmem:[%s1440 + $0x1c7] sm:$0xff]
      %v1502 = vld [vmem:[%s1440 + $0x1cf] sm:$0xff]
      %v1503 = vld [vmem:[%s1440 + $0x1e7] sm:$0xff]
      %v1504 = vld [vmem:[%s1440 + $0x1ef] sm:$0xff]
      %v1505 = vld [vmem:[%s1440 + $0x8] sm:$0xff]
      %v1506 = vld [vmem:[%s1440 + $0x10] sm:$0xff]
      %v1507 = vld [vmem:[%s1440 + $0x28] sm:$0xff]
      %v1508 = vld [vmem:[%s1440 + $0x30] sm:$0xff]
      %v1509 = vld [vmem:[%s1440 + $0x48] sm:$0xff]
      %v1510 = vld [vmem:[%s1440 + $0x50] sm:$0xff]
      %v1511 = vld [vmem:[%s1440 + $0x68] sm:$0xff]
      %v1512 = vld [vmem:[%s1440 + $0x70] sm:$0xff]
      %v1513 = vld [vmem:[%s1440 + $0x88] sm:$0xff]
      %v1514 = vld [vmem:[%s1440 + $0x90] sm:$0xff]
      %v1515 = vld [vmem:[%s1440 + $0xa8] sm:$0xff]
      %v1516 = vld [vmem:[%s1440 + $0xb0] sm:$0xff]
      %v1517 = vld [vmem:[%s1440 + $0xc8] sm:$0xff]
      %v1518 = vld [vmem:[%s1440 + $0xd0] sm:$0xff]
      %v1519 = vld [vmem:[%s1440 + $0xe8] sm:$0xff]
      %v1520 = vld [vmem:[%s1440 + $0xf0] sm:$0xff]
      %v1521 = vld [vmem:[%s1440 + $0x108] sm:$0xff]
      %v1522 = vld [vmem:[%s1440 + $0x110] sm:$0xff]
      %v1523 = vld [vmem:[%s1440 + $0x128] sm:$0xff]
      %v1524 = vld [vmem:[%s1440 + $0x130] sm:$0xff]
      %v1525 = vld [vmem:[%s1440 + $0x148] sm:$0xff]
      %v1526 = vld [vmem:[%s1440 + $0x150] sm:$0xff]
      %v1527 = vld [vmem:[%s1440 + $0x168] sm:$0xff]
      %v1528 = vld [vmem:[%s1440 + $0x170] sm:$0xff]
      %v1529 = vld [vmem:[%s1440 + $0x188] sm:$0xff]
      %v1530 = vld [vmem:[%s1440 + $0x190] sm:$0xff]
      %v1531 = vld [vmem:[%s1440 + $0x1a8] sm:$0xff]
      %v1532 = vld [vmem:[%s1440 + $0x1b0] sm:$0xff]
      %v1533 = vld [vmem:[%s1440 + $0x1c8] sm:$0xff]
      %v1534 = vld [vmem:[%s1440 + $0x1d0] sm:$0xff]
      %v1535 = vld [vmem:[%s1440 + $0x1e8] sm:$0xff]
      %v1536 = vld [vmem:[%s1440 + $0x1f0] sm:$0xff]
      %v1537 = vld [vmem:[%s1440 + $0x9] sm:$0xff]
      %v1538 = vld [vmem:[%s1440 + $0x11] sm:$0xff]
      %v1539 = vld [vmem:[%s1440 + $0x29] sm:$0xff]
      %v1540 = vld [vmem:[%s1440 + $0x31] sm:$0xff]
      %v1541 = vld [vmem:[%s1440 + $0x49] sm:$0xff]
      %v1542 = vld [vmem:[%s1440 + $0x51] sm:$0xff]
      %v1543 = vld [vmem:[%s1440 + $0x69] sm:$0xff]
      %v1544 = vld [vmem:[%s1440 + $0x71] sm:$0xff]
      %v1545 = vld [vmem:[%s1440 + $0x89] sm:$0xff]
      %v1546 = vld [vmem:[%s1440 + $0x91] sm:$0xff]
      %v1547 = vld [vmem:[%s1440 + $0xa9] sm:$0xff]
      %v1548 = vld [vmem:[%s1440 + $0xb1] sm:$0xff]
      %v1549 = vld [vmem:[%s1440 + $0xc9] sm:$0xff]
      %v1550 = vld [vmem:[%s1440 + $0xd1] sm:$0xff]
      %v1551 = vld [vmem:[%s1440 + $0xe9] sm:$0xff]
      %v1552 = vld [vmem:[%s1440 + $0xf1] sm:$0xff]
      %v1553 = vld [vmem:[%s1440 + $0x109] sm:$0xff]
      %v1554 = vld [vmem:[%s1440 + $0x111] sm:$0xff]
      %v1555 = vld [vmem:[%s1440 + $0x129] sm:$0xff]
      %v1556 = vld [vmem:[%s1440 + $0x131] sm:$0xff]
      %v1557 = vld [vmem:[%s1440 + $0x149] sm:$0xff]
      %v1558 = vld [vmem:[%s1440 + $0x151] sm:$0xff]
      %v1559 = vld [vmem:[%s1440 + $0x169] sm:$0xff]
      %v1560 = vld [vmem:[%s1440 + $0x171] sm:$0xff]
      %v1561 = vld [vmem:[%s1440 + $0x189] sm:$0xff]
      %v1562 = vld [vmem:[%s1440 + $0x191] sm:$0xff]
      %v1563 = vld [vmem:[%s1440 + $0x1a9] sm:$0xff]
      %v1564 = vld [vmem:[%s1440 + $0x1b1] sm:$0xff]
      %v1565 = vld [vmem:[%s1440 + $0x1c9] sm:$0xff]
      %v1566 = vld [vmem:[%s1440 + $0x1d1] sm:$0xff]
      %v1567 = vld [vmem:[%s1440 + $0x1e9] sm:$0xff]
      %v1568 = vld [vmem:[%s1440 + $0x1f1] sm:$0xff]
      %v1569 = vld [vmem:[%s1440 + $0xa] sm:$0xff]
      %v1570 = vld [vmem:[%s1440 + $0x12] sm:$0xff]
      %v1571 = vld [vmem:[%s1440 + $0x2a] sm:$0xff]
      %v1572 = vld [vmem:[%s1440 + $0x32] sm:$0xff]
      %v1573 = vld [vmem:[%s1440 + $0x4a] sm:$0xff]
      %v1574 = vld [vmem:[%s1440 + $0x52] sm:$0xff]
      %v1575 = vld [vmem:[%s1440 + $0x6a] sm:$0xff]
      %v1576 = vld [vmem:[%s1440 + $0x72] sm:$0xff]
      %v1577 = vld [vmem:[%s1440 + $0x8a] sm:$0xff]
      %v1578 = vld [vmem:[%s1440 + $0x92] sm:$0xff]
      %v1579 = vld [vmem:[%s1440 + $0xaa] sm:$0xff]
      %v1580 = vld [vmem:[%s1440 + $0xb2] sm:$0xff]
      %v1581 = vld [vmem:[%s1440 + $0xca] sm:$0xff]
      %v1582 = vld [vmem:[%s1440 + $0xd2] sm:$0xff]
      %v1583 = vld [vmem:[%s1440 + $0xea] sm:$0xff]
      %v1584 = vld [vmem:[%s1440 + $0xf2] sm:$0xff]
      %v1585 = vld [vmem:[%s1440 + $0x10a] sm:$0xff]
      %v1586 = vld [vmem:[%s1440 + $0x112] sm:$0xff]
      %v1587 = vld [vmem:[%s1440 + $0x12a] sm:$0xff]
      %v1588 = vld [vmem:[%s1440 + $0x132] sm:$0xff]
      %v1589 = vld [vmem:[%s1440 + $0x14a] sm:$0xff]
      %v1590 = vld [vmem:[%s1440 + $0x152] sm:$0xff]
      %v1591 = vld [vmem:[%s1440 + $0x16a] sm:$0xff]
      %v1592 = vld [vmem:[%s1440 + $0x172] sm:$0xff]
      %v1593 = vld [vmem:[%s1440 + $0x18a] sm:$0xff]
      %v1594 = vld [vmem:[%s1440 + $0x192] sm:$0xff]
      %v1595 = vld [vmem:[%s1440 + $0x1aa] sm:$0xff]
      %v1596 = vld [vmem:[%s1440 + $0x1b2] sm:$0xff]
      %v1597 = vld [vmem:[%s1440 + $0x1ca] sm:$0xff]
      %v1598 = vld [vmem:[%s1440 + $0x1d2] sm:$0xff]
      %v1599 = vld [vmem:[%s1440 + $0x1ea] sm:$0xff]
      %v1600 = vld [vmem:[%s1440 + $0x1f2] sm:$0xff]
      %s1601 = scalar_lea.vmem [#allocation2], 128
      %v1602 = vld [vmem:[%s1601 + $0x6] sm:$0xff]
      %v1603 = vld [vmem:[%s1601 + $0xe] sm:$0xff]
      %v1604 = vld [vmem:[%s1601 + $0x26] sm:$0xff]
      %v1605 = vld [vmem:[%s1601 + $0x2e] sm:$0xff]
      %v1606 = vld [vmem:[%s1601 + $0x46] sm:$0xff]
      %v1607 = vld [vmem:[%s1601 + $0x4e] sm:$0xff]
      %v1608 = vld [vmem:[%s1601 + $0x66] sm:$0xff]
      %v1609 = vld [vmem:[%s1601 + $0x6e] sm:$0xff]
      %v1610 = vld [vmem:[%s1601 + $0x86] sm:$0xff]
      %v1611 = vld [vmem:[%s1601 + $0x8e] sm:$0xff]
      %v1612 = vld [vmem:[%s1601 + $0xa6] sm:$0xff]
      %v1613 = vld [vmem:[%s1601 + $0xae] sm:$0xff]
      %v1614 = vld [vmem:[%s1601 + $0xc6] sm:$0xff]
      %v1615 = vld [vmem:[%s1601 + $0xce] sm:$0xff]
      %v1616 = vld [vmem:[%s1601 + $0xe6] sm:$0xff]
      %v1617 = vld [vmem:[%s1601 + $0xee] sm:$0xff]
      %v1618 = vld [vmem:[%s1601 + $0x106] sm:$0xff]
      %v1619 = vld [vmem:[%s1601 + $0x10e] sm:$0xff]
      %v1620 = vld [vmem:[%s1601 + $0x126] sm:$0xff]
      %v1621 = vld [vmem:[%s1601 + $0x12e] sm:$0xff]
      %v1622 = vld [vmem:[%s1601 + $0x146] sm:$0xff]
      %v1623 = vld [vmem:[%s1601 + $0x14e] sm:$0xff]
      %v1624 = vld [vmem:[%s1601 + $0x166] sm:$0xff]
      %v1625 = vld [vmem:[%s1601 + $0x16e] sm:$0xff]
      %v1626 = vld [vmem:[%s1601 + $0x186] sm:$0xff]
      %v1627 = vld [vmem:[%s1601 + $0x18e] sm:$0xff]
      %v1628 = vld [vmem:[%s1601 + $0x1a6] sm:$0xff]
      %v1629 = vld [vmem:[%s1601 + $0x1ae] sm:$0xff]
      %v1630 = vld [vmem:[%s1601 + $0x1c6] sm:$0xff]
      %v1631 = vld [vmem:[%s1601 + $0x1ce] sm:$0xff]
      %v1632 = vld [vmem:[%s1601 + $0x1e6] sm:$0xff]
      %v1633 = vld [vmem:[%s1601 + $0x1ee] sm:$0xff]
      %v1634 = vld [vmem:[%s1601 + $0x7] sm:$0xff]
      %v1635 = vld [vmem:[%s1601 + $0xf] sm:$0xff]
      %v1636 = vld [vmem:[%s1601 + $0x27] sm:$0xff]
      %v1637 = vld [vmem:[%s1601 + $0x2f] sm:$0xff]
      %v1638 = vld [vmem:[%s1601 + $0x47] sm:$0xff]
      %v1639 = vld [vmem:[%s1601 + $0x4f] sm:$0xff]
      %v1640 = vld [vmem:[%s1601 + $0x67] sm:$0xff]
      %v1641 = vld [vmem:[%s1601 + $0x6f] sm:$0xff]
      %v1642 = vld [vmem:[%s1601 + $0x87] sm:$0xff]
      %v1643 = vld [vmem:[%s1601 + $0x8f] sm:$0xff]
      %v1644 = vld [vmem:[%s1601 + $0xa7] sm:$0xff]
      %v1645 = vld [vmem:[%s1601 + $0xaf] sm:$0xff]
      %v1646 = vld [vmem:[%s1601 + $0xc7] sm:$0xff]
      %v1647 = vld [vmem:[%s1601 + $0xcf] sm:$0xff]
      %v1648 = vld [vmem:[%s1601 + $0xe7] sm:$0xff]
      %v1649 = vld [vmem:[%s1601 + $0xef] sm:$0xff]
      %v1650 = vld [vmem:[%s1601 + $0x107] sm:$0xff]
      %v1651 = vld [vmem:[%s1601 + $0x10f] sm:$0xff]
      %v1652 = vld [vmem:[%s1601 + $0x127] sm:$0xff]
      %v1653 = vld [vmem:[%s1601 + $0x12f] sm:$0xff]
      %v1654 = vld [vmem:[%s1601 + $0x147] sm:$0xff]
      %v1655 = vld [vmem:[%s1601 + $0x14f] sm:$0xff]
      %v1656 = vld [vmem:[%s1601 + $0x167] sm:$0xff]
      %v1657 = vld [vmem:[%s1601 + $0x16f] sm:$0xff]
      %v1658 = vld [vmem:[%s1601 + $0x187] sm:$0xff]
      %v1659 = vld [vmem:[%s1601 + $0x18f] sm:$0xff]
      %v1660 = vld [vmem:[%s1601 + $0x1a7] sm:$0xff]
      %v1661 = vld [vmem:[%s1601 + $0x1af] sm:$0xff]
      %v1662 = vld [vmem:[%s1601 + $0x1c7] sm:$0xff]
      %v1663 = vld [vmem:[%s1601 + $0x1cf] sm:$0xff]
      %v1664 = vld [vmem:[%s1601 + $0x1e7] sm:$0xff]
      %v1665 = vld [vmem:[%s1601 + $0x1ef] sm:$0xff]
      %v1666 = vld [vmem:[%s1601 + $0x8] sm:$0xff]
      %v1667 = vld [vmem:[%s1601 + $0x10] sm:$0xff]
      %v1668 = vld [vmem:[%s1601 + $0x28] sm:$0xff]
      %v1669 = vld [vmem:[%s1601 + $0x30] sm:$0xff]
      %v1670 = vld [vmem:[%s1601 + $0x48] sm:$0xff]
      %v1671 = vld [vmem:[%s1601 + $0x50] sm:$0xff]
      %v1672 = vld [vmem:[%s1601 + $0x68] sm:$0xff]
      %v1673 = vld [vmem:[%s1601 + $0x70] sm:$0xff]
      %v1674 = vld [vmem:[%s1601 + $0x88] sm:$0xff]
      %v1675 = vld [vmem:[%s1601 + $0x90] sm:$0xff]
      %v1676 = vld [vmem:[%s1601 + $0xa8] sm:$0xff]
      %v1677 = vld [vmem:[%s1601 + $0xb0] sm:$0xff]
      %v1678 = vld [vmem:[%s1601 + $0xc8] sm:$0xff]
      %v1679 = vld [vmem:[%s1601 + $0xd0] sm:$0xff]
      %v1680 = vld [vmem:[%s1601 + $0xe8] sm:$0xff]
      %v1681 = vld [vmem:[%s1601 + $0xf0] sm:$0xff]
      %v1682 = vld [vmem:[%s1601 + $0x108] sm:$0xff]
      %v1683 = vld [vmem:[%s1601 + $0x110] sm:$0xff]
      %v1684 = vld [vmem:[%s1601 + $0x128] sm:$0xff]
      %v1685 = vld [vmem:[%s1601 + $0x130] sm:$0xff]
      %v1686 = vld [vmem:[%s1601 + $0x148] sm:$0xff]
      %v1687 = vld [vmem:[%s1601 + $0x150] sm:$0xff]
      %v1688 = vld [vmem:[%s1601 + $0x168] sm:$0xff]
      %v1689 = vld [vmem:[%s1601 + $0x170] sm:$0xff]
      %v1690 = vld [vmem:[%s1601 + $0x188] sm:$0xff]
      %v1691 = vld [vmem:[%s1601 + $0x190] sm:$0xff]
      %v1692 = vld [vmem:[%s1601 + $0x1a8] sm:$0xff]
      %v1693 = vld [vmem:[%s1601 + $0x1b0] sm:$0xff]
      %v1694 = vld [vmem:[%s1601 + $0x1c8] sm:$0xff]
      %v1695 = vld [vmem:[%s1601 + $0x1d0] sm:$0xff]
      %v1696 = vld [vmem:[%s1601 + $0x1e8] sm:$0xff]
      %v1697 = vld [vmem:[%s1601 + $0x1f0] sm:$0xff]
      %v1698 = vld [vmem:[%s1601 + $0x9] sm:$0xff]
      %v1699 = vld [vmem:[%s1601 + $0x11] sm:$0xff]
      %v1700 = vld [vmem:[%s1601 + $0x29] sm:$0xff]
      %v1701 = vld [vmem:[%s1601 + $0x31] sm:$0xff]
      %v1702 = vld [vmem:[%s1601 + $0x49] sm:$0xff]
      %v1703 = vld [vmem:[%s1601 + $0x51] sm:$0xff]
      %v1704 = vld [vmem:[%s1601 + $0x69] sm:$0xff]
      %v1705 = vld [vmem:[%s1601 + $0x71] sm:$0xff]
      %v1706 = vld [vmem:[%s1601 + $0x89] sm:$0xff]
      %v1707 = vld [vmem:[%s1601 + $0x91] sm:$0xff]
      %v1708 = vld [vmem:[%s1601 + $0xa9] sm:$0xff]
      %v1709 = vld [vmem:[%s1601 + $0xb1] sm:$0xff]
      %v1710 = vld [vmem:[%s1601 + $0xc9] sm:$0xff]
      %v1711 = vld [vmem:[%s1601 + $0xd1] sm:$0xff]
      %v1712 = vld [vmem:[%s1601 + $0xe9] sm:$0xff]
      %v1713 = vld [vmem:[%s1601 + $0xf1] sm:$0xff]
      %v1714 = vld [vmem:[%s1601 + $0x109] sm:$0xff]
      %v1715 = vld [vmem:[%s1601 + $0x111] sm:$0xff]
      %v1716 = vld [vmem:[%s1601 + $0x129] sm:$0xff]
      %v1717 = vld [vmem:[%s1601 + $0x131] sm:$0xff]
      %v1718 = vld [vmem:[%s1601 + $0x149] sm:$0xff]
      %v1719 = vld [vmem:[%s1601 + $0x151] sm:$0xff]
      %v1720 = vld [vmem:[%s1601 + $0x169] sm:$0xff]
      %v1721 = vld [vmem:[%s1601 + $0x171] sm:$0xff]
      %v1722 = vld [vmem:[%s1601 + $0x189] sm:$0xff]
      %v1723 = vld [vmem:[%s1601 + $0x191] sm:$0xff]
      %v1724 = vld [vmem:[%s1601 + $0x1a9] sm:$0xff]
      %v1725 = vld [vmem:[%s1601 + $0x1b1] sm:$0xff]
      %v1726 = vld [vmem:[%s1601 + $0x1c9] sm:$0xff]
      %v1727 = vld [vmem:[%s1601 + $0x1d1] sm:$0xff]
      %v1728 = vld [vmem:[%s1601 + $0x1e9] sm:$0xff]
      %v1729 = vld [vmem:[%s1601 + $0x1f1] sm:$0xff]
      %v1730 = vld [vmem:[%s1601 + $0xa] sm:$0xff]
      %v1731 = vld [vmem:[%s1601 + $0x12] sm:$0xff]
      %v1732 = vld [vmem:[%s1601 + $0x2a] sm:$0xff]
      %v1733 = vld [vmem:[%s1601 + $0x32] sm:$0xff]
      %v1734 = vld [vmem:[%s1601 + $0x4a] sm:$0xff]
      %v1735 = vld [vmem:[%s1601 + $0x52] sm:$0xff]
      %v1736 = vld [vmem:[%s1601 + $0x6a] sm:$0xff]
      %v1737 = vld [vmem:[%s1601 + $0x72] sm:$0xff]
      %v1738 = vld [vmem:[%s1601 + $0x8a] sm:$0xff]
      %v1739 = vld [vmem:[%s1601 + $0x92] sm:$0xff]
      %v1740 = vld [vmem:[%s1601 + $0xaa] sm:$0xff]
      %v1741 = vld [vmem:[%s1601 + $0xb2] sm:$0xff]
      %v1742 = vld [vmem:[%s1601 + $0xca] sm:$0xff]
      %v1743 = vld [vmem:[%s1601 + $0xd2] sm:$0xff]
      %v1744 = vld [vmem:[%s1601 + $0xea] sm:$0xff]
      %v1745 = vld [vmem:[%s1601 + $0xf2] sm:$0xff]
      %v1746 = vld [vmem:[%s1601 + $0x10a] sm:$0xff]
      %v1747 = vld [vmem:[%s1601 + $0x112] sm:$0xff]
      %v1748 = vld [vmem:[%s1601 + $0x12a] sm:$0xff]
      %v1749 = vld [vmem:[%s1601 + $0x132] sm:$0xff]
      %v1750 = vld [vmem:[%s1601 + $0x14a] sm:$0xff]
      %v1751 = vld [vmem:[%s1601 + $0x152] sm:$0xff]
      %v1752 = vld [vmem:[%s1601 + $0x16a] sm:$0xff]
      %v1753 = vld [vmem:[%s1601 + $0x172] sm:$0xff]
      %v1754 = vld [vmem:[%s1601 + $0x18a] sm:$0xff]
      %v1755 = vld [vmem:[%s1601 + $0x192] sm:$0xff]
      %v1756 = vld [vmem:[%s1601 + $0x1aa] sm:$0xff]
      %v1757 = vld [vmem:[%s1601 + $0x1b2] sm:$0xff]
      %v1758 = vld [vmem:[%s1601 + $0x1ca] sm:$0xff]
      %v1759 = vld [vmem:[%s1601 + $0x1d2] sm:$0xff]
      %v1760 = vld [vmem:[%s1601 + $0x1ea] sm:$0xff]
      %v1761 = vld [vmem:[%s1601 + $0x1f2] sm:$0xff]
      %1794 = vrot.lane.b32.xlu0 %v991, 16
      %v1795 = vpop.permute.xlu0 %1794
      %1796 = vrot.lane.b32.xlu0 %v992, 16
      %v1797 = vpop.permute.xlu0 %1796
      %1798 = vrot.lane.b32.xlu0 %v993, 16
      %v1799 = vpop.permute.xlu0 %1798
      %1800 = vrot.lane.b32.xlu0 %v994, 16
      %v1801 = vpop.permute.xlu0 %1800
      %1802 = vrot.lane.b32.xlu0 %v995, 16
      %v1803 = vpop.permute.xlu0 %1802
      %1804 = vrot.lane.b32.xlu0 %v996, 16
      %v1805 = vpop.permute.xlu0 %1804
      %1806 = vrot.lane.b32.xlu0 %v997, 16
      %v1807 = vpop.permute.xlu0 %1806
      %1808 = vrot.lane.b32.xlu0 %v998, 16
      %v1809 = vpop.permute.xlu0 %1808
      %1810 = vrot.lane.b32.xlu0 %v999, 16
      %v1811 = vpop.permute.xlu0 %1810
      %1812 = vrot.lane.b32.xlu0 %v1000, 16
      %v1813 = vpop.permute.xlu0 %1812
      %1814 = vrot.lane.b32.xlu0 %v1001, 16
      %v1815 = vpop.permute.xlu0 %1814
      %1816 = vrot.lane.b32.xlu0 %v1002, 16
      %v1817 = vpop.permute.xlu0 %1816
      %1818 = vrot.lane.b32.xlu0 %v1003, 16
      %v1819 = vpop.permute.xlu0 %1818
      %1820 = vrot.lane.b32.xlu0 %v1004, 16
      %v1821 = vpop.permute.xlu0 %1820
      %1822 = vrot.lane.b32.xlu0 %v1005, 16
      %v1823 = vpop.permute.xlu0 %1822
      %1824 = vrot.lane.b32.xlu0 %v1006, 16
      %v1825 = vpop.permute.xlu0 %1824
      %1826 = vrot.lane.b32.xlu0 %v1007, 16
      %v1827 = vpop.permute.xlu0 %1826
      %1828 = vrot.lane.b32.xlu0 %v1008, 16
      %v1829 = vpop.permute.xlu0 %1828
      %1830 = vrot.lane.b32.xlu0 %v1009, 16
      %v1831 = vpop.permute.xlu0 %1830
      %1832 = vrot.lane.b32.xlu0 %v1010, 16
      %v1833 = vpop.permute.xlu0 %1832
      %1834 = vrot.lane.b32.xlu0 %v1011, 16
      %v1835 = vpop.permute.xlu0 %1834
      %1836 = vrot.lane.b32.xlu0 %v1012, 16
      %v1837 = vpop.permute.xlu0 %1836
      %1838 = vrot.lane.b32.xlu0 %v1013, 16
      %v1839 = vpop.permute.xlu0 %1838
      %1840 = vrot.lane.b32.xlu0 %v1014, 16
      %v1841 = vpop.permute.xlu0 %1840
      %1842 = vrot.lane.b32.xlu0 %v1015, 16
      %v1843 = vpop.permute.xlu0 %1842
      %1844 = vrot.lane.b32.xlu0 %v1016, 16
      %v1845 = vpop.permute.xlu0 %1844
      %1846 = vrot.lane.b32.xlu0 %v1017, 16
      %v1847 = vpop.permute.xlu0 %1846
      %1848 = vrot.lane.b32.xlu0 %v1018, 16
      %v1849 = vpop.permute.xlu0 %1848
      %1850 = vrot.lane.b32.xlu0 %v1019, 16
      %v1851 = vpop.permute.xlu0 %1850
      %1852 = vrot.lane.b32.xlu0 %v1020, 16
      %v1853 = vpop.permute.xlu0 %1852
      %1854 = vrot.lane.b32.xlu0 %v1021, 16
      %v1855 = vpop.permute.xlu0 %1854
      %1856 = vrot.lane.b32.xlu0 %v1022, 16
      %v1857 = vpop.permute.xlu0 %1856
      %1922 = vrot.lane.b32.xlu0 %v1023, 32
      %v1923 = vpop.permute.xlu0 %1922
      %1924 = vrot.lane.b32.xlu0 %v1024, 32
      %v1925 = vpop.permute.xlu0 %1924
      %1926 = vrot.lane.b32.xlu0 %v1025, 32
      %v1927 = vpop.permute.xlu0 %1926
      %1928 = vrot.lane.b32.xlu0 %v1026, 32
      %v1929 = vpop.permute.xlu0 %1928
      %1930 = vrot.lane.b32.xlu0 %v1027, 32
      %v1931 = vpop.permute.xlu0 %1930
      %1932 = vrot.lane.b32.xlu0 %v1028, 32
      %v1933 = vpop.permute.xlu0 %1932
      %1934 = vrot.lane.b32.xlu0 %v1029, 32
      %v1935 = vpop.permute.xlu0 %1934
      %1936 = vrot.lane.b32.xlu0 %v1030, 32
      %v1937 = vpop.permute.xlu0 %1936
      %1938 = vrot.lane.b32.xlu0 %v1031, 32
      %v1939 = vpop.permute.xlu0 %1938
      %1940 = vrot.lane.b32.xlu0 %v1032, 32
      %v1941 = vpop.permute.xlu0 %1940
      %1942 = vrot.lane.b32.xlu0 %v1033, 32
      %v1943 = vpop.permute.xlu0 %1942
      %1944 = vrot.lane.b32.xlu0 %v1034, 32
      %v1945 = vpop.permute.xlu0 %1944
      %1946 = vrot.lane.b32.xlu0 %v1035, 32
      %v1947 = vpop.permute.xlu0 %1946
      %1948 = vrot.lane.b32.xlu0 %v1036, 32
      %v1949 = vpop.permute.xlu0 %1948
      %1950 = vrot.lane.b32.xlu0 %v1037, 32
      %v1951 = vpop.permute.xlu0 %1950
      %1952 = vrot.lane.b32.xlu0 %v1038, 32
      %v1953 = vpop.permute.xlu0 %1952
      %1954 = vrot.lane.b32.xlu0 %v1039, 32
      %v1955 = vpop.permute.xlu0 %1954
      %1956 = vrot.lane.b32.xlu0 %v1040, 32
      %v1957 = vpop.permute.xlu0 %1956
      %1958 = vrot.lane.b32.xlu0 %v1041, 32
      %v1959 = vpop.permute.xlu0 %1958
      %1960 = vrot.lane.b32.xlu0 %v1042, 32
      %v1961 = vpop.permute.xlu0 %1960
      %1962 = vrot.lane.b32.xlu0 %v1043, 32
      %v1963 = vpop.permute.xlu0 %1962
      %1964 = vrot.lane.b32.xlu0 %v1044, 32
      %v1965 = vpop.permute.xlu0 %1964
      %1966 = vrot.lane.b32.xlu0 %v1045, 32
      %v1967 = vpop.permute.xlu0 %1966
      %1968 = vrot.lane.b32.xlu0 %v1046, 32
      %v1969 = vpop.permute.xlu0 %1968
      %1970 = vrot.lane.b32.xlu0 %v1047, 32
      %v1971 = vpop.permute.xlu0 %1970
      %1972 = vrot.lane.b32.xlu0 %v1048, 32
      %v1973 = vpop.permute.xlu0 %1972
      %1974 = vrot.lane.b32.xlu0 %v1049, 32
      %v1975 = vpop.permute.xlu0 %1974
      %1976 = vrot.lane.b32.xlu0 %v1050, 32
      %v1977 = vpop.permute.xlu0 %1976
      %1978 = vrot.lane.b32.xlu0 %v1051, 32
      %v1979 = vpop.permute.xlu0 %1978
      %1980 = vrot.lane.b32.xlu0 %v1052, 32
      %v1981 = vpop.permute.xlu0 %1980
      %1982 = vrot.lane.b32.xlu0 %v1053, 32
      %v1983 = vpop.permute.xlu0 %1982
      %1984 = vrot.lane.b32.xlu0 %v1054, 32
      %v1985 = vpop.permute.xlu0 %1984
      %2050 = vrot.lane.b32.xlu0 %v1055, 48
      %v2051 = vpop.permute.xlu0 %2050
      %2052 = vrot.lane.b32.xlu0 %v1056, 48
      %v2053 = vpop.permute.xlu0 %2052
      %2054 = vrot.lane.b32.xlu0 %v1057, 48
      %v2055 = vpop.permute.xlu0 %2054
      %2056 = vrot.lane.b32.xlu0 %v1058, 48
      %v2057 = vpop.permute.xlu0 %2056
      %2058 = vrot.lane.b32.xlu0 %v1059, 48
      %v2059 = vpop.permute.xlu0 %2058
      %2060 = vrot.lane.b32.xlu0 %v1060, 48
      %v2061 = vpop.permute.xlu0 %2060
      %2062 = vrot.lane.b32.xlu0 %v1061, 48
      %v2063 = vpop.permute.xlu0 %2062
      %2064 = vrot.lane.b32.xlu0 %v1062, 48
      %v2065 = vpop.permute.xlu0 %2064
      %2066 = vrot.lane.b32.xlu0 %v1063, 48
      %v2067 = vpop.permute.xlu0 %2066
      %2068 = vrot.lane.b32.xlu0 %v1064, 48
      %v2069 = vpop.permute.xlu0 %2068
      %2070 = vrot.lane.b32.xlu0 %v1065, 48
      %v2071 = vpop.permute.xlu0 %2070
      %2072 = vrot.lane.b32.xlu0 %v1066, 48
      %v2073 = vpop.permute.xlu0 %2072
      %2074 = vrot.lane.b32.xlu0 %v1067, 48
      %v2075 = vpop.permute.xlu0 %2074
      %2076 = vrot.lane.b32.xlu0 %v1068, 48
      %v2077 = vpop.permute.xlu0 %2076
      %2078 = vrot.lane.b32.xlu0 %v1069, 48
      %v2079 = vpop.permute.xlu0 %2078
      %2080 = vrot.lane.b32.xlu0 %v1070, 48
      %v2081 = vpop.permute.xlu0 %2080
      %2082 = vrot.lane.b32.xlu0 %v1071, 48
      %v2083 = vpop.permute.xlu0 %2082
      %2084 = vrot.lane.b32.xlu0 %v1072, 48
      %v2085 = vpop.permute.xlu0 %2084
      %2086 = vrot.lane.b32.xlu0 %v1073, 48
      %v2087 = vpop.permute.xlu0 %2086
      %2088 = vrot.lane.b32.xlu0 %v1074, 48
      %v2089 = vpop.permute.xlu0 %2088
      %2090 = vrot.lane.b32.xlu0 %v1075, 48
      %v2091 = vpop.permute.xlu0 %2090
      %2092 = vrot.lane.b32.xlu0 %v1076, 48
      %v2093 = vpop.permute.xlu0 %2092
      %2094 = vrot.lane.b32.xlu0 %v1077, 48
      %v2095 = vpop.permute.xlu0 %2094
      %2096 = vrot.lane.b32.xlu0 %v1078, 48
      %v2097 = vpop.permute.xlu0 %2096
      %2098 = vrot.lane.b32.xlu0 %v1079, 48
      %v2099 = vpop.permute.xlu0 %2098
      %2100 = vrot.lane.b32.xlu0 %v1080, 48
      %v2101 = vpop.permute.xlu0 %2100
      %2102 = vrot.lane.b32.xlu0 %v1081, 48
      %v2103 = vpop.permute.xlu0 %2102
      %2104 = vrot.lane.b32.xlu0 %v1082, 48
      %v2105 = vpop.permute.xlu0 %2104
      %2106 = vrot.lane.b32.xlu0 %v1083, 48
      %v2107 = vpop.permute.xlu0 %2106
      %2108 = vrot.lane.b32.xlu0 %v1084, 48
      %v2109 = vpop.permute.xlu0 %2108
      %2110 = vrot.lane.b32.xlu0 %v1085, 48
      %v2111 = vpop.permute.xlu0 %2110
      %2112 = vrot.lane.b32.xlu0 %v1086, 48
      %v2113 = vpop.permute.xlu0 %2112
      %2178 = vrot.lane.b32.xlu0 %v1087, 64
      %v2179 = vpop.permute.xlu0 %2178
      %2180 = vrot.lane.b32.xlu0 %v1088, 64
      %v2181 = vpop.permute.xlu0 %2180
      %2182 = vrot.lane.b32.xlu0 %v1089, 64
      %v2183 = vpop.permute.xlu0 %2182
      %2184 = vrot.lane.b32.xlu0 %v1090, 64
      %v2185 = vpop.permute.xlu0 %2184
      %2186 = vrot.lane.b32.xlu0 %v1091, 64
      %v2187 = vpop.permute.xlu0 %2186
      %2188 = vrot.lane.b32.xlu0 %v1092, 64
      %v2189 = vpop.permute.xlu0 %2188
      %2190 = vrot.lane.b32.xlu0 %v1093, 64
      %v2191 = vpop.permute.xlu0 %2190
      %2192 = vrot.lane.b32.xlu0 %v1094, 64
      %v2193 = vpop.permute.xlu0 %2192
      %2194 = vrot.lane.b32.xlu0 %v1095, 64
      %v2195 = vpop.permute.xlu0 %2194
      %2196 = vrot.lane.b32.xlu0 %v1096, 64
      %v2197 = vpop.permute.xlu0 %2196
      %2198 = vrot.lane.b32.xlu0 %v1097, 64
      %v2199 = vpop.permute.xlu0 %2198
      %2200 = vrot.lane.b32.xlu0 %v1098, 64
      %v2201 = vpop.permute.xlu0 %2200
      %2202 = vrot.lane.b32.xlu0 %v1099, 64
      %v2203 = vpop.permute.xlu0 %2202
      %2204 = vrot.lane.b32.xlu0 %v1100, 64
      %v2205 = vpop.permute.xlu0 %2204
      %2206 = vrot.lane.b32.xlu0 %v1101, 64
      %v2207 = vpop.permute.xlu0 %2206
      %2208 = vrot.lane.b32.xlu0 %v1102, 64
      %v2209 = vpop.permute.xlu0 %2208
      %2210 = vrot.lane.b32.xlu0 %v1103, 64
      %v2211 = vpop.permute.xlu0 %2210
      %2212 = vrot.lane.b32.xlu0 %v1104, 64
      %v2213 = vpop.permute.xlu0 %2212
      %2214 = vrot.lane.b32.xlu0 %v1105, 64
      %v2215 = vpop.permute.xlu0 %2214
      %2216 = vrot.lane.b32.xlu0 %v1106, 64
      %v2217 = vpop.permute.xlu0 %2216
      %2218 = vrot.lane.b32.xlu0 %v1107, 64
      %v2219 = vpop.permute.xlu0 %2218
      %2220 = vrot.lane.b32.xlu0 %v1108, 64
      %v2221 = vpop.permute.xlu0 %2220
      %2222 = vrot.lane.b32.xlu0 %v1109, 64
      %v2223 = vpop.permute.xlu0 %2222
      %2224 = vrot.lane.b32.xlu0 %v1110, 64
      %v2225 = vpop.permute.xlu0 %2224
      %2226 = vrot.lane.b32.xlu0 %v1111, 64
      %v2227 = vpop.permute.xlu0 %2226
      %2228 = vrot.lane.b32.xlu0 %v1112, 64
      %v2229 = vpop.permute.xlu0 %2228
      %2230 = vrot.lane.b32.xlu0 %v1113, 64
      %v2231 = vpop.permute.xlu0 %2230
      %2232 = vrot.lane.b32.xlu0 %v1114, 64
      %v2233 = vpop.permute.xlu0 %2232
      %2234 = vrot.lane.b32.xlu0 %v1115, 64
      %v2235 = vpop.permute.xlu0 %2234
      %2236 = vrot.lane.b32.xlu0 %v1116, 64
      %v2237 = vpop.permute.xlu0 %2236
      %2238 = vrot.lane.b32.xlu0 %v1117, 64
      %v2239 = vpop.permute.xlu0 %2238
      %2240 = vrot.lane.b32.xlu0 %v1118, 64
      %v2241 = vpop.permute.xlu0 %2240
      %2306 = vrot.lane.b32.xlu0 %v1120, 80
      %v2307 = vpop.permute.xlu0 %2306
      %2308 = vrot.lane.b32.xlu0 %v1121, 80
      %v2309 = vpop.permute.xlu0 %2308
      %2310 = vrot.lane.b32.xlu0 %v1122, 80
      %v2311 = vpop.permute.xlu0 %2310
      %2312 = vrot.lane.b32.xlu0 %v1123, 80
      %v2313 = vpop.permute.xlu0 %2312
      %2314 = vrot.lane.b32.xlu0 %v1124, 80
      %v2315 = vpop.permute.xlu0 %2314
      %2316 = vrot.lane.b32.xlu0 %v1125, 80
      %v2317 = vpop.permute.xlu0 %2316
      %2318 = vrot.lane.b32.xlu0 %v1126, 80
      %v2319 = vpop.permute.xlu0 %2318
      %2320 = vrot.lane.b32.xlu0 %v1127, 80
      %v2321 = vpop.permute.xlu0 %2320
      %2322 = vrot.lane.b32.xlu0 %v1128, 80
      %v2323 = vpop.permute.xlu0 %2322
      %2324 = vrot.lane.b32.xlu0 %v1129, 80
      %v2325 = vpop.permute.xlu0 %2324
      %2326 = vrot.lane.b32.xlu0 %v1130, 80
      %v2327 = vpop.permute.xlu0 %2326
      %2328 = vrot.lane.b32.xlu0 %v1131, 80
      %v2329 = vpop.permute.xlu0 %2328
      %2330 = vrot.lane.b32.xlu0 %v1132, 80
      %v2331 = vpop.permute.xlu0 %2330
      %2332 = vrot.lane.b32.xlu0 %v1133, 80
      %v2333 = vpop.permute.xlu0 %2332
      %2334 = vrot.lane.b32.xlu0 %v1134, 80
      %v2335 = vpop.permute.xlu0 %2334
      %2336 = vrot.lane.b32.xlu0 %v1135, 80
      %v2337 = vpop.permute.xlu0 %2336
      %2338 = vrot.lane.b32.xlu0 %v1136, 80
      %v2339 = vpop.permute.xlu0 %2338
      %2340 = vrot.lane.b32.xlu0 %v1137, 80
      %v2341 = vpop.permute.xlu0 %2340
      %2342 = vrot.lane.b32.xlu0 %v1138, 80
      %v2343 = vpop.permute.xlu0 %2342
      %2344 = vrot.lane.b32.xlu0 %v1139, 80
      %v2345 = vpop.permute.xlu0 %2344
      %2346 = vrot.lane.b32.xlu0 %v1140, 80
      %v2347 = vpop.permute.xlu0 %2346
      %2348 = vrot.lane.b32.xlu0 %v1141, 80
      %v2349 = vpop.permute.xlu0 %2348
      %2350 = vrot.lane.b32.xlu0 %v1142, 80
      %v2351 = vpop.permute.xlu0 %2350
      %2352 = vrot.lane.b32.xlu0 %v1143, 80
      %v2353 = vpop.permute.xlu0 %2352
      %2354 = vrot.lane.b32.xlu0 %v1144, 80
      %v2355 = vpop.permute.xlu0 %2354
      %2356 = vrot.lane.b32.xlu0 %v1145, 80
      %v2357 = vpop.permute.xlu0 %2356
      %2358 = vrot.lane.b32.xlu0 %v1146, 80
      %v2359 = vpop.permute.xlu0 %2358
      %2360 = vrot.lane.b32.xlu0 %v1147, 80
      %v2361 = vpop.permute.xlu0 %2360
      %2362 = vrot.lane.b32.xlu0 %v1148, 80
      %v2363 = vpop.permute.xlu0 %2362
      %2364 = vrot.lane.b32.xlu0 %v1149, 80
      %v2365 = vpop.permute.xlu0 %2364
      %2366 = vrot.lane.b32.xlu0 %v1150, 80
      %v2367 = vpop.permute.xlu0 %2366
      %2368 = vrot.lane.b32.xlu0 %v1151, 80
      %v2369 = vpop.permute.xlu0 %2368
      %2434 = vrot.lane.b32.xlu0 %v1152, 96
      %v2435 = vpop.permute.xlu0 %2434
      %2436 = vrot.lane.b32.xlu0 %v1153, 96
      %v2437 = vpop.permute.xlu0 %2436
      %2438 = vrot.lane.b32.xlu0 %v1154, 96
      %v2439 = vpop.permute.xlu0 %2438
      %2440 = vrot.lane.b32.xlu0 %v1155, 96
      %v2441 = vpop.permute.xlu0 %2440
      %2442 = vrot.lane.b32.xlu0 %v1156, 96
      %v2443 = vpop.permute.xlu0 %2442
      %2444 = vrot.lane.b32.xlu0 %v1157, 96
      %v2445 = vpop.permute.xlu0 %2444
      %2446 = vrot.lane.b32.xlu0 %v1158, 96
      %v2447 = vpop.permute.xlu0 %2446
      %2448 = vrot.lane.b32.xlu0 %v1159, 96
      %v2449 = vpop.permute.xlu0 %2448
      %2450 = vrot.lane.b32.xlu0 %v1160, 96
      %v2451 = vpop.permute.xlu0 %2450
      %2452 = vrot.lane.b32.xlu0 %v1161, 96
      %v2453 = vpop.permute.xlu0 %2452
      %2454 = vrot.lane.b32.xlu0 %v1162, 96
      %v2455 = vpop.permute.xlu0 %2454
      %2456 = vrot.lane.b32.xlu0 %v1163, 96
      %v2457 = vpop.permute.xlu0 %2456
      %2458 = vrot.lane.b32.xlu0 %v1164, 96
      %v2459 = vpop.permute.xlu0 %2458
      %2460 = vrot.lane.b32.xlu0 %v1165, 96
      %v2461 = vpop.permute.xlu0 %2460
      %2462 = vrot.lane.b32.xlu0 %v1166, 96
      %v2463 = vpop.permute.xlu0 %2462
      %2464 = vrot.lane.b32.xlu0 %v1167, 96
      %v2465 = vpop.permute.xlu0 %2464
      %2466 = vrot.lane.b32.xlu0 %v1168, 96
      %v2467 = vpop.permute.xlu0 %2466
      %2468 = vrot.lane.b32.xlu0 %v1169, 96
      %v2469 = vpop.permute.xlu0 %2468
      %2470 = vrot.lane.b32.xlu0 %v1170, 96
      %v2471 = vpop.permute.xlu0 %2470
      %2472 = vrot.lane.b32.xlu0 %v1171, 96
      %v2473 = vpop.permute.xlu0 %2472
      %2474 = vrot.lane.b32.xlu0 %v1172, 96
      %v2475 = vpop.permute.xlu0 %2474
      %2476 = vrot.lane.b32.xlu0 %v1173, 96
      %v2477 = vpop.permute.xlu0 %2476
      %2478 = vrot.lane.b32.xlu0 %v1174, 96
      %v2479 = vpop.permute.xlu0 %2478
      %2480 = vrot.lane.b32.xlu0 %v1175, 96
      %v2481 = vpop.permute.xlu0 %2480
      %2482 = vrot.lane.b32.xlu0 %v1176, 96
      %v2483 = vpop.permute.xlu0 %2482
      %2484 = vrot.lane.b32.xlu0 %v1177, 96
      %v2485 = vpop.permute.xlu0 %2484
      %2486 = vrot.lane.b32.xlu0 %v1178, 96
      %v2487 = vpop.permute.xlu0 %2486
      %2488 = vrot.lane.b32.xlu0 %v1179, 96
      %v2489 = vpop.permute.xlu0 %2488
      %2490 = vrot.lane.b32.xlu0 %v1180, 96
      %v2491 = vpop.permute.xlu0 %2490
      %2492 = vrot.lane.b32.xlu0 %v1181, 96
      %v2493 = vpop.permute.xlu0 %2492
      %2494 = vrot.lane.b32.xlu0 %v1182, 96
      %v2495 = vpop.permute.xlu0 %2494
      %2496 = vrot.lane.b32.xlu0 %v1183, 96
      %v2497 = vpop.permute.xlu0 %2496
      %2562 = vrot.lane.b32.xlu0 %v1184, 112
      %v2563 = vpop.permute.xlu0 %2562
      %2564 = vrot.lane.b32.xlu0 %v1185, 112
      %v2565 = vpop.permute.xlu0 %2564
      %2566 = vrot.lane.b32.xlu0 %v1186, 112
      %v2567 = vpop.permute.xlu0 %2566
      %2568 = vrot.lane.b32.xlu0 %v1187, 112
      %v2569 = vpop.permute.xlu0 %2568
      %2570 = vrot.lane.b32.xlu0 %v1188, 112
      %v2571 = vpop.permute.xlu0 %2570
      %2572 = vrot.lane.b32.xlu0 %v1189, 112
      %v2573 = vpop.permute.xlu0 %2572
      %2574 = vrot.lane.b32.xlu0 %v1190, 112
      %v2575 = vpop.permute.xlu0 %2574
      %2576 = vrot.lane.b32.xlu0 %v1191, 112
      %v2577 = vpop.permute.xlu0 %2576
      %2578 = vrot.lane.b32.xlu0 %v1192, 112
      %v2579 = vpop.permute.xlu0 %2578
      %2580 = vrot.lane.b32.xlu0 %v1193, 112
      %v2581 = vpop.permute.xlu0 %2580
      %2582 = vrot.lane.b32.xlu0 %v1194, 112
      %v2583 = vpop.permute.xlu0 %2582
      %2584 = vrot.lane.b32.xlu0 %v1195, 112
      %v2585 = vpop.permute.xlu0 %2584
      %2586 = vrot.lane.b32.xlu0 %v1196, 112
      %v2587 = vpop.permute.xlu0 %2586
      %2588 = vrot.lane.b32.xlu0 %v1197, 112
      %v2589 = vpop.permute.xlu0 %2588
      %2590 = vrot.lane.b32.xlu0 %v1198, 112
      %v2591 = vpop.permute.xlu0 %2590
      %2592 = vrot.lane.b32.xlu0 %v1199, 112
      %v2593 = vpop.permute.xlu0 %2592
      %2594 = vrot.lane.b32.xlu0 %v1200, 112
      %v2595 = vpop.permute.xlu0 %2594
      %2596 = vrot.lane.b32.xlu0 %v1201, 112
      %v2597 = vpop.permute.xlu0 %2596
      %2598 = vrot.lane.b32.xlu0 %v1202, 112
      %v2599 = vpop.permute.xlu0 %2598
      %2600 = vrot.lane.b32.xlu0 %v1203, 112
      %v2601 = vpop.permute.xlu0 %2600
      %2602 = vrot.lane.b32.xlu0 %v1204, 112
      %v2603 = vpop.permute.xlu0 %2602
      %2604 = vrot.lane.b32.xlu0 %v1205, 112
      %v2605 = vpop.permute.xlu0 %2604
      %2606 = vrot.lane.b32.xlu0 %v1206, 112
      %v2607 = vpop.permute.xlu0 %2606
      %2608 = vrot.lane.b32.xlu0 %v1207, 112
      %v2609 = vpop.permute.xlu0 %2608
      %2610 = vrot.lane.b32.xlu0 %v1208, 112
      %v2611 = vpop.permute.xlu0 %2610
      %2612 = vrot.lane.b32.xlu0 %v1209, 112
      %v2613 = vpop.permute.xlu0 %2612
      %2614 = vrot.lane.b32.xlu0 %v1210, 112
      %v2615 = vpop.permute.xlu0 %2614
      %2616 = vrot.lane.b32.xlu0 %v1211, 112
      %v2617 = vpop.permute.xlu0 %2616
      %2618 = vrot.lane.b32.xlu0 %v1212, 112
      %v2619 = vpop.permute.xlu0 %2618
      %2620 = vrot.lane.b32.xlu0 %v1213, 112
      %v2621 = vpop.permute.xlu0 %2620
      %2622 = vrot.lane.b32.xlu0 %v1214, 112
      %v2623 = vpop.permute.xlu0 %2622
      %2624 = vrot.lane.b32.xlu0 %v1215, 112
      %v2625 = vpop.permute.xlu0 %2624
      %2690 = vrot.lane.b32.xlu0 %v1248, 16
      %v2691 = vpop.permute.xlu0 %2690
      %2692 = vrot.lane.b32.xlu0 %v1249, 16
      %v2693 = vpop.permute.xlu0 %2692
      %2694 = vrot.lane.b32.xlu0 %v1250, 16
      %v2695 = vpop.permute.xlu0 %2694
      %2696 = vrot.lane.b32.xlu0 %v1251, 16
      %v2697 = vpop.permute.xlu0 %2696
      %2698 = vrot.lane.b32.xlu0 %v1252, 16
      %v2699 = vpop.permute.xlu0 %2698
      %2700 = vrot.lane.b32.xlu0 %v1253, 16
      %v2701 = vpop.permute.xlu0 %2700
      %2702 = vrot.lane.b32.xlu0 %v1254, 16
      %v2703 = vpop.permute.xlu0 %2702
      %2704 = vrot.lane.b32.xlu0 %v1255, 16
      %v2705 = vpop.permute.xlu0 %2704
      %2706 = vrot.lane.b32.xlu0 %v1256, 16
      %v2707 = vpop.permute.xlu0 %2706
      %2708 = vrot.lane.b32.xlu0 %v1257, 16
      %v2709 = vpop.permute.xlu0 %2708
      %2710 = vrot.lane.b32.xlu0 %v1258, 16
      %v2711 = vpop.permute.xlu0 %2710
      %2712 = vrot.lane.b32.xlu0 %v1259, 16
      %v2713 = vpop.permute.xlu0 %2712
      %2714 = vrot.lane.b32.xlu0 %v1260, 16
      %v2715 = vpop.permute.xlu0 %2714
      %2716 = vrot.lane.b32.xlu0 %v1261, 16
      %v2717 = vpop.permute.xlu0 %2716
      %2718 = vrot.lane.b32.xlu0 %v1262, 16
      %v2719 = vpop.permute.xlu0 %2718
      %2720 = vrot.lane.b32.xlu0 %v1263, 16
      %v2721 = vpop.permute.xlu0 %2720
      %2722 = vrot.lane.b32.xlu0 %v1264, 16
      %v2723 = vpop.permute.xlu0 %2722
      %2724 = vrot.lane.b32.xlu0 %v1265, 16
      %v2725 = vpop.permute.xlu0 %2724
      %2726 = vrot.lane.b32.xlu0 %v1266, 16
      %v2727 = vpop.permute.xlu0 %2726
      %2728 = vrot.lane.b32.xlu0 %v1267, 16
      %v2729 = vpop.permute.xlu0 %2728
      %2730 = vrot.lane.b32.xlu0 %v1268, 16
      %v2731 = vpop.permute.xlu0 %2730
      %2732 = vrot.lane.b32.xlu0 %v1269, 16
      %v2733 = vpop.permute.xlu0 %2732
      %2734 = vrot.lane.b32.xlu0 %v1270, 16
      %v2735 = vpop.permute.xlu0 %2734
      %2736 = vrot.lane.b32.xlu0 %v1271, 16
      %v2737 = vpop.permute.xlu0 %2736
      %2738 = vrot.lane.b32.xlu0 %v1272, 16
      %v2739 = vpop.permute.xlu0 %2738
      %2740 = vrot.lane.b32.xlu0 %v1273, 16
      %v2741 = vpop.permute.xlu0 %2740
      %2742 = vrot.lane.b32.xlu0 %v1274, 16
      %v2743 = vpop.permute.xlu0 %2742
      %2744 = vrot.lane.b32.xlu0 %v1275, 16
      %v2745 = vpop.permute.xlu0 %2744
      %2746 = vrot.lane.b32.xlu0 %v1276, 16
      %v2747 = vpop.permute.xlu0 %2746
      %2748 = vrot.lane.b32.xlu0 %v1277, 16
      %v2749 = vpop.permute.xlu0 %2748
      %2750 = vrot.lane.b32.xlu0 %v1278, 16
      %v2751 = vpop.permute.xlu0 %2750
      %2752 = vrot.lane.b32.xlu0 %v1279, 16
      %v2753 = vpop.permute.xlu0 %2752
      %2818 = vrot.lane.b32.xlu0 %v1280, 32
      %v2819 = vpop.permute.xlu0 %2818
      %2820 = vrot.lane.b32.xlu0 %v1281, 32
      %v2821 = vpop.permute.xlu0 %2820
      %2822 = vrot.lane.b32.xlu0 %v1282, 32
      %v2823 = vpop.permute.xlu0 %2822
      %2824 = vrot.lane.b32.xlu0 %v1283, 32
      %v2825 = vpop.permute.xlu0 %2824
      %2826 = vrot.lane.b32.xlu0 %v1284, 32
      %v2827 = vpop.permute.xlu0 %2826
      %2828 = vrot.lane.b32.xlu0 %v1285, 32
      %v2829 = vpop.permute.xlu0 %2828
      %2830 = vrot.lane.b32.xlu0 %v1286, 32
      %v2831 = vpop.permute.xlu0 %2830
      %2832 = vrot.lane.b32.xlu0 %v1287, 32
      %v2833 = vpop.permute.xlu0 %2832
      %2834 = vrot.lane.b32.xlu0 %v1288, 32
      %v2835 = vpop.permute.xlu0 %2834
      %2836 = vrot.lane.b32.xlu0 %v1289, 32
      %v2837 = vpop.permute.xlu0 %2836
      %2838 = vrot.lane.b32.xlu0 %v1290, 32
      %v2839 = vpop.permute.xlu0 %2838
      %2840 = vrot.lane.b32.xlu0 %v1291, 32
      %v2841 = vpop.permute.xlu0 %2840
      %2842 = vrot.lane.b32.xlu0 %v1292, 32
      %v2843 = vpop.permute.xlu0 %2842
      %2844 = vrot.lane.b32.xlu0 %v1293, 32
      %v2845 = vpop.permute.xlu0 %2844
      %2846 = vrot.lane.b32.xlu0 %v1294, 32
      %v2847 = vpop.permute.xlu0 %2846
      %2848 = vrot.lane.b32.xlu0 %v1295, 32
      %v2849 = vpop.permute.xlu0 %2848
      %2850 = vrot.lane.b32.xlu0 %v1296, 32
      %v2851 = vpop.permute.xlu0 %2850
      %2852 = vrot.lane.b32.xlu0 %v1297, 32
      %v2853 = vpop.permute.xlu0 %2852
      %2854 = vrot.lane.b32.xlu0 %v1298, 32
      %v2855 = vpop.permute.xlu0 %2854
      %2856 = vrot.lane.b32.xlu0 %v1299, 32
      %v2857 = vpop.permute.xlu0 %2856
      %2858 = vrot.lane.b32.xlu0 %v1300, 32
      %v2859 = vpop.permute.xlu0 %2858
      %2860 = vrot.lane.b32.xlu0 %v1301, 32
      %v2861 = vpop.permute.xlu0 %2860
      %2862 = vrot.lane.b32.xlu0 %v1302, 32
      %v2863 = vpop.permute.xlu0 %2862
      %2864 = vrot.lane.b32.xlu0 %v1303, 32
      %v2865 = vpop.permute.xlu0 %2864
      %2866 = vrot.lane.b32.xlu0 %v1304, 32
      %v2867 = vpop.permute.xlu0 %2866
      %2868 = vrot.lane.b32.xlu0 %v1305, 32
      %v2869 = vpop.permute.xlu0 %2868
      %2870 = vrot.lane.b32.xlu0 %v1306, 32
      %v2871 = vpop.permute.xlu0 %2870
      %2872 = vrot.lane.b32.xlu0 %v1307, 32
      %v2873 = vpop.permute.xlu0 %2872
      %2874 = vrot.lane.b32.xlu0 %v1308, 32
      %v2875 = vpop.permute.xlu0 %2874
      %2876 = vrot.lane.b32.xlu0 %v1309, 32
      %v2877 = vpop.permute.xlu0 %2876
      %2878 = vrot.lane.b32.xlu0 %v1310, 32
      %v2879 = vpop.permute.xlu0 %2878
      %2880 = vrot.lane.b32.xlu0 %v1311, 32
      %v2881 = vpop.permute.xlu0 %2880
      %2946 = vrot.lane.b32.xlu0 %v1312, 48
      %v2947 = vpop.permute.xlu0 %2946
      %2948 = vrot.lane.b32.xlu0 %v1313, 48
      %v2949 = vpop.permute.xlu0 %2948
      %2950 = vrot.lane.b32.xlu0 %v1314, 48
      %v2951 = vpop.permute.xlu0 %2950
      %2952 = vrot.lane.b32.xlu0 %v1315, 48
      %v2953 = vpop.permute.xlu0 %2952
      %2954 = vrot.lane.b32.xlu0 %v1316, 48
      %v2955 = vpop.permute.xlu0 %2954
      %2956 = vrot.lane.b32.xlu0 %v1317, 48
      %v2957 = vpop.permute.xlu0 %2956
      %2958 = vrot.lane.b32.xlu0 %v1318, 48
      %v2959 = vpop.permute.xlu0 %2958
      %2960 = vrot.lane.b32.xlu0 %v1319, 48
      %v2961 = vpop.permute.xlu0 %2960
      %2962 = vrot.lane.b32.xlu0 %v1320, 48
      %v2963 = vpop.permute.xlu0 %2962
      %2964 = vrot.lane.b32.xlu0 %v1321, 48
      %v2965 = vpop.permute.xlu0 %2964
      %2966 = vrot.lane.b32.xlu0 %v1322, 48
      %v2967 = vpop.permute.xlu0 %2966
      %2968 = vrot.lane.b32.xlu0 %v1323, 48
      %v2969 = vpop.permute.xlu0 %2968
      %2970 = vrot.lane.b32.xlu0 %v1324, 48
      %v2971 = vpop.permute.xlu0 %2970
      %2972 = vrot.lane.b32.xlu0 %v1325, 48
      %v2973 = vpop.permute.xlu0 %2972
      %2974 = vrot.lane.b32.xlu0 %v1326, 48
      %v2975 = vpop.permute.xlu0 %2974
      %2976 = vrot.lane.b32.xlu0 %v1327, 48
      %v2977 = vpop.permute.xlu0 %2976
      %2978 = vrot.lane.b32.xlu0 %v1328, 48
      %v2979 = vpop.permute.xlu0 %2978
      %2980 = vrot.lane.b32.xlu0 %v1329, 48
      %v2981 = vpop.permute.xlu0 %2980
      %2982 = vrot.lane.b32.xlu0 %v1330, 48
      %v2983 = vpop.permute.xlu0 %2982
      %2984 = vrot.lane.b32.xlu0 %v1331, 48
      %v2985 = vpop.permute.xlu0 %2984
      %2986 = vrot.lane.b32.xlu0 %v1332, 48
      %v2987 = vpop.permute.xlu0 %2986
      %2988 = vrot.lane.b32.xlu0 %v1333, 48
      %v2989 = vpop.permute.xlu0 %2988
      %2990 = vrot.lane.b32.xlu0 %v1334, 48
      %v2991 = vpop.permute.xlu0 %2990
      %2992 = vrot.lane.b32.xlu0 %v1335, 48
      %v2993 = vpop.permute.xlu0 %2992
      %2994 = vrot.lane.b32.xlu0 %v1336, 48
      %v2995 = vpop.permute.xlu0 %2994
      %2996 = vrot.lane.b32.xlu0 %v1337, 48
      %v2997 = vpop.permute.xlu0 %2996
      %2998 = vrot.lane.b32.xlu0 %v1338, 48
      %v2999 = vpop.permute.xlu0 %2998
      %3000 = vrot.lane.b32.xlu0 %v1339, 48
      %v3001 = vpop.permute.xlu0 %3000
      %3002 = vrot.lane.b32.xlu0 %v1340, 48
      %v3003 = vpop.permute.xlu0 %3002
      %3004 = vrot.lane.b32.xlu0 %v1341, 48
      %v3005 = vpop.permute.xlu0 %3004
      %3006 = vrot.lane.b32.xlu0 %v1342, 48
      %v3007 = vpop.permute.xlu0 %3006
      %3008 = vrot.lane.b32.xlu0 %v1343, 48
      %v3009 = vpop.permute.xlu0 %3008
      %3074 = vrot.lane.b32.xlu0 %v1344, 64
      %v3075 = vpop.permute.xlu0 %3074
      %3076 = vrot.lane.b32.xlu0 %v1345, 64
      %v3077 = vpop.permute.xlu0 %3076
      %3078 = vrot.lane.b32.xlu0 %v1346, 64
      %v3079 = vpop.permute.xlu0 %3078
      %3080 = vrot.lane.b32.xlu0 %v1347, 64
      %v3081 = vpop.permute.xlu0 %3080
      %3082 = vrot.lane.b32.xlu0 %v1348, 64
      %v3083 = vpop.permute.xlu0 %3082
      %3084 = vrot.lane.b32.xlu0 %v1349, 64
      %v3085 = vpop.permute.xlu0 %3084
      %3086 = vrot.lane.b32.xlu0 %v1350, 64
      %v3087 = vpop.permute.xlu0 %3086
      %3088 = vrot.lane.b32.xlu0 %v1351, 64
      %v3089 = vpop.permute.xlu0 %3088
      %3090 = vrot.lane.b32.xlu0 %v1352, 64
      %v3091 = vpop.permute.xlu0 %3090
      %3092 = vrot.lane.b32.xlu0 %v1353, 64
      %v3093 = vpop.permute.xlu0 %3092
      %3094 = vrot.lane.b32.xlu0 %v1354, 64
      %v3095 = vpop.permute.xlu0 %3094
      %3096 = vrot.lane.b32.xlu0 %v1355, 64
      %v3097 = vpop.permute.xlu0 %3096
      %3098 = vrot.lane.b32.xlu0 %v1356, 64
      %v3099 = vpop.permute.xlu0 %3098
      %3100 = vrot.lane.b32.xlu0 %v1357, 64
      %v3101 = vpop.permute.xlu0 %3100
      %3102 = vrot.lane.b32.xlu0 %v1358, 64
      %v3103 = vpop.permute.xlu0 %3102
      %3104 = vrot.lane.b32.xlu0 %v1359, 64
      %v3105 = vpop.permute.xlu0 %3104
      %3106 = vrot.lane.b32.xlu0 %v1360, 64
      %v3107 = vpop.permute.xlu0 %3106
      %3108 = vrot.lane.b32.xlu0 %v1361, 64
      %v3109 = vpop.permute.xlu0 %3108
      %3110 = vrot.lane.b32.xlu0 %v1362, 64
      %v3111 = vpop.permute.xlu0 %3110
      %3112 = vrot.lane.b32.xlu0 %v1363, 64
      %v3113 = vpop.permute.xlu0 %3112
      %3114 = vrot.lane.b32.xlu0 %v1364, 64
      %v3115 = vpop.permute.xlu0 %3114
      %3116 = vrot.lane.b32.xlu0 %v1365, 64
      %v3117 = vpop.permute.xlu0 %3116
      %3118 = vrot.lane.b32.xlu0 %v1366, 64
      %v3119 = vpop.permute.xlu0 %3118
      %3120 = vrot.lane.b32.xlu0 %v1367, 64
      %v3121 = vpop.permute.xlu0 %3120
      %3122 = vrot.lane.b32.xlu0 %v1368, 64
      %v3123 = vpop.permute.xlu0 %3122
      %3124 = vrot.lane.b32.xlu0 %v1369, 64
      %v3125 = vpop.permute.xlu0 %3124
      %3126 = vrot.lane.b32.xlu0 %v1370, 64
      %v3127 = vpop.permute.xlu0 %3126
      %3128 = vrot.lane.b32.xlu0 %v1371, 64
      %v3129 = vpop.permute.xlu0 %3128
      %3130 = vrot.lane.b32.xlu0 %v1372, 64
      %v3131 = vpop.permute.xlu0 %3130
      %3132 = vrot.lane.b32.xlu0 %v1373, 64
      %v3133 = vpop.permute.xlu0 %3132
      %3134 = vrot.lane.b32.xlu0 %v1374, 64
      %v3135 = vpop.permute.xlu0 %3134
      %3136 = vrot.lane.b32.xlu0 %v1375, 64
      %v3137 = vpop.permute.xlu0 %3136
      %3202 = vrot.lane.b32.xlu0 %v1376, 80
      %v3203 = vpop.permute.xlu0 %3202
      %3204 = vrot.lane.b32.xlu0 %v1377, 80
      %v3205 = vpop.permute.xlu0 %3204
      %3206 = vrot.lane.b32.xlu0 %v1378, 80
      %v3207 = vpop.permute.xlu0 %3206
      %3208 = vrot.lane.b32.xlu0 %v1379, 80
      %v3209 = vpop.permute.xlu0 %3208
      %3210 = vrot.lane.b32.xlu0 %v1380, 80
      %v3211 = vpop.permute.xlu0 %3210
      %3212 = vrot.lane.b32.xlu0 %v1381, 80
      %v3213 = vpop.permute.xlu0 %3212
      %3214 = vrot.lane.b32.xlu0 %v1382, 80
      %v3215 = vpop.permute.xlu0 %3214
      %3216 = vrot.lane.b32.xlu0 %v1383, 80
      %v3217 = vpop.permute.xlu0 %3216
      %3218 = vrot.lane.b32.xlu0 %v1384, 80
      %v3219 = vpop.permute.xlu0 %3218
      %3220 = vrot.lane.b32.xlu0 %v1385, 80
      %v3221 = vpop.permute.xlu0 %3220
      %3222 = vrot.lane.b32.xlu0 %v1386, 80
      %v3223 = vpop.permute.xlu0 %3222
      %3224 = vrot.lane.b32.xlu0 %v1387, 80
      %v3225 = vpop.permute.xlu0 %3224
      %3226 = vrot.lane.b32.xlu0 %v1388, 80
      %v3227 = vpop.permute.xlu0 %3226
      %3228 = vrot.lane.b32.xlu0 %v1389, 80
      %v3229 = vpop.permute.xlu0 %3228
      %3230 = vrot.lane.b32.xlu0 %v1390, 80
      %v3231 = vpop.permute.xlu0 %3230
      %3232 = vrot.lane.b32.xlu0 %v1391, 80
      %v3233 = vpop.permute.xlu0 %3232
      %3234 = vrot.lane.b32.xlu0 %v1392, 80
      %v3235 = vpop.permute.xlu0 %3234
      %3236 = vrot.lane.b32.xlu0 %v1393, 80
      %v3237 = vpop.permute.xlu0 %3236
      %3238 = vrot.lane.b32.xlu0 %v1394, 80
      %v3239 = vpop.permute.xlu0 %3238
      %3240 = vrot.lane.b32.xlu0 %v1395, 80
      %v3241 = vpop.permute.xlu0 %3240
      %3242 = vrot.lane.b32.xlu0 %v1396, 80
      %v3243 = vpop.permute.xlu0 %3242
      %3244 = vrot.lane.b32.xlu0 %v1397, 80
      %v3245 = vpop.permute.xlu0 %3244
      %3246 = vrot.lane.b32.xlu0 %v1398, 80
      %v3247 = vpop.permute.xlu0 %3246
      %3248 = vrot.lane.b32.xlu0 %v1399, 80
      %v3249 = vpop.permute.xlu0 %3248
      %3250 = vrot.lane.b32.xlu0 %v1400, 80
      %v3251 = vpop.permute.xlu0 %3250
      %3252 = vrot.lane.b32.xlu0 %v1401, 80
      %v3253 = vpop.permute.xlu0 %3252
      %3254 = vrot.lane.b32.xlu0 %v1402, 80
      %v3255 = vpop.permute.xlu0 %3254
      %3256 = vrot.lane.b32.xlu0 %v1403, 80
      %v3257 = vpop.permute.xlu0 %3256
      %3258 = vrot.lane.b32.xlu0 %v1404, 80
      %v3259 = vpop.permute.xlu0 %3258
      %3260 = vrot.lane.b32.xlu0 %v1405, 80
      %v3261 = vpop.permute.xlu0 %3260
      %3262 = vrot.lane.b32.xlu0 %v1406, 80
      %v3263 = vpop.permute.xlu0 %3262
      %3264 = vrot.lane.b32.xlu0 %v1407, 80
      %v3265 = vpop.permute.xlu0 %3264
      %3330 = vrot.lane.b32.xlu0 %v1408, 96
      %v3331 = vpop.permute.xlu0 %3330
      %3332 = vrot.lane.b32.xlu0 %v1409, 96
      %v3333 = vpop.permute.xlu0 %3332
      %3334 = vrot.lane.b32.xlu0 %v1410, 96
      %v3335 = vpop.permute.xlu0 %3334
      %3336 = vrot.lane.b32.xlu0 %v1411, 96
      %v3337 = vpop.permute.xlu0 %3336
      %3338 = vrot.lane.b32.xlu0 %v1412, 96
      %v3339 = vpop.permute.xlu0 %3338
      %3340 = vrot.lane.b32.xlu0 %v1413, 96
      %v3341 = vpop.permute.xlu0 %3340
      %3342 = vrot.lane.b32.xlu0 %v1414, 96
      %v3343 = vpop.permute.xlu0 %3342
      %3344 = vrot.lane.b32.xlu0 %v1415, 96
      %v3345 = vpop.permute.xlu0 %3344
      %3346 = vrot.lane.b32.xlu0 %v1416, 96
      %v3347 = vpop.permute.xlu0 %3346
      %3348 = vrot.lane.b32.xlu0 %v1417, 96
      %v3349 = vpop.permute.xlu0 %3348
      %3350 = vrot.lane.b32.xlu0 %v1418, 96
      %v3351 = vpop.permute.xlu0 %3350
      %3352 = vrot.lane.b32.xlu0 %v1419, 96
      %v3353 = vpop.permute.xlu0 %3352
      %3354 = vrot.lane.b32.xlu0 %v1420, 96
      %v3355 = vpop.permute.xlu0 %3354
      %3356 = vrot.lane.b32.xlu0 %v1421, 96
      %v3357 = vpop.permute.xlu0 %3356
      %3358 = vrot.lane.b32.xlu0 %v1422, 96
      %v3359 = vpop.permute.xlu0 %3358
      %3360 = vrot.lane.b32.xlu0 %v1423, 96
      %v3361 = vpop.permute.xlu0 %3360
      %3362 = vrot.lane.b32.xlu0 %v1424, 96
      %v3363 = vpop.permute.xlu0 %3362
      %3364 = vrot.lane.b32.xlu0 %v1425, 96
      %v3365 = vpop.permute.xlu0 %3364
      %3366 = vrot.lane.b32.xlu0 %v1426, 96
      %v3367 = vpop.permute.xlu0 %3366
      %3368 = vrot.lane.b32.xlu0 %v1427, 96
      %v3369 = vpop.permute.xlu0 %3368
      %3370 = vrot.lane.b32.xlu0 %v1428, 96
      %v3371 = vpop.permute.xlu0 %3370
      %3372 = vrot.lane.b32.xlu0 %v1429, 96
      %v3373 = vpop.permute.xlu0 %3372
      %3374 = vrot.lane.b32.xlu0 %v1430, 96
      %v3375 = vpop.permute.xlu0 %3374
      %3376 = vrot.lane.b32.xlu0 %v1431, 96
      %v3377 = vpop.permute.xlu0 %3376
      %3378 = vrot.lane.b32.xlu0 %v1432, 96
      %v3379 = vpop.permute.xlu0 %3378
      %3380 = vrot.lane.b32.xlu0 %v1433, 96
      %v3381 = vpop.permute.xlu0 %3380
      %3382 = vrot.lane.b32.xlu0 %v1434, 96
      %v3383 = vpop.permute.xlu0 %3382
      %3384 = vrot.lane.b32.xlu0 %v1435, 96
      %v3385 = vpop.permute.xlu0 %3384
      %3386 = vrot.lane.b32.xlu0 %v1436, 96
      %v3387 = vpop.permute.xlu0 %3386
      %3388 = vrot.lane.b32.xlu0 %v1437, 96
      %v3389 = vpop.permute.xlu0 %3388
      %3390 = vrot.lane.b32.xlu0 %v1438, 96
      %v3391 = vpop.permute.xlu0 %3390
      %3392 = vrot.lane.b32.xlu0 %v1439, 96
      %v3393 = vpop.permute.xlu0 %3392
      %3458 = vrot.lane.b32.xlu0 %v1441, 112
      %v3459 = vpop.permute.xlu0 %3458
      %3460 = vrot.lane.b32.xlu0 %v1442, 112
      %v3461 = vpop.permute.xlu0 %3460
      %3462 = vrot.lane.b32.xlu0 %v1443, 112
      %v3463 = vpop.permute.xlu0 %3462
      %3464 = vrot.lane.b32.xlu0 %v1444, 112
      %v3465 = vpop.permute.xlu0 %3464
      %3466 = vrot.lane.b32.xlu0 %v1445, 112
      %v3467 = vpop.permute.xlu0 %3466
      %3468 = vrot.lane.b32.xlu0 %v1446, 112
      %v3469 = vpop.permute.xlu0 %3468
      %3470 = vrot.lane.b32.xlu0 %v1447, 112
      %v3471 = vpop.permute.xlu0 %3470
      %3472 = vrot.lane.b32.xlu0 %v1448, 112
      %v3473 = vpop.permute.xlu0 %3472
      %3474 = vrot.lane.b32.xlu0 %v1449, 112
      %v3475 = vpop.permute.xlu0 %3474
      %3476 = vrot.lane.b32.xlu0 %v1450, 112
      %v3477 = vpop.permute.xlu0 %3476
      %3478 = vrot.lane.b32.xlu0 %v1451, 112
      %v3479 = vpop.permute.xlu0 %3478
      %3480 = vrot.lane.b32.xlu0 %v1452, 112
      %v3481 = vpop.permute.xlu0 %3480
      %3482 = vrot.lane.b32.xlu0 %v1453, 112
      %v3483 = vpop.permute.xlu0 %3482
      %3484 = vrot.lane.b32.xlu0 %v1454, 112
      %v3485 = vpop.permute.xlu0 %3484
      %3486 = vrot.lane.b32.xlu0 %v1455, 112
      %v3487 = vpop.permute.xlu0 %3486
      %3488 = vrot.lane.b32.xlu0 %v1456, 112
      %v3489 = vpop.permute.xlu0 %3488
      %3490 = vrot.lane.b32.xlu0 %v1457, 112
      %v3491 = vpop.permute.xlu0 %3490
      %3492 = vrot.lane.b32.xlu0 %v1458, 112
      %v3493 = vpop.permute.xlu0 %3492
      %3494 = vrot.lane.b32.xlu0 %v1459, 112
      %v3495 = vpop.permute.xlu0 %3494
      %3496 = vrot.lane.b32.xlu0 %v1460, 112
      %v3497 = vpop.permute.xlu0 %3496
      %3498 = vrot.lane.b32.xlu0 %v1461, 112
      %v3499 = vpop.permute.xlu0 %3498
      %3500 = vrot.lane.b32.xlu0 %v1462, 112
      %v3501 = vpop.permute.xlu0 %3500
      %3502 = vrot.lane.b32.xlu0 %v1463, 112
      %v3503 = vpop.permute.xlu0 %3502
      %3504 = vrot.lane.b32.xlu0 %v1464, 112
      %v3505 = vpop.permute.xlu0 %3504
      %3506 = vrot.lane.b32.xlu0 %v1465, 112
      %v3507 = vpop.permute.xlu0 %3506
      %3508 = vrot.lane.b32.xlu0 %v1466, 112
      %v3509 = vpop.permute.xlu0 %3508
      %3510 = vrot.lane.b32.xlu0 %v1467, 112
      %v3511 = vpop.permute.xlu0 %3510
      %3512 = vrot.lane.b32.xlu0 %v1468, 112
      %v3513 = vpop.permute.xlu0 %3512
      %3514 = vrot.lane.b32.xlu0 %v1469, 112
      %v3515 = vpop.permute.xlu0 %3514
      %3516 = vrot.lane.b32.xlu0 %v1470, 112
      %v3517 = vpop.permute.xlu0 %3516
      %3518 = vrot.lane.b32.xlu0 %v1471, 112
      %v3519 = vpop.permute.xlu0 %3518
      %3520 = vrot.lane.b32.xlu0 %v1472, 112
      %v3521 = vpop.permute.xlu0 %3520
      %vm3554 = vcmask 130048
      %v3555 = vsel %vm3554, %v959, %v1795
      %v3556 = vsel %vm3554, %v960, %v1797
      %v3557 = vsel %vm3554, %v961, %v1799
      %v3558 = vsel %vm3554, %v962, %v1801
      %v3559 = vsel %vm3554, %v963, %v1803
      %v3560 = vsel %vm3554, %v964, %v1805
      %v3561 = vsel %vm3554, %v965, %v1807
      %v3562 = vsel %vm3554, %v966, %v1809
      %v3563 = vsel %vm3554, %v967, %v1811
      %v3564 = vsel %vm3554, %v968, %v1813
      %v3565 = vsel %vm3554, %v969, %v1815
      %v3566 = vsel %vm3554, %v970, %v1817
      %v3567 = vsel %vm3554, %v971, %v1819
      %v3568 = vsel %vm3554, %v972, %v1821
      %v3569 = vsel %vm3554, %v973, %v1823
      %v3570 = vsel %vm3554, %v974, %v1825
      %v3571 = vsel %vm3554, %v975, %v1827
      %v3572 = vsel %vm3554, %v976, %v1829
      %v3573 = vsel %vm3554, %v977, %v1831
      %v3574 = vsel %vm3554, %v978, %v1833
      %v3575 = vsel %vm3554, %v979, %v1835
      %v3576 = vsel %vm3554, %v980, %v1837
      %v3577 = vsel %vm3554, %v981, %v1839
      %v3578 = vsel %vm3554, %v982, %v1841
      %v3579 = vsel %vm3554, %v983, %v1843
      %v3580 = vsel %vm3554, %v984, %v1845
      %v3581 = vsel %vm3554, %v985, %v1847
      %v3582 = vsel %vm3554, %v986, %v1849
      %v3583 = vsel %vm3554, %v987, %v1851
      %v3584 = vsel %vm3554, %v988, %v1853
      %v3585 = vsel %vm3554, %v989, %v1855
      %v3586 = vsel %vm3554, %v990, %v1857
      %v3587 = vsel %vm894, %v3555, %v1923
      %v3588 = vsel %vm894, %v3556, %v1925
      %v3589 = vsel %vm894, %v3557, %v1927
      %v3590 = vsel %vm894, %v3558, %v1929
      %v3591 = vsel %vm894, %v3559, %v1931
      %v3592 = vsel %vm894, %v3560, %v1933
      %v3593 = vsel %vm894, %v3561, %v1935
      %v3594 = vsel %vm894, %v3562, %v1937
      %v3595 = vsel %vm894, %v3563, %v1939
      %v3596 = vsel %vm894, %v3564, %v1941
      %v3597 = vsel %vm894, %v3565, %v1943
      %v3598 = vsel %vm894, %v3566, %v1945
      %v3599 = vsel %vm894, %v3567, %v1947
      %v3600 = vsel %vm894, %v3568, %v1949
      %v3601 = vsel %vm894, %v3569, %v1951
      %v3602 = vsel %vm894, %v3570, %v1953
      %v3603 = vsel %vm894, %v3571, %v1955
      %v3604 = vsel %vm894, %v3572, %v1957
      %v3605 = vsel %vm894, %v3573, %v1959
      %v3606 = vsel %vm894, %v3574, %v1961
      %v3607 = vsel %vm894, %v3575, %v1963
      %v3608 = vsel %vm894, %v3576, %v1965
      %v3609 = vsel %vm894, %v3577, %v1967
      %v3610 = vsel %vm894, %v3578, %v1969
      %v3611 = vsel %vm894, %v3579, %v1971
      %v3612 = vsel %vm894, %v3580, %v1973
      %v3613 = vsel %vm894, %v3581, %v1975
      %v3614 = vsel %vm894, %v3582, %v1977
      %v3615 = vsel %vm894, %v3583, %v1979
      %v3616 = vsel %vm894, %v3584, %v1981
      %v3617 = vsel %vm894, %v3585, %v1983
      %v3618 = vsel %vm894, %v3586, %v1985
      %vm3619 = vcmask 392192
      %v3620 = vsel %vm3619, %v3587, %v2051
      %v3621 = vsel %vm3619, %v3588, %v2053
      %v3622 = vsel %vm3619, %v3589, %v2055
      %v3623 = vsel %vm3619, %v3590, %v2057
      %v3624 = vsel %vm3619, %v3591, %v2059
      %v3625 = vsel %vm3619, %v3592, %v2061
      %v3626 = vsel %vm3619, %v3593, %v2063
      %v3627 = vsel %vm3619, %v3594, %v2065
      %v3628 = vsel %vm3619, %v3595, %v2067
      %v3629 = vsel %vm3619, %v3596, %v2069
      %v3630 = vsel %vm3619, %v3597, %v2071
      %v3631 = vsel %vm3619, %v3598, %v2073
      %v3632 = vsel %vm3619, %v3599, %v2075
      %v3633 = vsel %vm3619, %v3600, %v2077
      %v3634 = vsel %vm3619, %v3601, %v2079
      %v3635 = vsel %vm3619, %v3602, %v2081
      %v3636 = vsel %vm3619, %v3603, %v2083
      %v3637 = vsel %vm3619, %v3604, %v2085
      %v3638 = vsel %vm3619, %v3605, %v2087
      %v3639 = vsel %vm3619, %v3606, %v2089
      %v3640 = vsel %vm3619, %v3607, %v2091
      %v3641 = vsel %vm3619, %v3608, %v2093
      %v3642 = vsel %vm3619, %v3609, %v2095
      %v3643 = vsel %vm3619, %v3610, %v2097
      %v3644 = vsel %vm3619, %v3611, %v2099
      %v3645 = vsel %vm3619, %v3612, %v2101
      %v3646 = vsel %vm3619, %v3613, %v2103
      %v3647 = vsel %vm3619, %v3614, %v2105
      %v3648 = vsel %vm3619, %v3615, %v2107
      %v3649 = vsel %vm3619, %v3616, %v2109
      %v3650 = vsel %vm3619, %v3617, %v2111
      %v3651 = vsel %vm3619, %v3618, %v2113
      %vm3652 = vcmask 523264
      %v3653 = vsel %vm3652, %v3620, %v2179
      %v3654 = vsel %vm3652, %v3621, %v2181
      %v3655 = vsel %vm3652, %v3622, %v2183
      %v3656 = vsel %vm3652, %v3623, %v2185
      %v3657 = vsel %vm3652, %v3624, %v2187
      %v3658 = vsel %vm3652, %v3625, %v2189
      %v3659 = vsel %vm3652, %v3626, %v2191
      %v3660 = vsel %vm3652, %v3627, %v2193
      %v3661 = vsel %vm3652, %v3628, %v2195
      %v3662 = vsel %vm3652, %v3629, %v2197
      %v3663 = vsel %vm3652, %v3630, %v2199
      %v3664 = vsel %vm3652, %v3631, %v2201
      %v3665 = vsel %vm3652, %v3632, %v2203
      %v3666 = vsel %vm3652, %v3633, %v2205
      %v3667 = vsel %vm3652, %v3634, %v2207
      %v3668 = vsel %vm3652, %v3635, %v2209
      %v3669 = vsel %vm3652, %v3636, %v2211
      %v3670 = vsel %vm3652, %v3637, %v2213
      %v3671 = vsel %vm3652, %v3638, %v2215
      %v3672 = vsel %vm3652, %v3639, %v2217
      %v3673 = vsel %vm3652, %v3640, %v2219
      %v3674 = vsel %vm3652, %v3641, %v2221
      %v3675 = vsel %vm3652, %v3642, %v2223
      %v3676 = vsel %vm3652, %v3643, %v2225
      %v3677 = vsel %vm3652, %v3644, %v2227
      %v3678 = vsel %vm3652, %v3645, %v2229
      %v3679 = vsel %vm3652, %v3646, %v2231
      %v3680 = vsel %vm3652, %v3647, %v2233
      %v3681 = vsel %vm3652, %v3648, %v2235
      %v3682 = vsel %vm3652, %v3649, %v2237
      %v3683 = vsel %vm3652, %v3650, %v2239
      %v3684 = vsel %vm3652, %v3651, %v2241
      %vm3685 = vcmask 654336
      %v3686 = vsel %vm3685, %v3653, %v2307
      %v3687 = vsel %vm3685, %v3654, %v2309
      %v3688 = vsel %vm3685, %v3655, %v2311
      %v3689 = vsel %vm3685, %v3656, %v2313
      %v3690 = vsel %vm3685, %v3657, %v2315
      %v3691 = vsel %vm3685, %v3658, %v2317
      %v3692 = vsel %vm3685, %v3659, %v2319
      %v3693 = vsel %vm3685, %v3660, %v2321
      %v3694 = vsel %vm3685, %v3661, %v2323
      %v3695 = vsel %vm3685, %v3662, %v2325
      %v3696 = vsel %vm3685, %v3663, %v2327
      %v3697 = vsel %vm3685, %v3664, %v2329
      %v3698 = vsel %vm3685, %v3665, %v2331
      %v3699 = vsel %vm3685, %v3666, %v2333
      %v3700 = vsel %vm3685, %v3667, %v2335
      %v3701 = vsel %vm3685, %v3668, %v2337
      %v3702 = vsel %vm3685, %v3669, %v2339
      %v3703 = vsel %vm3685, %v3670, %v2341
      %v3704 = vsel %vm3685, %v3671, %v2343
      %v3705 = vsel %vm3685, %v3672, %v2345
      %v3706 = vsel %vm3685, %v3673, %v2347
      %v3707 = vsel %vm3685, %v3674, %v2349
      %v3708 = vsel %vm3685, %v3675, %v2351
      %v3709 = vsel %vm3685, %v3676, %v2353
      %v3710 = vsel %vm3685, %v3677, %v2355
      %v3711 = vsel %vm3685, %v3678, %v2357
      %v3712 = vsel %vm3685, %v3679, %v2359
      %v3713 = vsel %vm3685, %v3680, %v2361
      %v3714 = vsel %vm3685, %v3681, %v2363
      %v3715 = vsel %vm3685, %v3682, %v2365
      %v3716 = vsel %vm3685, %v3683, %v2367
      %v3717 = vsel %vm3685, %v3684, %v2369
      %vm3718 = vcmask 785408
      %v3719 = vsel %vm3718, %v3686, %v2435
      %v3720 = vsel %vm3718, %v3687, %v2437
      %v3721 = vsel %vm3718, %v3688, %v2439
      %v3722 = vsel %vm3718, %v3689, %v2441
      %v3723 = vsel %vm3718, %v3690, %v2443
      %v3724 = vsel %vm3718, %v3691, %v2445
      %v3725 = vsel %vm3718, %v3692, %v2447
      %v3726 = vsel %vm3718, %v3693, %v2449
      %v3727 = vsel %vm3718, %v3694, %v2451
      %v3728 = vsel %vm3718, %v3695, %v2453
      %v3729 = vsel %vm3718, %v3696, %v2455
      %v3730 = vsel %vm3718, %v3697, %v2457
      %v3731 = vsel %vm3718, %v3698, %v2459
      %v3732 = vsel %vm3718, %v3699, %v2461
      %v3733 = vsel %vm3718, %v3700, %v2463
      %v3734 = vsel %vm3718, %v3701, %v2465
      %v3735 = vsel %vm3718, %v3702, %v2467
      %v3736 = vsel %vm3718, %v3703, %v2469
      %v3737 = vsel %vm3718, %v3704, %v2471
      %v3738 = vsel %vm3718, %v3705, %v2473
      %v3739 = vsel %vm3718, %v3706, %v2475
      %v3740 = vsel %vm3718, %v3707, %v2477
      %v3741 = vsel %vm3718, %v3708, %v2479
      %v3742 = vsel %vm3718, %v3709, %v2481
      %v3743 = vsel %vm3718, %v3710, %v2483
      %v3744 = vsel %vm3718, %v3711, %v2485
      %v3745 = vsel %vm3718, %v3712, %v2487
      %v3746 = vsel %vm3718, %v3713, %v2489
      %v3747 = vsel %vm3718, %v3714, %v2491
      %v3748 = vsel %vm3718, %v3715, %v2493
      %v3749 = vsel %vm3718, %v3716, %v2495
      %v3750 = vsel %vm3718, %v3717, %v2497
      %vm3751 = vcmask 916480
      %v3752 = vsel %vm3751, %v3719, %v2563
      %v3753 = vsel %vm3751, %v3720, %v2565
      %v3754 = vsel %vm3751, %v3721, %v2567
      %v3755 = vsel %vm3751, %v3722, %v2569
      %v3756 = vsel %vm3751, %v3723, %v2571
      %v3757 = vsel %vm3751, %v3724, %v2573
      %v3758 = vsel %vm3751, %v3725, %v2575
      %v3759 = vsel %vm3751, %v3726, %v2577
      %v3760 = vsel %vm3751, %v3727, %v2579
      %v3761 = vsel %vm3751, %v3728, %v2581
      %v3762 = vsel %vm3751, %v3729, %v2583
      %v3763 = vsel %vm3751, %v3730, %v2585
      %v3764 = vsel %vm3751, %v3731, %v2587
      %v3765 = vsel %vm3751, %v3732, %v2589
      %v3766 = vsel %vm3751, %v3733, %v2591
      %v3767 = vsel %vm3751, %v3734, %v2593
      %v3768 = vsel %vm3751, %v3735, %v2595
      %v3769 = vsel %vm3751, %v3736, %v2597
      %v3770 = vsel %vm3751, %v3737, %v2599
      %v3771 = vsel %vm3751, %v3738, %v2601
      %v3772 = vsel %vm3751, %v3739, %v2603
      %v3773 = vsel %vm3751, %v3740, %v2605
      %v3774 = vsel %vm3751, %v3741, %v2607
      %v3775 = vsel %vm3751, %v3742, %v2609
      %v3776 = vsel %vm3751, %v3743, %v2611
      %v3777 = vsel %vm3751, %v3744, %v2613
      %v3778 = vsel %vm3751, %v3745, %v2615
      %v3779 = vsel %vm3751, %v3746, %v2617
      %v3780 = vsel %vm3751, %v3747, %v2619
      %v3781 = vsel %vm3751, %v3748, %v2621
      %v3782 = vsel %vm3751, %v3749, %v2623
      %v3783 = vsel %vm3751, %v3750, %v2625
      %v3784 = vsel %vm3554, %v1216, %v2691
      %v3785 = vsel %vm3554, %v1217, %v2693
      %v3786 = vsel %vm3554, %v1218, %v2695
      %v3787 = vsel %vm3554, %v1219, %v2697
      %v3788 = vsel %vm3554, %v1220, %v2699
      %v3789 = vsel %vm3554, %v1221, %v2701
      %v3790 = vsel %vm3554, %v1222, %v2703
      %v3791 = vsel %vm3554, %v1223, %v2705
      %v3792 = vsel %vm3554, %v1224, %v2707
      %v3793 = vsel %vm3554, %v1225, %v2709
      %v3794 = vsel %vm3554, %v1226, %v2711
      %v3795 = vsel %vm3554, %v1227, %v2713
      %v3796 = vsel %vm3554, %v1228, %v2715
      %v3797 = vsel %vm3554, %v1229, %v2717
      %v3798 = vsel %vm3554, %v1230, %v2719
      %v3799 = vsel %vm3554, %v1231, %v2721
      %v3800 = vsel %vm3554, %v1232, %v2723
      %v3801 = vsel %vm3554, %v1233, %v2725
      %v3802 = vsel %vm3554, %v1234, %v2727
      %v3803 = vsel %vm3554, %v1235, %v2729
      %v3804 = vsel %vm3554, %v1236, %v2731
      %v3805 = vsel %vm3554, %v1237, %v2733
      %v3806 = vsel %vm3554, %v1238, %v2735
      %v3807 = vsel %vm3554, %v1239, %v2737
      %v3808 = vsel %vm3554, %v1240, %v2739
      %v3809 = vsel %vm3554, %v1241, %v2741
      %v3810 = vsel %vm3554, %v1242, %v2743
      %v3811 = vsel %vm3554, %v1243, %v2745
      %v3812 = vsel %vm3554, %v1244, %v2747
      %v3813 = vsel %vm3554, %v1245, %v2749
      %v3814 = vsel %vm3554, %v1246, %v2751
      %v3815 = vsel %vm3554, %v1247, %v2753
      %v3816 = vsel %vm894, %v3784, %v2819
      %v3817 = vsel %vm894, %v3785, %v2821
      %v3818 = vsel %vm894, %v3786, %v2823
      %v3819 = vsel %vm894, %v3787, %v2825
      %v3820 = vsel %vm894, %v3788, %v2827
      %v3821 = vsel %vm894, %v3789, %v2829
      %v3822 = vsel %vm894, %v3790, %v2831
      %v3823 = vsel %vm894, %v3791, %v2833
      %v3824 = vsel %vm894, %v3792, %v2835
      %v3825 = vsel %vm894, %v3793, %v2837
      %v3826 = vsel %vm894, %v3794, %v2839
      %v3827 = vsel %vm894, %v3795, %v2841
      %v3828 = vsel %vm894, %v3796, %v2843
      %v3829 = vsel %vm894, %v3797, %v2845
      %v3830 = vsel %vm894, %v3798, %v2847
      %v3831 = vsel %vm894, %v3799, %v2849
      %v3832 = vsel %vm894, %v3800, %v2851
      %v3833 = vsel %vm894, %v3801, %v2853
      %v3834 = vsel %vm894, %v3802, %v2855
      %v3835 = vsel %vm894, %v3803, %v2857
      %v3836 = vsel %vm894, %v3804, %v2859
      %v3837 = vsel %vm894, %v3805, %v2861
      %v3838 = vsel %vm894, %v3806, %v2863
      %v3839 = vsel %vm894, %v3807, %v2865
      %v3840 = vsel %vm894, %v3808, %v2867
      %v3841 = vsel %vm894, %v3809, %v2869
      %v3842 = vsel %vm894, %v3810, %v2871
      %v3843 = vsel %vm894, %v3811, %v2873
      %v3844 = vsel %vm894, %v3812, %v2875
      %v3845 = vsel %vm894, %v3813, %v2877
      %v3846 = vsel %vm894, %v3814, %v2879
      %v3847 = vsel %vm894, %v3815, %v2881
      %v3848 = vsel %vm3619, %v3816, %v2947
      %v3849 = vsel %vm3619, %v3817, %v2949
      %v3850 = vsel %vm3619, %v3818, %v2951
      %v3851 = vsel %vm3619, %v3819, %v2953
      %v3852 = vsel %vm3619, %v3820, %v2955
      %v3853 = vsel %vm3619, %v3821, %v2957
      %v3854 = vsel %vm3619, %v3822, %v2959
      %v3855 = vsel %vm3619, %v3823, %v2961
      %v3856 = vsel %vm3619, %v3824, %v2963
      %v3857 = vsel %vm3619, %v3825, %v2965
      %v3858 = vsel %vm3619, %v3826, %v2967
      %v3859 = vsel %vm3619, %v3827, %v2969
      %v3860 = vsel %vm3619, %v3828, %v2971
      %v3861 = vsel %vm3619, %v3829, %v2973
      %v3862 = vsel %vm3619, %v3830, %v2975
      %v3863 = vsel %vm3619, %v3831, %v2977
      %v3864 = vsel %vm3619, %v3832, %v2979
      %v3865 = vsel %vm3619, %v3833, %v2981
      %v3866 = vsel %vm3619, %v3834, %v2983
      %v3867 = vsel %vm3619, %v3835, %v2985
      %v3868 = vsel %vm3619, %v3836, %v2987
      %v3869 = vsel %vm3619, %v3837, %v2989
      %v3870 = vsel %vm3619, %v3838, %v2991
      %v3871 = vsel %vm3619, %v3839, %v2993
      %v3872 = vsel %vm3619, %v3840, %v2995
      %v3873 = vsel %vm3619, %v3841, %v2997
      %v3874 = vsel %vm3619, %v3842, %v2999
      %v3875 = vsel %vm3619, %v3843, %v3001
      %v3876 = vsel %vm3619, %v3844, %v3003
      %v3877 = vsel %vm3619, %v3845, %v3005
      %v3878 = vsel %vm3619, %v3846, %v3007
      %v3879 = vsel %vm3619, %v3847, %v3009
      %v3880 = vsel %vm3652, %v3848, %v3075
      %v3881 = vsel %vm3652, %v3849, %v3077
      %v3882 = vsel %vm3652, %v3850, %v3079
      %v3883 = vsel %vm3652, %v3851, %v3081
      %v3884 = vsel %vm3652, %v3852, %v3083
      %v3885 = vsel %vm3652, %v3853, %v3085
      %v3886 = vsel %vm3652, %v3854, %v3087
      %v3887 = vsel %vm3652, %v3855, %v3089
      %v3888 = vsel %vm3652, %v3856, %v3091
      %v3889 = vsel %vm3652, %v3857, %v3093
      %v3890 = vsel %vm3652, %v3858, %v3095
      %v3891 = vsel %vm3652, %v3859, %v3097
      %v3892 = vsel %vm3652, %v3860, %v3099
      %v3893 = vsel %vm3652, %v3861, %v3101
      %v3894 = vsel %vm3652, %v3862, %v3103
      %v3895 = vsel %vm3652, %v3863, %v3105
      %v3896 = vsel %vm3652, %v3864, %v3107
      %v3897 = vsel %vm3652, %v3865, %v3109
      %v3898 = vsel %vm3652, %v3866, %v3111
      %v3899 = vsel %vm3652, %v3867, %v3113
      %v3900 = vsel %vm3652, %v3868, %v3115
      %v3901 = vsel %vm3652, %v3869, %v3117
      %v3902 = vsel %vm3652, %v3870, %v3119
      %v3903 = vsel %vm3652, %v3871, %v3121
      %v3904 = vsel %vm3652, %v3872, %v3123
      %v3905 = vsel %vm3652, %v3873, %v3125
      %v3906 = vsel %vm3652, %v3874, %v3127
      %v3907 = vsel %vm3652, %v3875, %v3129
      %v3908 = vsel %vm3652, %v3876, %v3131
      %v3909 = vsel %vm3652, %v3877, %v3133
      %v3910 = vsel %vm3652, %v3878, %v3135
      %v3911 = vsel %vm3652, %v3879, %v3137
      %v3912 = vsel %vm3685, %v3880, %v3203
      %v3913 = vsel %vm3685, %v3881, %v3205
      %v3914 = vsel %vm3685, %v3882, %v3207
      %v3915 = vsel %vm3685, %v3883, %v3209
      %v3916 = vsel %vm3685, %v3884, %v3211
      %v3917 = vsel %vm3685, %v3885, %v3213
      %v3918 = vsel %vm3685, %v3886, %v3215
      %v3919 = vsel %vm3685, %v3887, %v3217
      %v3920 = vsel %vm3685, %v3888, %v3219
      %v3921 = vsel %vm3685, %v3889, %v3221
      %v3922 = vsel %vm3685, %v3890, %v3223
      %v3923 = vsel %vm3685, %v3891, %v3225
      %v3924 = vsel %vm3685, %v3892, %v3227
      %v3925 = vsel %vm3685, %v3893, %v3229
      %v3926 = vsel %vm3685, %v3894, %v3231
      %v3927 = vsel %vm3685, %v3895, %v3233
      %v3928 = vsel %vm3685, %v3896, %v3235
      %v3929 = vsel %vm3685, %v3897, %v3237
      %v3930 = vsel %vm3685, %v3898, %v3239
      %v3931 = vsel %vm3685, %v3899, %v3241
      %v3932 = vsel %vm3685, %v3900, %v3243
      %v3933 = vsel %vm3685, %v3901, %v3245
      %v3934 = vsel %vm3685, %v3902, %v3247
      %v3935 = vsel %vm3685, %v3903, %v3249
      %v3936 = vsel %vm3685, %v3904, %v3251
      %v3937 = vsel %vm3685, %v3905, %v3253
      %v3938 = vsel %vm3685, %v3906, %v3255
      %v3939 = vsel %vm3685, %v3907, %v3257
      %v3940 = vsel %vm3685, %v3908, %v3259
      %v3941 = vsel %vm3685, %v3909, %v3261
      %v3942 = vsel %vm3685, %v3910, %v3263
      %v3943 = vsel %vm3685, %v3911, %v3265
      %v3944 = vsel %vm3718, %v3912, %v3331
      %v3945 = vsel %vm3718, %v3913, %v3333
      %v3946 = vsel %vm3718, %v3914, %v3335
      %v3947 = vsel %vm3718, %v3915, %v3337
      %v3948 = vsel %vm3718, %v3916, %v3339
      %v3949 = vsel %vm3718, %v3917, %v3341
      %v3950 = vsel %vm3718, %v3918, %v3343
      %v3951 = vsel %vm3718, %v3919, %v3345
      %v3952 = vsel %vm3718, %v3920, %v3347
      %v3953 = vsel %vm3718, %v3921, %v3349
      %v3954 = vsel %vm3718, %v3922, %v3351
      %v3955 = vsel %vm3718, %v3923, %v3353
      %v3956 = vsel %vm3718, %v3924, %v3355
      %v3957 = vsel %vm3718, %v3925, %v3357
      %v3958 = vsel %vm3718, %v3926, %v3359
      %v3959 = vsel %vm3718, %v3927, %v3361
      %v3960 = vsel %vm3718, %v3928, %v3363
      %v3961 = vsel %vm3718, %v3929, %v3365
      %v3962 = vsel %vm3718, %v3930, %v3367
      %v3963 = vsel %vm3718, %v3931, %v3369
      %v3964 = vsel %vm3718, %v3932, %v3371
      %v3965 = vsel %vm3718, %v3933, %v3373
      %v3966 = vsel %vm3718, %v3934, %v3375
      %v3967 = vsel %vm3718, %v3935, %v3377
      %v3968 = vsel %vm3718, %v3936, %v3379
      %v3969 = vsel %vm3718, %v3937, %v3381
      %v3970 = vsel %vm3718, %v3938, %v3383
      %v3971 = vsel %vm3718, %v3939, %v3385
      %v3972 = vsel %vm3718, %v3940, %v3387
      %v3973 = vsel %vm3718, %v3941, %v3389
      %v3974 = vsel %vm3718, %v3942, %v3391
      %v3975 = vsel %vm3718, %v3943, %v3393
      %v3976 = vsel %vm3751, %v3944, %v3459
      %v3977 = vsel %vm3751, %v3945, %v3461
      %v3978 = vsel %vm3751, %v3946, %v3463
      %v3979 = vsel %vm3751, %v3947, %v3465
      %v3980 = vsel %vm3751, %v3948, %v3467
      %v3981 = vsel %vm3751, %v3949, %v3469
      %v3982 = vsel %vm3751, %v3950, %v3471
      %v3983 = vsel %vm3751, %v3951, %v3473
      %v3984 = vsel %vm3751, %v3952, %v3475
      %v3985 = vsel %vm3751, %v3953, %v3477
      %v3986 = vsel %vm3751, %v3954, %v3479
      %v3987 = vsel %vm3751, %v3955, %v3481
      %v3988 = vsel %vm3751, %v3956, %v3483
      %v3989 = vsel %vm3751, %v3957, %v3485
      %v3990 = vsel %vm3751, %v3958, %v3487
      %v3991 = vsel %vm3751, %v3959, %v3489
      %v3992 = vsel %vm3751, %v3960, %v3491
      %v3993 = vsel %vm3751, %v3961, %v3493
      %v3994 = vsel %vm3751, %v3962, %v3495
      %v3995 = vsel %vm3751, %v3963, %v3497
      %v3996 = vsel %vm3751, %v3964, %v3499
      %v3997 = vsel %vm3751, %v3965, %v3501
      %v3998 = vsel %vm3751, %v3966, %v3503
      %v3999 = vsel %vm3751, %v3967, %v3505
      %v4000 = vsel %vm3751, %v3968, %v3507
      %v4001 = vsel %vm3751, %v3969, %v3509
      %v4002 = vsel %vm3751, %v3970, %v3511
      %v4003 = vsel %vm3751, %v3971, %v3513
      %v4004 = vsel %vm3751, %v3972, %v3515
      %v4005 = vsel %vm3751, %v3973, %v3517
      %v4006 = vsel %vm3751, %v3974, %v3519
      %v4007 = vsel %vm3751, %v3975, %v3521
      %4040 = vrot.lane.b32.xlu0 %v1505, 16
      %v4041 = vpop.permute.xlu0 %4040
      %4042 = vrot.lane.b32.xlu0 %v1506, 16
      %v4043 = vpop.permute.xlu0 %4042
      %4044 = vrot.lane.b32.xlu0 %v1507, 16
      %v4045 = vpop.permute.xlu0 %4044
      %4046 = vrot.lane.b32.xlu0 %v1508, 16
      %v4047 = vpop.permute.xlu0 %4046
      %4048 = vrot.lane.b32.xlu0 %v1509, 16
      %v4049 = vpop.permute.xlu0 %4048
      %4050 = vrot.lane.b32.xlu0 %v1510, 16
      %v4051 = vpop.permute.xlu0 %4050
      %4052 = vrot.lane.b32.xlu0 %v1511, 16
      %v4053 = vpop.permute.xlu0 %4052
      %4054 = vrot.lane.b32.xlu0 %v1512, 16
      %v4055 = vpop.permute.xlu0 %4054
      %4056 = vrot.lane.b32.xlu0 %v1513, 16
      %v4057 = vpop.permute.xlu0 %4056
      %4058 = vrot.lane.b32.xlu0 %v1514, 16
      %v4059 = vpop.permute.xlu0 %4058
      %4060 = vrot.lane.b32.xlu0 %v1515, 16
      %v4061 = vpop.permute.xlu0 %4060
      %4062 = vrot.lane.b32.xlu0 %v1516, 16
      %v4063 = vpop.permute.xlu0 %4062
      %4064 = vrot.lane.b32.xlu0 %v1517, 16
      %v4065 = vpop.permute.xlu0 %4064
      %4066 = vrot.lane.b32.xlu0 %v1518, 16
      %v4067 = vpop.permute.xlu0 %4066
      %4068 = vrot.lane.b32.xlu0 %v1519, 16
      %v4069 = vpop.permute.xlu0 %4068
      %4070 = vrot.lane.b32.xlu0 %v1520, 16
      %v4071 = vpop.permute.xlu0 %4070
      %4072 = vrot.lane.b32.xlu0 %v1521, 16
      %v4073 = vpop.permute.xlu0 %4072
      %4074 = vrot.lane.b32.xlu0 %v1522, 16
      %v4075 = vpop.permute.xlu0 %4074
      %4076 = vrot.lane.b32.xlu0 %v1523, 16
      %v4077 = vpop.permute.xlu0 %4076
      %4078 = vrot.lane.b32.xlu0 %v1524, 16
      %v4079 = vpop.permute.xlu0 %4078
      %4080 = vrot.lane.b32.xlu0 %v1525, 16
      %v4081 = vpop.permute.xlu0 %4080
      %4082 = vrot.lane.b32.xlu0 %v1526, 16
      %v4083 = vpop.permute.xlu0 %4082
      %4084 = vrot.lane.b32.xlu0 %v1527, 16
      %v4085 = vpop.permute.xlu0 %4084
      %4086 = vrot.lane.b32.xlu0 %v1528, 16
      %v4087 = vpop.permute.xlu0 %4086
      %4088 = vrot.lane.b32.xlu0 %v1529, 16
      %v4089 = vpop.permute.xlu0 %4088
      %4090 = vrot.lane.b32.xlu0 %v1530, 16
      %v4091 = vpop.permute.xlu0 %4090
      %4092 = vrot.lane.b32.xlu0 %v1531, 16
      %v4093 = vpop.permute.xlu0 %4092
      %4094 = vrot.lane.b32.xlu0 %v1532, 16
      %v4095 = vpop.permute.xlu0 %4094
      %4096 = vrot.lane.b32.xlu0 %v1533, 16
      %v4097 = vpop.permute.xlu0 %4096
      %4098 = vrot.lane.b32.xlu0 %v1534, 16
      %v4099 = vpop.permute.xlu0 %4098
      %4100 = vrot.lane.b32.xlu0 %v1535, 16
      %v4101 = vpop.permute.xlu0 %4100
      %4102 = vrot.lane.b32.xlu0 %v1536, 16
      %v4103 = vpop.permute.xlu0 %4102
      %4168 = vrot.lane.b32.xlu0 %v1537, 32
      %v4169 = vpop.permute.xlu0 %4168
      %4170 = vrot.lane.b32.xlu0 %v1538, 32
      %v4171 = vpop.permute.xlu0 %4170
      %4172 = vrot.lane.b32.xlu0 %v1539, 32
      %v4173 = vpop.permute.xlu0 %4172
      %4174 = vrot.lane.b32.xlu0 %v1540, 32
      %v4175 = vpop.permute.xlu0 %4174
      %4176 = vrot.lane.b32.xlu0 %v1541, 32
      %v4177 = vpop.permute.xlu0 %4176
      %4178 = vrot.lane.b32.xlu0 %v1542, 32
      %v4179 = vpop.permute.xlu0 %4178
      %4180 = vrot.lane.b32.xlu0 %v1543, 32
      %v4181 = vpop.permute.xlu0 %4180
      %4182 = vrot.lane.b32.xlu0 %v1544, 32
      %v4183 = vpop.permute.xlu0 %4182
      %4184 = vrot.lane.b32.xlu0 %v1545, 32
      %v4185 = vpop.permute.xlu0 %4184
      %4186 = vrot.lane.b32.xlu0 %v1546, 32
      %v4187 = vpop.permute.xlu0 %4186
      %4188 = vrot.lane.b32.xlu0 %v1547, 32
      %v4189 = vpop.permute.xlu0 %4188
      %4190 = vrot.lane.b32.xlu0 %v1548, 32
      %v4191 = vpop.permute.xlu0 %4190
      %4192 = vrot.lane.b32.xlu0 %v1549, 32
      %v4193 = vpop.permute.xlu0 %4192
      %4194 = vrot.lane.b32.xlu0 %v1550, 32
      %v4195 = vpop.permute.xlu0 %4194
      %4196 = vrot.lane.b32.xlu0 %v1551, 32
      %v4197 = vpop.permute.xlu0 %4196
      %4198 = vrot.lane.b32.xlu0 %v1552, 32
      %v4199 = vpop.permute.xlu0 %4198
      %4200 = vrot.lane.b32.xlu0 %v1553, 32
      %v4201 = vpop.permute.xlu0 %4200
      %4202 = vrot.lane.b32.xlu0 %v1554, 32
      %v4203 = vpop.permute.xlu0 %4202
      %4204 = vrot.lane.b32.xlu0 %v1555, 32
      %v4205 = vpop.permute.xlu0 %4204
      %4206 = vrot.lane.b32.xlu0 %v1556, 32
      %v4207 = vpop.permute.xlu0 %4206
      %4208 = vrot.lane.b32.xlu0 %v1557, 32
      %v4209 = vpop.permute.xlu0 %4208
      %4210 = vrot.lane.b32.xlu0 %v1558, 32
      %v4211 = vpop.permute.xlu0 %4210
      %4212 = vrot.lane.b32.xlu0 %v1559, 32
      %v4213 = vpop.permute.xlu0 %4212
      %4214 = vrot.lane.b32.xlu0 %v1560, 32
      %v4215 = vpop.permute.xlu0 %4214
      %4216 = vrot.lane.b32.xlu0 %v1561, 32
      %v4217 = vpop.permute.xlu0 %4216
      %4218 = vrot.lane.b32.xlu0 %v1562, 32
      %v4219 = vpop.permute.xlu0 %4218
      %4220 = vrot.lane.b32.xlu0 %v1563, 32
      %v4221 = vpop.permute.xlu0 %4220
      %4222 = vrot.lane.b32.xlu0 %v1564, 32
      %v4223 = vpop.permute.xlu0 %4222
      %4224 = vrot.lane.b32.xlu0 %v1565, 32
      %v4225 = vpop.permute.xlu0 %4224
      %4226 = vrot.lane.b32.xlu0 %v1566, 32
      %v4227 = vpop.permute.xlu0 %4226
      %4228 = vrot.lane.b32.xlu0 %v1567, 32
      %v4229 = vpop.permute.xlu0 %4228
      %4230 = vrot.lane.b32.xlu0 %v1568, 32
      %v4231 = vpop.permute.xlu0 %4230
      %4296 = vrot.lane.b32.xlu0 %v1569, 48
      %v4297 = vpop.permute.xlu0 %4296
      %4298 = vrot.lane.b32.xlu0 %v1570, 48
      %v4299 = vpop.permute.xlu0 %4298
      %4300 = vrot.lane.b32.xlu0 %v1571, 48
      %v4301 = vpop.permute.xlu0 %4300
      %4302 = vrot.lane.b32.xlu0 %v1572, 48
      %v4303 = vpop.permute.xlu0 %4302
      %4304 = vrot.lane.b32.xlu0 %v1573, 48
      %v4305 = vpop.permute.xlu0 %4304
      %4306 = vrot.lane.b32.xlu0 %v1574, 48
      %v4307 = vpop.permute.xlu0 %4306
      %4308 = vrot.lane.b32.xlu0 %v1575, 48
      %v4309 = vpop.permute.xlu0 %4308
      %4310 = vrot.lane.b32.xlu0 %v1576, 48
      %v4311 = vpop.permute.xlu0 %4310
      %4312 = vrot.lane.b32.xlu0 %v1577, 48
      %v4313 = vpop.permute.xlu0 %4312
      %4314 = vrot.lane.b32.xlu0 %v1578, 48
      %v4315 = vpop.permute.xlu0 %4314
      %4316 = vrot.lane.b32.xlu0 %v1579, 48
      %v4317 = vpop.permute.xlu0 %4316
      %4318 = vrot.lane.b32.xlu0 %v1580, 48
      %v4319 = vpop.permute.xlu0 %4318
      %4320 = vrot.lane.b32.xlu0 %v1581, 48
      %v4321 = vpop.permute.xlu0 %4320
      %4322 = vrot.lane.b32.xlu0 %v1582, 48
      %v4323 = vpop.permute.xlu0 %4322
      %4324 = vrot.lane.b32.xlu0 %v1583, 48
      %v4325 = vpop.permute.xlu0 %4324
      %4326 = vrot.lane.b32.xlu0 %v1584, 48
      %v4327 = vpop.permute.xlu0 %4326
      %4328 = vrot.lane.b32.xlu0 %v1585, 48
      %v4329 = vpop.permute.xlu0 %4328
      %4330 = vrot.lane.b32.xlu0 %v1586, 48
      %v4331 = vpop.permute.xlu0 %4330
      %4332 = vrot.lane.b32.xlu0 %v1587, 48
      %v4333 = vpop.permute.xlu0 %4332
      %4334 = vrot.lane.b32.xlu0 %v1588, 48
      %v4335 = vpop.permute.xlu0 %4334
      %4336 = vrot.lane.b32.xlu0 %v1589, 48
      %v4337 = vpop.permute.xlu0 %4336
      %4338 = vrot.lane.b32.xlu0 %v1590, 48
      %v4339 = vpop.permute.xlu0 %4338
      %4340 = vrot.lane.b32.xlu0 %v1591, 48
      %v4341 = vpop.permute.xlu0 %4340
      %4342 = vrot.lane.b32.xlu0 %v1592, 48
      %v4343 = vpop.permute.xlu0 %4342
      %4344 = vrot.lane.b32.xlu0 %v1593, 48
      %v4345 = vpop.permute.xlu0 %4344
      %4346 = vrot.lane.b32.xlu0 %v1594, 48
      %v4347 = vpop.permute.xlu0 %4346
      %4348 = vrot.lane.b32.xlu0 %v1595, 48
      %v4349 = vpop.permute.xlu0 %4348
      %4350 = vrot.lane.b32.xlu0 %v1596, 48
      %v4351 = vpop.permute.xlu0 %4350
      %4352 = vrot.lane.b32.xlu0 %v1597, 48
      %v4353 = vpop.permute.xlu0 %4352
      %4354 = vrot.lane.b32.xlu0 %v1598, 48
      %v4355 = vpop.permute.xlu0 %4354
      %4356 = vrot.lane.b32.xlu0 %v1599, 48
      %v4357 = vpop.permute.xlu0 %4356
      %4358 = vrot.lane.b32.xlu0 %v1600, 48
      %v4359 = vpop.permute.xlu0 %4358
      %4424 = vrot.lane.b32.xlu0 %v1602, 64
      %v4425 = vpop.permute.xlu0 %4424
      %4426 = vrot.lane.b32.xlu0 %v1603, 64
      %v4427 = vpop.permute.xlu0 %4426
      %4428 = vrot.lane.b32.xlu0 %v1604, 64
      %v4429 = vpop.permute.xlu0 %4428
      %4430 = vrot.lane.b32.xlu0 %v1605, 64
      %v4431 = vpop.permute.xlu0 %4430
      %4432 = vrot.lane.b32.xlu0 %v1606, 64
      %v4433 = vpop.permute.xlu0 %4432
      %4434 = vrot.lane.b32.xlu0 %v1607, 64
      %v4435 = vpop.permute.xlu0 %4434
      %4436 = vrot.lane.b32.xlu0 %v1608, 64
      %v4437 = vpop.permute.xlu0 %4436
      %4438 = vrot.lane.b32.xlu0 %v1609, 64
      %v4439 = vpop.permute.xlu0 %4438
      %4440 = vrot.lane.b32.xlu0 %v1610, 64
      %v4441 = vpop.permute.xlu0 %4440
      %4442 = vrot.lane.b32.xlu0 %v1611, 64
      %v4443 = vpop.permute.xlu0 %4442
      %4444 = vrot.lane.b32.xlu0 %v1612, 64
      %v4445 = vpop.permute.xlu0 %4444
      %4446 = vrot.lane.b32.xlu0 %v1613, 64
      %v4447 = vpop.permute.xlu0 %4446
      %4448 = vrot.lane.b32.xlu0 %v1614, 64
      %v4449 = vpop.permute.xlu0 %4448
      %4450 = vrot.lane.b32.xlu0 %v1615, 64
      %v4451 = vpop.permute.xlu0 %4450
      %4452 = vrot.lane.b32.xlu0 %v1616, 64
      %v4453 = vpop.permute.xlu0 %4452
      %4454 = vrot.lane.b32.xlu0 %v1617, 64
      %v4455 = vpop.permute.xlu0 %4454
      %4456 = vrot.lane.b32.xlu0 %v1618, 64
      %v4457 = vpop.permute.xlu0 %4456
      %4458 = vrot.lane.b32.xlu0 %v1619, 64
      %v4459 = vpop.permute.xlu0 %4458
      %4460 = vrot.lane.b32.xlu0 %v1620, 64
      %v4461 = vpop.permute.xlu0 %4460
      %4462 = vrot.lane.b32.xlu0 %v1621, 64
      %v4463 = vpop.permute.xlu0 %4462
      %4464 = vrot.lane.b32.xlu0 %v1622, 64
      %v4465 = vpop.permute.xlu0 %4464
      %4466 = vrot.lane.b32.xlu0 %v1623, 64
      %v4467 = vpop.permute.xlu0 %4466
      %4468 = vrot.lane.b32.xlu0 %v1624, 64
      %v4469 = vpop.permute.xlu0 %4468
      %4470 = vrot.lane.b32.xlu0 %v1625, 64
      %v4471 = vpop.permute.xlu0 %4470
      %4472 = vrot.lane.b32.xlu0 %v1626, 64
      %v4473 = vpop.permute.xlu0 %4472
      %4474 = vrot.lane.b32.xlu0 %v1627, 64
      %v4475 = vpop.permute.xlu0 %4474
      %4476 = vrot.lane.b32.xlu0 %v1628, 64
      %v4477 = vpop.permute.xlu0 %4476
      %4478 = vrot.lane.b32.xlu0 %v1629, 64
      %v4479 = vpop.permute.xlu0 %4478
      %4480 = vrot.lane.b32.xlu0 %v1630, 64
      %v4481 = vpop.permute.xlu0 %4480
      %4482 = vrot.lane.b32.xlu0 %v1631, 64
      %v4483 = vpop.permute.xlu0 %4482
      %4484 = vrot.lane.b32.xlu0 %v1632, 64
      %v4485 = vpop.permute.xlu0 %4484
      %4486 = vrot.lane.b32.xlu0 %v1633, 64
      %v4487 = vpop.permute.xlu0 %4486
      %4552 = vrot.lane.b32.xlu0 %v1634, 80
      %v4553 = vpop.permute.xlu0 %4552
      %4554 = vrot.lane.b32.xlu0 %v1635, 80
      %v4555 = vpop.permute.xlu0 %4554
      %4556 = vrot.lane.b32.xlu0 %v1636, 80
      %v4557 = vpop.permute.xlu0 %4556
      %4558 = vrot.lane.b32.xlu0 %v1637, 80
      %v4559 = vpop.permute.xlu0 %4558
      %4560 = vrot.lane.b32.xlu0 %v1638, 80
      %v4561 = vpop.permute.xlu0 %4560
      %4562 = vrot.lane.b32.xlu0 %v1639, 80
      %v4563 = vpop.permute.xlu0 %4562
      %4564 = vrot.lane.b32.xlu0 %v1640, 80
      %v4565 = vpop.permute.xlu0 %4564
      %4566 = vrot.lane.b32.xlu0 %v1641, 80
      %v4567 = vpop.permute.xlu0 %4566
      %4568 = vrot.lane.b32.xlu0 %v1642, 80
      %v4569 = vpop.permute.xlu0 %4568
      %4570 = vrot.lane.b32.xlu0 %v1643, 80
      %v4571 = vpop.permute.xlu0 %4570
      %4572 = vrot.lane.b32.xlu0 %v1644, 80
      %v4573 = vpop.permute.xlu0 %4572
      %4574 = vrot.lane.b32.xlu0 %v1645, 80
      %v4575 = vpop.permute.xlu0 %4574
      %4576 = vrot.lane.b32.xlu0 %v1646, 80
      %v4577 = vpop.permute.xlu0 %4576
      %4578 = vrot.lane.b32.xlu0 %v1647, 80
      %v4579 = vpop.permute.xlu0 %4578
      %4580 = vrot.lane.b32.xlu0 %v1648, 80
      %v4581 = vpop.permute.xlu0 %4580
      %4582 = vrot.lane.b32.xlu0 %v1649, 80
      %v4583 = vpop.permute.xlu0 %4582
      %4584 = vrot.lane.b32.xlu0 %v1650, 80
      %v4585 = vpop.permute.xlu0 %4584
      %4586 = vrot.lane.b32.xlu0 %v1651, 80
      %v4587 = vpop.permute.xlu0 %4586
      %4588 = vrot.lane.b32.xlu0 %v1652, 80
      %v4589 = vpop.permute.xlu0 %4588
      %4590 = vrot.lane.b32.xlu0 %v1653, 80
      %v4591 = vpop.permute.xlu0 %4590
      %4592 = vrot.lane.b32.xlu0 %v1654, 80
      %v4593 = vpop.permute.xlu0 %4592
      %4594 = vrot.lane.b32.xlu0 %v1655, 80
      %v4595 = vpop.permute.xlu0 %4594
      %4596 = vrot.lane.b32.xlu0 %v1656, 80
      %v4597 = vpop.permute.xlu0 %4596
      %4598 = vrot.lane.b32.xlu0 %v1657, 80
      %v4599 = vpop.permute.xlu0 %4598
      %4600 = vrot.lane.b32.xlu0 %v1658, 80
      %v4601 = vpop.permute.xlu0 %4600
      %4602 = vrot.lane.b32.xlu0 %v1659, 80
      %v4603 = vpop.permute.xlu0 %4602
      %4604 = vrot.lane.b32.xlu0 %v1660, 80
      %v4605 = vpop.permute.xlu0 %4604
      %4606 = vrot.lane.b32.xlu0 %v1661, 80
      %v4607 = vpop.permute.xlu0 %4606
      %4608 = vrot.lane.b32.xlu0 %v1662, 80
      %v4609 = vpop.permute.xlu0 %4608
      %4610 = vrot.lane.b32.xlu0 %v1663, 80
      %v4611 = vpop.permute.xlu0 %4610
      %4612 = vrot.lane.b32.xlu0 %v1664, 80
      %v4613 = vpop.permute.xlu0 %4612
      %4614 = vrot.lane.b32.xlu0 %v1665, 80
      %v4615 = vpop.permute.xlu0 %4614
      %4680 = vrot.lane.b32.xlu0 %v1666, 96
      %v4681 = vpop.permute.xlu0 %4680
      %4682 = vrot.lane.b32.xlu0 %v1667, 96
      %v4683 = vpop.permute.xlu0 %4682
      %4684 = vrot.lane.b32.xlu0 %v1668, 96
      %v4685 = vpop.permute.xlu0 %4684
      %4686 = vrot.lane.b32.xlu0 %v1669, 96
      %v4687 = vpop.permute.xlu0 %4686
      %4688 = vrot.lane.b32.xlu0 %v1670, 96
      %v4689 = vpop.permute.xlu0 %4688
      %4690 = vrot.lane.b32.xlu0 %v1671, 96
      %v4691 = vpop.permute.xlu0 %4690
      %4692 = vrot.lane.b32.xlu0 %v1672, 96
      %v4693 = vpop.permute.xlu0 %4692
      %4694 = vrot.lane.b32.xlu0 %v1673, 96
      %v4695 = vpop.permute.xlu0 %4694
      %4696 = vrot.lane.b32.xlu0 %v1674, 96
      %v4697 = vpop.permute.xlu0 %4696
      %4698 = vrot.lane.b32.xlu0 %v1675, 96
      %v4699 = vpop.permute.xlu0 %4698
      %4700 = vrot.lane.b32.xlu0 %v1676, 96
      %v4701 = vpop.permute.xlu0 %4700
      %4702 = vrot.lane.b32.xlu0 %v1677, 96
      %v4703 = vpop.permute.xlu0 %4702
      %4704 = vrot.lane.b32.xlu0 %v1678, 96
      %v4705 = vpop.permute.xlu0 %4704
      %4706 = vrot.lane.b32.xlu0 %v1679, 96
      %v4707 = vpop.permute.xlu0 %4706
      %4708 = vrot.lane.b32.xlu0 %v1680, 96
      %v4709 = vpop.permute.xlu0 %4708
      %4710 = vrot.lane.b32.xlu0 %v1681, 96
      %v4711 = vpop.permute.xlu0 %4710
      %4712 = vrot.lane.b32.xlu0 %v1682, 96
      %v4713 = vpop.permute.xlu0 %4712
      %4714 = vrot.lane.b32.xlu0 %v1683, 96
      %v4715 = vpop.permute.xlu0 %4714
      %4716 = vrot.lane.b32.xlu0 %v1684, 96
      %v4717 = vpop.permute.xlu0 %4716
      %4718 = vrot.lane.b32.xlu0 %v1685, 96
      %v4719 = vpop.permute.xlu0 %4718
      %4720 = vrot.lane.b32.xlu0 %v1686, 96
      %v4721 = vpop.permute.xlu0 %4720
      %4722 = vrot.lane.b32.xlu0 %v1687, 96
      %v4723 = vpop.permute.xlu0 %4722
      %4724 = vrot.lane.b32.xlu0 %v1688, 96
      %v4725 = vpop.permute.xlu0 %4724
      %4726 = vrot.lane.b32.xlu0 %v1689, 96
      %v4727 = vpop.permute.xlu0 %4726
      %4728 = vrot.lane.b32.xlu0 %v1690, 96
      %v4729 = vpop.permute.xlu0 %4728
      %4730 = vrot.lane.b32.xlu0 %v1691, 96
      %v4731 = vpop.permute.xlu0 %4730
      %4732 = vrot.lane.b32.xlu0 %v1692, 96
      %v4733 = vpop.permute.xlu0 %4732
      %4734 = vrot.lane.b32.xlu0 %v1693, 96
      %v4735 = vpop.permute.xlu0 %4734
      %4736 = vrot.lane.b32.xlu0 %v1694, 96
      %v4737 = vpop.permute.xlu0 %4736
      %4738 = vrot.lane.b32.xlu0 %v1695, 96
      %v4739 = vpop.permute.xlu0 %4738
      %4740 = vrot.lane.b32.xlu0 %v1696, 96
      %v4741 = vpop.permute.xlu0 %4740
      %4742 = vrot.lane.b32.xlu0 %v1697, 96
      %v4743 = vpop.permute.xlu0 %4742
      %4808 = vrot.lane.b32.xlu0 %v1698, 112
      %v4809 = vpop.permute.xlu0 %4808
      %4810 = vrot.lane.b32.xlu0 %v1699, 112
      %v4811 = vpop.permute.xlu0 %4810
      %4812 = vrot.lane.b32.xlu0 %v1700, 112
      %v4813 = vpop.permute.xlu0 %4812
      %4814 = vrot.lane.b32.xlu0 %v1701, 112
      %v4815 = vpop.permute.xlu0 %4814
      %4816 = vrot.lane.b32.xlu0 %v1702, 112
      %v4817 = vpop.permute.xlu0 %4816
      %4818 = vrot.lane.b32.xlu0 %v1703, 112
      %v4819 = vpop.permute.xlu0 %4818
      %4820 = vrot.lane.b32.xlu0 %v1704, 112
      %v4821 = vpop.permute.xlu0 %4820
      %4822 = vrot.lane.b32.xlu0 %v1705, 112
      %v4823 = vpop.permute.xlu0 %4822
      %4824 = vrot.lane.b32.xlu0 %v1706, 112
      %v4825 = vpop.permute.xlu0 %4824
      %4826 = vrot.lane.b32.xlu0 %v1707, 112
      %v4827 = vpop.permute.xlu0 %4826
      %4828 = vrot.lane.b32.xlu0 %v1708, 112
      %v4829 = vpop.permute.xlu0 %4828
      %4830 = vrot.lane.b32.xlu0 %v1709, 112
      %v4831 = vpop.permute.xlu0 %4830
      %4832 = vrot.lane.b32.xlu0 %v1710, 112
      %v4833 = vpop.permute.xlu0 %4832
      %4834 = vrot.lane.b32.xlu0 %v1711, 112
      %v4835 = vpop.permute.xlu0 %4834
      %4836 = vrot.lane.b32.xlu0 %v1712, 112
      %v4837 = vpop.permute.xlu0 %4836
      %4838 = vrot.lane.b32.xlu0 %v1713, 112
      %v4839 = vpop.permute.xlu0 %4838
      %4840 = vrot.lane.b32.xlu0 %v1714, 112
      %v4841 = vpop.permute.xlu0 %4840
      %4842 = vrot.lane.b32.xlu0 %v1715, 112
      %v4843 = vpop.permute.xlu0 %4842
      %4844 = vrot.lane.b32.xlu0 %v1716, 112
      %v4845 = vpop.permute.xlu0 %4844
      %4846 = vrot.lane.b32.xlu0 %v1717, 112
      %v4847 = vpop.permute.xlu0 %4846
      %4848 = vrot.lane.b32.xlu0 %v1718, 112
      %v4849 = vpop.permute.xlu0 %4848
      %4850 = vrot.lane.b32.xlu0 %v1719, 112
      %v4851 = vpop.permute.xlu0 %4850
      %4852 = vrot.lane.b32.xlu0 %v1720, 112
      %v4853 = vpop.permute.xlu0 %4852
      %4854 = vrot.lane.b32.xlu0 %v1721, 112
      %v4855 = vpop.permute.xlu0 %4854
      %4856 = vrot.lane.b32.xlu0 %v1722, 112
      %v4857 = vpop.permute.xlu0 %4856
      %4858 = vrot.lane.b32.xlu0 %v1723, 112
      %v4859 = vpop.permute.xlu0 %4858
      %4860 = vrot.lane.b32.xlu0 %v1724, 112
      %v4861 = vpop.permute.xlu0 %4860
      %4862 = vrot.lane.b32.xlu0 %v1725, 112
      %v4863 = vpop.permute.xlu0 %4862
      %4864 = vrot.lane.b32.xlu0 %v1726, 112
      %v4865 = vpop.permute.xlu0 %4864
      %4866 = vrot.lane.b32.xlu0 %v1727, 112
      %v4867 = vpop.permute.xlu0 %4866
      %4868 = vrot.lane.b32.xlu0 %v1728, 112
      %v4869 = vpop.permute.xlu0 %4868
      %4870 = vrot.lane.b32.xlu0 %v1729, 112
      %v4871 = vpop.permute.xlu0 %4870
      %v4904 = vsel %vm3554, %v1473, %v4041
      %v4905 = vsel %vm3554, %v1474, %v4043
      %v4906 = vsel %vm3554, %v1475, %v4045
      %v4907 = vsel %vm3554, %v1476, %v4047
      %v4908 = vsel %vm3554, %v1477, %v4049
      %v4909 = vsel %vm3554, %v1478, %v4051
      %v4910 = vsel %vm3554, %v1479, %v4053
      %v4911 = vsel %vm3554, %v1480, %v4055
      %v4912 = vsel %vm3554, %v1481, %v4057
      %v4913 = vsel %vm3554, %v1482, %v4059
      %v4914 = vsel %vm3554, %v1483, %v4061
      %v4915 = vsel %vm3554, %v1484, %v4063
      %v4916 = vsel %vm3554, %v1485, %v4065
      %v4917 = vsel %vm3554, %v1486, %v4067
      %v4918 = vsel %vm3554, %v1487, %v4069
      %v4919 = vsel %vm3554, %v1488, %v4071
      %v4920 = vsel %vm3554, %v1489, %v4073
      %v4921 = vsel %vm3554, %v1490, %v4075
      %v4922 = vsel %vm3554, %v1491, %v4077
      %v4923 = vsel %vm3554, %v1492, %v4079
      %v4924 = vsel %vm3554, %v1493, %v4081
      %v4925 = vsel %vm3554, %v1494, %v4083
      %v4926 = vsel %vm3554, %v1495, %v4085
      %v4927 = vsel %vm3554, %v1496, %v4087
      %v4928 = vsel %vm3554, %v1497, %v4089
      %v4929 = vsel %vm3554, %v1498, %v4091
      %v4930 = vsel %vm3554, %v1499, %v4093
      %v4931 = vsel %vm3554, %v1500, %v4095
      %v4932 = vsel %vm3554, %v1501, %v4097
      %v4933 = vsel %vm3554, %v1502, %v4099
      %v4934 = vsel %vm3554, %v1503, %v4101
      %v4935 = vsel %vm3554, %v1504, %v4103
      %v4936 = vsel %vm894, %v4904, %v4169
      %v4937 = vsel %vm894, %v4905, %v4171
      %v4938 = vsel %vm894, %v4906, %v4173
      %v4939 = vsel %vm894, %v4907, %v4175
      %v4940 = vsel %vm894, %v4908, %v4177
      %v4941 = vsel %vm894, %v4909, %v4179
      %v4942 = vsel %vm894, %v4910, %v4181
      %v4943 = vsel %vm894, %v4911, %v4183
      %v4944 = vsel %vm894, %v4912, %v4185
      %v4945 = vsel %vm894, %v4913, %v4187
      %v4946 = vsel %vm894, %v4914, %v4189
      %v4947 = vsel %vm894, %v4915, %v4191
      %v4948 = vsel %vm894, %v4916, %v4193
      %v4949 = vsel %vm894, %v4917, %v4195
      %v4950 = vsel %vm894, %v4918, %v4197
      %v4951 = vsel %vm894, %v4919, %v4199
      %v4952 = vsel %vm894, %v4920, %v4201
      %v4953 = vsel %vm894, %v4921, %v4203
      %v4954 = vsel %vm894, %v4922, %v4205
      %v4955 = vsel %vm894, %v4923, %v4207
      %v4956 = vsel %vm894, %v4924, %v4209
      %v4957 = vsel %vm894, %v4925, %v4211
      %v4958 = vsel %vm894, %v4926, %v4213
      %v4959 = vsel %vm894, %v4927, %v4215
      %v4960 = vsel %vm894, %v4928, %v4217
      %v4961 = vsel %vm894, %v4929, %v4219
      %v4962 = vsel %vm894, %v4930, %v4221
      %v4963 = vsel %vm894, %v4931, %v4223
      %v4964 = vsel %vm894, %v4932, %v4225
      %v4965 = vsel %vm894, %v4933, %v4227
      %v4966 = vsel %vm894, %v4934, %v4229
      %v4967 = vsel %vm894, %v4935, %v4231
      %v4968 = vsel %vm3619, %v4936, %v4297
      %v4969 = vsel %vm3619, %v4937, %v4299
      %v4970 = vsel %vm3619, %v4938, %v4301
      %v4971 = vsel %vm3619, %v4939, %v4303
      %v4972 = vsel %vm3619, %v4940, %v4305
      %v4973 = vsel %vm3619, %v4941, %v4307
      %v4974 = vsel %vm3619, %v4942, %v4309
      %v4975 = vsel %vm3619, %v4943, %v4311
      %v4976 = vsel %vm3619, %v4944, %v4313
      %v4977 = vsel %vm3619, %v4945, %v4315
      %v4978 = vsel %vm3619, %v4946, %v4317
      %v4979 = vsel %vm3619, %v4947, %v4319
      %v4980 = vsel %vm3619, %v4948, %v4321
      %v4981 = vsel %vm3619, %v4949, %v4323
      %v4982 = vsel %vm3619, %v4950, %v4325
      %v4983 = vsel %vm3619, %v4951, %v4327
      %v4984 = vsel %vm3619, %v4952, %v4329
      %v4985 = vsel %vm3619, %v4953, %v4331
      %v4986 = vsel %vm3619, %v4954, %v4333
      %v4987 = vsel %vm3619, %v4955, %v4335
      %v4988 = vsel %vm3619, %v4956, %v4337
      %v4989 = vsel %vm3619, %v4957, %v4339
      %v4990 = vsel %vm3619, %v4958, %v4341
      %v4991 = vsel %vm3619, %v4959, %v4343
      %v4992 = vsel %vm3619, %v4960, %v4345
      %v4993 = vsel %vm3619, %v4961, %v4347
      %v4994 = vsel %vm3619, %v4962, %v4349
      %v4995 = vsel %vm3619, %v4963, %v4351
      %v4996 = vsel %vm3619, %v4964, %v4353
      %v4997 = vsel %vm3619, %v4965, %v4355
      %v4998 = vsel %vm3619, %v4966, %v4357
      %v4999 = vsel %vm3619, %v4967, %v4359
      %v5000 = vsel %vm3652, %v4968, %v4425
      %v5001 = vsel %vm3652, %v4969, %v4427
      %v5002 = vsel %vm3652, %v4970, %v4429
      %v5003 = vsel %vm3652, %v4971, %v4431
      %v5004 = vsel %vm3652, %v4972, %v4433
      %v5005 = vsel %vm3652, %v4973, %v4435
      %v5006 = vsel %vm3652, %v4974, %v4437
      %v5007 = vsel %vm3652, %v4975, %v4439
      %v5008 = vsel %vm3652, %v4976, %v4441
      %v5009 = vsel %vm3652, %v4977, %v4443
      %v5010 = vsel %vm3652, %v4978, %v4445
      %v5011 = vsel %vm3652, %v4979, %v4447
      %v5012 = vsel %vm3652, %v4980, %v4449
      %v5013 = vsel %vm3652, %v4981, %v4451
      %v5014 = vsel %vm3652, %v4982, %v4453
      %v5015 = vsel %vm3652, %v4983, %v4455
      %v5016 = vsel %vm3652, %v4984, %v4457
      %v5017 = vsel %vm3652, %v4985, %v4459
      %v5018 = vsel %vm3652, %v4986, %v4461
      %v5019 = vsel %vm3652, %v4987, %v4463
      %v5020 = vsel %vm3652, %v4988, %v4465
      %v5021 = vsel %vm3652, %v4989, %v4467
      %v5022 = vsel %vm3652, %v4990, %v4469
      %v5023 = vsel %vm3652, %v4991, %v4471
      %v5024 = vsel %vm3652, %v4992, %v4473
      %v5025 = vsel %vm3652, %v4993, %v4475
      %v5026 = vsel %vm3652, %v4994, %v4477
      %v5027 = vsel %vm3652, %v4995, %v4479
      %v5028 = vsel %vm3652, %v4996, %v4481
      %v5029 = vsel %vm3652, %v4997, %v4483
      %v5030 = vsel %vm3652, %v4998, %v4485
      %v5031 = vsel %vm3652, %v4999, %v4487
      %v5032 = vsel %vm3685, %v5000, %v4553
      %v5033 = vsel %vm3685, %v5001, %v4555
      %v5034 = vsel %vm3685, %v5002, %v4557
      %v5035 = vsel %vm3685, %v5003, %v4559
      %v5036 = vsel %vm3685, %v5004, %v4561
      %v5037 = vsel %vm3685, %v5005, %v4563
      %v5038 = vsel %vm3685, %v5006, %v4565
      %v5039 = vsel %vm3685, %v5007, %v4567
      %v5040 = vsel %vm3685, %v5008, %v4569
      %v5041 = vsel %vm3685, %v5009, %v4571
      %v5042 = vsel %vm3685, %v5010, %v4573
      %v5043 = vsel %vm3685, %v5011, %v4575
      %v5044 = vsel %vm3685, %v5012, %v4577
      %v5045 = vsel %vm3685, %v5013, %v4579
      %v5046 = vsel %vm3685, %v5014, %v4581
      %v5047 = vsel %vm3685, %v5015, %v4583
      %v5048 = vsel %vm3685, %v5016, %v4585
      %v5049 = vsel %vm3685, %v5017, %v4587
      %v5050 = vsel %vm3685, %v5018, %v4589
      %v5051 = vsel %vm3685, %v5019, %v4591
      %v5052 = vsel %vm3685, %v5020, %v4593
      %v5053 = vsel %vm3685, %v5021, %v4595
      %v5054 = vsel %vm3685, %v5022, %v4597
      %v5055 = vsel %vm3685, %v5023, %v4599
      %v5056 = vsel %vm3685, %v5024, %v4601
      %v5057 = vsel %vm3685, %v5025, %v4603
      %v5058 = vsel %vm3685, %v5026, %v4605
      %v5059 = vsel %vm3685, %v5027, %v4607
      %v5060 = vsel %vm3685, %v5028, %v4609
      %v5061 = vsel %vm3685, %v5029, %v4611
      %v5062 = vsel %vm3685, %v5030, %v4613
      %v5063 = vsel %vm3685, %v5031, %v4615
      %v5064 = vsel %vm3718, %v5032, %v4681
      %v5065 = vsel %vm3718, %v5033, %v4683
      %v5066 = vsel %vm3718, %v5034, %v4685
      %v5067 = vsel %vm3718, %v5035, %v4687
      %v5068 = vsel %vm3718, %v5036, %v4689
      %v5069 = vsel %vm3718, %v5037, %v4691
      %v5070 = vsel %vm3718, %v5038, %v4693
      %v5071 = vsel %vm3718, %v5039, %v4695
      %v5072 = vsel %vm3718, %v5040, %v4697
      %v5073 = vsel %vm3718, %v5041, %v4699
      %v5074 = vsel %vm3718, %v5042, %v4701
      %v5075 = vsel %vm3718, %v5043, %v4703
      %v5076 = vsel %vm3718, %v5044, %v4705
      %v5077 = vsel %vm3718, %v5045, %v4707
      %v5078 = vsel %vm3718, %v5046, %v4709
      %v5079 = vsel %vm3718, %v5047, %v4711
      %v5080 = vsel %vm3718, %v5048, %v4713
      %v5081 = vsel %vm3718, %v5049, %v4715
      %v5082 = vsel %vm3718, %v5050, %v4717
      %v5083 = vsel %vm3718, %v5051, %v4719
      %v5084 = vsel %vm3718, %v5052, %v4721
      %v5085 = vsel %vm3718, %v5053, %v4723
      %v5086 = vsel %vm3718, %v5054, %v4725
      %v5087 = vsel %vm3718, %v5055, %v4727
      %v5088 = vsel %vm3718, %v5056, %v4729
      %v5089 = vsel %vm3718, %v5057, %v4731
      %v5090 = vsel %vm3718, %v5058, %v4733
      %v5091 = vsel %vm3718, %v5059, %v4735
      %v5092 = vsel %vm3718, %v5060, %v4737
      %v5093 = vsel %vm3718, %v5061, %v4739
      %v5094 = vsel %vm3718, %v5062, %v4741
      %v5095 = vsel %vm3718, %v5063, %v4743
      %v5096 = vsel %vm3751, %v5064, %v4809
      %v5097 = vsel %vm3751, %v5065, %v4811
      %v5098 = vsel %vm3751, %v5066, %v4813
      %v5099 = vsel %vm3751, %v5067, %v4815
      %v5100 = vsel %vm3751, %v5068, %v4817
      %v5101 = vsel %vm3751, %v5069, %v4819
      %v5102 = vsel %vm3751, %v5070, %v4821
      %v5103 = vsel %vm3751, %v5071, %v4823
      %v5104 = vsel %vm3751, %v5072, %v4825
      %v5105 = vsel %vm3751, %v5073, %v4827
      %v5106 = vsel %vm3751, %v5074, %v4829
      %v5107 = vsel %vm3751, %v5075, %v4831
      %v5108 = vsel %vm3751, %v5076, %v4833
      %v5109 = vsel %vm3751, %v5077, %v4835
      %v5110 = vsel %vm3751, %v5078, %v4837
      %v5111 = vsel %vm3751, %v5079, %v4839
      %v5112 = vsel %vm3751, %v5080, %v4841
      %v5113 = vsel %vm3751, %v5081, %v4843
      %v5114 = vsel %vm3751, %v5082, %v4845
      %v5115 = vsel %vm3751, %v5083, %v4847
      %v5116 = vsel %vm3751, %v5084, %v4849
      %v5117 = vsel %vm3751, %v5085, %v4851
      %v5118 = vsel %vm3751, %v5086, %v4853
      %v5119 = vsel %vm3751, %v5087, %v4855
      %v5120 = vsel %vm3751, %v5088, %v4857
      %v5121 = vsel %vm3751, %v5089, %v4859
      %v5122 = vsel %vm3751, %v5090, %v4861
      %v5123 = vsel %vm3751, %v5091, %v4863
      %v5124 = vsel %vm3751, %v5092, %v4865
      %v5125 = vsel %vm3751, %v5093, %v4867
      %v5126 = vsel %vm3751, %v5094, %v4869
      %v5127 = vsel %vm3751, %v5095, %v4871
      %5128 = vrot.lane.b32.xlu0 %v1152, 112
      %v5129 = vpop.permute.xlu0 %5128
      %5130 = vrot.lane.b32.xlu0 %v1153, 112
      %v5131 = vpop.permute.xlu0 %5130
      %5132 = vrot.lane.b32.xlu0 %v1154, 112
      %v5133 = vpop.permute.xlu0 %5132
      %5134 = vrot.lane.b32.xlu0 %v1155, 112
      %v5135 = vpop.permute.xlu0 %5134
      %5136 = vrot.lane.b32.xlu0 %v1156, 112
      %v5137 = vpop.permute.xlu0 %5136
      %5138 = vrot.lane.b32.xlu0 %v1157, 112
      %v5139 = vpop.permute.xlu0 %5138
      %5140 = vrot.lane.b32.xlu0 %v1158, 112
      %v5141 = vpop.permute.xlu0 %5140
      %5142 = vrot.lane.b32.xlu0 %v1159, 112
      %v5143 = vpop.permute.xlu0 %5142
      %5144 = vrot.lane.b32.xlu0 %v1160, 112
      %v5145 = vpop.permute.xlu0 %5144
      %5146 = vrot.lane.b32.xlu0 %v1161, 112
      %v5147 = vpop.permute.xlu0 %5146
      %5148 = vrot.lane.b32.xlu0 %v1162, 112
      %v5149 = vpop.permute.xlu0 %5148
      %5150 = vrot.lane.b32.xlu0 %v1163, 112
      %v5151 = vpop.permute.xlu0 %5150
      %5152 = vrot.lane.b32.xlu0 %v1164, 112
      %v5153 = vpop.permute.xlu0 %5152
      %5154 = vrot.lane.b32.xlu0 %v1165, 112
      %v5155 = vpop.permute.xlu0 %5154
      %5156 = vrot.lane.b32.xlu0 %v1166, 112
      %v5157 = vpop.permute.xlu0 %5156
      %5158 = vrot.lane.b32.xlu0 %v1167, 112
      %v5159 = vpop.permute.xlu0 %5158
      %5160 = vrot.lane.b32.xlu0 %v1168, 112
      %v5161 = vpop.permute.xlu0 %5160
      %5162 = vrot.lane.b32.xlu0 %v1169, 112
      %v5163 = vpop.permute.xlu0 %5162
      %5164 = vrot.lane.b32.xlu0 %v1170, 112
      %v5165 = vpop.permute.xlu0 %5164
      %5166 = vrot.lane.b32.xlu0 %v1171, 112
      %v5167 = vpop.permute.xlu0 %5166
      %5168 = vrot.lane.b32.xlu0 %v1172, 112
      %v5169 = vpop.permute.xlu0 %5168
      %5170 = vrot.lane.b32.xlu0 %v1173, 112
      %v5171 = vpop.permute.xlu0 %5170
      %5172 = vrot.lane.b32.xlu0 %v1174, 112
      %v5173 = vpop.permute.xlu0 %5172
      %5174 = vrot.lane.b32.xlu0 %v1175, 112
      %v5175 = vpop.permute.xlu0 %5174
      %5176 = vrot.lane.b32.xlu0 %v1176, 112
      %v5177 = vpop.permute.xlu0 %5176
      %5178 = vrot.lane.b32.xlu0 %v1177, 112
      %v5179 = vpop.permute.xlu0 %5178
      %5180 = vrot.lane.b32.xlu0 %v1178, 112
      %v5181 = vpop.permute.xlu0 %5180
      %5182 = vrot.lane.b32.xlu0 %v1179, 112
      %v5183 = vpop.permute.xlu0 %5182
      %5184 = vrot.lane.b32.xlu0 %v1180, 112
      %v5185 = vpop.permute.xlu0 %5184
      %5186 = vrot.lane.b32.xlu0 %v1181, 112
      %v5187 = vpop.permute.xlu0 %5186
      %5188 = vrot.lane.b32.xlu0 %v1182, 112
      %v5189 = vpop.permute.xlu0 %5188
      %5190 = vrot.lane.b32.xlu0 %v1183, 112
      %v5191 = vpop.permute.xlu0 %5190
      %5256 = vrot.lane.b32.xlu0 %v1216, 16
      %v5257 = vpop.permute.xlu0 %5256
      %5258 = vrot.lane.b32.xlu0 %v1217, 16
      %v5259 = vpop.permute.xlu0 %5258
      %5260 = vrot.lane.b32.xlu0 %v1218, 16
      %v5261 = vpop.permute.xlu0 %5260
      %5262 = vrot.lane.b32.xlu0 %v1219, 16
      %v5263 = vpop.permute.xlu0 %5262
      %5264 = vrot.lane.b32.xlu0 %v1220, 16
      %v5265 = vpop.permute.xlu0 %5264
      %5266 = vrot.lane.b32.xlu0 %v1221, 16
      %v5267 = vpop.permute.xlu0 %5266
      %5268 = vrot.lane.b32.xlu0 %v1222, 16
      %v5269 = vpop.permute.xlu0 %5268
      %5270 = vrot.lane.b32.xlu0 %v1223, 16
      %v5271 = vpop.permute.xlu0 %5270
      %5272 = vrot.lane.b32.xlu0 %v1224, 16
      %v5273 = vpop.permute.xlu0 %5272
      %5274 = vrot.lane.b32.xlu0 %v1225, 16
      %v5275 = vpop.permute.xlu0 %5274
      %5276 = vrot.lane.b32.xlu0 %v1226, 16
      %v5277 = vpop.permute.xlu0 %5276
      %5278 = vrot.lane.b32.xlu0 %v1227, 16
      %v5279 = vpop.permute.xlu0 %5278
      %5280 = vrot.lane.b32.xlu0 %v1228, 16
      %v5281 = vpop.permute.xlu0 %5280
      %5282 = vrot.lane.b32.xlu0 %v1229, 16
      %v5283 = vpop.permute.xlu0 %5282
      %5284 = vrot.lane.b32.xlu0 %v1230, 16
      %v5285 = vpop.permute.xlu0 %5284
      %5286 = vrot.lane.b32.xlu0 %v1231, 16
      %v5287 = vpop.permute.xlu0 %5286
      %5288 = vrot.lane.b32.xlu0 %v1232, 16
      %v5289 = vpop.permute.xlu0 %5288
      %5290 = vrot.lane.b32.xlu0 %v1233, 16
      %v5291 = vpop.permute.xlu0 %5290
      %5292 = vrot.lane.b32.xlu0 %v1234, 16
      %v5293 = vpop.permute.xlu0 %5292
      %5294 = vrot.lane.b32.xlu0 %v1235, 16
      %v5295 = vpop.permute.xlu0 %5294
      %5296 = vrot.lane.b32.xlu0 %v1236, 16
      %v5297 = vpop.permute.xlu0 %5296
      %5298 = vrot.lane.b32.xlu0 %v1237, 16
      %v5299 = vpop.permute.xlu0 %5298
      %5300 = vrot.lane.b32.xlu0 %v1238, 16
      %v5301 = vpop.permute.xlu0 %5300
      %5302 = vrot.lane.b32.xlu0 %v1239, 16
      %v5303 = vpop.permute.xlu0 %5302
      %5304 = vrot.lane.b32.xlu0 %v1240, 16
      %v5305 = vpop.permute.xlu0 %5304
      %5306 = vrot.lane.b32.xlu0 %v1241, 16
      %v5307 = vpop.permute.xlu0 %5306
      %5308 = vrot.lane.b32.xlu0 %v1242, 16
      %v5309 = vpop.permute.xlu0 %5308
      %5310 = vrot.lane.b32.xlu0 %v1243, 16
      %v5311 = vpop.permute.xlu0 %5310
      %5312 = vrot.lane.b32.xlu0 %v1244, 16
      %v5313 = vpop.permute.xlu0 %5312
      %5314 = vrot.lane.b32.xlu0 %v1245, 16
      %v5315 = vpop.permute.xlu0 %5314
      %5316 = vrot.lane.b32.xlu0 %v1246, 16
      %v5317 = vpop.permute.xlu0 %5316
      %5318 = vrot.lane.b32.xlu0 %v1247, 16
      %v5319 = vpop.permute.xlu0 %5318
      %5352 = vrot.lane.b32.xlu0 %v1312, 32
      %v5353 = vpop.permute.xlu0 %5352
      %5354 = vrot.lane.b32.xlu0 %v1313, 32
      %v5355 = vpop.permute.xlu0 %5354
      %5356 = vrot.lane.b32.xlu0 %v1314, 32
      %v5357 = vpop.permute.xlu0 %5356
      %5358 = vrot.lane.b32.xlu0 %v1315, 32
      %v5359 = vpop.permute.xlu0 %5358
      %5360 = vrot.lane.b32.xlu0 %v1316, 32
      %v5361 = vpop.permute.xlu0 %5360
      %5362 = vrot.lane.b32.xlu0 %v1317, 32
      %v5363 = vpop.permute.xlu0 %5362
      %5364 = vrot.lane.b32.xlu0 %v1318, 32
      %v5365 = vpop.permute.xlu0 %5364
      %5366 = vrot.lane.b32.xlu0 %v1319, 32
      %v5367 = vpop.permute.xlu0 %5366
      %5368 = vrot.lane.b32.xlu0 %v1320, 32
      %v5369 = vpop.permute.xlu0 %5368
      %5370 = vrot.lane.b32.xlu0 %v1321, 32
      %v5371 = vpop.permute.xlu0 %5370
      %5372 = vrot.lane.b32.xlu0 %v1322, 32
      %v5373 = vpop.permute.xlu0 %5372
      %5374 = vrot.lane.b32.xlu0 %v1323, 32
      %v5375 = vpop.permute.xlu0 %5374
      %5376 = vrot.lane.b32.xlu0 %v1324, 32
      %v5377 = vpop.permute.xlu0 %5376
      %5378 = vrot.lane.b32.xlu0 %v1325, 32
      %v5379 = vpop.permute.xlu0 %5378
      %5380 = vrot.lane.b32.xlu0 %v1326, 32
      %v5381 = vpop.permute.xlu0 %5380
      %5382 = vrot.lane.b32.xlu0 %v1327, 32
      %v5383 = vpop.permute.xlu0 %5382
      %5384 = vrot.lane.b32.xlu0 %v1328, 32
      %v5385 = vpop.permute.xlu0 %5384
      %5386 = vrot.lane.b32.xlu0 %v1329, 32
      %v5387 = vpop.permute.xlu0 %5386
      %5388 = vrot.lane.b32.xlu0 %v1330, 32
      %v5389 = vpop.permute.xlu0 %5388
      %5390 = vrot.lane.b32.xlu0 %v1331, 32
      %v5391 = vpop.permute.xlu0 %5390
      %5392 = vrot.lane.b32.xlu0 %v1332, 32
      %v5393 = vpop.permute.xlu0 %5392
      %5394 = vrot.lane.b32.xlu0 %v1333, 32
      %v5395 = vpop.permute.xlu0 %5394
      %5396 = vrot.lane.b32.xlu0 %v1334, 32
      %v5397 = vpop.permute.xlu0 %5396
      %5398 = vrot.lane.b32.xlu0 %v1335, 32
      %v5399 = vpop.permute.xlu0 %5398
      %5400 = vrot.lane.b32.xlu0 %v1336, 32
      %v5401 = vpop.permute.xlu0 %5400
      %5402 = vrot.lane.b32.xlu0 %v1337, 32
      %v5403 = vpop.permute.xlu0 %5402
      %5404 = vrot.lane.b32.xlu0 %v1338, 32
      %v5405 = vpop.permute.xlu0 %5404
      %5406 = vrot.lane.b32.xlu0 %v1339, 32
      %v5407 = vpop.permute.xlu0 %5406
      %5408 = vrot.lane.b32.xlu0 %v1340, 32
      %v5409 = vpop.permute.xlu0 %5408
      %5410 = vrot.lane.b32.xlu0 %v1341, 32
      %v5411 = vpop.permute.xlu0 %5410
      %5412 = vrot.lane.b32.xlu0 %v1342, 32
      %v5413 = vpop.permute.xlu0 %5412
      %5414 = vrot.lane.b32.xlu0 %v1343, 32
      %v5415 = vpop.permute.xlu0 %5414
      %5448 = vrot.lane.b32.xlu0 %v1344, 48
      %v5449 = vpop.permute.xlu0 %5448
      %5450 = vrot.lane.b32.xlu0 %v1345, 48
      %v5451 = vpop.permute.xlu0 %5450
      %5452 = vrot.lane.b32.xlu0 %v1346, 48
      %v5453 = vpop.permute.xlu0 %5452
      %5454 = vrot.lane.b32.xlu0 %v1347, 48
      %v5455 = vpop.permute.xlu0 %5454
      %5456 = vrot.lane.b32.xlu0 %v1348, 48
      %v5457 = vpop.permute.xlu0 %5456
      %5458 = vrot.lane.b32.xlu0 %v1349, 48
      %v5459 = vpop.permute.xlu0 %5458
      %5460 = vrot.lane.b32.xlu0 %v1350, 48
      %v5461 = vpop.permute.xlu0 %5460
      %5462 = vrot.lane.b32.xlu0 %v1351, 48
      %v5463 = vpop.permute.xlu0 %5462
      %5464 = vrot.lane.b32.xlu0 %v1352, 48
      %v5465 = vpop.permute.xlu0 %5464
      %5466 = vrot.lane.b32.xlu0 %v1353, 48
      %v5467 = vpop.permute.xlu0 %5466
      %5468 = vrot.lane.b32.xlu0 %v1354, 48
      %v5469 = vpop.permute.xlu0 %5468
      %5470 = vrot.lane.b32.xlu0 %v1355, 48
      %v5471 = vpop.permute.xlu0 %5470
      %5472 = vrot.lane.b32.xlu0 %v1356, 48
      %v5473 = vpop.permute.xlu0 %5472
      %5474 = vrot.lane.b32.xlu0 %v1357, 48
      %v5475 = vpop.permute.xlu0 %5474
      %5476 = vrot.lane.b32.xlu0 %v1358, 48
      %v5477 = vpop.permute.xlu0 %5476
      %5478 = vrot.lane.b32.xlu0 %v1359, 48
      %v5479 = vpop.permute.xlu0 %5478
      %5480 = vrot.lane.b32.xlu0 %v1360, 48
      %v5481 = vpop.permute.xlu0 %5480
      %5482 = vrot.lane.b32.xlu0 %v1361, 48
      %v5483 = vpop.permute.xlu0 %5482
      %5484 = vrot.lane.b32.xlu0 %v1362, 48
      %v5485 = vpop.permute.xlu0 %5484
      %5486 = vrot.lane.b32.xlu0 %v1363, 48
      %v5487 = vpop.permute.xlu0 %5486
      %5488 = vrot.lane.b32.xlu0 %v1364, 48
      %v5489 = vpop.permute.xlu0 %5488
      %5490 = vrot.lane.b32.xlu0 %v1365, 48
      %v5491 = vpop.permute.xlu0 %5490
      %5492 = vrot.lane.b32.xlu0 %v1366, 48
      %v5493 = vpop.permute.xlu0 %5492
      %5494 = vrot.lane.b32.xlu0 %v1367, 48
      %v5495 = vpop.permute.xlu0 %5494
      %5496 = vrot.lane.b32.xlu0 %v1368, 48
      %v5497 = vpop.permute.xlu0 %5496
      %5498 = vrot.lane.b32.xlu0 %v1369, 48
      %v5499 = vpop.permute.xlu0 %5498
      %5500 = vrot.lane.b32.xlu0 %v1370, 48
      %v5501 = vpop.permute.xlu0 %5500
      %5502 = vrot.lane.b32.xlu0 %v1371, 48
      %v5503 = vpop.permute.xlu0 %5502
      %5504 = vrot.lane.b32.xlu0 %v1372, 48
      %v5505 = vpop.permute.xlu0 %5504
      %5506 = vrot.lane.b32.xlu0 %v1373, 48
      %v5507 = vpop.permute.xlu0 %5506
      %5508 = vrot.lane.b32.xlu0 %v1374, 48
      %v5509 = vpop.permute.xlu0 %5508
      %5510 = vrot.lane.b32.xlu0 %v1375, 48
      %v5511 = vpop.permute.xlu0 %5510
      %5544 = vrot.lane.b32.xlu0 %v1376, 64
      %v5545 = vpop.permute.xlu0 %5544
      %5546 = vrot.lane.b32.xlu0 %v1377, 64
      %v5547 = vpop.permute.xlu0 %5546
      %5548 = vrot.lane.b32.xlu0 %v1378, 64
      %v5549 = vpop.permute.xlu0 %5548
      %5550 = vrot.lane.b32.xlu0 %v1379, 64
      %v5551 = vpop.permute.xlu0 %5550
      %5552 = vrot.lane.b32.xlu0 %v1380, 64
      %v5553 = vpop.permute.xlu0 %5552
      %5554 = vrot.lane.b32.xlu0 %v1381, 64
      %v5555 = vpop.permute.xlu0 %5554
      %5556 = vrot.lane.b32.xlu0 %v1382, 64
      %v5557 = vpop.permute.xlu0 %5556
      %5558 = vrot.lane.b32.xlu0 %v1383, 64
      %v5559 = vpop.permute.xlu0 %5558
      %5560 = vrot.lane.b32.xlu0 %v1384, 64
      %v5561 = vpop.permute.xlu0 %5560
      %5562 = vrot.lane.b32.xlu0 %v1385, 64
      %v5563 = vpop.permute.xlu0 %5562
      %5564 = vrot.lane.b32.xlu0 %v1386, 64
      %v5565 = vpop.permute.xlu0 %5564
      %5566 = vrot.lane.b32.xlu0 %v1387, 64
      %v5567 = vpop.permute.xlu0 %5566
      %5568 = vrot.lane.b32.xlu0 %v1388, 64
      %v5569 = vpop.permute.xlu0 %5568
      %5570 = vrot.lane.b32.xlu0 %v1389, 64
      %v5571 = vpop.permute.xlu0 %5570
      %5572 = vrot.lane.b32.xlu0 %v1390, 64
      %v5573 = vpop.permute.xlu0 %5572
      %5574 = vrot.lane.b32.xlu0 %v1391, 64
      %v5575 = vpop.permute.xlu0 %5574
      %5576 = vrot.lane.b32.xlu0 %v1392, 64
      %v5577 = vpop.permute.xlu0 %5576
      %5578 = vrot.lane.b32.xlu0 %v1393, 64
      %v5579 = vpop.permute.xlu0 %5578
      %5580 = vrot.lane.b32.xlu0 %v1394, 64
      %v5581 = vpop.permute.xlu0 %5580
      %5582 = vrot.lane.b32.xlu0 %v1395, 64
      %v5583 = vpop.permute.xlu0 %5582
      %5584 = vrot.lane.b32.xlu0 %v1396, 64
      %v5585 = vpop.permute.xlu0 %5584
      %5586 = vrot.lane.b32.xlu0 %v1397, 64
      %v5587 = vpop.permute.xlu0 %5586
      %5588 = vrot.lane.b32.xlu0 %v1398, 64
      %v5589 = vpop.permute.xlu0 %5588
      %5590 = vrot.lane.b32.xlu0 %v1399, 64
      %v5591 = vpop.permute.xlu0 %5590
      %5592 = vrot.lane.b32.xlu0 %v1400, 64
      %v5593 = vpop.permute.xlu0 %5592
      %5594 = vrot.lane.b32.xlu0 %v1401, 64
      %v5595 = vpop.permute.xlu0 %5594
      %5596 = vrot.lane.b32.xlu0 %v1402, 64
      %v5597 = vpop.permute.xlu0 %5596
      %5598 = vrot.lane.b32.xlu0 %v1403, 64
      %v5599 = vpop.permute.xlu0 %5598
      %5600 = vrot.lane.b32.xlu0 %v1404, 64
      %v5601 = vpop.permute.xlu0 %5600
      %5602 = vrot.lane.b32.xlu0 %v1405, 64
      %v5603 = vpop.permute.xlu0 %5602
      %5604 = vrot.lane.b32.xlu0 %v1406, 64
      %v5605 = vpop.permute.xlu0 %5604
      %5606 = vrot.lane.b32.xlu0 %v1407, 64
      %v5607 = vpop.permute.xlu0 %5606
      %5672 = vrot.lane.b32.xlu0 %v1473, 80
      %v5673 = vpop.permute.xlu0 %5672
      %5674 = vrot.lane.b32.xlu0 %v1474, 80
      %v5675 = vpop.permute.xlu0 %5674
      %5676 = vrot.lane.b32.xlu0 %v1475, 80
      %v5677 = vpop.permute.xlu0 %5676
      %5678 = vrot.lane.b32.xlu0 %v1476, 80
      %v5679 = vpop.permute.xlu0 %5678
      %5680 = vrot.lane.b32.xlu0 %v1477, 80
      %v5681 = vpop.permute.xlu0 %5680
      %5682 = vrot.lane.b32.xlu0 %v1478, 80
      %v5683 = vpop.permute.xlu0 %5682
      %5684 = vrot.lane.b32.xlu0 %v1479, 80
      %v5685 = vpop.permute.xlu0 %5684
      %5686 = vrot.lane.b32.xlu0 %v1480, 80
      %v5687 = vpop.permute.xlu0 %5686
      %5688 = vrot.lane.b32.xlu0 %v1481, 80
      %v5689 = vpop.permute.xlu0 %5688
      %5690 = vrot.lane.b32.xlu0 %v1482, 80
      %v5691 = vpop.permute.xlu0 %5690
      %5692 = vrot.lane.b32.xlu0 %v1483, 80
      %v5693 = vpop.permute.xlu0 %5692
      %5694 = vrot.lane.b32.xlu0 %v1484, 80
      %v5695 = vpop.permute.xlu0 %5694
      %5696 = vrot.lane.b32.xlu0 %v1485, 80
      %v5697 = vpop.permute.xlu0 %5696
      %5698 = vrot.lane.b32.xlu0 %v1486, 80
      %v5699 = vpop.permute.xlu0 %5698
      %5700 = vrot.lane.b32.xlu0 %v1487, 80
      %v5701 = vpop.permute.xlu0 %5700
      %5702 = vrot.lane.b32.xlu0 %v1488, 80
      %v5703 = vpop.permute.xlu0 %5702
      %5704 = vrot.lane.b32.xlu0 %v1489, 80
      %v5705 = vpop.permute.xlu0 %5704
      %5706 = vrot.lane.b32.xlu0 %v1490, 80
      %v5707 = vpop.permute.xlu0 %5706
      %5708 = vrot.lane.b32.xlu0 %v1491, 80
      %v5709 = vpop.permute.xlu0 %5708
      %5710 = vrot.lane.b32.xlu0 %v1492, 80
      %v5711 = vpop.permute.xlu0 %5710
      %5712 = vrot.lane.b32.xlu0 %v1493, 80
      %v5713 = vpop.permute.xlu0 %5712
      %5714 = vrot.lane.b32.xlu0 %v1494, 80
      %v5715 = vpop.permute.xlu0 %5714
      %5716 = vrot.lane.b32.xlu0 %v1495, 80
      %v5717 = vpop.permute.xlu0 %5716
      %5718 = vrot.lane.b32.xlu0 %v1496, 80
      %v5719 = vpop.permute.xlu0 %5718
      %5720 = vrot.lane.b32.xlu0 %v1497, 80
      %v5721 = vpop.permute.xlu0 %5720
      %5722 = vrot.lane.b32.xlu0 %v1498, 80
      %v5723 = vpop.permute.xlu0 %5722
      %5724 = vrot.lane.b32.xlu0 %v1499, 80
      %v5725 = vpop.permute.xlu0 %5724
      %5726 = vrot.lane.b32.xlu0 %v1500, 80
      %v5727 = vpop.permute.xlu0 %5726
      %5728 = vrot.lane.b32.xlu0 %v1501, 80
      %v5729 = vpop.permute.xlu0 %5728
      %5730 = vrot.lane.b32.xlu0 %v1502, 80
      %v5731 = vpop.permute.xlu0 %5730
      %5732 = vrot.lane.b32.xlu0 %v1503, 80
      %v5733 = vpop.permute.xlu0 %5732
      %5734 = vrot.lane.b32.xlu0 %v1504, 80
      %v5735 = vpop.permute.xlu0 %5734
      %5768 = vrot.lane.b32.xlu0 %v1505, 96
      %v5769 = vpop.permute.xlu0 %5768
      %5770 = vrot.lane.b32.xlu0 %v1506, 96
      %v5771 = vpop.permute.xlu0 %5770
      %5772 = vrot.lane.b32.xlu0 %v1507, 96
      %v5773 = vpop.permute.xlu0 %5772
      %5774 = vrot.lane.b32.xlu0 %v1508, 96
      %v5775 = vpop.permute.xlu0 %5774
      %5776 = vrot.lane.b32.xlu0 %v1509, 96
      %v5777 = vpop.permute.xlu0 %5776
      %5778 = vrot.lane.b32.xlu0 %v1510, 96
      %v5779 = vpop.permute.xlu0 %5778
      %5780 = vrot.lane.b32.xlu0 %v1511, 96
      %v5781 = vpop.permute.xlu0 %5780
      %5782 = vrot.lane.b32.xlu0 %v1512, 96
      %v5783 = vpop.permute.xlu0 %5782
      %5784 = vrot.lane.b32.xlu0 %v1513, 96
      %v5785 = vpop.permute.xlu0 %5784
      %5786 = vrot.lane.b32.xlu0 %v1514, 96
      %v5787 = vpop.permute.xlu0 %5786
      %5788 = vrot.lane.b32.xlu0 %v1515, 96
      %v5789 = vpop.permute.xlu0 %5788
      %5790 = vrot.lane.b32.xlu0 %v1516, 96
      %v5791 = vpop.permute.xlu0 %5790
      %5792 = vrot.lane.b32.xlu0 %v1517, 96
      %v5793 = vpop.permute.xlu0 %5792
      %5794 = vrot.lane.b32.xlu0 %v1518, 96
      %v5795 = vpop.permute.xlu0 %5794
      %5796 = vrot.lane.b32.xlu0 %v1519, 96
      %v5797 = vpop.permute.xlu0 %5796
      %5798 = vrot.lane.b32.xlu0 %v1520, 96
      %v5799 = vpop.permute.xlu0 %5798
      %5800 = vrot.lane.b32.xlu0 %v1521, 96
      %v5801 = vpop.permute.xlu0 %5800
      %5802 = vrot.lane.b32.xlu0 %v1522, 96
      %v5803 = vpop.permute.xlu0 %5802
      %5804 = vrot.lane.b32.xlu0 %v1523, 96
      %v5805 = vpop.permute.xlu0 %5804
      %5806 = vrot.lane.b32.xlu0 %v1524, 96
      %v5807 = vpop.permute.xlu0 %5806
      %5808 = vrot.lane.b32.xlu0 %v1525, 96
      %v5809 = vpop.permute.xlu0 %5808
      %5810 = vrot.lane.b32.xlu0 %v1526, 96
      %v5811 = vpop.permute.xlu0 %5810
      %5812 = vrot.lane.b32.xlu0 %v1527, 96
      %v5813 = vpop.permute.xlu0 %5812
      %5814 = vrot.lane.b32.xlu0 %v1528, 96
      %v5815 = vpop.permute.xlu0 %5814
      %5816 = vrot.lane.b32.xlu0 %v1529, 96
      %v5817 = vpop.permute.xlu0 %5816
      %5818 = vrot.lane.b32.xlu0 %v1530, 96
      %v5819 = vpop.permute.xlu0 %5818
      %5820 = vrot.lane.b32.xlu0 %v1531, 96
      %v5821 = vpop.permute.xlu0 %5820
      %5822 = vrot.lane.b32.xlu0 %v1532, 96
      %v5823 = vpop.permute.xlu0 %5822
      %5824 = vrot.lane.b32.xlu0 %v1533, 96
      %v5825 = vpop.permute.xlu0 %5824
      %5826 = vrot.lane.b32.xlu0 %v1534, 96
      %v5827 = vpop.permute.xlu0 %5826
      %5828 = vrot.lane.b32.xlu0 %v1535, 96
      %v5829 = vpop.permute.xlu0 %5828
      %5830 = vrot.lane.b32.xlu0 %v1536, 96
      %v5831 = vpop.permute.xlu0 %5830
      %5864 = vrot.lane.b32.xlu0 %v1537, 112
      %v5865 = vpop.permute.xlu0 %5864
      %5866 = vrot.lane.b32.xlu0 %v1538, 112
      %v5867 = vpop.permute.xlu0 %5866
      %5868 = vrot.lane.b32.xlu0 %v1539, 112
      %v5869 = vpop.permute.xlu0 %5868
      %5870 = vrot.lane.b32.xlu0 %v1540, 112
      %v5871 = vpop.permute.xlu0 %5870
      %5872 = vrot.lane.b32.xlu0 %v1541, 112
      %v5873 = vpop.permute.xlu0 %5872
      %5874 = vrot.lane.b32.xlu0 %v1542, 112
      %v5875 = vpop.permute.xlu0 %5874
      %5876 = vrot.lane.b32.xlu0 %v1543, 112
      %v5877 = vpop.permute.xlu0 %5876
      %5878 = vrot.lane.b32.xlu0 %v1544, 112
      %v5879 = vpop.permute.xlu0 %5878
      %5880 = vrot.lane.b32.xlu0 %v1545, 112
      %v5881 = vpop.permute.xlu0 %5880
      %5882 = vrot.lane.b32.xlu0 %v1546, 112
      %v5883 = vpop.permute.xlu0 %5882
      %5884 = vrot.lane.b32.xlu0 %v1547, 112
      %v5885 = vpop.permute.xlu0 %5884
      %5886 = vrot.lane.b32.xlu0 %v1548, 112
      %v5887 = vpop.permute.xlu0 %5886
      %5888 = vrot.lane.b32.xlu0 %v1549, 112
      %v5889 = vpop.permute.xlu0 %5888
      %5890 = vrot.lane.b32.xlu0 %v1550, 112
      %v5891 = vpop.permute.xlu0 %5890
      %5892 = vrot.lane.b32.xlu0 %v1551, 112
      %v5893 = vpop.permute.xlu0 %5892
      %5894 = vrot.lane.b32.xlu0 %v1552, 112
      %v5895 = vpop.permute.xlu0 %5894
      %5896 = vrot.lane.b32.xlu0 %v1553, 112
      %v5897 = vpop.permute.xlu0 %5896
      %5898 = vrot.lane.b32.xlu0 %v1554, 112
      %v5899 = vpop.permute.xlu0 %5898
      %5900 = vrot.lane.b32.xlu0 %v1555, 112
      %v5901 = vpop.permute.xlu0 %5900
      %5902 = vrot.lane.b32.xlu0 %v1556, 112
      %v5903 = vpop.permute.xlu0 %5902
      %5904 = vrot.lane.b32.xlu0 %v1557, 112
      %v5905 = vpop.permute.xlu0 %5904
      %5906 = vrot.lane.b32.xlu0 %v1558, 112
      %v5907 = vpop.permute.xlu0 %5906
      %5908 = vrot.lane.b32.xlu0 %v1559, 112
      %v5909 = vpop.permute.xlu0 %5908
      %5910 = vrot.lane.b32.xlu0 %v1560, 112
      %v5911 = vpop.permute.xlu0 %5910
      %5912 = vrot.lane.b32.xlu0 %v1561, 112
      %v5913 = vpop.permute.xlu0 %5912
      %5914 = vrot.lane.b32.xlu0 %v1562, 112
      %v5915 = vpop.permute.xlu0 %5914
      %5916 = vrot.lane.b32.xlu0 %v1563, 112
      %v5917 = vpop.permute.xlu0 %5916
      %5918 = vrot.lane.b32.xlu0 %v1564, 112
      %v5919 = vpop.permute.xlu0 %5918
      %5920 = vrot.lane.b32.xlu0 %v1565, 112
      %v5921 = vpop.permute.xlu0 %5920
      %5922 = vrot.lane.b32.xlu0 %v1566, 112
      %v5923 = vpop.permute.xlu0 %5922
      %5924 = vrot.lane.b32.xlu0 %v1567, 112
      %v5925 = vpop.permute.xlu0 %5924
      %5926 = vrot.lane.b32.xlu0 %v1568, 112
      %v5927 = vpop.permute.xlu0 %5926
      %v5928 = vsel %vm3554, %v5129, %v1184
      %v5929 = vsel %vm3554, %v5131, %v1185
      %v5930 = vsel %vm3554, %v5133, %v1186
      %v5931 = vsel %vm3554, %v5135, %v1187
      %v5932 = vsel %vm3554, %v5137, %v1188
      %v5933 = vsel %vm3554, %v5139, %v1189
      %v5934 = vsel %vm3554, %v5141, %v1190
      %v5935 = vsel %vm3554, %v5143, %v1191
      %v5936 = vsel %vm3554, %v5145, %v1192
      %v5937 = vsel %vm3554, %v5147, %v1193
      %v5938 = vsel %vm3554, %v5149, %v1194
      %v5939 = vsel %vm3554, %v5151, %v1195
      %v5940 = vsel %vm3554, %v5153, %v1196
      %v5941 = vsel %vm3554, %v5155, %v1197
      %v5942 = vsel %vm3554, %v5157, %v1198
      %v5943 = vsel %vm3554, %v5159, %v1199
      %v5944 = vsel %vm3554, %v5161, %v1200
      %v5945 = vsel %vm3554, %v5163, %v1201
      %v5946 = vsel %vm3554, %v5165, %v1202
      %v5947 = vsel %vm3554, %v5167, %v1203
      %v5948 = vsel %vm3554, %v5169, %v1204
      %v5949 = vsel %vm3554, %v5171, %v1205
      %v5950 = vsel %vm3554, %v5173, %v1206
      %v5951 = vsel %vm3554, %v5175, %v1207
      %v5952 = vsel %vm3554, %v5177, %v1208
      %v5953 = vsel %vm3554, %v5179, %v1209
      %v5954 = vsel %vm3554, %v5181, %v1210
      %v5955 = vsel %vm3554, %v5183, %v1211
      %v5956 = vsel %vm3554, %v5185, %v1212
      %v5957 = vsel %vm3554, %v5187, %v1213
      %v5958 = vsel %vm3554, %v5189, %v1214
      %v5959 = vsel %vm3554, %v5191, %v1215
      %v5960 = vsel %vm894, %v5928, %v5257
      %v5961 = vsel %vm894, %v5929, %v5259
      %v5962 = vsel %vm894, %v5930, %v5261
      %v5963 = vsel %vm894, %v5931, %v5263
      %v5964 = vsel %vm894, %v5932, %v5265
      %v5965 = vsel %vm894, %v5933, %v5267
      %v5966 = vsel %vm894, %v5934, %v5269
      %v5967 = vsel %vm894, %v5935, %v5271
      %v5968 = vsel %vm894, %v5936, %v5273
      %v5969 = vsel %vm894, %v5937, %v5275
      %v5970 = vsel %vm894, %v5938, %v5277
      %v5971 = vsel %vm894, %v5939, %v5279
      %v5972 = vsel %vm894, %v5940, %v5281
      %v5973 = vsel %vm894, %v5941, %v5283
      %v5974 = vsel %vm894, %v5942, %v5285
      %v5975 = vsel %vm894, %v5943, %v5287
      %v5976 = vsel %vm894, %v5944, %v5289
      %v5977 = vsel %vm894, %v5945, %v5291
      %v5978 = vsel %vm894, %v5946, %v5293
      %v5979 = vsel %vm894, %v5947, %v5295
      %v5980 = vsel %vm894, %v5948, %v5297
      %v5981 = vsel %vm894, %v5949, %v5299
      %v5982 = vsel %vm894, %v5950, %v5301
      %v5983 = vsel %vm894, %v5951, %v5303
      %v5984 = vsel %vm894, %v5952, %v5305
      %v5985 = vsel %vm894, %v5953, %v5307
      %v5986 = vsel %vm894, %v5954, %v5309
      %v5987 = vsel %vm894, %v5955, %v5311
      %v5988 = vsel %vm894, %v5956, %v5313
      %v5989 = vsel %vm894, %v5957, %v5315
      %v5990 = vsel %vm894, %v5958, %v5317
      %v5991 = vsel %vm894, %v5959, %v5319
      %v5992 = vsel %vm3619, %v5960, %v5353
      %v5993 = vsel %vm3619, %v5961, %v5355
      %v5994 = vsel %vm3619, %v5962, %v5357
      %v5995 = vsel %vm3619, %v5963, %v5359
      %v5996 = vsel %vm3619, %v5964, %v5361
      %v5997 = vsel %vm3619, %v5965, %v5363
      %v5998 = vsel %vm3619, %v5966, %v5365
      %v5999 = vsel %vm3619, %v5967, %v5367
      %v6000 = vsel %vm3619, %v5968, %v5369
      %v6001 = vsel %vm3619, %v5969, %v5371
      %v6002 = vsel %vm3619, %v5970, %v5373
      %v6003 = vsel %vm3619, %v5971, %v5375
      %v6004 = vsel %vm3619, %v5972, %v5377
      %v6005 = vsel %vm3619, %v5973, %v5379
      %v6006 = vsel %vm3619, %v5974, %v5381
      %v6007 = vsel %vm3619, %v5975, %v5383
      %v6008 = vsel %vm3619, %v5976, %v5385
      %v6009 = vsel %vm3619, %v5977, %v5387
      %v6010 = vsel %vm3619, %v5978, %v5389
      %v6011 = vsel %vm3619, %v5979, %v5391
      %v6012 = vsel %vm3619, %v5980, %v5393
      %v6013 = vsel %vm3619, %v5981, %v5395
      %v6014 = vsel %vm3619, %v5982, %v5397
      %v6015 = vsel %vm3619, %v5983, %v5399
      %v6016 = vsel %vm3619, %v5984, %v5401
      %v6017 = vsel %vm3619, %v5985, %v5403
      %v6018 = vsel %vm3619, %v5986, %v5405
      %v6019 = vsel %vm3619, %v5987, %v5407
      %v6020 = vsel %vm3619, %v5988, %v5409
      %v6021 = vsel %vm3619, %v5989, %v5411
      %v6022 = vsel %vm3619, %v5990, %v5413
      %v6023 = vsel %vm3619, %v5991, %v5415
      %v6024 = vsel %vm3652, %v5992, %v5449
      %v6025 = vsel %vm3652, %v5993, %v5451
      %v6026 = vsel %vm3652, %v5994, %v5453
      %v6027 = vsel %vm3652, %v5995, %v5455
      %v6028 = vsel %vm3652, %v5996, %v5457
      %v6029 = vsel %vm3652, %v5997, %v5459
      %v6030 = vsel %vm3652, %v5998, %v5461
      %v6031 = vsel %vm3652, %v5999, %v5463
      %v6032 = vsel %vm3652, %v6000, %v5465
      %v6033 = vsel %vm3652, %v6001, %v5467
      %v6034 = vsel %vm3652, %v6002, %v5469
      %v6035 = vsel %vm3652, %v6003, %v5471
      %v6036 = vsel %vm3652, %v6004, %v5473
      %v6037 = vsel %vm3652, %v6005, %v5475
      %v6038 = vsel %vm3652, %v6006, %v5477
      %v6039 = vsel %vm3652, %v6007, %v5479
      %v6040 = vsel %vm3652, %v6008, %v5481
      %v6041 = vsel %vm3652, %v6009, %v5483
      %v6042 = vsel %vm3652, %v6010, %v5485
      %v6043 = vsel %vm3652, %v6011, %v5487
      %v6044 = vsel %vm3652, %v6012, %v5489
      %v6045 = vsel %vm3652, %v6013, %v5491
      %v6046 = vsel %vm3652, %v6014, %v5493
      %v6047 = vsel %vm3652, %v6015, %v5495
      %v6048 = vsel %vm3652, %v6016, %v5497
      %v6049 = vsel %vm3652, %v6017, %v5499
      %v6050 = vsel %vm3652, %v6018, %v5501
      %v6051 = vsel %vm3652, %v6019, %v5503
      %v6052 = vsel %vm3652, %v6020, %v5505
      %v6053 = vsel %vm3652, %v6021, %v5507
      %v6054 = vsel %vm3652, %v6022, %v5509
      %v6055 = vsel %vm3652, %v6023, %v5511
      %v6056 = vsel %vm3685, %v6024, %v5545
      %v6057 = vsel %vm3685, %v6025, %v5547
      %v6058 = vsel %vm3685, %v6026, %v5549
      %v6059 = vsel %vm3685, %v6027, %v5551
      %v6060 = vsel %vm3685, %v6028, %v5553
      %v6061 = vsel %vm3685, %v6029, %v5555
      %v6062 = vsel %vm3685, %v6030, %v5557
      %v6063 = vsel %vm3685, %v6031, %v5559
      %v6064 = vsel %vm3685, %v6032, %v5561
      %v6065 = vsel %vm3685, %v6033, %v5563
      %v6066 = vsel %vm3685, %v6034, %v5565
      %v6067 = vsel %vm3685, %v6035, %v5567
      %v6068 = vsel %vm3685, %v6036, %v5569
      %v6069 = vsel %vm3685, %v6037, %v5571
      %v6070 = vsel %vm3685, %v6038, %v5573
      %v6071 = vsel %vm3685, %v6039, %v5575
      %v6072 = vsel %vm3685, %v6040, %v5577
      %v6073 = vsel %vm3685, %v6041, %v5579
      %v6074 = vsel %vm3685, %v6042, %v5581
      %v6075 = vsel %vm3685, %v6043, %v5583
      %v6076 = vsel %vm3685, %v6044, %v5585
      %v6077 = vsel %vm3685, %v6045, %v5587
      %v6078 = vsel %vm3685, %v6046, %v5589
      %v6079 = vsel %vm3685, %v6047, %v5591
      %v6080 = vsel %vm3685, %v6048, %v5593
      %v6081 = vsel %vm3685, %v6049, %v5595
      %v6082 = vsel %vm3685, %v6050, %v5597
      %v6083 = vsel %vm3685, %v6051, %v5599
      %v6084 = vsel %vm3685, %v6052, %v5601
      %v6085 = vsel %vm3685, %v6053, %v5603
      %v6086 = vsel %vm3685, %v6054, %v5605
      %v6087 = vsel %vm3685, %v6055, %v5607
      %v6088 = vsel %vm3718, %v6056, %v5673
      %v6089 = vsel %vm3718, %v6057, %v5675
      %v6090 = vsel %vm3718, %v6058, %v5677
      %v6091 = vsel %vm3718, %v6059, %v5679
      %v6092 = vsel %vm3718, %v6060, %v5681
      %v6093 = vsel %vm3718, %v6061, %v5683
      %v6094 = vsel %vm3718, %v6062, %v5685
      %v6095 = vsel %vm3718, %v6063, %v5687
      %v6096 = vsel %vm3718, %v6064, %v5689
      %v6097 = vsel %vm3718, %v6065, %v5691
      %v6098 = vsel %vm3718, %v6066, %v5693
      %v6099 = vsel %vm3718, %v6067, %v5695
      %v6100 = vsel %vm3718, %v6068, %v5697
      %v6101 = vsel %vm3718, %v6069, %v5699
      %v6102 = vsel %vm3718, %v6070, %v5701
      %v6103 = vsel %vm3718, %v6071, %v5703
      %v6104 = vsel %vm3718, %v6072, %v5705
      %v6105 = vsel %vm3718, %v6073, %v5707
      %v6106 = vsel %vm3718, %v6074, %v5709
      %v6107 = vsel %vm3718, %v6075, %v5711
      %v6108 = vsel %vm3718, %v6076, %v5713
      %v6109 = vsel %vm3718, %v6077, %v5715
      %v6110 = vsel %vm3718, %v6078, %v5717
      %v6111 = vsel %vm3718, %v6079, %v5719
      %v6112 = vsel %vm3718, %v6080, %v5721
      %v6113 = vsel %vm3718, %v6081, %v5723
      %v6114 = vsel %vm3718, %v6082, %v5725
      %v6115 = vsel %vm3718, %v6083, %v5727
      %v6116 = vsel %vm3718, %v6084, %v5729
      %v6117 = vsel %vm3718, %v6085, %v5731
      %v6118 = vsel %vm3718, %v6086, %v5733
      %v6119 = vsel %vm3718, %v6087, %v5735
      %v6120 = vsel %vm3751, %v6088, %v5769
      %v6121 = vsel %vm3751, %v6089, %v5771
      %v6122 = vsel %vm3751, %v6090, %v5773
      %v6123 = vsel %vm3751, %v6091, %v5775
      %v6124 = vsel %vm3751, %v6092, %v5777
      %v6125 = vsel %vm3751, %v6093, %v5779
      %v6126 = vsel %vm3751, %v6094, %v5781
      %v6127 = vsel %vm3751, %v6095, %v5783
      %v6128 = vsel %vm3751, %v6096, %v5785
      %v6129 = vsel %vm3751, %v6097, %v5787
      %v6130 = vsel %vm3751, %v6098, %v5789
      %v6131 = vsel %vm3751, %v6099, %v5791
      %v6132 = vsel %vm3751, %v6100, %v5793
      %v6133 = vsel %vm3751, %v6101, %v5795
      %v6134 = vsel %vm3751, %v6102, %v5797
      %v6135 = vsel %vm3751, %v6103, %v5799
      %v6136 = vsel %vm3751, %v6104, %v5801
      %v6137 = vsel %vm3751, %v6105, %v5803
      %v6138 = vsel %vm3751, %v6106, %v5805
      %v6139 = vsel %vm3751, %v6107, %v5807
      %v6140 = vsel %vm3751, %v6108, %v5809
      %v6141 = vsel %vm3751, %v6109, %v5811
      %v6142 = vsel %vm3751, %v6110, %v5813
      %v6143 = vsel %vm3751, %v6111, %v5815
      %v6144 = vsel %vm3751, %v6112, %v5817
      %v6145 = vsel %vm3751, %v6113, %v5819
      %v6146 = vsel %vm3751, %v6114, %v5821
      %v6147 = vsel %vm3751, %v6115, %v5823
      %v6148 = vsel %vm3751, %v6116, %v5825
      %v6149 = vsel %vm3751, %v6117, %v5827
      %v6150 = vsel %vm3751, %v6118, %v5829
      %v6151 = vsel %vm3751, %v6119, %v5831
      %v6152 = vld [vmem:[%s4] sm:$0xff]
      %v6153 = vld [vmem:[%s4 + $0x8] sm:$0xff]
      %v6154 = vld [vmem:[%s4 + $0x10] sm:$0xff]
      %v6155 = vld [vmem:[%s4 + $0x18] sm:$0xff]
      %v6156 = vld [vmem:[%s4 + $0x20] sm:$0xff]
      %v6157 = vld [vmem:[%s4 + $0x28] sm:$0xff]
      %v6158 = vld [vmem:[%s4 + $0x30] sm:$0xff]
      %v6159 = vld [vmem:[%s4 + $0x38] sm:$0xff]
      %v6160 = vld [vmem:[%s4 + $0x40] sm:$0xff]
      %v6161 = vld [vmem:[%s4 + $0x48] sm:$0xff]
      %v6162 = vld [vmem:[%s4 + $0x50] sm:$0xff]
      %v6163 = vld [vmem:[%s4 + $0x58] sm:$0xff]
      %v6164 = vld [vmem:[%s4 + $0x60] sm:$0xff]
      %v6165 = vld [vmem:[%s4 + $0x68] sm:$0xff]
      %v6166 = vld [vmem:[%s4 + $0x70] sm:$0xff]
      %v6167 = vld [vmem:[%s4 + $0x78] sm:$0xff]
      %v6168 = vld [vmem:[%s4 + $0x80] sm:$0xff]
      %v6169 = vld [vmem:[%s4 + $0x88] sm:$0xff]
      %v6170 = vld [vmem:[%s5] sm:$0x1]
      %v6172 = vlaneseq
      %v6173 = vshrl.u32 %v6172, 7
      %v6174 = vsub.s32 0, %v6173
      %v6175 = vrot.slane %v6170, %v6174
      %v6177 = vsel %vm3554, %v5865, 0
      %v6179 = vsel %vm3554, %v5867, 0
      %v6181 = vsel %vm3554, %v5869, 0
      %v6183 = vsel %vm3554, %v5871, 0
      %v6185 = vsel %vm3554, %v5873, 0
      %v6187 = vsel %vm3554, %v5875, 0
      %v6189 = vsel %vm3554, %v5877, 0
      %v6191 = vsel %vm3554, %v5879, 0
      %v6193 = vsel %vm3554, %v5881, 0
      %v6195 = vsel %vm3554, %v5883, 0
      %v6197 = vsel %vm3554, %v5885, 0
      %v6199 = vsel %vm3554, %v5887, 0
      %v6201 = vsel %vm3554, %v5889, 0
      %v6203 = vsel %vm3554, %v5891, 0
      %v6205 = vsel %vm3554, %v5893, 0
      %v6207 = vsel %vm3554, %v5895, 0
      %v6209 = vsel %vm3554, %v5897, 0
      %v6211 = vsel %vm3554, %v5899, 0
      %v6213 = vsel %vm3554, %v5901, 0
      %v6215 = vsel %vm3554, %v5903, 0
      %v6217 = vsel %vm3554, %v5905, 0
      %v6219 = vsel %vm3554, %v5907, 0
      %v6221 = vsel %vm3554, %v5909, 0
      %v6223 = vsel %vm3554, %v5911, 0
      %v6225 = vsel %vm3554, %v5913, 0
      %v6227 = vsel %vm3554, %v5915, 0
      %v6229 = vsel %vm3554, %v5917, 0
      %v6231 = vsel %vm3554, %v5919, 0
      %v6233 = vsel %vm3554, %v5921, 0
      %v6235 = vsel %vm3554, %v5923, 0
      %v6237 = vsel %vm3554, %v5925, 0
      %v6239 = vsel %vm3554, %v5927, 0
      %6241 = vmatprep.subr.mxu0 0.0
      %6242 = vmatpush1.msra.mxu0 %v6152
      %6243 = vmatprep.subr.mxu0 0.0
      %6244 = vmatpush1.msra.mxu0 %v6153
      %6245 = vmatprep.subr.mxu0 0.0
      %6246 = vmatpush1.msra.mxu0 %v6154
      %6247 = vmatprep.subr.mxu0 0.0
      %6248 = vmatpush1.msra.mxu0 %v6155
      %6249 = vmatprep.subr.mxu0 0.0
      %6250 = vmatpush1.msra.mxu0 %v6156
      %6251 = vmatprep.subr.mxu0 0.0
      %6252 = vmatpush1.msra.mxu0 %v6157
      %6253 = vmatprep.subr.mxu0 0.0
      %6254 = vmatpush1.msra.mxu0 %v6158
      %6255 = vmatprep.subr.mxu0 0.0
      %6256 = vmatpush1.msra.mxu0 %v6159
      %6257 = vmatprep.subr.mxu0 0.0
      %6258 = vmatpush1.msra.mxu0 %v6160
      %6259 = vmatprep.subr.mxu0 0.0
      %6260 = vmatpush1.msra.mxu0 %v6161
      %6261 = vmatprep.subr.mxu0 0.0
      %6262 = vmatpush1.msra.mxu0 %v6162
      %6263 = vmatprep.subr.mxu0 0.0
      %6264 = vmatpush1.msra.mxu0 %v6163
      %6265 = vmatprep.subr.mxu0 0.0
      %6266 = vmatpush1.msra.mxu0 %v6164
      %6267 = vmatprep.subr.mxu0 0.0
      %6268 = vmatpush1.msra.mxu0 %v6165
      %6269 = vmatprep.subr.mxu0 0.0
      %6270 = vmatpush1.msra.mxu0 %v6166
      %6271 = vmatprep.subr.mxu0 0.0
      %6272 = vmatpush1.msra.mxu0 %v6167
      %6273 = vmatprep.subr.mxu0 0.0
      %6274 = vmatpush1.msra.mxu0 %v6168
      %6275 = vmatprep.subr.mxu0 0.0
      %6276 = vmatpush1.msra.mxu0 %v6169
      %6277 = vmatprep.subr.mxu0 0.0
      %6278 = vmatpush1.msra.mxu0 0.0
      %6279 = vmatprep.subr.mxu0 0.0
      %6280 = vmatpush1.msra.mxu0 0.0
      %6281 = vmatprep.subr.mxu0 0.0
      %6282 = vmatpush1.msra.mxu0 0.0
      %6283 = vmatprep.subr.mxu0 0.0
      %6284 = vmatpush1.msra.mxu0 0.0
      %6285 = vmatprep.subr.mxu0 0.0
      %6286 = vmatpush1.msra.mxu0 0.0
      %6287 = vmatprep.subr.mxu0 0.0
      %6288 = vmatpush1.msra.mxu0 0.0
      %6289 = vmatprep.subr.mxu0 0.0
      %6290 = vmatpush1.msra.mxu0 0.0
      %6291 = vmatprep.subr.mxu0 0.0
      %6292 = vmatpush1.msra.mxu0 0.0
      %6293 = vmatprep.subr.mxu0 0.0
      %6294 = vmatpush1.msra.mxu0 0.0
      %6295 = vmatprep.subr.mxu0 0.0
      %6296 = vmatpush1.msra.mxu0 0.0
      %6297 = vmatprep.subr.mxu0 0.0
      %6298 = vmatpush1.msra.mxu0 0.0
      %6299 = vmatprep.subr.mxu0 0.0
      %6300 = vmatpush1.msra.mxu0 0.0
      %6301 = vmatprep.subr.mxu0 0.0
      %6302 = vmatpush1.msra.mxu0 0.0
      %6303 = vmatprep.subr.mxu0 0.0
      %6304 = vmatpush1.msra.mxu0 0.0
      %6305 = vmatprep.mubr.f32.mxu0 %v6177
      %6306 = vmatmul.mubr.f32.gmra.mrb[0].mxu0 %v6120
      %v6307 = vpop.f32.mrb[0].mxu0
      %v6308 = vadd.f32 %v6175, %v6307
      %v6309 = vpop.f32.mrb[0].mxu0
      %6310 = vmatprep.mubr.f32.mxu0 %v6179
      %6311 = vmatmul.mubr.f32.gmra.mrb[0].mxu0 %v6121
      %v6312 = vpop.f32.mrb[0].mxu0
      %v6313 = vadd.f32 %v6175, %v6312
      %v6314 = vpop.f32.mrb[0].mxu0
      %6315 = vmatprep.mubr.f32.mxu0 %v6181
      %6316 = vmatmul.mubr.f32.gmra.mrb[0].mxu0 %v6122
      %v6317 = vpop.f32.mrb[0].mxu0
      %v6318 = vadd.f32 %v6175, %v6317
      %v6319 = vpop.f32.mrb[0].mxu0
      %6320 = vmatprep.mubr.f32.mxu0 %v6183
      %6321 = vmatmul.mubr.f32.gmra.mrb[0].mxu0 %v6123
      %v6322 = vpop.f32.mrb[0].mxu0
      %v6323 = vadd.f32 %v6175, %v6322
      %v6324 = vpop.f32.mrb[0].mxu0
      %6325 = vmatprep.mubr.f32.mxu0 %v6185
      %6326 = vmatmul.mubr.f32.gmra.mrb[0].mxu0 %v6124
      %v6327 = vpop.f32.mrb[0].mxu0
      %v6328 = vadd.f32 %v6175, %v6327
      %v6329 = vpop.f32.mrb[0].mxu0
      %6330 = vmatprep.mubr.f32.mxu0 %v6187
      %6331 = vmatmul.mubr.f32.gmra.mrb[0].mxu0 %v6125
      %v6332 = vpop.f32.mrb[0].mxu0
      %v6333 = vadd.f32 %v6175, %v6332
      %v6334 = vpop.f32.mrb[0].mxu0
      %6335 = vmatprep.mubr.f32.mxu0 %v6189
      %6336 = vmatmul.mubr.f32.gmra.mrb[0].mxu0 %v6126
      %v6337 = vpop.f32.mrb[0].mxu0
      %v6338 = vadd.f32 %v6175, %v6337
      %v6339 = vpop.f32.mrb[0].mxu0
      %6340 = vmatprep.mubr.f32.mxu0 %v6191
      %6341 = vmatmul.mubr.f32.gmra.mrb[0].mxu0 %v6127
      %v6342 = vpop.f32.mrb[0].mxu0
      %v6343 = vadd.f32 %v6175, %v6342
      %v6344 = vpop.f32.mrb[0].mxu0
      %6345 = vmatprep.mubr.f32.mxu0 %v6193
      %6346 = vmatmul.mubr.f32.gmra.mrb[0].mxu0 %v6128
      %v6347 = vpop.f32.mrb[0].mxu0
      %v6348 = vadd.f32 %v6175, %v6347
      %v6349 = vpop.f32.mrb[0].mxu0
      %6350 = vmatprep.mubr.f32.mxu0 %v6195
      %6351 = vmatmul.mubr.f32.gmra.mrb[0].mxu0 %v6129
      %v6352 = vpop.f32.mrb[0].mxu0
      %v6353 = vadd.f32 %v6175, %v6352
      %v6354 = vpop.f32.mrb[0].mxu0
      %6355 = vmatprep.mubr.f32.mxu0 %v6197
      %6356 = vmatmul.mubr.f32.gmra.mrb[0].mxu0 %v6130
      %v6357 = vpop.f32.mrb[0].mxu0
      %v6358 = vadd.f32 %v6175, %v6357
      %v6359 = vpop.f32.mrb[0].mxu0
      %6360 = vmatprep.mubr.f32.mxu0 %v6199
      %6361 = vmatmul.mubr.f32.gmra.mrb[0].mxu0 %v6131
      %v6362 = vpop.f32.mrb[0].mxu0
      %v6363 = vadd.f32 %v6175, %v6362
      %v6364 = vpop.f32.mrb[0].mxu0
      %6365 = vmatprep.mubr.f32.mxu0 %v6201
      %6366 = vmatmul.mubr.f32.gmra.mrb[0].mxu0 %v6132
      %v6367 = vpop.f32.mrb[0].mxu0
      %v6368 = vadd.f32 %v6175, %v6367
      %v6369 = vpop.f32.mrb[0].mxu0
      %6370 = vmatprep.mubr.f32.mxu0 %v6203
      %6371 = vmatmul.mubr.f32.gmra.mrb[0].mxu0 %v6133
      %v6372 = vpop.f32.mrb[0].mxu0
      %v6373 = vadd.f32 %v6175, %v6372
      %v6374 = vpop.f32.mrb[0].mxu0
      %6375 = vmatprep.mubr.f32.mxu0 %v6205
      %6376 = vmatmul.mubr.f32.gmra.mrb[0].mxu0 %v6134
      %v6377 = vpop.f32.mrb[0].mxu0
      %v6378 = vadd.f32 %v6175, %v6377
      %v6379 = vpop.f32.mrb[0].mxu0
      %6380 = vmatprep.mubr.f32.mxu0 %v6207
      %6381 = vmatmul.mubr.f32.gmra.mrb[0].mxu0 %v6135
      %v6382 = vpop.f32.mrb[0].mxu0
      %v6383 = vadd.f32 %v6175, %v6382
      %v6384 = vpop.f32.mrb[0].mxu0
      %6385 = vmatprep.mubr.f32.mxu0 %v6209
      %6386 = vmatmul.mubr.f32.gmra.mrb[0].mxu0 %v6136
      %v6387 = vpop.f32.mrb[0].mxu0
      %v6388 = vadd.f32 %v6175, %v6387
      %v6389 = vpop.f32.mrb[0].mxu0
      %6390 = vmatprep.mubr.f32.mxu0 %v6211
      %6391 = vmatmul.mubr.f32.gmra.mrb[0].mxu0 %v6137
      %v6392 = vpop.f32.mrb[0].mxu0
      %v6393 = vadd.f32 %v6175, %v6392
      %v6394 = vpop.f32.mrb[0].mxu0
      %6395 = vmatprep.mubr.f32.mxu0 %v6213
      %6396 = vmatmul.mubr.f32.gmra.mrb[0].mxu0 %v6138
      %v6397 = vpop.f32.mrb[0].mxu0
      %v6398 = vadd.f32 %v6175, %v6397
      %v6399 = vpop.f32.mrb[0].mxu0
      %6400 = vmatprep.mubr.f32.mxu0 %v6215
      %6401 = vmatmul.mubr.f32.gmra.mrb[0].mxu0 %v6139
      %v6402 = vpop.f32.mrb[0].mxu0
      %v6403 = vadd.f32 %v6175, %v6402
      %v6404 = vpop.f32.mrb[0].mxu0
      %6405 = vmatprep.mubr.f32.mxu0 %v6217
      %6406 = vmatmul.mubr.f32.gmra.mrb[0].mxu0 %v6140
      %v6407 = vpop.f32.mrb[0].mxu0
      %v6408 = vadd.f32 %v6175, %v6407
      %v6409 = vpop.f32.mrb[0].mxu0
      %6410 = vmatprep.mubr.f32.mxu0 %v6219
      %6411 = vmatmul.mubr.f32.gmra.mrb[0].mxu0 %v6141
      %v6412 = vpop.f32.mrb[0].mxu0
      %v6413 = vadd.f32 %v6175, %v6412
      %v6414 = vpop.f32.mrb[0].mxu0
      %6415 = vmatprep.mubr.f32.mxu0 %v6221
      %6416 = vmatmul.mubr.f32.gmra.mrb[0].mxu0 %v6142
      %v6417 = vpop.f32.mrb[0].mxu0
      %v6418 = vadd.f32 %v6175, %v6417
      %v6419 = vpop.f32.mrb[0].mxu0
      %6420 = vmatprep.mubr.f32.mxu0 %v6223
      %6421 = vmatmul.mubr.f32.gmra.mrb[0].mxu0 %v6143
      %v6422 = vpop.f32.mrb[0].mxu0
      %v6423 = vadd.f32 %v6175, %v6422
      %v6424 = vpop.f32.mrb[0].mxu0
      %6425 = vmatprep.mubr.f32.mxu0 %v6225
      %6426 = vmatmul.mubr.f32.gmra.mrb[0].mxu0 %v6144
      %v6427 = vpop.f32.mrb[0].mxu0
      %v6428 = vadd.f32 %v6175, %v6427
      %v6429 = vpop.f32.mrb[0].mxu0
      %6430 = vmatprep.mubr.f32.mxu0 %v6227
      %6431 = vmatmul.mubr.f32.gmra.mrb[0].mxu0 %v6145
      %v6432 = vpop.f32.mrb[0].mxu0
      %v6433 = vadd.f32 %v6175, %v6432
      %v6434 = vpop.f32.mrb[0].mxu0
      %6435 = vmatprep.mubr.f32.mxu0 %v6229
      %6436 = vmatmul.mubr.f32.gmra.mrb[0].mxu0 %v6146
      %v6437 = vpop.f32.mrb[0].mxu0
      %v6438 = vadd.f32 %v6175, %v6437
      %v6439 = vpop.f32.mrb[0].mxu0
      %6440 = vmatprep.mubr.f32.mxu0 %v6231
      %6441 = vmatmul.mubr.f32.gmra.mrb[0].mxu0 %v6147
      %v6442 = vpop.f32.mrb[0].mxu0
      %v6443 = vadd.f32 %v6175, %v6442
      %v6444 = vpop.f32.mrb[0].mxu0
      %6445 = vmatprep.mubr.f32.mxu0 %v6233
      %6446 = vmatmul.mubr.f32.gmra.mrb[0].mxu0 %v6148
      %v6447 = vpop.f32.mrb[0].mxu0
      %v6448 = vadd.f32 %v6175, %v6447
      %v6449 = vpop.f32.mrb[0].mxu0
      %6450 = vmatprep.mubr.f32.mxu0 %v6235
      %6451 = vmatmul.mubr.f32.gmra.mrb[0].mxu0 %v6149
      %v6452 = vpop.f32.mrb[0].mxu0
      %v6453 = vadd.f32 %v6175, %v6452
      %v6454 = vpop.f32.mrb[0].mxu0
      %6455 = vmatprep.mubr.f32.mxu0 %v6237
      %6456 = vmatmul.mubr.f32.gmra.mrb[0].mxu0 %v6150
      %v6457 = vpop.f32.mrb[0].mxu0
      %v6458 = vadd.f32 %v6175, %v6457
      %v6459 = vpop.f32.mrb[0].mxu0
      %6460 = vmatprep.mubr.f32.mxu0 %v6239
      %6461 = vmatmul.mubr.f32.gmra.mrb[0].mxu0 %v6151
      %v6462 = vpop.f32.mrb[0].mxu0
      %v6463 = vadd.f32 %v6175, %v6462
      %v6464 = vpop.f32.mrb[0].mxu0
      %6465 = vdwg.mxu0
      %6466 = vst.msk [vmem:[%s431 + $0x8] sm:$0xff] %vm420, %v6308
      %6467 = vst.msk [vmem:[%s431 + $0x10] sm:$0xff] %vm420, %v6313
      %6468 = vst.msk [vmem:[%s431 + $0x28] sm:$0xff] %vm420, %v6318
      %6469 = vst.msk [vmem:[%s431 + $0x30] sm:$0xff] %vm420, %v6323
      %6470 = vst.msk [vmem:[%s431 + $0x48] sm:$0xff] %vm420, %v6328
      %6471 = vst.msk [vmem:[%s431 + $0x50] sm:$0xff] %vm420, %v6333
      %6472 = vst.msk [vmem:[%s431 + $0x68] sm:$0xff] %vm420, %v6338
      %6473 = vst.msk [vmem:[%s431 + $0x70] sm:$0xff] %vm420, %v6343
      %6474 = vst.msk [vmem:[%s431 + $0x88] sm:$0xff] %vm420, %v6348
      %6475 = vst.msk [vmem:[%s431 + $0x90] sm:$0xff] %vm420, %v6353
      %6476 = vst.msk [vmem:[%s431 + $0xa8] sm:$0xff] %vm420, %v6358
      %6477 = vst.msk [vmem:[%s431 + $0xb0] sm:$0xff] %vm420, %v6363
      %6478 = vst.msk [vmem:[%s431 + $0xc8] sm:$0xff] %vm420, %v6368
      %6479 = vst.msk [vmem:[%s431 + $0xd0] sm:$0xff] %vm420, %v6373
      %6480 = vst.msk [vmem:[%s431 + $0xe8] sm:$0xff] %vm420, %v6378
      %6481 = vst.msk [vmem:[%s431 + $0xf0] sm:$0xff] %vm420, %v6383
      %6482 = vst.msk [vmem:[%s431 + $0x108] sm:$0xff] %vm420, %v6388
      %6483 = vst.msk [vmem:[%s431 + $0x110] sm:$0xff] %vm420, %v6393
      %6484 = vst.msk [vmem:[%s431 + $0x128] sm:$0xff] %vm420, %v6398
      %6485 = vst.msk [vmem:[%s431 + $0x130] sm:$0xff] %vm420, %v6403
      %6486 = vst.msk [vmem:[%s431 + $0x148] sm:$0xff] %vm420, %v6408
      %6487 = vst.msk [vmem:[%s431 + $0x150] sm:$0xff] %vm420, %v6413
      %6488 = vst.msk [vmem:[%s431 + $0x168] sm:$0xff] %vm420, %v6418
      %6489 = vst.msk [vmem:[%s431 + $0x170] sm:$0xff] %vm420, %v6423
      %6490 = vst.msk [vmem:[%s431 + $0x188] sm:$0xff] %vm420, %v6428
      %6491 = vst.msk [vmem:[%s431 + $0x190] sm:$0xff] %vm420, %v6433
      %6492 = vst.msk [vmem:[%s431 + $0x1a8] sm:$0xff] %vm420, %v6438
      %6493 = vst.msk [vmem:[%s431 + $0x1b0] sm:$0xff] %vm420, %v6443
      %6494 = vst.msk [vmem:[%s431 + $0x1c8] sm:$0xff] %vm420, %v6448
      %6495 = vst.msk [vmem:[%s431 + $0x1d0] sm:$0xff] %vm420, %v6453
      %6496 = vst.msk [vmem:[%s431 + $0x1e8] sm:$0xff] %vm420, %v6458
      %6497 = vst.msk [vmem:[%s431 + $0x1f0] sm:$0xff] %vm420, %v6463
      %v6498 = vld [vmem:[#allocation3 + $0x7] sm:$0xff]
      %v6499 = vld [vmem:[#allocation3 + $0xf] sm:$0xff]
      %v6500 = vld [vmem:[#allocation3 + $0x27] sm:$0xff]
      %v6501 = vld [vmem:[#allocation3 + $0x2f] sm:$0xff]
      %v6502 = vld [vmem:[#allocation3 + $0x47] sm:$0xff]
      %v6503 = vld [vmem:[#allocation3 + $0x4f] sm:$0xff]
      %v6504 = vld [vmem:[#allocation3 + $0x67] sm:$0xff]
      %v6505 = vld [vmem:[#allocation3 + $0x6f] sm:$0xff]
      %v6506 = vld [vmem:[#allocation3 + $0x87] sm:$0xff]
      %v6507 = vld [vmem:[#allocation3 + $0x8f] sm:$0xff]
      %v6508 = vld [vmem:[#allocation3 + $0xa7] sm:$0xff]
      %v6509 = vld [vmem:[#allocation3 + $0xaf] sm:$0xff]
      %v6510 = vld [vmem:[#allocation3 + $0xc7] sm:$0xff]
      %v6511 = vld [vmem:[#allocation3 + $0xcf] sm:$0xff]
      %v6512 = vld [vmem:[#allocation3 + $0xe7] sm:$0xff]
      %v6513 = vld [vmem:[#allocation3 + $0xef] sm:$0xff]
      %v6514 = vld [vmem:[#allocation3 + $0x107] sm:$0xff]
      %v6515 = vld [vmem:[#allocation3 + $0x10f] sm:$0xff]
      %v6516 = vld [vmem:[#allocation3 + $0x127] sm:$0xff]
      %v6517 = vld [vmem:[#allocation3 + $0x12f] sm:$0xff]
      %v6518 = vld [vmem:[#allocation3 + $0x147] sm:$0xff]
      %v6519 = vld [vmem:[#allocation3 + $0x14f] sm:$0xff]
      %v6520 = vld [vmem:[#allocation3 + $0x167] sm:$0xff]
      %v6521 = vld [vmem:[#allocation3 + $0x16f] sm:$0xff]
      %v6522 = vld [vmem:[#allocation3 + $0x187] sm:$0xff]
      %v6523 = vld [vmem:[#allocation3 + $0x18f] sm:$0xff]
      %v6524 = vld [vmem:[#allocation3 + $0x1a7] sm:$0xff]
      %v6525 = vld [vmem:[#allocation3 + $0x1af] sm:$0xff]
      %v6526 = vld [vmem:[#allocation3 + $0x1c7] sm:$0xff]
      %v6527 = vld [vmem:[#allocation3 + $0x1cf] sm:$0xff]
      %v6528 = vld [vmem:[#allocation3 + $0x1e7] sm:$0xff]
      %v6529 = vld [vmem:[#allocation3 + $0x1ef] sm:$0xff]
      %v6530 = vld [vmem:[#allocation3 + $0x8] sm:$0xff]
      %v6531 = vld [vmem:[#allocation3 + $0x10] sm:$0xff]
      %v6532 = vld [vmem:[#allocation3 + $0x28] sm:$0xff]
      %v6533 = vld [vmem:[#allocation3 + $0x30] sm:$0xff]
      %v6534 = vld [vmem:[#allocation3 + $0x48] sm:$0xff]
      %v6535 = vld [vmem:[#allocation3 + $0x50] sm:$0xff]
      %v6536 = vld [vmem:[#allocation3 + $0x68] sm:$0xff]
      %v6537 = vld [vmem:[#allocation3 + $0x70] sm:$0xff]
      %v6538 = vld [vmem:[#allocation3 + $0x88] sm:$0xff]
      %v6539 = vld [vmem:[#allocation3 + $0x90] sm:$0xff]
      %v6540 = vld [vmem:[#allocation3 + $0xa8] sm:$0xff]
      %v6541 = vld [vmem:[#allocation3 + $0xb0] sm:$0xff]
      %v6542 = vld [vmem:[#allocation3 + $0xc8] sm:$0xff]
      %v6543 = vld [vmem:[#allocation3 + $0xd0] sm:$0xff]
      %v6544 = vld [vmem:[#allocation3 + $0xe8] sm:$0xff]
      %v6545 = vld [vmem:[#allocation3 + $0xf0] sm:$0xff]
      %v6546 = vld [vmem:[#allocation3 + $0x108] sm:$0xff]
      %v6547 = vld [vmem:[#allocation3 + $0x110] sm:$0xff]
      %v6548 = vld [vmem:[#allocation3 + $0x128] sm:$0xff]
      %v6549 = vld [vmem:[#allocation3 + $0x130] sm:$0xff]
      %v6550 = vld [vmem:[#allocation3 + $0x148] sm:$0xff]
      %v6551 = vld [vmem:[#allocation3 + $0x150] sm:$0xff]
      %v6552 = vld [vmem:[#allocation3 + $0x168] sm:$0xff]
      %v6553 = vld [vmem:[#allocation3 + $0x170] sm:$0xff]
      %v6554 = vld [vmem:[#allocation3 + $0x188] sm:$0xff]
      %v6555 = vld [vmem:[#allocation3 + $0x190] sm:$0xff]
      %v6556 = vld [vmem:[#allocation3 + $0x1a8] sm:$0xff]
      %v6557 = vld [vmem:[#allocation3 + $0x1b0] sm:$0xff]
      %v6558 = vld [vmem:[#allocation3 + $0x1c8] sm:$0xff]
      %v6559 = vld [vmem:[#allocation3 + $0x1d0] sm:$0xff]
      %v6560 = vld [vmem:[#allocation3 + $0x1e8] sm:$0xff]
      %v6561 = vld [vmem:[#allocation3 + $0x1f0] sm:$0xff]
      %v6562 = vld [vmem:[#allocation3 + $0x9] sm:$0xff]
      %v6563 = vld [vmem:[#allocation3 + $0x11] sm:$0xff]
      %v6564 = vld [vmem:[#allocation3 + $0x29] sm:$0xff]
      %v6565 = vld [vmem:[#allocation3 + $0x31] sm:$0xff]
      %v6566 = vld [vmem:[#allocation3 + $0x49] sm:$0xff]
      %v6567 = vld [vmem:[#allocation3 + $0x51] sm:$0xff]
      %v6568 = vld [vmem:[#allocation3 + $0x69] sm:$0xff]
      %v6569 = vld [vmem:[#allocation3 + $0x71] sm:$0xff]
      %v6570 = vld [vmem:[#allocation3 + $0x89] sm:$0xff]
      %v6571 = vld [vmem:[#allocation3 + $0x91] sm:$0xff]
      %v6572 = vld [vmem:[#allocation3 + $0xa9] sm:$0xff]
      %v6573 = vld [vmem:[#allocation3 + $0xb1] sm:$0xff]
      %v6574 = vld [vmem:[#allocation3 + $0xc9] sm:$0xff]
      %v6575 = vld [vmem:[#allocation3 + $0xd1] sm:$0xff]
      %v6576 = vld [vmem:[#allocation3 + $0xe9] sm:$0xff]
      %v6577 = vld [vmem:[#allocation3 + $0xf1] sm:$0xff]
      %v6578 = vld [vmem:[#allocation3 + $0x109] sm:$0xff]
      %v6579 = vld [vmem:[#allocation3 + $0x111] sm:$0xff]
      %v6580 = vld [vmem:[#allocation3 + $0x129] sm:$0xff]
      %v6581 = vld [vmem:[#allocation3 + $0x131] sm:$0xff]
      %v6582 = vld [vmem:[#allocation3 + $0x149] sm:$0xff]
      %v6583 = vld [vmem:[#allocation3 + $0x151] sm:$0xff]
      %v6584 = vld [vmem:[#allocation3 + $0x169] sm:$0xff]
      %v6585 = vld [vmem:[#allocation3 + $0x171] sm:$0xff]
      %v6586 = vld [vmem:[#allocation3 + $0x189] sm:$0xff]
      %v6587 = vld [vmem:[#allocation3 + $0x191] sm:$0xff]
      %v6588 = vld [vmem:[#allocation3 + $0x1a9] sm:$0xff]
      %v6589 = vld [vmem:[#allocation3 + $0x1b1] sm:$0xff]
      %v6590 = vld [vmem:[#allocation3 + $0x1c9] sm:$0xff]
      %v6591 = vld [vmem:[#allocation3 + $0x1d1] sm:$0xff]
      %v6592 = vld [vmem:[#allocation3 + $0x1e9] sm:$0xff]
      %v6593 = vld [vmem:[#allocation3 + $0x1f1] sm:$0xff]
      %v6594 = vld [vmem:[%s431 + $0x7] sm:$0xff]
      %v6595 = vld [vmem:[%s431 + $0xf] sm:$0xff]
      %v6596 = vld [vmem:[%s431 + $0x27] sm:$0xff]
      %v6597 = vld [vmem:[%s431 + $0x2f] sm:$0xff]
      %v6598 = vld [vmem:[%s431 + $0x47] sm:$0xff]
      %v6599 = vld [vmem:[%s431 + $0x4f] sm:$0xff]
      %v6600 = vld [vmem:[%s431 + $0x67] sm:$0xff]
      %v6601 = vld [vmem:[%s431 + $0x6f] sm:$0xff]
      %v6602 = vld [vmem:[%s431 + $0x87] sm:$0xff]
      %v6603 = vld [vmem:[%s431 + $0x8f] sm:$0xff]
      %v6604 = vld [vmem:[%s431 + $0xa7] sm:$0xff]
      %v6605 = vld [vmem:[%s431 + $0xaf] sm:$0xff]
      %v6606 = vld [vmem:[%s431 + $0xc7] sm:$0xff]
      %v6607 = vld [vmem:[%s431 + $0xcf] sm:$0xff]
      %v6608 = vld [vmem:[%s431 + $0xe7] sm:$0xff]
      %v6609 = vld [vmem:[%s431 + $0xef] sm:$0xff]
      %v6610 = vld [vmem:[%s431 + $0x107] sm:$0xff]
      %v6611 = vld [vmem:[%s431 + $0x10f] sm:$0xff]
      %v6612 = vld [vmem:[%s431 + $0x127] sm:$0xff]
      %v6613 = vld [vmem:[%s431 + $0x12f] sm:$0xff]
      %v6614 = vld [vmem:[%s431 + $0x147] sm:$0xff]
      %v6615 = vld [vmem:[%s431 + $0x14f] sm:$0xff]
      %v6616 = vld [vmem:[%s431 + $0x167] sm:$0xff]
      %v6617 = vld [vmem:[%s431 + $0x16f] sm:$0xff]
      %v6618 = vld [vmem:[%s431 + $0x187] sm:$0xff]
      %v6619 = vld [vmem:[%s431 + $0x18f] sm:$0xff]
      %v6620 = vld [vmem:[%s431 + $0x1a7] sm:$0xff]
      %v6621 = vld [vmem:[%s431 + $0x1af] sm:$0xff]
      %v6622 = vld [vmem:[%s431 + $0x1c7] sm:$0xff]
      %v6623 = vld [vmem:[%s431 + $0x1cf] sm:$0xff]
      %v6624 = vld [vmem:[%s431 + $0x1e7] sm:$0xff]
      %v6625 = vld [vmem:[%s431 + $0x1ef] sm:$0xff]
      %v6626 = vld [vmem:[%s431 + $0x8] sm:$0xff]
      %v6627 = vld [vmem:[%s431 + $0x10] sm:$0xff]
      %v6628 = vld [vmem:[%s431 + $0x28] sm:$0xff]
      %v6629 = vld [vmem:[%s431 + $0x30] sm:$0xff]
      %v6630 = vld [vmem:[%s431 + $0x48] sm:$0xff]
      %v6631 = vld [vmem:[%s431 + $0x50] sm:$0xff]
      %v6632 = vld [vmem:[%s431 + $0x68] sm:$0xff]
      %v6633 = vld [vmem:[%s431 + $0x70] sm:$0xff]
      %v6634 = vld [vmem:[%s431 + $0x88] sm:$0xff]
      %v6635 = vld [vmem:[%s431 + $0x90] sm:$0xff]
      %v6636 = vld [vmem:[%s431 + $0xa8] sm:$0xff]
      %v6637 = vld [vmem:[%s431 + $0xb0] sm:$0xff]
      %v6638 = vld [vmem:[%s431 + $0xc8] sm:$0xff]
      %v6639 = vld [vmem:[%s431 + $0xd0] sm:$0xff]
      %v6640 = vld [vmem:[%s431 + $0xe8] sm:$0xff]
      %v6641 = vld [vmem:[%s431 + $0xf0] sm:$0xff]
      %v6642 = vld [vmem:[%s431 + $0x108] sm:$0xff]
      %v6643 = vld [vmem:[%s431 + $0x110] sm:$0xff]
      %v6644 = vld [vmem:[%s431 + $0x128] sm:$0xff]
      %v6645 = vld [vmem:[%s431 + $0x130] sm:$0xff]
      %v6646 = vld [vmem:[%s431 + $0x148] sm:$0xff]
      %v6647 = vld [vmem:[%s431 + $0x150] sm:$0xff]
      %v6648 = vld [vmem:[%s431 + $0x168] sm:$0xff]
      %v6649 = vld [vmem:[%s431 + $0x170] sm:$0xff]
      %v6650 = vld [vmem:[%s431 + $0x188] sm:$0xff]
      %v6651 = vld [vmem:[%s431 + $0x190] sm:$0xff]
      %v6652 = vld [vmem:[%s431 + $0x1a8] sm:$0xff]
      %v6653 = vld [vmem:[%s431 + $0x1b0] sm:$0xff]
      %v6654 = vld [vmem:[%s431 + $0x1c8] sm:$0xff]
      %v6655 = vld [vmem:[%s431 + $0x1d0] sm:$0xff]
      %v6656 = vld [vmem:[%s431 + $0x1e8] sm:$0xff]
      %v6657 = vld [vmem:[%s431 + $0x1f0] sm:$0xff]
      %v6658 = vld [vmem:[%s431 + $0x9] sm:$0xff]
      %v6659 = vld [vmem:[%s431 + $0x11] sm:$0xff]
      %v6660 = vld [vmem:[%s431 + $0x29] sm:$0xff]
      %v6661 = vld [vmem:[%s431 + $0x31] sm:$0xff]
      %v6662 = vld [vmem:[%s431 + $0x49] sm:$0xff]
      %v6663 = vld [vmem:[%s431 + $0x51] sm:$0xff]
      %v6664 = vld [vmem:[%s431 + $0x69] sm:$0xff]
      %v6665 = vld [vmem:[%s431 + $0x71] sm:$0xff]
      %v6666 = vld [vmem:[%s431 + $0x89] sm:$0xff]
      %v6667 = vld [vmem:[%s431 + $0x91] sm:$0xff]
      %v6668 = vld [vmem:[%s431 + $0xa9] sm:$0xff]
      %v6669 = vld [vmem:[%s431 + $0xb1] sm:$0xff]
      %v6670 = vld [vmem:[%s431 + $0xc9] sm:$0xff]
      %v6671 = vld [vmem:[%s431 + $0xd1] sm:$0xff]
      %v6672 = vld [vmem:[%s431 + $0xe9] sm:$0xff]
      %v6673 = vld [vmem:[%s431 + $0xf1] sm:$0xff]
      %v6674 = vld [vmem:[%s431 + $0x109] sm:$0xff]
      %v6675 = vld [vmem:[%s431 + $0x111] sm:$0xff]
      %v6676 = vld [vmem:[%s431 + $0x129] sm:$0xff]
      %v6677 = vld [vmem:[%s431 + $0x131] sm:$0xff]
      %v6678 = vld [vmem:[%s431 + $0x149] sm:$0xff]
      %v6679 = vld [vmem:[%s431 + $0x151] sm:$0xff]
      %v6680 = vld [vmem:[%s431 + $0x169] sm:$0xff]
      %v6681 = vld [vmem:[%s431 + $0x171] sm:$0xff]
      %v6682 = vld [vmem:[%s431 + $0x189] sm:$0xff]
      %v6683 = vld [vmem:[%s431 + $0x191] sm:$0xff]
      %v6684 = vld [vmem:[%s431 + $0x1a9] sm:$0xff]
      %v6685 = vld [vmem:[%s431 + $0x1b1] sm:$0xff]
      %v6686 = vld [vmem:[%s431 + $0x1c9] sm:$0xff]
      %v6687 = vld [vmem:[%s431 + $0x1d1] sm:$0xff]
      %v6688 = vld [vmem:[%s431 + $0x1e9] sm:$0xff]
      %v6689 = vld [vmem:[%s431 + $0x1f1] sm:$0xff]
      %s6690 = scalar_lea.vmem [#allocation3], 64
      %v6691 = vld [vmem:[%s6690 + $0x7] sm:$0xff]
      %v6692 = vld [vmem:[%s6690 + $0xf] sm:$0xff]
      %v6693 = vld [vmem:[%s6690 + $0x27] sm:$0xff]
      %v6694 = vld [vmem:[%s6690 + $0x2f] sm:$0xff]
      %v6695 = vld [vmem:[%s6690 + $0x47] sm:$0xff]
      %v6696 = vld [vmem:[%s6690 + $0x4f] sm:$0xff]
      %v6697 = vld [vmem:[%s6690 + $0x67] sm:$0xff]
      %v6698 = vld [vmem:[%s6690 + $0x6f] sm:$0xff]
      %v6699 = vld [vmem:[%s6690 + $0x87] sm:$0xff]
      %v6700 = vld [vmem:[%s6690 + $0x8f] sm:$0xff]
      %v6701 = vld [vmem:[%s6690 + $0xa7] sm:$0xff]
      %v6702 = vld [vmem:[%s6690 + $0xaf] sm:$0xff]
      %v6703 = vld [vmem:[%s6690 + $0xc7] sm:$0xff]
      %v6704 = vld [vmem:[%s6690 + $0xcf] sm:$0xff]
      %v6705 = vld [vmem:[%s6690 + $0xe7] sm:$0xff]
      %v6706 = vld [vmem:[%s6690 + $0xef] sm:$0xff]
      %v6707 = vld [vmem:[%s6690 + $0x107] sm:$0xff]
      %v6708 = vld [vmem:[%s6690 + $0x10f] sm:$0xff]
      %v6709 = vld [vmem:[%s6690 + $0x127] sm:$0xff]
      %v6710 = vld [vmem:[%s6690 + $0x12f] sm:$0xff]
      %v6711 = vld [vmem:[%s6690 + $0x147] sm:$0xff]
      %v6712 = vld [vmem:[%s6690 + $0x14f] sm:$0xff]
      %v6713 = vld [vmem:[%s6690 + $0x167] sm:$0xff]
      %v6714 = vld [vmem:[%s6690 + $0x16f] sm:$0xff]
      %v6715 = vld [vmem:[%s6690 + $0x187] sm:$0xff]
      %v6716 = vld [vmem:[%s6690 + $0x18f] sm:$0xff]
      %v6717 = vld [vmem:[%s6690 + $0x1a7] sm:$0xff]
      %v6718 = vld [vmem:[%s6690 + $0x1af] sm:$0xff]
      %v6719 = vld [vmem:[%s6690 + $0x1c7] sm:$0xff]
      %v6720 = vld [vmem:[%s6690 + $0x1cf] sm:$0xff]
      %v6721 = vld [vmem:[%s6690 + $0x1e7] sm:$0xff]
      %v6722 = vld [vmem:[%s6690 + $0x1ef] sm:$0xff]
      %v6723 = vld [vmem:[%s6690 + $0x8] sm:$0xff]
      %v6724 = vld [vmem:[%s6690 + $0x10] sm:$0xff]
      %v6725 = vld [vmem:[%s6690 + $0x28] sm:$0xff]
      %v6726 = vld [vmem:[%s6690 + $0x30] sm:$0xff]
      %v6727 = vld [vmem:[%s6690 + $0x48] sm:$0xff]
      %v6728 = vld [vmem:[%s6690 + $0x50] sm:$0xff]
      %v6729 = vld [vmem:[%s6690 + $0x68] sm:$0xff]
      %v6730 = vld [vmem:[%s6690 + $0x70] sm:$0xff]
      %v6731 = vld [vmem:[%s6690 + $0x88] sm:$0xff]
      %v6732 = vld [vmem:[%s6690 + $0x90] sm:$0xff]
      %v6733 = vld [vmem:[%s6690 + $0xa8] sm:$0xff]
      %v6734 = vld [vmem:[%s6690 + $0xb0] sm:$0xff]
      %v6735 = vld [vmem:[%s6690 + $0xc8] sm:$0xff]
      %v6736 = vld [vmem:[%s6690 + $0xd0] sm:$0xff]
      %v6737 = vld [vmem:[%s6690 + $0xe8] sm:$0xff]
      %v6738 = vld [vmem:[%s6690 + $0xf0] sm:$0xff]
      %v6739 = vld [vmem:[%s6690 + $0x108] sm:$0xff]
      %v6740 = vld [vmem:[%s6690 + $0x110] sm:$0xff]
      %v6741 = vld [vmem:[%s6690 + $0x128] sm:$0xff]
      %v6742 = vld [vmem:[%s6690 + $0x130] sm:$0xff]
      %v6743 = vld [vmem:[%s6690 + $0x148] sm:$0xff]
      %v6744 = vld [vmem:[%s6690 + $0x150] sm:$0xff]
      %v6745 = vld [vmem:[%s6690 + $0x168] sm:$0xff]
      %v6746 = vld [vmem:[%s6690 + $0x170] sm:$0xff]
      %v6747 = vld [vmem:[%s6690 + $0x188] sm:$0xff]
      %v6748 = vld [vmem:[%s6690 + $0x190] sm:$0xff]
      %v6749 = vld [vmem:[%s6690 + $0x1a8] sm:$0xff]
      %v6750 = vld [vmem:[%s6690 + $0x1b0] sm:$0xff]
      %v6751 = vld [vmem:[%s6690 + $0x1c8] sm:$0xff]
      %v6752 = vld [vmem:[%s6690 + $0x1d0] sm:$0xff]
      %v6753 = vld [vmem:[%s6690 + $0x1e8] sm:$0xff]
      %v6754 = vld [vmem:[%s6690 + $0x1f0] sm:$0xff]
      %v6755 = vld [vmem:[%s6690 + $0x9] sm:$0xff]
      %v6756 = vld [vmem:[%s6690 + $0x11] sm:$0xff]
      %v6757 = vld [vmem:[%s6690 + $0x29] sm:$0xff]
      %v6758 = vld [vmem:[%s6690 + $0x31] sm:$0xff]
      %v6759 = vld [vmem:[%s6690 + $0x49] sm:$0xff]
      %v6760 = vld [vmem:[%s6690 + $0x51] sm:$0xff]
      %v6761 = vld [vmem:[%s6690 + $0x69] sm:$0xff]
      %v6762 = vld [vmem:[%s6690 + $0x71] sm:$0xff]
      %v6763 = vld [vmem:[%s6690 + $0x89] sm:$0xff]
      %v6764 = vld [vmem:[%s6690 + $0x91] sm:$0xff]
      %v6765 = vld [vmem:[%s6690 + $0xa9] sm:$0xff]
      %v6766 = vld [vmem:[%s6690 + $0xb1] sm:$0xff]
      %v6767 = vld [vmem:[%s6690 + $0xc9] sm:$0xff]
      %v6768 = vld [vmem:[%s6690 + $0xd1] sm:$0xff]
      %v6769 = vld [vmem:[%s6690 + $0xe9] sm:$0xff]
      %v6770 = vld [vmem:[%s6690 + $0xf1] sm:$0xff]
      %v6771 = vld [vmem:[%s6690 + $0x109] sm:$0xff]
      %v6772 = vld [vmem:[%s6690 + $0x111] sm:$0xff]
      %v6773 = vld [vmem:[%s6690 + $0x129] sm:$0xff]
      %v6774 = vld [vmem:[%s6690 + $0x131] sm:$0xff]
      %v6775 = vld [vmem:[%s6690 + $0x149] sm:$0xff]
      %v6776 = vld [vmem:[%s6690 + $0x151] sm:$0xff]
      %v6777 = vld [vmem:[%s6690 + $0x169] sm:$0xff]
      %v6778 = vld [vmem:[%s6690 + $0x171] sm:$0xff]
      %v6779 = vld [vmem:[%s6690 + $0x189] sm:$0xff]
      %v6780 = vld [vmem:[%s6690 + $0x191] sm:$0xff]
      %v6781 = vld [vmem:[%s6690 + $0x1a9] sm:$0xff]
      %v6782 = vld [vmem:[%s6690 + $0x1b1] sm:$0xff]
      %v6783 = vld [vmem:[%s6690 + $0x1c9] sm:$0xff]
      %v6784 = vld [vmem:[%s6690 + $0x1d1] sm:$0xff]
      %v6785 = vld [vmem:[%s6690 + $0x1e9] sm:$0xff]
      %v6786 = vld [vmem:[%s6690 + $0x1f1] sm:$0xff]
      %6819 = vrot.lane.b32.xlu0 %v6530, 24
      %v6820 = vpop.permute.xlu0 %6819
      %6821 = vrot.lane.b32.xlu0 %v6531, 24
      %v6822 = vpop.permute.xlu0 %6821
      %6823 = vrot.lane.b32.xlu0 %v6532, 24
      %v6824 = vpop.permute.xlu0 %6823
      %6825 = vrot.lane.b32.xlu0 %v6533, 24
      %v6826 = vpop.permute.xlu0 %6825
      %6827 = vrot.lane.b32.xlu0 %v6534, 24
      %v6828 = vpop.permute.xlu0 %6827
      %6829 = vrot.lane.b32.xlu0 %v6535, 24
      %v6830 = vpop.permute.xlu0 %6829
      %6831 = vrot.lane.b32.xlu0 %v6536, 24
      %v6832 = vpop.permute.xlu0 %6831
      %6833 = vrot.lane.b32.xlu0 %v6537, 24
      %v6834 = vpop.permute.xlu0 %6833
      %6835 = vrot.lane.b32.xlu0 %v6538, 24
      %v6836 = vpop.permute.xlu0 %6835
      %6837 = vrot.lane.b32.xlu0 %v6539, 24
      %v6838 = vpop.permute.xlu0 %6837
      %6839 = vrot.lane.b32.xlu0 %v6540, 24
      %v6840 = vpop.permute.xlu0 %6839
      %6841 = vrot.lane.b32.xlu0 %v6541, 24
      %v6842 = vpop.permute.xlu0 %6841
      %6843 = vrot.lane.b32.xlu0 %v6542, 24
      %v6844 = vpop.permute.xlu0 %6843
      %6845 = vrot.lane.b32.xlu0 %v6543, 24
      %v6846 = vpop.permute.xlu0 %6845
      %6847 = vrot.lane.b32.xlu0 %v6544, 24
      %v6848 = vpop.permute.xlu0 %6847
      %6849 = vrot.lane.b32.xlu0 %v6545, 24
      %v6850 = vpop.permute.xlu0 %6849
      %6851 = vrot.lane.b32.xlu0 %v6546, 24
      %v6852 = vpop.permute.xlu0 %6851
      %6853 = vrot.lane.b32.xlu0 %v6547, 24
      %v6854 = vpop.permute.xlu0 %6853
      %6855 = vrot.lane.b32.xlu0 %v6548, 24
      %v6856 = vpop.permute.xlu0 %6855
      %6857 = vrot.lane.b32.xlu0 %v6549, 24
      %v6858 = vpop.permute.xlu0 %6857
      %6859 = vrot.lane.b32.xlu0 %v6550, 24
      %v6860 = vpop.permute.xlu0 %6859
      %6861 = vrot.lane.b32.xlu0 %v6551, 24
      %v6862 = vpop.permute.xlu0 %6861
      %6863 = vrot.lane.b32.xlu0 %v6552, 24
      %v6864 = vpop.permute.xlu0 %6863
      %6865 = vrot.lane.b32.xlu0 %v6553, 24
      %v6866 = vpop.permute.xlu0 %6865
      %6867 = vrot.lane.b32.xlu0 %v6554, 24
      %v6868 = vpop.permute.xlu0 %6867
      %6869 = vrot.lane.b32.xlu0 %v6555, 24
      %v6870 = vpop.permute.xlu0 %6869
      %6871 = vrot.lane.b32.xlu0 %v6556, 24
      %v6872 = vpop.permute.xlu0 %6871
      %6873 = vrot.lane.b32.xlu0 %v6557, 24
      %v6874 = vpop.permute.xlu0 %6873
      %6875 = vrot.lane.b32.xlu0 %v6558, 24
      %v6876 = vpop.permute.xlu0 %6875
      %6877 = vrot.lane.b32.xlu0 %v6559, 24
      %v6878 = vpop.permute.xlu0 %6877
      %6879 = vrot.lane.b32.xlu0 %v6560, 24
      %v6880 = vpop.permute.xlu0 %6879
      %6881 = vrot.lane.b32.xlu0 %v6561, 24
      %v6882 = vpop.permute.xlu0 %6881
      %6947 = vrot.lane.b32.xlu0 %v6562, 48
      %v6948 = vpop.permute.xlu0 %6947
      %6949 = vrot.lane.b32.xlu0 %v6563, 48
      %v6950 = vpop.permute.xlu0 %6949
      %6951 = vrot.lane.b32.xlu0 %v6564, 48
      %v6952 = vpop.permute.xlu0 %6951
      %6953 = vrot.lane.b32.xlu0 %v6565, 48
      %v6954 = vpop.permute.xlu0 %6953
      %6955 = vrot.lane.b32.xlu0 %v6566, 48
      %v6956 = vpop.permute.xlu0 %6955
      %6957 = vrot.lane.b32.xlu0 %v6567, 48
      %v6958 = vpop.permute.xlu0 %6957
      %6959 = vrot.lane.b32.xlu0 %v6568, 48
      %v6960 = vpop.permute.xlu0 %6959
      %6961 = vrot.lane.b32.xlu0 %v6569, 48
      %v6962 = vpop.permute.xlu0 %6961
      %6963 = vrot.lane.b32.xlu0 %v6570, 48
      %v6964 = vpop.permute.xlu0 %6963
      %6965 = vrot.lane.b32.xlu0 %v6571, 48
      %v6966 = vpop.permute.xlu0 %6965
      %6967 = vrot.lane.b32.xlu0 %v6572, 48
      %v6968 = vpop.permute.xlu0 %6967
      %6969 = vrot.lane.b32.xlu0 %v6573, 48
      %v6970 = vpop.permute.xlu0 %6969
      %6971 = vrot.lane.b32.xlu0 %v6574, 48
      %v6972 = vpop.permute.xlu0 %6971
      %6973 = vrot.lane.b32.xlu0 %v6575, 48
      %v6974 = vpop.permute.xlu0 %6973
      %6975 = vrot.lane.b32.xlu0 %v6576, 48
      %v6976 = vpop.permute.xlu0 %6975
      %6977 = vrot.lane.b32.xlu0 %v6577, 48
      %v6978 = vpop.permute.xlu0 %6977
      %6979 = vrot.lane.b32.xlu0 %v6578, 48
      %v6980 = vpop.permute.xlu0 %6979
      %6981 = vrot.lane.b32.xlu0 %v6579, 48
      %v6982 = vpop.permute.xlu0 %6981
      %6983 = vrot.lane.b32.xlu0 %v6580, 48
      %v6984 = vpop.permute.xlu0 %6983
      %6985 = vrot.lane.b32.xlu0 %v6581, 48
      %v6986 = vpop.permute.xlu0 %6985
      %6987 = vrot.lane.b32.xlu0 %v6582, 48
      %v6988 = vpop.permute.xlu0 %6987
      %6989 = vrot.lane.b32.xlu0 %v6583, 48
      %v6990 = vpop.permute.xlu0 %6989
      %6991 = vrot.lane.b32.xlu0 %v6584, 48
      %v6992 = vpop.permute.xlu0 %6991
      %6993 = vrot.lane.b32.xlu0 %v6585, 48
      %v6994 = vpop.permute.xlu0 %6993
      %6995 = vrot.lane.b32.xlu0 %v6586, 48
      %v6996 = vpop.permute.xlu0 %6995
      %6997 = vrot.lane.b32.xlu0 %v6587, 48
      %v6998 = vpop.permute.xlu0 %6997
      %6999 = vrot.lane.b32.xlu0 %v6588, 48
      %v7000 = vpop.permute.xlu0 %6999
      %7001 = vrot.lane.b32.xlu0 %v6589, 48
      %v7002 = vpop.permute.xlu0 %7001
      %7003 = vrot.lane.b32.xlu0 %v6590, 48
      %v7004 = vpop.permute.xlu0 %7003
      %7005 = vrot.lane.b32.xlu0 %v6591, 48
      %v7006 = vpop.permute.xlu0 %7005
      %7007 = vrot.lane.b32.xlu0 %v6592, 48
      %v7008 = vpop.permute.xlu0 %7007
      %7009 = vrot.lane.b32.xlu0 %v6593, 48
      %v7010 = vpop.permute.xlu0 %7009
      %7075 = vrot.lane.b32.xlu0 %v6594, 72
      %v7076 = vpop.permute.xlu0 %7075
      %7077 = vrot.lane.b32.xlu0 %v6595, 72
      %v7078 = vpop.permute.xlu0 %7077
      %7079 = vrot.lane.b32.xlu0 %v6596, 72
      %v7080 = vpop.permute.xlu0 %7079
      %7081 = vrot.lane.b32.xlu0 %v6597, 72
      %v7082 = vpop.permute.xlu0 %7081
      %7083 = vrot.lane.b32.xlu0 %v6598, 72
      %v7084 = vpop.permute.xlu0 %7083
      %7085 = vrot.lane.b32.xlu0 %v6599, 72
      %v7086 = vpop.permute.xlu0 %7085
      %7087 = vrot.lane.b32.xlu0 %v6600, 72
      %v7088 = vpop.permute.xlu0 %7087
      %7089 = vrot.lane.b32.xlu0 %v6601, 72
      %v7090 = vpop.permute.xlu0 %7089
      %7091 = vrot.lane.b32.xlu0 %v6602, 72
      %v7092 = vpop.permute.xlu0 %7091
      %7093 = vrot.lane.b32.xlu0 %v6603, 72
      %v7094 = vpop.permute.xlu0 %7093
      %7095 = vrot.lane.b32.xlu0 %v6604, 72
      %v7096 = vpop.permute.xlu0 %7095
      %7097 = vrot.lane.b32.xlu0 %v6605, 72
      %v7098 = vpop.permute.xlu0 %7097
      %7099 = vrot.lane.b32.xlu0 %v6606, 72
      %v7100 = vpop.permute.xlu0 %7099
      %7101 = vrot.lane.b32.xlu0 %v6607, 72
      %v7102 = vpop.permute.xlu0 %7101
      %7103 = vrot.lane.b32.xlu0 %v6608, 72
      %v7104 = vpop.permute.xlu0 %7103
      %7105 = vrot.lane.b32.xlu0 %v6609, 72
      %v7106 = vpop.permute.xlu0 %7105
      %7107 = vrot.lane.b32.xlu0 %v6610, 72
      %v7108 = vpop.permute.xlu0 %7107
      %7109 = vrot.lane.b32.xlu0 %v6611, 72
      %v7110 = vpop.permute.xlu0 %7109
      %7111 = vrot.lane.b32.xlu0 %v6612, 72
      %v7112 = vpop.permute.xlu0 %7111
      %7113 = vrot.lane.b32.xlu0 %v6613, 72
      %v7114 = vpop.permute.xlu0 %7113
      %7115 = vrot.lane.b32.xlu0 %v6614, 72
      %v7116 = vpop.permute.xlu0 %7115
      %7117 = vrot.lane.b32.xlu0 %v6615, 72
      %v7118 = vpop.permute.xlu0 %7117
      %7119 = vrot.lane.b32.xlu0 %v6616, 72
      %v7120 = vpop.permute.xlu0 %7119
      %7121 = vrot.lane.b32.xlu0 %v6617, 72
      %v7122 = vpop.permute.xlu0 %7121
      %7123 = vrot.lane.b32.xlu0 %v6618, 72
      %v7124 = vpop.permute.xlu0 %7123
      %7125 = vrot.lane.b32.xlu0 %v6619, 72
      %v7126 = vpop.permute.xlu0 %7125
      %7127 = vrot.lane.b32.xlu0 %v6620, 72
      %v7128 = vpop.permute.xlu0 %7127
      %7129 = vrot.lane.b32.xlu0 %v6621, 72
      %v7130 = vpop.permute.xlu0 %7129
      %7131 = vrot.lane.b32.xlu0 %v6622, 72
      %v7132 = vpop.permute.xlu0 %7131
      %7133 = vrot.lane.b32.xlu0 %v6623, 72
      %v7134 = vpop.permute.xlu0 %7133
      %7135 = vrot.lane.b32.xlu0 %v6624, 72
      %v7136 = vpop.permute.xlu0 %7135
      %7137 = vrot.lane.b32.xlu0 %v6625, 72
      %v7138 = vpop.permute.xlu0 %7137
      %7203 = vrot.lane.b32.xlu0 %v6626, 96
      %v7204 = vpop.permute.xlu0 %7203
      %7205 = vrot.lane.b32.xlu0 %v6627, 96
      %v7206 = vpop.permute.xlu0 %7205
      %7207 = vrot.lane.b32.xlu0 %v6628, 96
      %v7208 = vpop.permute.xlu0 %7207
      %7209 = vrot.lane.b32.xlu0 %v6629, 96
      %v7210 = vpop.permute.xlu0 %7209
      %7211 = vrot.lane.b32.xlu0 %v6630, 96
      %v7212 = vpop.permute.xlu0 %7211
      %7213 = vrot.lane.b32.xlu0 %v6631, 96
      %v7214 = vpop.permute.xlu0 %7213
      %7215 = vrot.lane.b32.xlu0 %v6632, 96
      %v7216 = vpop.permute.xlu0 %7215
      %7217 = vrot.lane.b32.xlu0 %v6633, 96
      %v7218 = vpop.permute.xlu0 %7217
      %7219 = vrot.lane.b32.xlu0 %v6634, 96
      %v7220 = vpop.permute.xlu0 %7219
      %7221 = vrot.lane.b32.xlu0 %v6635, 96
      %v7222 = vpop.permute.xlu0 %7221
      %7223 = vrot.lane.b32.xlu0 %v6636, 96
      %v7224 = vpop.permute.xlu0 %7223
      %7225 = vrot.lane.b32.xlu0 %v6637, 96
      %v7226 = vpop.permute.xlu0 %7225
      %7227 = vrot.lane.b32.xlu0 %v6638, 96
      %v7228 = vpop.permute.xlu0 %7227
      %7229 = vrot.lane.b32.xlu0 %v6639, 96
      %v7230 = vpop.permute.xlu0 %7229
      %7231 = vrot.lane.b32.xlu0 %v6640, 96
      %v7232 = vpop.permute.xlu0 %7231
      %7233 = vrot.lane.b32.xlu0 %v6641, 96
      %v7234 = vpop.permute.xlu0 %7233
      %7235 = vrot.lane.b32.xlu0 %v6642, 96
      %v7236 = vpop.permute.xlu0 %7235
      %7237 = vrot.lane.b32.xlu0 %v6643, 96
      %v7238 = vpop.permute.xlu0 %7237
      %7239 = vrot.lane.b32.xlu0 %v6644, 96
      %v7240 = vpop.permute.xlu0 %7239
      %7241 = vrot.lane.b32.xlu0 %v6645, 96
      %v7242 = vpop.permute.xlu0 %7241
      %7243 = vrot.lane.b32.xlu0 %v6646, 96
      %v7244 = vpop.permute.xlu0 %7243
      %7245 = vrot.lane.b32.xlu0 %v6647, 96
      %v7246 = vpop.permute.xlu0 %7245
      %7247 = vrot.lane.b32.xlu0 %v6648, 96
      %v7248 = vpop.permute.xlu0 %7247
      %7249 = vrot.lane.b32.xlu0 %v6649, 96
      %v7250 = vpop.permute.xlu0 %7249
      %7251 = vrot.lane.b32.xlu0 %v6650, 96
      %v7252 = vpop.permute.xlu0 %7251
      %7253 = vrot.lane.b32.xlu0 %v6651, 96
      %v7254 = vpop.permute.xlu0 %7253
      %7255 = vrot.lane.b32.xlu0 %v6652, 96
      %v7256 = vpop.permute.xlu0 %7255
      %7257 = vrot.lane.b32.xlu0 %v6653, 96
      %v7258 = vpop.permute.xlu0 %7257
      %7259 = vrot.lane.b32.xlu0 %v6654, 96
      %v7260 = vpop.permute.xlu0 %7259
      %7261 = vrot.lane.b32.xlu0 %v6655, 96
      %v7262 = vpop.permute.xlu0 %7261
      %7263 = vrot.lane.b32.xlu0 %v6656, 96
      %v7264 = vpop.permute.xlu0 %7263
      %7265 = vrot.lane.b32.xlu0 %v6657, 96
      %v7266 = vpop.permute.xlu0 %7265
      %7331 = vrot.lane.b32.xlu0 %v6658, 120
      %v7332 = vpop.permute.xlu0 %7331
      %7333 = vrot.lane.b32.xlu0 %v6659, 120
      %v7334 = vpop.permute.xlu0 %7333
      %7335 = vrot.lane.b32.xlu0 %v6660, 120
      %v7336 = vpop.permute.xlu0 %7335
      %7337 = vrot.lane.b32.xlu0 %v6661, 120
      %v7338 = vpop.permute.xlu0 %7337
      %7339 = vrot.lane.b32.xlu0 %v6662, 120
      %v7340 = vpop.permute.xlu0 %7339
      %7341 = vrot.lane.b32.xlu0 %v6663, 120
      %v7342 = vpop.permute.xlu0 %7341
      %7343 = vrot.lane.b32.xlu0 %v6664, 120
      %v7344 = vpop.permute.xlu0 %7343
      %7345 = vrot.lane.b32.xlu0 %v6665, 120
      %v7346 = vpop.permute.xlu0 %7345
      %7347 = vrot.lane.b32.xlu0 %v6666, 120
      %v7348 = vpop.permute.xlu0 %7347
      %7349 = vrot.lane.b32.xlu0 %v6667, 120
      %v7350 = vpop.permute.xlu0 %7349
      %7351 = vrot.lane.b32.xlu0 %v6668, 120
      %v7352 = vpop.permute.xlu0 %7351
      %7353 = vrot.lane.b32.xlu0 %v6669, 120
      %v7354 = vpop.permute.xlu0 %7353
      %7355 = vrot.lane.b32.xlu0 %v6670, 120
      %v7356 = vpop.permute.xlu0 %7355
      %7357 = vrot.lane.b32.xlu0 %v6671, 120
      %v7358 = vpop.permute.xlu0 %7357
      %7359 = vrot.lane.b32.xlu0 %v6672, 120
      %v7360 = vpop.permute.xlu0 %7359
      %7361 = vrot.lane.b32.xlu0 %v6673, 120
      %v7362 = vpop.permute.xlu0 %7361
      %7363 = vrot.lane.b32.xlu0 %v6674, 120
      %v7364 = vpop.permute.xlu0 %7363
      %7365 = vrot.lane.b32.xlu0 %v6675, 120
      %v7366 = vpop.permute.xlu0 %7365
      %7367 = vrot.lane.b32.xlu0 %v6676, 120
      %v7368 = vpop.permute.xlu0 %7367
      %7369 = vrot.lane.b32.xlu0 %v6677, 120
      %v7370 = vpop.permute.xlu0 %7369
      %7371 = vrot.lane.b32.xlu0 %v6678, 120
      %v7372 = vpop.permute.xlu0 %7371
      %7373 = vrot.lane.b32.xlu0 %v6679, 120
      %v7374 = vpop.permute.xlu0 %7373
      %7375 = vrot.lane.b32.xlu0 %v6680, 120
      %v7376 = vpop.permute.xlu0 %7375
      %7377 = vrot.lane.b32.xlu0 %v6681, 120
      %v7378 = vpop.permute.xlu0 %7377
      %7379 = vrot.lane.b32.xlu0 %v6682, 120
      %v7380 = vpop.permute.xlu0 %7379
      %7381 = vrot.lane.b32.xlu0 %v6683, 120
      %v7382 = vpop.permute.xlu0 %7381
      %7383 = vrot.lane.b32.xlu0 %v6684, 120
      %v7384 = vpop.permute.xlu0 %7383
      %7385 = vrot.lane.b32.xlu0 %v6685, 120
      %v7386 = vpop.permute.xlu0 %7385
      %7387 = vrot.lane.b32.xlu0 %v6686, 120
      %v7388 = vpop.permute.xlu0 %7387
      %7389 = vrot.lane.b32.xlu0 %v6687, 120
      %v7390 = vpop.permute.xlu0 %7389
      %7391 = vrot.lane.b32.xlu0 %v6688, 120
      %v7392 = vpop.permute.xlu0 %7391
      %7393 = vrot.lane.b32.xlu0 %v6689, 120
      %v7394 = vpop.permute.xlu0 %7393
      %7459 = vrot.lane.b32.xlu0 %v6691, 16
      %v7460 = vpop.permute.xlu0 %7459
      %7461 = vrot.lane.b32.xlu0 %v6692, 16
      %v7462 = vpop.permute.xlu0 %7461
      %7463 = vrot.lane.b32.xlu0 %v6693, 16
      %v7464 = vpop.permute.xlu0 %7463
      %7465 = vrot.lane.b32.xlu0 %v6694, 16
      %v7466 = vpop.permute.xlu0 %7465
      %7467 = vrot.lane.b32.xlu0 %v6695, 16
      %v7468 = vpop.permute.xlu0 %7467
      %7469 = vrot.lane.b32.xlu0 %v6696, 16
      %v7470 = vpop.permute.xlu0 %7469
      %7471 = vrot.lane.b32.xlu0 %v6697, 16
      %v7472 = vpop.permute.xlu0 %7471
      %7473 = vrot.lane.b32.xlu0 %v6698, 16
      %v7474 = vpop.permute.xlu0 %7473
      %7475 = vrot.lane.b32.xlu0 %v6699, 16
      %v7476 = vpop.permute.xlu0 %7475
      %7477 = vrot.lane.b32.xlu0 %v6700, 16
      %v7478 = vpop.permute.xlu0 %7477
      %7479 = vrot.lane.b32.xlu0 %v6701, 16
      %v7480 = vpop.permute.xlu0 %7479
      %7481 = vrot.lane.b32.xlu0 %v6702, 16
      %v7482 = vpop.permute.xlu0 %7481
      %7483 = vrot.lane.b32.xlu0 %v6703, 16
      %v7484 = vpop.permute.xlu0 %7483
      %7485 = vrot.lane.b32.xlu0 %v6704, 16
      %v7486 = vpop.permute.xlu0 %7485
      %7487 = vrot.lane.b32.xlu0 %v6705, 16
      %v7488 = vpop.permute.xlu0 %7487
      %7489 = vrot.lane.b32.xlu0 %v6706, 16
      %v7490 = vpop.permute.xlu0 %7489
      %7491 = vrot.lane.b32.xlu0 %v6707, 16
      %v7492 = vpop.permute.xlu0 %7491
      %7493 = vrot.lane.b32.xlu0 %v6708, 16
      %v7494 = vpop.permute.xlu0 %7493
      %7495 = vrot.lane.b32.xlu0 %v6709, 16
      %v7496 = vpop.permute.xlu0 %7495
      %7497 = vrot.lane.b32.xlu0 %v6710, 16
      %v7498 = vpop.permute.xlu0 %7497
      %7499 = vrot.lane.b32.xlu0 %v6711, 16
      %v7500 = vpop.permute.xlu0 %7499
      %7501 = vrot.lane.b32.xlu0 %v6712, 16
      %v7502 = vpop.permute.xlu0 %7501
      %7503 = vrot.lane.b32.xlu0 %v6713, 16
      %v7504 = vpop.permute.xlu0 %7503
      %7505 = vrot.lane.b32.xlu0 %v6714, 16
      %v7506 = vpop.permute.xlu0 %7505
      %7507 = vrot.lane.b32.xlu0 %v6715, 16
      %v7508 = vpop.permute.xlu0 %7507
      %7509 = vrot.lane.b32.xlu0 %v6716, 16
      %v7510 = vpop.permute.xlu0 %7509
      %7511 = vrot.lane.b32.xlu0 %v6717, 16
      %v7512 = vpop.permute.xlu0 %7511
      %7513 = vrot.lane.b32.xlu0 %v6718, 16
      %v7514 = vpop.permute.xlu0 %7513
      %7515 = vrot.lane.b32.xlu0 %v6719, 16
      %v7516 = vpop.permute.xlu0 %7515
      %7517 = vrot.lane.b32.xlu0 %v6720, 16
      %v7518 = vpop.permute.xlu0 %7517
      %7519 = vrot.lane.b32.xlu0 %v6721, 16
      %v7520 = vpop.permute.xlu0 %7519
      %7521 = vrot.lane.b32.xlu0 %v6722, 16
      %v7522 = vpop.permute.xlu0 %7521
      %7587 = vrot.lane.b32.xlu0 %v6723, 40
      %v7588 = vpop.permute.xlu0 %7587
      %7589 = vrot.lane.b32.xlu0 %v6724, 40
      %v7590 = vpop.permute.xlu0 %7589
      %7591 = vrot.lane.b32.xlu0 %v6725, 40
      %v7592 = vpop.permute.xlu0 %7591
      %7593 = vrot.lane.b32.xlu0 %v6726, 40
      %v7594 = vpop.permute.xlu0 %7593
      %7595 = vrot.lane.b32.xlu0 %v6727, 40
      %v7596 = vpop.permute.xlu0 %7595
      %7597 = vrot.lane.b32.xlu0 %v6728, 40
      %v7598 = vpop.permute.xlu0 %7597
      %7599 = vrot.lane.b32.xlu0 %v6729, 40
      %v7600 = vpop.permute.xlu0 %7599
      %7601 = vrot.lane.b32.xlu0 %v6730, 40
      %v7602 = vpop.permute.xlu0 %7601
      %7603 = vrot.lane.b32.xlu0 %v6731, 40
      %v7604 = vpop.permute.xlu0 %7603
      %7605 = vrot.lane.b32.xlu0 %v6732, 40
      %v7606 = vpop.permute.xlu0 %7605
      %7607 = vrot.lane.b32.xlu0 %v6733, 40
      %v7608 = vpop.permute.xlu0 %7607
      %7609 = vrot.lane.b32.xlu0 %v6734, 40
      %v7610 = vpop.permute.xlu0 %7609
      %7611 = vrot.lane.b32.xlu0 %v6735, 40
      %v7612 = vpop.permute.xlu0 %7611
      %7613 = vrot.lane.b32.xlu0 %v6736, 40
      %v7614 = vpop.permute.xlu0 %7613
      %7615 = vrot.lane.b32.xlu0 %v6737, 40
      %v7616 = vpop.permute.xlu0 %7615
      %7617 = vrot.lane.b32.xlu0 %v6738, 40
      %v7618 = vpop.permute.xlu0 %7617
      %7619 = vrot.lane.b32.xlu0 %v6739, 40
      %v7620 = vpop.permute.xlu0 %7619
      %7621 = vrot.lane.b32.xlu0 %v6740, 40
      %v7622 = vpop.permute.xlu0 %7621
      %7623 = vrot.lane.b32.xlu0 %v6741, 40
      %v7624 = vpop.permute.xlu0 %7623
      %7625 = vrot.lane.b32.xlu0 %v6742, 40
      %v7626 = vpop.permute.xlu0 %7625
      %7627 = vrot.lane.b32.xlu0 %v6743, 40
      %v7628 = vpop.permute.xlu0 %7627
      %7629 = vrot.lane.b32.xlu0 %v6744, 40
      %v7630 = vpop.permute.xlu0 %7629
      %7631 = vrot.lane.b32.xlu0 %v6745, 40
      %v7632 = vpop.permute.xlu0 %7631
      %7633 = vrot.lane.b32.xlu0 %v6746, 40
      %v7634 = vpop.permute.xlu0 %7633
      %7635 = vrot.lane.b32.xlu0 %v6747, 40
      %v7636 = vpop.permute.xlu0 %7635
      %7637 = vrot.lane.b32.xlu0 %v6748, 40
      %v7638 = vpop.permute.xlu0 %7637
      %7639 = vrot.lane.b32.xlu0 %v6749, 40
      %v7640 = vpop.permute.xlu0 %7639
      %7641 = vrot.lane.b32.xlu0 %v6750, 40
      %v7642 = vpop.permute.xlu0 %7641
      %7643 = vrot.lane.b32.xlu0 %v6751, 40
      %v7644 = vpop.permute.xlu0 %7643
      %7645 = vrot.lane.b32.xlu0 %v6752, 40
      %v7646 = vpop.permute.xlu0 %7645
      %7647 = vrot.lane.b32.xlu0 %v6753, 40
      %v7648 = vpop.permute.xlu0 %7647
      %7649 = vrot.lane.b32.xlu0 %v6754, 40
      %v7650 = vpop.permute.xlu0 %7649
      %7715 = vrot.lane.b32.xlu0 %v6755, 64
      %v7716 = vpop.permute.xlu0 %7715
      %7717 = vrot.lane.b32.xlu0 %v6756, 64
      %v7718 = vpop.permute.xlu0 %7717
      %7719 = vrot.lane.b32.xlu0 %v6757, 64
      %v7720 = vpop.permute.xlu0 %7719
      %7721 = vrot.lane.b32.xlu0 %v6758, 64
      %v7722 = vpop.permute.xlu0 %7721
      %7723 = vrot.lane.b32.xlu0 %v6759, 64
      %v7724 = vpop.permute.xlu0 %7723
      %7725 = vrot.lane.b32.xlu0 %v6760, 64
      %v7726 = vpop.permute.xlu0 %7725
      %7727 = vrot.lane.b32.xlu0 %v6761, 64
      %v7728 = vpop.permute.xlu0 %7727
      %7729 = vrot.lane.b32.xlu0 %v6762, 64
      %v7730 = vpop.permute.xlu0 %7729
      %7731 = vrot.lane.b32.xlu0 %v6763, 64
      %v7732 = vpop.permute.xlu0 %7731
      %7733 = vrot.lane.b32.xlu0 %v6764, 64
      %v7734 = vpop.permute.xlu0 %7733
      %7735 = vrot.lane.b32.xlu0 %v6765, 64
      %v7736 = vpop.permute.xlu0 %7735
      %7737 = vrot.lane.b32.xlu0 %v6766, 64
      %v7738 = vpop.permute.xlu0 %7737
      %7739 = vrot.lane.b32.xlu0 %v6767, 64
      %v7740 = vpop.permute.xlu0 %7739
      %7741 = vrot.lane.b32.xlu0 %v6768, 64
      %v7742 = vpop.permute.xlu0 %7741
      %7743 = vrot.lane.b32.xlu0 %v6769, 64
      %v7744 = vpop.permute.xlu0 %7743
      %7745 = vrot.lane.b32.xlu0 %v6770, 64
      %v7746 = vpop.permute.xlu0 %7745
      %7747 = vrot.lane.b32.xlu0 %v6771, 64
      %v7748 = vpop.permute.xlu0 %7747
      %7749 = vrot.lane.b32.xlu0 %v6772, 64
      %v7750 = vpop.permute.xlu0 %7749
      %7751 = vrot.lane.b32.xlu0 %v6773, 64
      %v7752 = vpop.permute.xlu0 %7751
      %7753 = vrot.lane.b32.xlu0 %v6774, 64
      %v7754 = vpop.permute.xlu0 %7753
      %7755 = vrot.lane.b32.xlu0 %v6775, 64
      %v7756 = vpop.permute.xlu0 %7755
      %7757 = vrot.lane.b32.xlu0 %v6776, 64
      %v7758 = vpop.permute.xlu0 %7757
      %7759 = vrot.lane.b32.xlu0 %v6777, 64
      %v7760 = vpop.permute.xlu0 %7759
      %7761 = vrot.lane.b32.xlu0 %v6778, 64
      %v7762 = vpop.permute.xlu0 %7761
      %7763 = vrot.lane.b32.xlu0 %v6779, 64
      %v7764 = vpop.permute.xlu0 %7763
      %7765 = vrot.lane.b32.xlu0 %v6780, 64
      %v7766 = vpop.permute.xlu0 %7765
      %7767 = vrot.lane.b32.xlu0 %v6781, 64
      %v7768 = vpop.permute.xlu0 %7767
      %7769 = vrot.lane.b32.xlu0 %v6782, 64
      %v7770 = vpop.permute.xlu0 %7769
      %7771 = vrot.lane.b32.xlu0 %v6783, 64
      %v7772 = vpop.permute.xlu0 %7771
      %7773 = vrot.lane.b32.xlu0 %v6784, 64
      %v7774 = vpop.permute.xlu0 %7773
      %7775 = vrot.lane.b32.xlu0 %v6785, 64
      %v7776 = vpop.permute.xlu0 %7775
      %7777 = vrot.lane.b32.xlu0 %v6786, 64
      %v7778 = vpop.permute.xlu0 %7777
      %v7811 = vsel %vm420, %v6498, %v6820
      %v7812 = vsel %vm420, %v6499, %v6822
      %v7813 = vsel %vm420, %v6500, %v6824
      %v7814 = vsel %vm420, %v6501, %v6826
      %v7815 = vsel %vm420, %v6502, %v6828
      %v7816 = vsel %vm420, %v6503, %v6830
      %v7817 = vsel %vm420, %v6504, %v6832
      %v7818 = vsel %vm420, %v6505, %v6834
      %v7819 = vsel %vm420, %v6506, %v6836
      %v7820 = vsel %vm420, %v6507, %v6838
      %v7821 = vsel %vm420, %v6508, %v6840
      %v7822 = vsel %vm420, %v6509, %v6842
      %v7823 = vsel %vm420, %v6510, %v6844
      %v7824 = vsel %vm420, %v6511, %v6846
      %v7825 = vsel %vm420, %v6512, %v6848
      %v7826 = vsel %vm420, %v6513, %v6850
      %v7827 = vsel %vm420, %v6514, %v6852
      %v7828 = vsel %vm420, %v6515, %v6854
      %v7829 = vsel %vm420, %v6516, %v6856
      %v7830 = vsel %vm420, %v6517, %v6858
      %v7831 = vsel %vm420, %v6518, %v6860
      %v7832 = vsel %vm420, %v6519, %v6862
      %v7833 = vsel %vm420, %v6520, %v6864
      %v7834 = vsel %vm420, %v6521, %v6866
      %v7835 = vsel %vm420, %v6522, %v6868
      %v7836 = vsel %vm420, %v6523, %v6870
      %v7837 = vsel %vm420, %v6524, %v6872
      %v7838 = vsel %vm420, %v6525, %v6874
      %v7839 = vsel %vm420, %v6526, %v6876
      %v7840 = vsel %vm420, %v6527, %v6878
      %v7841 = vsel %vm420, %v6528, %v6880
      %v7842 = vsel %vm420, %v6529, %v6882
      %v7843 = vsel %vm3619, %v7811, %v6948
      %v7844 = vsel %vm3619, %v7812, %v6950
      %v7845 = vsel %vm3619, %v7813, %v6952
      %v7846 = vsel %vm3619, %v7814, %v6954
      %v7847 = vsel %vm3619, %v7815, %v6956
      %v7848 = vsel %vm3619, %v7816, %v6958
      %v7849 = vsel %vm3619, %v7817, %v6960
      %v7850 = vsel %vm3619, %v7818, %v6962
      %v7851 = vsel %vm3619, %v7819, %v6964
      %v7852 = vsel %vm3619, %v7820, %v6966
      %v7853 = vsel %vm3619, %v7821, %v6968
      %v7854 = vsel %vm3619, %v7822, %v6970
      %v7855 = vsel %vm3619, %v7823, %v6972
      %v7856 = vsel %vm3619, %v7824, %v6974
      %v7857 = vsel %vm3619, %v7825, %v6976
      %v7858 = vsel %vm3619, %v7826, %v6978
      %v7859 = vsel %vm3619, %v7827, %v6980
      %v7860 = vsel %vm3619, %v7828, %v6982
      %v7861 = vsel %vm3619, %v7829, %v6984
      %v7862 = vsel %vm3619, %v7830, %v6986
      %v7863 = vsel %vm3619, %v7831, %v6988
      %v7864 = vsel %vm3619, %v7832, %v6990
      %v7865 = vsel %vm3619, %v7833, %v6992
      %v7866 = vsel %vm3619, %v7834, %v6994
      %v7867 = vsel %vm3619, %v7835, %v6996
      %v7868 = vsel %vm3619, %v7836, %v6998
      %v7869 = vsel %vm3619, %v7837, %v7000
      %v7870 = vsel %vm3619, %v7838, %v7002
      %v7871 = vsel %vm3619, %v7839, %v7004
      %v7872 = vsel %vm3619, %v7840, %v7006
      %v7873 = vsel %vm3619, %v7841, %v7008
      %v7874 = vsel %vm3619, %v7842, %v7010
      %vm7875 = vcmask 588800
      %v7876 = vsel %vm7875, %v7843, %v7076
      %v7877 = vsel %vm7875, %v7844, %v7078
      %v7878 = vsel %vm7875, %v7845, %v7080
      %v7879 = vsel %vm7875, %v7846, %v7082
      %v7880 = vsel %vm7875, %v7847, %v7084
      %v7881 = vsel %vm7875, %v7848, %v7086
      %v7882 = vsel %vm7875, %v7849, %v7088
      %v7883 = vsel %vm7875, %v7850, %v7090
      %v7884 = vsel %vm7875, %v7851, %v7092
      %v7885 = vsel %vm7875, %v7852, %v7094
      %v7886 = vsel %vm7875, %v7853, %v7096
      %v7887 = vsel %vm7875, %v7854, %v7098
      %v7888 = vsel %vm7875, %v7855, %v7100
      %v7889 = vsel %vm7875, %v7856, %v7102
      %v7890 = vsel %vm7875, %v7857, %v7104
      %v7891 = vsel %vm7875, %v7858, %v7106
      %v7892 = vsel %vm7875, %v7859, %v7108
      %v7893 = vsel %vm7875, %v7860, %v7110
      %v7894 = vsel %vm7875, %v7861, %v7112
      %v7895 = vsel %vm7875, %v7862, %v7114
      %v7896 = vsel %vm7875, %v7863, %v7116
      %v7897 = vsel %vm7875, %v7864, %v7118
      %v7898 = vsel %vm7875, %v7865, %v7120
      %v7899 = vsel %vm7875, %v7866, %v7122
      %v7900 = vsel %vm7875, %v7867, %v7124
      %v7901 = vsel %vm7875, %v7868, %v7126
      %v7902 = vsel %vm7875, %v7869, %v7128
      %v7903 = vsel %vm7875, %v7870, %v7130
      %v7904 = vsel %vm7875, %v7871, %v7132
      %v7905 = vsel %vm7875, %v7872, %v7134
      %v7906 = vsel %vm7875, %v7873, %v7136
      %v7907 = vsel %vm7875, %v7874, %v7138
      %v7908 = vsel %vm3718, %v7876, %v7204
      %v7909 = vsel %vm3718, %v7877, %v7206
      %v7910 = vsel %vm3718, %v7878, %v7208
      %v7911 = vsel %vm3718, %v7879, %v7210
      %v7912 = vsel %vm3718, %v7880, %v7212
      %v7913 = vsel %vm3718, %v7881, %v7214
      %v7914 = vsel %vm3718, %v7882, %v7216
      %v7915 = vsel %vm3718, %v7883, %v7218
      %v7916 = vsel %vm3718, %v7884, %v7220
      %v7917 = vsel %vm3718, %v7885, %v7222
      %v7918 = vsel %vm3718, %v7886, %v7224
      %v7919 = vsel %vm3718, %v7887, %v7226
      %v7920 = vsel %vm3718, %v7888, %v7228
      %v7921 = vsel %vm3718, %v7889, %v7230
      %v7922 = vsel %vm3718, %v7890, %v7232
      %v7923 = vsel %vm3718, %v7891, %v7234
      %v7924 = vsel %vm3718, %v7892, %v7236
      %v7925 = vsel %vm3718, %v7893, %v7238
      %v7926 = vsel %vm3718, %v7894, %v7240
      %v7927 = vsel %vm3718, %v7895, %v7242
      %v7928 = vsel %vm3718, %v7896, %v7244
      %v7929 = vsel %vm3718, %v7897, %v7246
      %v7930 = vsel %vm3718, %v7898, %v7248
      %v7931 = vsel %vm3718, %v7899, %v7250
      %v7932 = vsel %vm3718, %v7900, %v7252
      %v7933 = vsel %vm3718, %v7901, %v7254
      %v7934 = vsel %vm3718, %v7902, %v7256
      %v7935 = vsel %vm3718, %v7903, %v7258
      %v7936 = vsel %vm3718, %v7904, %v7260
      %v7937 = vsel %vm3718, %v7905, %v7262
      %v7938 = vsel %vm3718, %v7906, %v7264
      %v7939 = vsel %vm3718, %v7907, %v7266
      %vm7940 = vcmask 982016
      %v7941 = vsel %vm7940, %v7908, %v7332
      %v7942 = vsel %vm7940, %v7909, %v7334
      %v7943 = vsel %vm7940, %v7910, %v7336
      %v7944 = vsel %vm7940, %v7911, %v7338
      %v7945 = vsel %vm7940, %v7912, %v7340
      %v7946 = vsel %vm7940, %v7913, %v7342
      %v7947 = vsel %vm7940, %v7914, %v7344
      %v7948 = vsel %vm7940, %v7915, %v7346
      %v7949 = vsel %vm7940, %v7916, %v7348
      %v7950 = vsel %vm7940, %v7917, %v7350
      %v7951 = vsel %vm7940, %v7918, %v7352
      %v7952 = vsel %vm7940, %v7919, %v7354
      %v7953 = vsel %vm7940, %v7920, %v7356
      %v7954 = vsel %vm7940, %v7921, %v7358
      %v7955 = vsel %vm7940, %v7922, %v7360
      %v7956 = vsel %vm7940, %v7923, %v7362
      %v7957 = vsel %vm7940, %v7924, %v7364
      %v7958 = vsel %vm7940, %v7925, %v7366
      %v7959 = vsel %vm7940, %v7926, %v7368
      %v7960 = vsel %vm7940, %v7927, %v7370
      %v7961 = vsel %vm7940, %v7928, %v7372
      %v7962 = vsel %vm7940, %v7929, %v7374
      %v7963 = vsel %vm7940, %v7930, %v7376
      %v7964 = vsel %vm7940, %v7931, %v7378
      %v7965 = vsel %vm7940, %v7932, %v7380
      %v7966 = vsel %vm7940, %v7933, %v7382
      %v7967 = vsel %vm7940, %v7934, %v7384
      %v7968 = vsel %vm7940, %v7935, %v7386
      %v7969 = vsel %vm7940, %v7936, %v7388
      %v7970 = vsel %vm7940, %v7937, %v7390
      %v7971 = vsel %vm7940, %v7938, %v7392
      %v7972 = vsel %vm7940, %v7939, %v7394
      %v7973 = vsel %vm3554, %v7332, %v7460
      %v7974 = vsel %vm3554, %v7334, %v7462
      %v7975 = vsel %vm3554, %v7336, %v7464
      %v7976 = vsel %vm3554, %v7338, %v7466
      %v7977 = vsel %vm3554, %v7340, %v7468
      %v7978 = vsel %vm3554, %v7342, %v7470
      %v7979 = vsel %vm3554, %v7344, %v7472
      %v7980 = vsel %vm3554, %v7346, %v7474
      %v7981 = vsel %vm3554, %v7348, %v7476
      %v7982 = vsel %vm3554, %v7350, %v7478
      %v7983 = vsel %vm3554, %v7352, %v7480
      %v7984 = vsel %vm3554, %v7354, %v7482
      %v7985 = vsel %vm3554, %v7356, %v7484
      %v7986 = vsel %vm3554, %v7358, %v7486
      %v7987 = vsel %vm3554, %v7360, %v7488
      %v7988 = vsel %vm3554, %v7362, %v7490
      %v7989 = vsel %vm3554, %v7364, %v7492
      %v7990 = vsel %vm3554, %v7366, %v7494
      %v7991 = vsel %vm3554, %v7368, %v7496
      %v7992 = vsel %vm3554, %v7370, %v7498
      %v7993 = vsel %vm3554, %v7372, %v7500
      %v7994 = vsel %vm3554, %v7374, %v7502
      %v7995 = vsel %vm3554, %v7376, %v7504
      %v7996 = vsel %vm3554, %v7378, %v7506
      %v7997 = vsel %vm3554, %v7380, %v7508
      %v7998 = vsel %vm3554, %v7382, %v7510
      %v7999 = vsel %vm3554, %v7384, %v7512
      %v8000 = vsel %vm3554, %v7386, %v7514
      %v8001 = vsel %vm3554, %v7388, %v7516
      %v8002 = vsel %vm3554, %v7390, %v7518
      %v8003 = vsel %vm3554, %v7392, %v7520
      %v8004 = vsel %vm3554, %v7394, %v7522
      %vm8005 = vcmask 326656
      %v8006 = vsel %vm8005, %v7973, %v7588
      %v8007 = vsel %vm8005, %v7974, %v7590
      %v8008 = vsel %vm8005, %v7975, %v7592
      %v8009 = vsel %vm8005, %v7976, %v7594
      %v8010 = vsel %vm8005, %v7977, %v7596
      %v8011 = vsel %vm8005, %v7978, %v7598
      %v8012 = vsel %vm8005, %v7979, %v7600
      %v8013 = vsel %vm8005, %v7980, %v7602
      %v8014 = vsel %vm8005, %v7981, %v7604
      %v8015 = vsel %vm8005, %v7982, %v7606
      %v8016 = vsel %vm8005, %v7983, %v7608
      %v8017 = vsel %vm8005, %v7984, %v7610
      %v8018 = vsel %vm8005, %v7985, %v7612
      %v8019 = vsel %vm8005, %v7986, %v7614
      %v8020 = vsel %vm8005, %v7987, %v7616
      %v8021 = vsel %vm8005, %v7988, %v7618
      %v8022 = vsel %vm8005, %v7989, %v7620
      %v8023 = vsel %vm8005, %v7990, %v7622
      %v8024 = vsel %vm8005, %v7991, %v7624
      %v8025 = vsel %vm8005, %v7992, %v7626
      %v8026 = vsel %vm8005, %v7993, %v7628
      %v8027 = vsel %vm8005, %v7994, %v7630
      %v8028 = vsel %vm8005, %v7995, %v7632
      %v8029 = vsel %vm8005, %v7996, %v7634
      %v8030 = vsel %vm8005, %v7997, %v7636
      %v8031 = vsel %vm8005, %v7998, %v7638
      %v8032 = vsel %vm8005, %v7999, %v7640
      %v8033 = vsel %vm8005, %v8000, %v7642
      %v8034 = vsel %vm8005, %v8001, %v7644
      %v8035 = vsel %vm8005, %v8002, %v7646
      %v8036 = vsel %vm8005, %v8003, %v7648
      %v8037 = vsel %vm8005, %v8004, %v7650
      %v8038 = vsel %vm3652, %v8006, %v7716
      %v8039 = vsel %vm3652, %v8007, %v7718
      %v8040 = vsel %vm3652, %v8008, %v7720
      %v8041 = vsel %vm3652, %v8009, %v7722
      %v8042 = vsel %vm3652, %v8010, %v7724
      %v8043 = vsel %vm3652, %v8011, %v7726
      %v8044 = vsel %vm3652, %v8012, %v7728
      %v8045 = vsel %vm3652, %v8013, %v7730
      %v8046 = vsel %vm3652, %v8014, %v7732
      %v8047 = vsel %vm3652, %v8015, %v7734
      %v8048 = vsel %vm3652, %v8016, %v7736
      %v8049 = vsel %vm3652, %v8017, %v7738
      %v8050 = vsel %vm3652, %v8018, %v7740
      %v8051 = vsel %vm3652, %v8019, %v7742
      %v8052 = vsel %vm3652, %v8020, %v7744
      %v8053 = vsel %vm3652, %v8021, %v7746
      %v8054 = vsel %vm3652, %v8022, %v7748
      %v8055 = vsel %vm3652, %v8023, %v7750
      %v8056 = vsel %vm3652, %v8024, %v7752
      %v8057 = vsel %vm3652, %v8025, %v7754
      %v8058 = vsel %vm3652, %v8026, %v7756
      %v8059 = vsel %vm3652, %v8027, %v7758
      %v8060 = vsel %vm3652, %v8028, %v7760
      %v8061 = vsel %vm3652, %v8029, %v7762
      %v8062 = vsel %vm3652, %v8030, %v7764
      %v8063 = vsel %vm3652, %v8031, %v7766
      %v8064 = vsel %vm3652, %v8032, %v7768
      %v8065 = vsel %vm3652, %v8033, %v7770
      %v8066 = vsel %vm3652, %v8034, %v7772
      %v8067 = vsel %vm3652, %v8035, %v7774
      %v8068 = vsel %vm3652, %v8036, %v7776
      %v8069 = vsel %vm3652, %v8037, %v7778
      %v8070 = vld [vmem:[%s1119 + $0x7] sm:$0xff]
      %v8071 = vld [vmem:[%s1119 + $0xf] sm:$0xff]
      %v8072 = vld [vmem:[%s1119 + $0x27] sm:$0xff]
      %v8073 = vld [vmem:[%s1119 + $0x2f] sm:$0xff]
      %v8074 = vld [vmem:[%s1119 + $0x47] sm:$0xff]
      %v8075 = vld [vmem:[%s1119 + $0x4f] sm:$0xff]
      %v8076 = vld [vmem:[%s1119 + $0x67] sm:$0xff]
      %v8077 = vld [vmem:[%s1119 + $0x6f] sm:$0xff]
      %v8078 = vld [vmem:[%s1119 + $0x87] sm:$0xff]
      %v8079 = vld [vmem:[%s1119 + $0x8f] sm:$0xff]
      %v8080 = vld [vmem:[%s1119 + $0xa7] sm:$0xff]
      %v8081 = vld [vmem:[%s1119 + $0xaf] sm:$0xff]
      %v8082 = vld [vmem:[%s1119 + $0xc7] sm:$0xff]
      %v8083 = vld [vmem:[%s1119 + $0xcf] sm:$0xff]
      %v8084 = vld [vmem:[%s1119 + $0xe7] sm:$0xff]
      %v8085 = vld [vmem:[%s1119 + $0xef] sm:$0xff]
      %v8086 = vld [vmem:[%s1119 + $0x107] sm:$0xff]
      %v8087 = vld [vmem:[%s1119 + $0x10f] sm:$0xff]
      %v8088 = vld [vmem:[%s1119 + $0x127] sm:$0xff]
      %v8089 = vld [vmem:[%s1119 + $0x12f] sm:$0xff]
      %v8090 = vld [vmem:[%s1119 + $0x147] sm:$0xff]
      %v8091 = vld [vmem:[%s1119 + $0x14f] sm:$0xff]
      %v8092 = vld [vmem:[%s1119 + $0x167] sm:$0xff]
      %v8093 = vld [vmem:[%s1119 + $0x16f] sm:$0xff]
      %v8094 = vld [vmem:[%s1119 + $0x187] sm:$0xff]
      %v8095 = vld [vmem:[%s1119 + $0x18f] sm:$0xff]
      %v8096 = vld [vmem:[%s1119 + $0x1a7] sm:$0xff]
      %v8097 = vld [vmem:[%s1119 + $0x1af] sm:$0xff]
      %v8098 = vld [vmem:[%s1119 + $0x1c7] sm:$0xff]
      %v8099 = vld [vmem:[%s1119 + $0x1cf] sm:$0xff]
      %v8100 = vld [vmem:[%s1119 + $0x1e7] sm:$0xff]
      %v8101 = vld [vmem:[%s1119 + $0x1ef] sm:$0xff]
      %v8102 = vld [vmem:[%s1119 + $0x207] sm:$0xff]
      %v8103 = vld [vmem:[%s1119 + $0x20f] sm:$0xff]
      %v8104 = vld [vmem:[%s1119 + $0x227] sm:$0xff]
      %v8105 = vld [vmem:[%s1119 + $0x22f] sm:$0xff]
      %v8106 = vld [vmem:[%s1119 + $0x8] sm:$0xff]
      %v8107 = vld [vmem:[%s1119 + $0x10] sm:$0xff]
      %v8108 = vld [vmem:[%s1119 + $0x28] sm:$0xff]
      %v8109 = vld [vmem:[%s1119 + $0x30] sm:$0xff]
      %v8110 = vld [vmem:[%s1119 + $0x48] sm:$0xff]
      %v8111 = vld [vmem:[%s1119 + $0x50] sm:$0xff]
      %v8112 = vld [vmem:[%s1119 + $0x68] sm:$0xff]
      %v8113 = vld [vmem:[%s1119 + $0x70] sm:$0xff]
      %v8114 = vld [vmem:[%s1119 + $0x88] sm:$0xff]
      %v8115 = vld [vmem:[%s1119 + $0x90] sm:$0xff]
      %v8116 = vld [vmem:[%s1119 + $0xa8] sm:$0xff]
      %v8117 = vld [vmem:[%s1119 + $0xb0] sm:$0xff]
      %v8118 = vld [vmem:[%s1119 + $0xc8] sm:$0xff]
      %v8119 = vld [vmem:[%s1119 + $0xd0] sm:$0xff]
      %v8120 = vld [vmem:[%s1119 + $0xe8] sm:$0xff]
      %v8121 = vld [vmem:[%s1119 + $0xf0] sm:$0xff]
      %v8122 = vld [vmem:[%s1119 + $0x108] sm:$0xff]
      %v8123 = vld [vmem:[%s1119 + $0x110] sm:$0xff]
      %v8124 = vld [vmem:[%s1119 + $0x128] sm:$0xff]
      %v8125 = vld [vmem:[%s1119 + $0x130] sm:$0xff]
      %v8126 = vld [vmem:[%s1119 + $0x148] sm:$0xff]
      %v8127 = vld [vmem:[%s1119 + $0x150] sm:$0xff]
      %v8128 = vld [vmem:[%s1119 + $0x168] sm:$0xff]
      %v8129 = vld [vmem:[%s1119 + $0x170] sm:$0xff]
      %v8130 = vld [vmem:[%s1119 + $0x188] sm:$0xff]
      %v8131 = vld [vmem:[%s1119 + $0x190] sm:$0xff]
      %v8132 = vld [vmem:[%s1119 + $0x1a8] sm:$0xff]
      %v8133 = vld [vmem:[%s1119 + $0x1b0] sm:$0xff]
      %v8134 = vld [vmem:[%s1119 + $0x1c8] sm:$0xff]
      %v8135 = vld [vmem:[%s1119 + $0x1d0] sm:$0xff]
      %v8136 = vld [vmem:[%s1119 + $0x1e8] sm:$0xff]
      %v8137 = vld [vmem:[%s1119 + $0x1f0] sm:$0xff]
      %v8138 = vld [vmem:[%s1119 + $0x208] sm:$0xff]
      %v8139 = vld [vmem:[%s1119 + $0x210] sm:$0xff]
      %v8140 = vld [vmem:[%s1119 + $0x228] sm:$0xff]
      %v8141 = vld [vmem:[%s1119 + $0x230] sm:$0xff]
      %v8142 = vadd.f32 %v8070, %v8106
      %v8143 = vadd.f32 %v8071, %v8107
      %v8144 = vadd.f32 %v8072, %v8108
      %v8145 = vadd.f32 %v8073, %v8109
      %v8146 = vadd.f32 %v8074, %v8110
      %v8147 = vadd.f32 %v8075, %v8111
      %v8148 = vadd.f32 %v8076, %v8112
      %v8149 = vadd.f32 %v8077, %v8113
      %v8150 = vadd.f32 %v8078, %v8114
      %v8151 = vadd.f32 %v8079, %v8115
      %v8152 = vadd.f32 %v8080, %v8116
      %v8153 = vadd.f32 %v8081, %v8117
      %v8154 = vadd.f32 %v8082, %v8118
      %v8155 = vadd.f32 %v8083, %v8119
      %v8156 = vadd.f32 %v8084, %v8120
      %v8157 = vadd.f32 %v8085, %v8121
      %v8158 = vadd.f32 %v8086, %v8122
      %v8159 = vadd.f32 %v8087, %v8123
      %v8160 = vadd.f32 %v8088, %v8124
      %v8161 = vadd.f32 %v8089, %v8125
      %v8162 = vadd.f32 %v8090, %v8126
      %v8163 = vadd.f32 %v8091, %v8127
      %v8164 = vadd.f32 %v8092, %v8128
      %v8165 = vadd.f32 %v8093, %v8129
      %v8166 = vadd.f32 %v8094, %v8130
      %v8167 = vadd.f32 %v8095, %v8131
      %v8168 = vadd.f32 %v8096, %v8132
      %v8169 = vadd.f32 %v8097, %v8133
      %v8170 = vadd.f32 %v8098, %v8134
      %v8171 = vadd.f32 %v8099, %v8135
      %v8172 = vadd.f32 %v8100, %v8136
      %v8173 = vadd.f32 %v8101, %v8137
      %v8174 = vadd.f32 %v8102, %v8138
      %v8175 = vadd.f32 %v8103, %v8139
      %v8176 = vadd.f32 %v8104, %v8140
      %v8177 = vadd.f32 %v8105, %v8141
      %v8178 = vld [vmem:[%s1119 + $0x9] sm:$0xff]
      %v8179 = vld [vmem:[%s1119 + $0x11] sm:$0xff]
      %v8180 = vld [vmem:[%s1119 + $0x29] sm:$0xff]
      %v8181 = vld [vmem:[%s1119 + $0x31] sm:$0xff]
      %v8182 = vld [vmem:[%s1119 + $0x49] sm:$0xff]
      %v8183 = vld [vmem:[%s1119 + $0x51] sm:$0xff]
      %v8184 = vld [vmem:[%s1119 + $0x69] sm:$0xff]
      %v8185 = vld [vmem:[%s1119 + $0x71] sm:$0xff]
      %v8186 = vld [vmem:[%s1119 + $0x89] sm:$0xff]
      %v8187 = vld [vmem:[%s1119 + $0x91] sm:$0xff]
      %v8188 = vld [vmem:[%s1119 + $0xa9] sm:$0xff]
      %v8189 = vld [vmem:[%s1119 + $0xb1] sm:$0xff]
      %v8190 = vld [vmem:[%s1119 + $0xc9] sm:$0xff]
      %v8191 = vld [vmem:[%s1119 + $0xd1] sm:$0xff]
      %v8192 = vld [vmem:[%s1119 + $0xe9] sm:$0xff]
      %v8193 = vld [vmem:[%s1119 + $0xf1] sm:$0xff]
      %v8194 = vld [vmem:[%s1119 + $0x109] sm:$0xff]
      %v8195 = vld [vmem:[%s1119 + $0x111] sm:$0xff]
      %v8196 = vld [vmem:[%s1119 + $0x129] sm:$0xff]
      %v8197 = vld [vmem:[%s1119 + $0x131] sm:$0xff]
      %v8198 = vld [vmem:[%s1119 + $0x149] sm:$0xff]
      %v8199 = vld [vmem:[%s1119 + $0x151] sm:$0xff]
      %v8200 = vld [vmem:[%s1119 + $0x169] sm:$0xff]
      %v8201 = vld [vmem:[%s1119 + $0x171] sm:$0xff]
      %v8202 = vld [vmem:[%s1119 + $0x189] sm:$0xff]
      %v8203 = vld [vmem:[%s1119 + $0x191] sm:$0xff]
      %v8204 = vld [vmem:[%s1119 + $0x1a9] sm:$0xff]
      %v8205 = vld [vmem:[%s1119 + $0x1b1] sm:$0xff]
      %v8206 = vld [vmem:[%s1119 + $0x1c9] sm:$0xff]
      %v8207 = vld [vmem:[%s1119 + $0x1d1] sm:$0xff]
      %v8208 = vld [vmem:[%s1119 + $0x1e9] sm:$0xff]
      %v8209 = vld [vmem:[%s1119 + $0x1f1] sm:$0xff]
      %v8210 = vld [vmem:[%s1119 + $0x209] sm:$0xff]
      %v8211 = vld [vmem:[%s1119 + $0x211] sm:$0xff]
      %v8212 = vld [vmem:[%s1119 + $0x229] sm:$0xff]
      %v8213 = vld [vmem:[%s1119 + $0x231] sm:$0xff]
      %v8214 = vadd.f32 %v8142, %v8178
      %v8215 = vadd.f32 %v8143, %v8179
      %v8216 = vadd.f32 %v8144, %v8180
      %v8217 = vadd.f32 %v8145, %v8181
      %v8218 = vadd.f32 %v8146, %v8182
      %v8219 = vadd.f32 %v8147, %v8183
      %v8220 = vadd.f32 %v8148, %v8184
      %v8221 = vadd.f32 %v8149, %v8185
      %v8222 = vadd.f32 %v8150, %v8186
      %v8223 = vadd.f32 %v8151, %v8187
      %v8224 = vadd.f32 %v8152, %v8188
      %v8225 = vadd.f32 %v8153, %v8189
      %v8226 = vadd.f32 %v8154, %v8190
      %v8227 = vadd.f32 %v8155, %v8191
      %v8228 = vadd.f32 %v8156, %v8192
      %v8229 = vadd.f32 %v8157, %v8193
      %v8230 = vadd.f32 %v8158, %v8194
      %v8231 = vadd.f32 %v8159, %v8195
      %v8232 = vadd.f32 %v8160, %v8196
      %v8233 = vadd.f32 %v8161, %v8197
      %v8234 = vadd.f32 %v8162, %v8198
      %v8235 = vadd.f32 %v8163, %v8199
      %v8236 = vadd.f32 %v8164, %v8200
      %v8237 = vadd.f32 %v8165, %v8201
      %v8238 = vadd.f32 %v8166, %v8202
      %v8239 = vadd.f32 %v8167, %v8203
      %v8240 = vadd.f32 %v8168, %v8204
      %v8241 = vadd.f32 %v8169, %v8205
      %v8242 = vadd.f32 %v8170, %v8206
      %v8243 = vadd.f32 %v8171, %v8207
      %v8244 = vadd.f32 %v8172, %v8208
      %v8245 = vadd.f32 %v8173, %v8209
      %v8246 = vadd.f32 %v8174, %v8210
      %v8247 = vadd.f32 %v8175, %v8211
      %v8248 = vadd.f32 %v8176, %v8212
      %v8249 = vadd.f32 %v8177, %v8213
      %v8250 = vadd.f32 %v8214, %v8216
      %v8251 = vadd.f32 %v8215, %v8217
      %v8252 = vadd.f32 %v8216, %v8218
      %v8253 = vadd.f32 %v8217, %v8219
      %v8254 = vadd.f32 %v8218, %v8220
      %v8255 = vadd.f32 %v8219, %v8221
      %v8256 = vadd.f32 %v8220, %v8222
      %v8257 = vadd.f32 %v8221, %v8223
      %v8258 = vadd.f32 %v8222, %v8224
      %v8259 = vadd.f32 %v8223, %v8225
      %v8260 = vadd.f32 %v8224, %v8226
      %v8261 = vadd.f32 %v8225, %v8227
      %v8262 = vadd.f32 %v8226, %v8228
      %v8263 = vadd.f32 %v8227, %v8229
      %v8264 = vadd.f32 %v8228, %v8230
      %v8265 = vadd.f32 %v8229, %v8231
      %v8266 = vadd.f32 %v8230, %v8232
      %v8267 = vadd.f32 %v8231, %v8233
      %v8268 = vadd.f32 %v8232, %v8234
      %v8269 = vadd.f32 %v8233, %v8235
      %v8270 = vadd.f32 %v8234, %v8236
      %v8271 = vadd.f32 %v8235, %v8237
      %v8272 = vadd.f32 %v8236, %v8238
      %v8273 = vadd.f32 %v8237, %v8239
      %v8274 = vadd.f32 %v8238, %v8240
      %v8275 = vadd.f32 %v8239, %v8241
      %v8276 = vadd.f32 %v8240, %v8242
      %v8277 = vadd.f32 %v8241, %v8243
      %v8278 = vadd.f32 %v8242, %v8244
      %v8279 = vadd.f32 %v8243, %v8245
      %v8280 = vadd.f32 %v8244, %v8246
      %v8281 = vadd.f32 %v8245, %v8247
      %v8282 = vadd.f32 %v8250, %v8218
      %v8283 = vadd.f32 %v8251, %v8219
      %v8284 = vadd.f32 %v8252, %v8220
      %v8285 = vadd.f32 %v8253, %v8221
      %v8286 = vadd.f32 %v8254, %v8222
      %v8287 = vadd.f32 %v8255, %v8223
      %v8288 = vadd.f32 %v8256, %v8224
      %v8289 = vadd.f32 %v8257, %v8225
      %v8290 = vadd.f32 %v8258, %v8226
      %v8291 = vadd.f32 %v8259, %v8227
      %v8292 = vadd.f32 %v8260, %v8228
      %v8293 = vadd.f32 %v8261, %v8229
      %v8294 = vadd.f32 %v8262, %v8230
      %v8295 = vadd.f32 %v8263, %v8231
      %v8296 = vadd.f32 %v8264, %v8232
      %v8297 = vadd.f32 %v8265, %v8233
      %v8298 = vadd.f32 %v8266, %v8234
      %v8299 = vadd.f32 %v8267, %v8235
      %v8300 = vadd.f32 %v8268, %v8236
      %v8301 = vadd.f32 %v8269, %v8237
      %v8302 = vadd.f32 %v8270, %v8238
      %v8303 = vadd.f32 %v8271, %v8239
      %v8304 = vadd.f32 %v8272, %v8240
      %v8305 = vadd.f32 %v8273, %v8241
      %v8306 = vadd.f32 %v8274, %v8242
      %v8307 = vadd.f32 %v8275, %v8243
      %v8308 = vadd.f32 %v8276, %v8244
      %v8309 = vadd.f32 %v8277, %v8245
      %v8310 = vadd.f32 %v8278, %v8246
      %v8311 = vadd.f32 %v8279, %v8247
      %v8312 = vadd.f32 %v8280, %v8248
      %v8313 = vadd.f32 %v8281, %v8249
      %8346 = vrot.lane.b32.xlu0 %v8282, 100
      %v8347 = vpop.permute.xlu0 %8346
      %8348 = vrot.lane.b32.xlu0 %v8283, 100
      %v8349 = vpop.permute.xlu0 %8348
      %8350 = vrot.lane.b32.xlu0 %v8284, 100
      %v8351 = vpop.permute.xlu0 %8350
      %8352 = vrot.lane.b32.xlu0 %v8285, 100
      %v8353 = vpop.permute.xlu0 %8352
      %8354 = vrot.lane.b32.xlu0 %v8286, 100
      %v8355 = vpop.permute.xlu0 %8354
      %8356 = vrot.lane.b32.xlu0 %v8287, 100
      %v8357 = vpop.permute.xlu0 %8356
      %8358 = vrot.lane.b32.xlu0 %v8288, 100
      %v8359 = vpop.permute.xlu0 %8358
      %8360 = vrot.lane.b32.xlu0 %v8289, 100
      %v8361 = vpop.permute.xlu0 %8360
      %8362 = vrot.lane.b32.xlu0 %v8290, 100
      %v8363 = vpop.permute.xlu0 %8362
      %8364 = vrot.lane.b32.xlu0 %v8291, 100
      %v8365 = vpop.permute.xlu0 %8364
      %8366 = vrot.lane.b32.xlu0 %v8292, 100
      %v8367 = vpop.permute.xlu0 %8366
      %8368 = vrot.lane.b32.xlu0 %v8293, 100
      %v8369 = vpop.permute.xlu0 %8368
      %8370 = vrot.lane.b32.xlu0 %v8294, 100
      %v8371 = vpop.permute.xlu0 %8370
      %8372 = vrot.lane.b32.xlu0 %v8295, 100
      %v8373 = vpop.permute.xlu0 %8372
      %8374 = vrot.lane.b32.xlu0 %v8296, 100
      %v8375 = vpop.permute.xlu0 %8374
      %8376 = vrot.lane.b32.xlu0 %v8297, 100
      %v8377 = vpop.permute.xlu0 %8376
      %8378 = vrot.lane.b32.xlu0 %v8298, 100
      %v8379 = vpop.permute.xlu0 %8378
      %8380 = vrot.lane.b32.xlu0 %v8299, 100
      %v8381 = vpop.permute.xlu0 %8380
      %8382 = vrot.lane.b32.xlu0 %v8300, 100
      %v8383 = vpop.permute.xlu0 %8382
      %8384 = vrot.lane.b32.xlu0 %v8301, 100
      %v8385 = vpop.permute.xlu0 %8384
      %8386 = vrot.lane.b32.xlu0 %v8302, 100
      %v8387 = vpop.permute.xlu0 %8386
      %8388 = vrot.lane.b32.xlu0 %v8303, 100
      %v8389 = vpop.permute.xlu0 %8388
      %8390 = vrot.lane.b32.xlu0 %v8304, 100
      %v8391 = vpop.permute.xlu0 %8390
      %8392 = vrot.lane.b32.xlu0 %v8305, 100
      %v8393 = vpop.permute.xlu0 %8392
      %8394 = vrot.lane.b32.xlu0 %v8306, 100
      %v8395 = vpop.permute.xlu0 %8394
      %8396 = vrot.lane.b32.xlu0 %v8307, 100
      %v8397 = vpop.permute.xlu0 %8396
      %8398 = vrot.lane.b32.xlu0 %v8308, 100
      %v8399 = vpop.permute.xlu0 %8398
      %8400 = vrot.lane.b32.xlu0 %v8309, 100
      %v8401 = vpop.permute.xlu0 %8400
      %8402 = vrot.lane.b32.xlu0 %v8310, 100
      %v8403 = vpop.permute.xlu0 %8402
      %8404 = vrot.lane.b32.xlu0 %v8311, 100
      %v8405 = vpop.permute.xlu0 %8404
      %8406 = vrot.lane.b32.xlu0 %v8312, 100
      %v8407 = vpop.permute.xlu0 %8406
      %8408 = vrot.lane.b32.xlu0 %v8313, 100
      %v8409 = vpop.permute.xlu0 %8408
      %v8442 = vsel %vm472, %v336, %v8347
      %v8443 = vsel %vm472, %v337, %v8349
      %v8444 = vsel %vm472, %v338, %v8351
      %v8445 = vsel %vm472, %v339, %v8353
      %v8446 = vsel %vm472, %v340, %v8355
      %v8447 = vsel %vm472, %v341, %v8357
      %v8448 = vsel %vm472, %v342, %v8359
      %v8449 = vsel %vm472, %v343, %v8361
      %v8450 = vsel %vm472, %v344, %v8363
      %v8451 = vsel %vm472, %v345, %v8365
      %v8452 = vsel %vm472, %v346, %v8367
      %v8453 = vsel %vm472, %v347, %v8369
      %v8454 = vsel %vm472, %v348, %v8371
      %v8455 = vsel %vm472, %v349, %v8373
      %v8456 = vsel %vm472, %v350, %v8375
      %v8457 = vsel %vm472, %v351, %v8377
      %v8458 = vsel %vm472, %v352, %v8379
      %v8459 = vsel %vm472, %v353, %v8381
      %v8460 = vsel %vm472, %v354, %v8383
      %v8461 = vsel %vm472, %v355, %v8385
      %v8462 = vsel %vm472, %v356, %v8387
      %v8463 = vsel %vm472, %v357, %v8389
      %v8464 = vsel %vm472, %v358, %v8391
      %v8465 = vsel %vm472, %v359, %v8393
      %v8466 = vsel %vm472, %v360, %v8395
      %v8467 = vsel %vm472, %v361, %v8397
      %v8468 = vsel %vm472, %v362, %v8399
      %v8469 = vsel %vm472, %v363, %v8401
      %v8470 = vsel %vm472, %v364, %v8403
      %v8471 = vsel %vm472, %v365, %v8405
      %v8472 = vsel %vm472, %v366, %v8407
      %v8473 = vsel %vm472, %v367, %v8409
      %v8474 = vld [vmem:[%s8] sm:$0x1]
      %v8475 = vld [vmem:[%s7] sm:$0xff]
      %vm8476 = vcmask 64512
      %v8478 = vsel %vm8476, %v8442, 0
      %v8481 = vsel %vm8476, %v8443, 0
      %v8484 = vsel %vm8476, %v8444, 0
      %v8487 = vsel %vm8476, %v8445, 0
      %v8490 = vsel %vm8476, %v8446, 0
      %v8493 = vsel %vm8476, %v8447, 0
      %v8496 = vsel %vm8476, %v8448, 0
      %v8499 = vsel %vm8476, %v8449, 0
      %v8502 = vsel %vm8476, %v8450, 0
      %v8505 = vsel %vm8476, %v8451, 0
      %v8508 = vsel %vm8476, %v8452, 0
      %v8511 = vsel %vm8476, %v8453, 0
      %v8514 = vsel %vm8476, %v8454, 0
      %v8517 = vsel %vm8476, %v8455, 0
      %v8520 = vsel %vm8476, %v8456, 0
      %v8523 = vsel %vm8476, %v8457, 0
      %v8526 = vsel %vm8476, %v8458, 0
      %v8529 = vsel %vm8476, %v8459, 0
      %v8532 = vsel %vm8476, %v8460, 0
      %v8535 = vsel %vm8476, %v8461, 0
      %v8538 = vsel %vm8476, %v8462, 0
      %v8541 = vsel %vm8476, %v8463, 0
      %v8544 = vsel %vm8476, %v8464, 0
      %v8547 = vsel %vm8476, %v8465, 0
      %v8550 = vsel %vm8476, %v8466, 0
      %v8553 = vsel %vm8476, %v8467, 0
      %v8556 = vsel %vm8476, %v8468, 0
      %v8559 = vsel %vm8476, %v8469, 0
      %v8562 = vsel %vm8476, %v8470, 0
      %v8565 = vsel %vm8476, %v8471, 0
      %v8568 = vsel %vm8476, %v8472, 0
      %v8571 = vsel %vm8476, %v8473, 0
      %8573 = vmatprep.subr.mxu0 0.0
      %8574 = vmatpush1.msra.mxu0 %v8475
      %8575 = vmatprep.subr.mxu0 0.0
      %8576 = vmatpush1.msra.mxu0 0.0
      %8577 = vmatprep.subr.mxu0 0.0
      %8578 = vmatpush1.msra.mxu0 0.0
      %8579 = vmatprep.subr.mxu0 0.0
      %8580 = vmatpush1.msra.mxu0 0.0
      %8581 = vmatprep.subr.mxu0 0.0
      %8582 = vmatpush1.msra.mxu0 0.0
      %8583 = vmatprep.subr.mxu0 0.0
      %8584 = vmatpush1.msra.mxu0 0.0
      %8585 = vmatprep.subr.mxu0 0.0
      %8586 = vmatpush1.msra.mxu0 0.0
      %8587 = vmatprep.subr.mxu0 0.0
      %8588 = vmatpush1.msra.mxu0 0.0
      %8589 = vmatprep.subr.mxu0 0.0
      %8590 = vmatpush1.msra.mxu0 0.0
      %8591 = vmatprep.subr.mxu0 0.0
      %8592 = vmatpush1.msra.mxu0 0.0
      %8593 = vmatprep.subr.mxu0 0.0
      %8594 = vmatpush1.msra.mxu0 0.0
      %8595 = vmatprep.subr.mxu0 0.0
      %8596 = vmatpush1.msra.mxu0 0.0
      %8597 = vmatprep.subr.mxu0 0.0
      %8598 = vmatpush1.msra.mxu0 0.0
      %8599 = vmatprep.subr.mxu0 0.0
      %8600 = vmatpush1.msra.mxu0 0.0
      %8601 = vmatprep.subr.mxu0 0.0
      %8602 = vmatpush1.msra.mxu0 0.0
      %8603 = vmatprep.subr.mxu0 0.0
      %8604 = vmatpush1.msra.mxu0 0.0
      %8605 = vmatprep.subr.mxu0 0.0
      %8606 = vmatpush1.msra.mxu0 0.0
      %8607 = vmatprep.subr.mxu0 0.0
      %8608 = vmatpush1.msra.mxu0 0.0
      %8609 = vmatprep.subr.mxu0 0.0
      %8610 = vmatpush1.msra.mxu0 0.0
      %8611 = vmatprep.subr.mxu0 0.0
      %8612 = vmatpush1.msra.mxu0 0.0
      %8613 = vmatprep.subr.mxu0 0.0
      %8614 = vmatpush1.msra.mxu0 0.0
      %8615 = vmatprep.subr.mxu0 0.0
      %8616 = vmatpush1.msra.mxu0 0.0
      %8617 = vmatprep.subr.mxu0 0.0
      %8618 = vmatpush1.msra.mxu0 0.0
      %8619 = vmatprep.subr.mxu0 0.0
      %8620 = vmatpush1.msra.mxu0 0.0
      %8621 = vmatprep.subr.mxu0 0.0
      %8622 = vmatpush1.msra.mxu0 0.0
      %8623 = vmatprep.subr.mxu0 0.0
      %8624 = vmatpush1.msra.mxu0 0.0
      %8625 = vmatprep.subr.mxu0 0.0
      %8626 = vmatpush1.msra.mxu0 0.0
      %8627 = vmatprep.subr.mxu0 0.0
      %8628 = vmatpush1.msra.mxu0 0.0
      %8629 = vmatprep.subr.mxu0 0.0
      %8630 = vmatpush1.msra.mxu0 0.0
      %8631 = vmatprep.subr.mxu0 0.0
      %8632 = vmatpush1.msra.mxu0 0.0
      %8633 = vmatprep.subr.mxu0 0.0
      %8634 = vmatpush1.msra.mxu0 0.0
      %8635 = vmatprep.subr.mxu0 0.0
      %8636 = vmatpush1.msra.mxu0 0.0
      %8637 = vmatprep.mubr.f32.mxu0 0.0
      %8638 = vmatmul.mubr.f32.gmra.mrb[0].mxu0 %v8478
      %v8639 = vpop.f32.mrb[0].mxu0
      %v8640 = vadd.f32 0.0, %v8639
      %v8641 = vpop.f32.mrb[0].mxu0
      %8642 = vmatprep.mubr.f32.mxu0 0.0
      %8643 = vmatmul.mubr.f32.gmra.mrb[0].mxu0 %v8481
      %v8644 = vpop.f32.mrb[0].mxu0
      %v8645 = vadd.f32 0.0, %v8644
      %v8646 = vpop.f32.mrb[0].mxu0
      %8647 = vmatprep.mubr.f32.mxu0 0.0
      %8648 = vmatmul.mubr.f32.gmra.mrb[0].mxu0 %v8484
      %v8649 = vpop.f32.mrb[0].mxu0
      %v8650 = vadd.f32 0.0, %v8649
      %v8651 = vpop.f32.mrb[0].mxu0
      %8652 = vmatprep.mubr.f32.mxu0 0.0
      %8653 = vmatmul.mubr.f32.gmra.mrb[0].mxu0 %v8487
      %v8654 = vpop.f32.mrb[0].mxu0
      %v8655 = vadd.f32 0.0, %v8654
      %v8656 = vpop.f32.mrb[0].mxu0
      %8657 = vmatprep.mubr.f32.mxu0 0.0
      %8658 = vmatmul.mubr.f32.gmra.mrb[0].mxu0 %v8490
      %v8659 = vpop.f32.mrb[0].mxu0
      %v8660 = vadd.f32 0.0, %v8659
      %v8661 = vpop.f32.mrb[0].mxu0
      %8662 = vmatprep.mubr.f32.mxu0 0.0
      %8663 = vmatmul.mubr.f32.gmra.mrb[0].mxu0 %v8493
      %v8664 = vpop.f32.mrb[0].mxu0
      %v8665 = vadd.f32 0.0, %v8664
      %v8666 = vpop.f32.mrb[0].mxu0
      %8667 = vmatprep.mubr.f32.mxu0 0.0
      %8668 = vmatmul.mubr.f32.gmra.mrb[0].mxu0 %v8496
      %v8669 = vpop.f32.mrb[0].mxu0
      %v8670 = vadd.f32 0.0, %v8669
      %v8671 = vpop.f32.mrb[0].mxu0
      %8672 = vmatprep.mubr.f32.mxu0 0.0
      %8673 = vmatmul.mubr.f32.gmra.mrb[0].mxu0 %v8499
      %v8674 = vpop.f32.mrb[0].mxu0
      %v8675 = vadd.f32 0.0, %v8674
      %v8676 = vpop.f32.mrb[0].mxu0
      %8677 = vmatprep.mubr.f32.mxu0 0.0
      %8678 = vmatmul.mubr.f32.gmra.mrb[0].mxu0 %v8502
      %v8679 = vpop.f32.mrb[0].mxu0
      %v8680 = vadd.f32 0.0, %v8679
      %v8681 = vpop.f32.mrb[0].mxu0
      %8682 = vmatprep.mubr.f32.mxu0 0.0
      %8683 = vmatmul.mubr.f32.gmra.mrb[0].mxu0 %v8505
      %v8684 = vpop.f32.mrb[0].mxu0
      %v8685 = vadd.f32 0.0, %v8684
      %v8686 = vpop.f32.mrb[0].mxu0
      %8687 = vmatprep.mubr.f32.mxu0 0.0
      %8688 = vmatmul.mubr.f32.gmra.mrb[0].mxu0 %v8508
      %v8689 = vpop.f32.mrb[0].mxu0
      %v8690 = vadd.f32 0.0, %v8689
      %v8691 = vpop.f32.mrb[0].mxu0
      %8692 = vmatprep.mubr.f32.mxu0 0.0
      %8693 = vmatmul.mubr.f32.gmra.mrb[0].mxu0 %v8511
      %v8694 = vpop.f32.mrb[0].mxu0
      %v8695 = vadd.f32 0.0, %v8694
      %v8696 = vpop.f32.mrb[0].mxu0
      %8697 = vmatprep.mubr.f32.mxu0 0.0
      %8698 = vmatmul.mubr.f32.gmra.mrb[0].mxu0 %v8514
      %v8699 = vpop.f32.mrb[0].mxu0
      %v8700 = vadd.f32 0.0, %v8699
      %v8701 = vpop.f32.mrb[0].mxu0
      %8702 = vmatprep.mubr.f32.mxu0 0.0
      %8703 = vmatmul.mubr.f32.gmra.mrb[0].mxu0 %v8517
      %v8704 = vpop.f32.mrb[0].mxu0
      %v8705 = vadd.f32 0.0, %v8704
      %v8706 = vpop.f32.mrb[0].mxu0
      %8707 = vmatprep.mubr.f32.mxu0 0.0
      %8708 = vmatmul.mubr.f32.gmra.mrb[0].mxu0 %v8520
      %v8709 = vpop.f32.mrb[0].mxu0
      %v8710 = vadd.f32 0.0, %v8709
      %v8711 = vpop.f32.mrb[0].mxu0
      %8712 = vmatprep.mubr.f32.mxu0 0.0
      %8713 = vmatmul.mubr.f32.gmra.mrb[0].mxu0 %v8523
      %v8714 = vpop.f32.mrb[0].mxu0
      %v8715 = vadd.f32 0.0, %v8714
      %v8716 = vpop.f32.mrb[0].mxu0
      %8717 = vmatprep.mubr.f32.mxu0 0.0
      %8718 = vmatmul.mubr.f32.gmra.mrb[0].mxu0 %v8526
      %v8719 = vpop.f32.mrb[0].mxu0
      %v8720 = vadd.f32 0.0, %v8719
      %v8721 = vpop.f32.mrb[0].mxu0
      %8722 = vmatprep.mubr.f32.mxu0 0.0
      %8723 = vmatmul.mubr.f32.gmra.mrb[0].mxu0 %v8529
      %v8724 = vpop.f32.mrb[0].mxu0
      %v8725 = vadd.f32 0.0, %v8724
      %v8726 = vpop.f32.mrb[0].mxu0
      %8727 = vmatprep.mubr.f32.mxu0 0.0
      %8728 = vmatmul.mubr.f32.gmra.mrb[0].mxu0 %v8532
      %v8729 = vpop.f32.mrb[0].mxu0
      %v8730 = vadd.f32 0.0, %v8729
      %v8731 = vpop.f32.mrb[0].mxu0
      %8732 = vmatprep.mubr.f32.mxu0 0.0
      %8733 = vmatmul.mubr.f32.gmra.mrb[0].mxu0 %v8535
      %v8734 = vpop.f32.mrb[0].mxu0
      %v8735 = vadd.f32 0.0, %v8734
      %v8736 = vpop.f32.mrb[0].mxu0
      %8737 = vmatprep.mubr.f32.mxu0 0.0
      %8738 = vmatmul.mubr.f32.gmra.mrb[0].mxu0 %v8538
      %v8739 = vpop.f32.mrb[0].mxu0
      %v8740 = vadd.f32 0.0, %v8739
      %v8741 = vpop.f32.mrb[0].mxu0
      %8742 = vmatprep.mubr.f32.mxu0 0.0
      %8743 = vmatmul.mubr.f32.gmra.mrb[0].mxu0 %v8541
      %v8744 = vpop.f32.mrb[0].mxu0
      %v8745 = vadd.f32 0.0, %v8744
      %v8746 = vpop.f32.mrb[0].mxu0
      %8747 = vmatprep.mubr.f32.mxu0 0.0
      %8748 = vmatmul.mubr.f32.gmra.mrb[0].mxu0 %v8544
      %v8749 = vpop.f32.mrb[0].mxu0
      %v8750 = vadd.f32 0.0, %v8749
      %v8751 = vpop.f32.mrb[0].mxu0
      %8752 = vmatprep.mubr.f32.mxu0 0.0
      %8753 = vmatmul.mubr.f32.gmra.mrb[0].mxu0 %v8547
      %v8754 = vpop.f32.mrb[0].mxu0
      %v8755 = vadd.f32 0.0, %v8754
      %v8756 = vpop.f32.mrb[0].mxu0
      %8757 = vmatprep.mubr.f32.mxu0 0.0
      %8758 = vmatmul.mubr.f32.gmra.mrb[0].mxu0 %v8550
      %v8759 = vpop.f32.mrb[0].mxu0
      %v8760 = vadd.f32 0.0, %v8759
      %v8761 = vpop.f32.mrb[0].mxu0
      %8762 = vmatprep.mubr.f32.mxu0 0.0
      %8763 = vmatmul.mubr.f32.gmra.mrb[0].mxu0 %v8553
      %v8764 = vpop.f32.mrb[0].mxu0
      %v8765 = vadd.f32 0.0, %v8764
      %v8766 = vpop.f32.mrb[0].mxu0
      %8767 = vmatprep.mubr.f32.mxu0 0.0
      %8768 = vmatmul.mubr.f32.gmra.mrb[0].mxu0 %v8556
      %v8769 = vpop.f32.mrb[0].mxu0
      %v8770 = vadd.f32 0.0, %v8769
      %v8771 = vpop.f32.mrb[0].mxu0
      %8772 = vmatprep.mubr.f32.mxu0 0.0
      %8773 = vmatmul.mubr.f32.gmra.mrb[0].mxu0 %v8559
      %v8774 = vpop.f32.mrb[0].mxu0
      %v8775 = vadd.f32 0.0, %v8774
      %v8776 = vpop.f32.mrb[0].mxu0
      %8777 = vmatprep.mubr.f32.mxu0 0.0
      %8778 = vmatmul.mubr.f32.gmra.mrb[0].mxu0 %v8562
      %v8779 = vpop.f32.mrb[0].mxu0
      %v8780 = vadd.f32 0.0, %v8779
      %v8781 = vpop.f32.mrb[0].mxu0
      %8782 = vmatprep.mubr.f32.mxu0 0.0
      %8783 = vmatmul.mubr.f32.gmra.mrb[0].mxu0 %v8565
      %v8784 = vpop.f32.mrb[0].mxu0
      %v8785 = vadd.f32 0.0, %v8784
      %v8786 = vpop.f32.mrb[0].mxu0
      %8787 = vmatprep.mubr.f32.mxu0 0.0
      %8788 = vmatmul.mubr.f32.gmra.mrb[0].mxu0 %v8568
      %v8789 = vpop.f32.mrb[0].mxu0
      %v8790 = vadd.f32 0.0, %v8789
      %v8791 = vpop.f32.mrb[0].mxu0
      %8792 = vmatprep.mubr.f32.mxu0 0.0
      %8793 = vmatmul.mubr.f32.gmra.mrb[0].mxu0 %v8571
      %v8794 = vpop.f32.mrb[0].mxu0
      %v8795 = vadd.f32 0.0, %v8794
      %v8796 = vpop.f32.mrb[0].mxu0
      %8797 = vdwg.mxu0
      %v8799 = vlaneseq
      %v8800 = vshrl.u32 %v8799, 7
      %v8801 = vsub.s32 0, %v8800
      %v8802 = vrot.slane %v8474, %v8801
      %v8804 = vadd.f32 %v8802, %v8640
      %v8805 = vadd.f32 %v8802, %v8645
      %v8806 = vadd.f32 %v8802, %v8650
      %v8807 = vadd.f32 %v8802, %v8655
      %v8808 = vadd.f32 %v8802, %v8660
      %v8809 = vadd.f32 %v8802, %v8665
      %v8810 = vadd.f32 %v8802, %v8670
      %v8811 = vadd.f32 %v8802, %v8675
      %v8812 = vadd.f32 %v8802, %v8680
      %v8813 = vadd.f32 %v8802, %v8685
      %v8814 = vadd.f32 %v8802, %v8690
      %v8815 = vadd.f32 %v8802, %v8695
      %v8816 = vadd.f32 %v8802, %v8700
      %v8817 = vadd.f32 %v8802, %v8705
      %v8818 = vadd.f32 %v8802, %v8710
      %v8819 = vadd.f32 %v8802, %v8715
      %v8820 = vadd.f32 %v8802, %v8720
      %v8821 = vadd.f32 %v8802, %v8725
      %v8822 = vadd.f32 %v8802, %v8730
      %v8823 = vadd.f32 %v8802, %v8735
      %v8824 = vadd.f32 %v8802, %v8740
      %v8825 = vadd.f32 %v8802, %v8745
      %v8826 = vadd.f32 %v8802, %v8750
      %v8827 = vadd.f32 %v8802, %v8755
      %v8828 = vadd.f32 %v8802, %v8760
      %v8829 = vadd.f32 %v8802, %v8765
      %v8830 = vadd.f32 %v8802, %v8770
      %v8831 = vadd.f32 %v8802, %v8775
      %v8832 = vadd.f32 %v8802, %v8780
      %v8833 = vadd.f32 %v8802, %v8785
      %v8834 = vadd.f32 %v8802, %v8790
      %v8835 = vadd.f32 %v8802, %v8795
      %v8836 = vld [vmem:[%s3] sm:$0xff]
      %v8837 = vld [vmem:[%s3 + $0x8] sm:$0xff]
      %v8838 = vld [vmem:[%s3 + $0x10] sm:$0xff]
      %v8839 = vld [vmem:[%s3 + $0x18] sm:$0xff]
      %v8840 = vld [vmem:[%s3 + $0x20] sm:$0xff]
      %v8841 = vld [vmem:[%s3 + $0x28] sm:$0xff]
      %v8842 = vld [vmem:[%s3 + $0x30] sm:$0xff]
      %v8843 = vld [vmem:[%s3 + $0x38] sm:$0xff]
      %v8844 = vld [vmem:[%s3 + $0x40] sm:$0xff]
      %v8845 = vld [vmem:[%s3 + $0x48] sm:$0xff]
      %v8846 = vld [vmem:[%s3 + $0x50] sm:$0xff]
      %v8847 = vld [vmem:[%s3 + $0x58] sm:$0xff]
      %v8848 = vld [vmem:[%s3 + $0x60] sm:$0xff]
      %v8849 = vld [vmem:[%s3 + $0x68] sm:$0xff]
      %v8850 = vld [vmem:[%s3 + $0x70] sm:$0xff]
      %v8851 = vld [vmem:[%s3 + $0x78] sm:$0xff]
      %v8852 = vld [vmem:[%s3 + $0x80] sm:$0xff]
      %v8853 = vld [vmem:[%s3 + $0x88] sm:$0xff]
      %v8854 = vld [vmem:[%s3 + $0x90] sm:$0xff]
      %v8855 = vld [vmem:[%s3 + $0x98] sm:$0xff]
      %v8856 = vld [vmem:[%s3 + $0xa0] sm:$0xff]
      %v8857 = vld [vmem:[%s3 + $0xa8] sm:$0xff]
      %v8858 = vld [vmem:[%s3 + $0xb0] sm:$0xff]
      %v8859 = vld [vmem:[%s3 + $0xb8] sm:$0xff]
      %v8860 = vld [vmem:[%s3 + $0xc0] sm:$0xff]
      %v8861 = vld [vmem:[%s3 + $0xc8] sm:$0xff]
      %v8862 = vld [vmem:[%s3 + $0xd0] sm:$0xff]
      %v8863 = vld [vmem:[%s3 + $0xd8] sm:$0xff]
      %v8864 = vld [vmem:[%s3 + $0xe0] sm:$0xff]
      %v8865 = vld [vmem:[%s3 + $0xe8] sm:$0xff]
      %v8866 = vld [vmem:[%s3 + $0xf0] sm:$0xff]
      %v8867 = vld [vmem:[%s3 + $0xf8] sm:$0xff]
      %v8868 = vld [vmem:[%s3 + $0x100] sm:$0xff]
      %v8869 = vld [vmem:[%s3 + $0x108] sm:$0xff]
      %v8870 = vld [vmem:[%s3 + $0x110] sm:$0xff]
      %v8871 = vld [vmem:[%s3 + $0x118] sm:$0xff]
      %v8872 = vld [vmem:[%s3 + $0x120] sm:$0xff]
      %v8873 = vld [vmem:[%s3 + $0x128] sm:$0xff]
      %v8874 = vld [vmem:[%s3 + $0x130] sm:$0xff]
      %v8875 = vld [vmem:[%s3 + $0x138] sm:$0xff]
      %v8876 = vld [vmem:[%s3 + $0x140] sm:$0xff]
      %v8877 = vld [vmem:[%s3 + $0x148] sm:$0xff]
      %v8878 = vld [vmem:[%s3 + $0x150] sm:$0xff]
      %v8879 = vld [vmem:[%s3 + $0x158] sm:$0xff]
      %v8880 = vld [vmem:[%s3 + $0x160] sm:$0xff]
      %v8881 = vld [vmem:[%s3 + $0x168] sm:$0xff]
      %v8882 = vld [vmem:[%s3 + $0x170] sm:$0xff]
      %v8883 = vld [vmem:[%s3 + $0x178] sm:$0xff]
      %v8884 = vld [vmem:[%s3 + $0x180] sm:$0xff]
      %v8885 = vld [vmem:[%s3 + $0x188] sm:$0xff]
      %v8887 = vsel %vm3554, %v1730, 0
      %v8890 = vsel %vm3554, %v1731, 0
      %v8893 = vsel %vm3554, %v1732, 0
      %v8896 = vsel %vm3554, %v1733, 0
      %v8899 = vsel %vm3554, %v1734, 0
      %v8902 = vsel %vm3554, %v1735, 0
      %v8905 = vsel %vm3554, %v1736, 0
      %v8908 = vsel %vm3554, %v1737, 0
      %v8911 = vsel %vm3554, %v1738, 0
      %v8914 = vsel %vm3554, %v1739, 0
      %v8917 = vsel %vm3554, %v1740, 0
      %v8920 = vsel %vm3554, %v1741, 0
      %v8923 = vsel %vm3554, %v1742, 0
      %v8926 = vsel %vm3554, %v1743, 0
      %v8929 = vsel %vm3554, %v1744, 0
      %v8932 = vsel %vm3554, %v1745, 0
      %v8935 = vsel %vm3554, %v1746, 0
      %v8938 = vsel %vm3554, %v1747, 0
      %v8941 = vsel %vm3554, %v1748, 0
      %v8944 = vsel %vm3554, %v1749, 0
      %v8947 = vsel %vm3554, %v1750, 0
      %v8950 = vsel %vm3554, %v1751, 0
      %v8953 = vsel %vm3554, %v1752, 0
      %v8956 = vsel %vm3554, %v1753, 0
      %v8959 = vsel %vm3554, %v1754, 0
      %v8962 = vsel %vm3554, %v1755, 0
      %v8965 = vsel %vm3554, %v1756, 0
      %v8968 = vsel %vm3554, %v1757, 0
      %v8971 = vsel %vm3554, %v1758, 0
      %v8974 = vsel %vm3554, %v1759, 0
      %v8977 = vsel %vm3554, %v1760, 0
      %v8980 = vsel %vm3554, %v1761, 0
      %8982 = vmatprep.subr.mxu0 0.0
      %8983 = vmatpush1.msra.mxu0 %v8836
      %8984 = vmatprep.subr.mxu0 0.0
      %8985 = vmatpush1.msra.mxu0 %v8837
      %8986 = vmatprep.subr.mxu0 0.0
      %8987 = vmatpush1.msra.mxu0 %v8838
      %8988 = vmatprep.subr.mxu0 0.0
      %8989 = vmatpush1.msra.mxu0 %v8839
      %8990 = vmatprep.subr.mxu0 0.0
      %8991 = vmatpush1.msra.mxu0 %v8840
      %8992 = vmatprep.subr.mxu0 0.0
      %8993 = vmatpush1.msra.mxu0 %v8841
      %8994 = vmatprep.subr.mxu0 0.0
      %8995 = vmatpush1.msra.mxu0 %v8842
      %8996 = vmatprep.subr.mxu0 0.0
      %8997 = vmatpush1.msra.mxu0 %v8843
      %8998 = vmatprep.subr.mxu0 0.0
      %8999 = vmatpush1.msra.mxu0 %v8844
      %9000 = vmatprep.subr.mxu0 0.0
      %9001 = vmatpush1.msra.mxu0 %v8845
      %9002 = vmatprep.subr.mxu0 0.0
      %9003 = vmatpush1.msra.mxu0 %v8846
      %9004 = vmatprep.subr.mxu0 0.0
      %9005 = vmatpush1.msra.mxu0 %v8847
      %9006 = vmatprep.subr.mxu0 0.0
      %9007 = vmatpush1.msra.mxu0 %v8848
      %9008 = vmatprep.subr.mxu0 0.0
      %9009 = vmatpush1.msra.mxu0 %v8849
      %9010 = vmatprep.subr.mxu0 0.0
      %9011 = vmatpush1.msra.mxu0 %v8850
      %9012 = vmatprep.subr.mxu0 0.0
      %9013 = vmatpush1.msra.mxu0 %v8851
      %9014 = vmatprep.subr.mxu0 0.0
      %9015 = vmatpush1.msra.mxu0 %v8852
      %9016 = vmatprep.subr.mxu0 0.0
      %9017 = vmatpush1.msra.mxu0 %v8853
      %9018 = vmatprep.subr.mxu0 0.0
      %9019 = vmatpush1.msra.mxu0 %v8854
      %9020 = vmatprep.subr.mxu0 0.0
      %9021 = vmatpush1.msra.mxu0 %v8855
      %9022 = vmatprep.subr.mxu0 0.0
      %9023 = vmatpush1.msra.mxu0 %v8856
      %9024 = vmatprep.subr.mxu0 0.0
      %9025 = vmatpush1.msra.mxu0 %v8857
      %9026 = vmatprep.subr.mxu0 0.0
      %9027 = vmatpush1.msra.mxu0 %v8858
      %9028 = vmatprep.subr.mxu0 0.0
      %9029 = vmatpush1.msra.mxu0 %v8859
      %9030 = vmatprep.subr.mxu0 0.0
      %9031 = vmatpush1.msra.mxu0 %v8860
      %9032 = vmatprep.subr.mxu0 0.0
      %9033 = vmatpush1.msra.mxu0 %v8861
      %9034 = vmatprep.subr.mxu0 0.0
      %9035 = vmatpush1.msra.mxu0 %v8862
      %9036 = vmatprep.subr.mxu0 0.0
      %9037 = vmatpush1.msra.mxu0 %v8863
      %9038 = vmatprep.subr.mxu0 0.0
      %9039 = vmatpush1.msra.mxu0 %v8864
      %9040 = vmatprep.subr.mxu0 0.0
      %9041 = vmatpush1.msra.mxu0 %v8865
      %9042 = vmatprep.subr.mxu0 0.0
      %9043 = vmatpush1.msra.mxu0 %v8866
      %9044 = vmatprep.subr.mxu0 0.0
      %9045 = vmatpush1.msra.mxu0 %v8867
      %9046 = vmatprep.mubr.f32.mxu0 %v3976
      %9047 = vmatmul.mubr.f32.gmra.mrb[0].mxu0 %v3752
      %v9048 = vpop.f32.mrb[0].mxu0
      %v9049 = vadd.f32 0.0, %v9048
      %v9050 = vpop.f32.mrb[0].mxu0
      %9051 = vmatprep.mubr.f32.mxu0 %v3977
      %9052 = vmatmul.mubr.f32.gmra.mrb[0].mxu0 %v3753
      %v9053 = vpop.f32.mrb[0].mxu0
      %v9054 = vadd.f32 0.0, %v9053
      %v9055 = vpop.f32.mrb[0].mxu0
      %9056 = vmatprep.mubr.f32.mxu0 %v3978
      %9057 = vmatmul.mubr.f32.gmra.mrb[0].mxu0 %v3754
      %v9058 = vpop.f32.mrb[0].mxu0
      %v9059 = vadd.f32 0.0, %v9058
      %v9060 = vpop.f32.mrb[0].mxu0
      %9061 = vmatprep.mubr.f32.mxu0 %v3979
      %9062 = vmatmul.mubr.f32.gmra.mrb[0].mxu0 %v3755
      %v9063 = vpop.f32.mrb[0].mxu0
      %v9064 = vadd.f32 0.0, %v9063
      %v9065 = vpop.f32.mrb[0].mxu0
      %9066 = vmatprep.mubr.f32.mxu0 %v3980
      %9067 = vmatmul.mubr.f32.gmra.mrb[0].mxu0 %v3756
      %v9068 = vpop.f32.mrb[0].mxu0
      %v9069 = vadd.f32 0.0, %v9068
      %v9070 = vpop.f32.mrb[0].mxu0
      %9071 = vmatprep.mubr.f32.mxu0 %v3981
      %9072 = vmatmul.mubr.f32.gmra.mrb[0].mxu0 %v3757
      %v9073 = vpop.f32.mrb[0].mxu0
      %v9074 = vadd.f32 0.0, %v9073
      %v9075 = vpop.f32.mrb[0].mxu0
      %9076 = vmatprep.mubr.f32.mxu0 %v3982
      %9077 = vmatmul.mubr.f32.gmra.mrb[0].mxu0 %v3758
      %v9078 = vpop.f32.mrb[0].mxu0
      %v9079 = vadd.f32 0.0, %v9078
      %v9080 = vpop.f32.mrb[0].mxu0
      %9081 = vmatprep.mubr.f32.mxu0 %v3983
      %9082 = vmatmul.mubr.f32.gmra.mrb[0].mxu0 %v3759
      %v9083 = vpop.f32.mrb[0].mxu0
      %v9084 = vadd.f32 0.0, %v9083
      %v9085 = vpop.f32.mrb[0].mxu0
      %9086 = vmatprep.mubr.f32.mxu0 %v3984
      %9087 = vmatmul.mubr.f32.gmra.mrb[0].mxu0 %v3760
      %v9088 = vpop.f32.mrb[0].mxu0
      %v9089 = vadd.f32 0.0, %v9088
      %v9090 = vpop.f32.mrb[0].mxu0
      %9091 = vmatprep.mubr.f32.mxu0 %v3985
      %9092 = vmatmul.mubr.f32.gmra.mrb[0].mxu0 %v3761
      %v9093 = vpop.f32.mrb[0].mxu0
      %v9094 = vadd.f32 0.0, %v9093
      %v9095 = vpop.f32.mrb[0].mxu0
      %9096 = vmatprep.mubr.f32.mxu0 %v3986
      %9097 = vmatmul.mubr.f32.gmra.mrb[0].mxu0 %v3762
      %v9098 = vpop.f32.mrb[0].mxu0
      %v9099 = vadd.f32 0.0, %v9098
      %v9100 = vpop.f32.mrb[0].mxu0
      %9101 = vmatprep.mubr.f32.mxu0 %v3987
      %9102 = vmatmul.mubr.f32.gmra.mrb[0].mxu0 %v3763
      %v9103 = vpop.f32.mrb[0].mxu0
      %v9104 = vadd.f32 0.0, %v9103
      %v9105 = vpop.f32.mrb[0].mxu0
      %9106 = vmatprep.mubr.f32.mxu0 %v3988
      %9107 = vmatmul.mubr.f32.gmra.mrb[0].mxu0 %v3764
      %v9108 = vpop.f32.mrb[0].mxu0
      %v9109 = vadd.f32 0.0, %v9108
      %v9110 = vpop.f32.mrb[0].mxu0
      %9111 = vmatprep.mubr.f32.mxu0 %v3989
      %9112 = vmatmul.mubr.f32.gmra.mrb[0].mxu0 %v3765
      %v9113 = vpop.f32.mrb[0].mxu0
      %v9114 = vadd.f32 0.0, %v9113
      %v9115 = vpop.f32.mrb[0].mxu0
      %9116 = vmatprep.mubr.f32.mxu0 %v3990
      %9117 = vmatmul.mubr.f32.gmra.mrb[0].mxu0 %v3766
      %v9118 = vpop.f32.mrb[0].mxu0
      %v9119 = vadd.f32 0.0, %v9118
      %v9120 = vpop.f32.mrb[0].mxu0
      %9121 = vmatprep.mubr.f32.mxu0 %v3991
      %9122 = vmatmul.mubr.f32.gmra.mrb[0].mxu0 %v3767
      %v9123 = vpop.f32.mrb[0].mxu0
      %v9124 = vadd.f32 0.0, %v9123
      %v9125 = vpop.f32.mrb[0].mxu0
      %9126 = vmatprep.mubr.f32.mxu0 %v3992
      %9127 = vmatmul.mubr.f32.gmra.mrb[0].mxu0 %v3768
      %v9128 = vpop.f32.mrb[0].mxu0
      %v9129 = vadd.f32 0.0, %v9128
      %v9130 = vpop.f32.mrb[0].mxu0
      %9131 = vmatprep.mubr.f32.mxu0 %v3993
      %9132 = vmatmul.mubr.f32.gmra.mrb[0].mxu0 %v3769
      %v9133 = vpop.f32.mrb[0].mxu0
      %v9134 = vadd.f32 0.0, %v9133
      %v9135 = vpop.f32.mrb[0].mxu0
      %9136 = vmatprep.mubr.f32.mxu0 %v3994
      %9137 = vmatmul.mubr.f32.gmra.mrb[0].mxu0 %v3770
      %v9138 = vpop.f32.mrb[0].mxu0
      %v9139 = vadd.f32 0.0, %v9138
      %v9140 = vpop.f32.mrb[0].mxu0
      %9141 = vmatprep.mubr.f32.mxu0 %v3995
      %9142 = vmatmul.mubr.f32.gmra.mrb[0].mxu0 %v3771
      %v9143 = vpop.f32.mrb[0].mxu0
      %v9144 = vadd.f32 0.0, %v9143
      %v9145 = vpop.f32.mrb[0].mxu0
      %9146 = vmatprep.mubr.f32.mxu0 %v3996
      %9147 = vmatmul.mubr.f32.gmra.mrb[0].mxu0 %v3772
      %v9148 = vpop.f32.mrb[0].mxu0
      %v9149 = vadd.f32 0.0, %v9148
      %v9150 = vpop.f32.mrb[0].mxu0
      %9151 = vmatprep.mubr.f32.mxu0 %v3997
      %9152 = vmatmul.mubr.f32.gmra.mrb[0].mxu0 %v3773
      %v9153 = vpop.f32.mrb[0].mxu0
      %v9154 = vadd.f32 0.0, %v9153
      %v9155 = vpop.f32.mrb[0].mxu0
      %9156 = vmatprep.mubr.f32.mxu0 %v3998
      %9157 = vmatmul.mubr.f32.gmra.mrb[0].mxu0 %v3774
      %v9158 = vpop.f32.mrb[0].mxu0
      %v9159 = vadd.f32 0.0, %v9158
      %v9160 = vpop.f32.mrb[0].mxu0
      %9161 = vmatprep.mubr.f32.mxu0 %v3999
      %9162 = vmatmul.mubr.f32.gmra.mrb[0].mxu0 %v3775
      %v9163 = vpop.f32.mrb[0].mxu0
      %v9164 = vadd.f32 0.0, %v9163
      %v9165 = vpop.f32.mrb[0].mxu0
      %9166 = vmatprep.mubr.f32.mxu0 %v4000
      %9167 = vmatmul.mubr.f32.gmra.mrb[0].mxu0 %v3776
      %v9168 = vpop.f32.mrb[0].mxu0
      %v9169 = vadd.f32 0.0, %v9168
      %v9170 = vpop.f32.mrb[0].mxu0
      %9171 = vmatprep.mubr.f32.mxu0 %v4001
      %9172 = vmatmul.mubr.f32.gmra.mrb[0].mxu0 %v3777
      %v9173 = vpop.f32.mrb[0].mxu0
      %v9174 = vadd.f32 0.0, %v9173
      %v9175 = vpop.f32.mrb[0].mxu0
      %9176 = vmatprep.mubr.f32.mxu0 %v4002
      %9177 = vmatmul.mubr.f32.gmra.mrb[0].mxu0 %v3778
      %v9178 = vpop.f32.mrb[0].mxu0
      %v9179 = vadd.f32 0.0, %v9178
      %v9180 = vpop.f32.mrb[0].mxu0
      %9181 = vmatprep.mubr.f32.mxu0 %v4003
      %9182 = vmatmul.mubr.f32.gmra.mrb[0].mxu0 %v3779
      %v9183 = vpop.f32.mrb[0].mxu0
      %v9184 = vadd.f32 0.0, %v9183
      %v9185 = vpop.f32.mrb[0].mxu0
      %9186 = vmatprep.mubr.f32.mxu0 %v4004
      %9187 = vmatmul.mubr.f32.gmra.mrb[0].mxu0 %v3780
      %v9188 = vpop.f32.mrb[0].mxu0
      %v9189 = vadd.f32 0.0, %v9188
      %v9190 = vpop.f32.mrb[0].mxu0
      %9191 = vmatprep.mubr.f32.mxu0 %v4005
      %9192 = vmatmul.mubr.f32.gmra.mrb[0].mxu0 %v3781
      %v9193 = vpop.f32.mrb[0].mxu0
      %v9194 = vadd.f32 0.0, %v9193
      %v9195 = vpop.f32.mrb[0].mxu0
      %9196 = vmatprep.mubr.f32.mxu0 %v4006
      %9197 = vmatmul.mubr.f32.gmra.mrb[0].mxu0 %v3782
      %v9198 = vpop.f32.mrb[0].mxu0
      %v9199 = vadd.f32 0.0, %v9198
      %v9200 = vpop.f32.mrb[0].mxu0
      %9201 = vmatprep.mubr.f32.mxu0 %v4007
      %9202 = vmatmul.mubr.f32.gmra.mrb[0].mxu0 %v3783
      %v9203 = vpop.f32.mrb[0].mxu0
      %v9204 = vadd.f32 0.0, %v9203
      %v9205 = vpop.f32.mrb[0].mxu0
      %9206 = vdwg.mxu0
      %9207 = vmatprep.subr.mxu0 0.0
      %9208 = vmatpush1.msra.mxu0 %v8868
      %9209 = vmatprep.subr.mxu0 0.0
      %9210 = vmatpush1.msra.mxu0 %v8869
      %9211 = vmatprep.subr.mxu0 0.0
      %9212 = vmatpush1.msra.mxu0 %v8870
      %9213 = vmatprep.subr.mxu0 0.0
      %9214 = vmatpush1.msra.mxu0 %v8871
      %9215 = vmatprep.subr.mxu0 0.0
      %9216 = vmatpush1.msra.mxu0 %v8872
      %9217 = vmatprep.subr.mxu0 0.0
      %9218 = vmatpush1.msra.mxu0 %v8873
      %9219 = vmatprep.subr.mxu0 0.0
      %9220 = vmatpush1.msra.mxu0 %v8874
      %9221 = vmatprep.subr.mxu0 0.0
      %9222 = vmatpush1.msra.mxu0 %v8875
      %9223 = vmatprep.subr.mxu0 0.0
      %9224 = vmatpush1.msra.mxu0 %v8876
      %9225 = vmatprep.subr.mxu0 0.0
      %9226 = vmatpush1.msra.mxu0 %v8877
      %9227 = vmatprep.subr.mxu0 0.0
      %9228 = vmatpush1.msra.mxu0 %v8878
      %9229 = vmatprep.subr.mxu0 0.0
      %9230 = vmatpush1.msra.mxu0 %v8879
      %9231 = vmatprep.subr.mxu0 0.0
      %9232 = vmatpush1.msra.mxu0 %v8880
      %9233 = vmatprep.subr.mxu0 0.0
      %9234 = vmatpush1.msra.mxu0 %v8881
      %9235 = vmatprep.subr.mxu0 0.0
      %9236 = vmatpush1.msra.mxu0 %v8882
      %9237 = vmatprep.subr.mxu0 0.0
      %9238 = vmatpush1.msra.mxu0 %v8883
      %9239 = vmatprep.subr.mxu0 0.0
      %9240 = vmatpush1.msra.mxu0 %v8884
      %9241 = vmatprep.subr.mxu0 0.0
      %9242 = vmatpush1.msra.mxu0 %v8885
      %9243 = vmatprep.subr.mxu0 0.0
      %9244 = vmatpush1.msra.mxu0 0.0
      %9245 = vmatprep.subr.mxu0 0.0
      %9246 = vmatpush1.msra.mxu0 0.0
      %9247 = vmatprep.subr.mxu0 0.0
      %9248 = vmatpush1.msra.mxu0 0.0
      %9249 = vmatprep.subr.mxu0 0.0
      %9250 = vmatpush1.msra.mxu0 0.0
      %9251 = vmatprep.subr.mxu0 0.0
      %9252 = vmatpush1.msra.mxu0 0.0
      %9253 = vmatprep.subr.mxu0 0.0
      %9254 = vmatpush1.msra.mxu0 0.0
      %9255 = vmatprep.subr.mxu0 0.0
      %9256 = vmatpush1.msra.mxu0 0.0
      %9257 = vmatprep.subr.mxu0 0.0
      %9258 = vmatpush1.msra.mxu0 0.0
      %9259 = vmatprep.subr.mxu0 0.0
      %9260 = vmatpush1.msra.mxu0 0.0
      %9261 = vmatprep.subr.mxu0 0.0
      %9262 = vmatpush1.msra.mxu0 0.0
      %9263 = vmatprep.subr.mxu0 0.0
      %9264 = vmatpush1.msra.mxu0 0.0
      %9265 = vmatprep.subr.mxu0 0.0
      %9266 = vmatpush1.msra.mxu0 0.0
      %9267 = vmatprep.subr.mxu0 0.0
      %9268 = vmatpush1.msra.mxu0 0.0
      %9269 = vmatprep.subr.mxu0 0.0
      %9270 = vmatpush1.msra.mxu0 0.0
      %9271 = vmatprep.mubr.f32.mxu0 %v8887
      %9272 = vmatmul.mubr.f32.gmra.mrb[0].mxu0 %v5096
      %v9273 = vpop.f32.mrb[0].mxu0
      %v9274 = vadd.f32 %v9049, %v9273
      %v9275 = vpop.f32.mrb[0].mxu0
      %9276 = vmatprep.mubr.f32.mxu0 %v8890
      %9277 = vmatmul.mubr.f32.gmra.mrb[0].mxu0 %v5097
      %v9278 = vpop.f32.mrb[0].mxu0
      %v9279 = vadd.f32 %v9054, %v9278
      %v9280 = vpop.f32.mrb[0].mxu0
      %9281 = vmatprep.mubr.f32.mxu0 %v8893
      %9282 = vmatmul.mubr.f32.gmra.mrb[0].mxu0 %v5098
      %v9283 = vpop.f32.mrb[0].mxu0
      %v9284 = vadd.f32 %v9059, %v9283
      %v9285 = vpop.f32.mrb[0].mxu0
      %9286 = vmatprep.mubr.f32.mxu0 %v8896
      %9287 = vmatmul.mubr.f32.gmra.mrb[0].mxu0 %v5099
      %v9288 = vpop.f32.mrb[0].mxu0
      %v9289 = vadd.f32 %v9064, %v9288
      %v9290 = vpop.f32.mrb[0].mxu0
      %9291 = vmatprep.mubr.f32.mxu0 %v8899
      %9292 = vmatmul.mubr.f32.gmra.mrb[0].mxu0 %v5100
      %v9293 = vpop.f32.mrb[0].mxu0
      %v9294 = vadd.f32 %v9069, %v9293
      %v9295 = vpop.f32.mrb[0].mxu0
      %9296 = vmatprep.mubr.f32.mxu0 %v8902
      %9297 = vmatmul.mubr.f32.gmra.mrb[0].mxu0 %v5101
      %v9298 = vpop.f32.mrb[0].mxu0
      %v9299 = vadd.f32 %v9074, %v9298
      %v9300 = vpop.f32.mrb[0].mxu0
      %9301 = vmatprep.mubr.f32.mxu0 %v8905
      %9302 = vmatmul.mubr.f32.gmra.mrb[0].mxu0 %v5102
      %v9303 = vpop.f32.mrb[0].mxu0
      %v9304 = vadd.f32 %v9079, %v9303
      %v9305 = vpop.f32.mrb[0].mxu0
      %9306 = vmatprep.mubr.f32.mxu0 %v8908
      %9307 = vmatmul.mubr.f32.gmra.mrb[0].mxu0 %v5103
      %v9308 = vpop.f32.mrb[0].mxu0
      %v9309 = vadd.f32 %v9084, %v9308
      %v9310 = vpop.f32.mrb[0].mxu0
      %9311 = vmatprep.mubr.f32.mxu0 %v8911
      %9312 = vmatmul.mubr.f32.gmra.mrb[0].mxu0 %v5104
      %v9313 = vpop.f32.mrb[0].mxu0
      %v9314 = vadd.f32 %v9089, %v9313
      %v9315 = vpop.f32.mrb[0].mxu0
      %9316 = vmatprep.mubr.f32.mxu0 %v8914
      %9317 = vmatmul.mubr.f32.gmra.mrb[0].mxu0 %v5105
      %v9318 = vpop.f32.mrb[0].mxu0
      %v9319 = vadd.f32 %v9094, %v9318
      %v9320 = vpop.f32.mrb[0].mxu0
      %9321 = vmatprep.mubr.f32.mxu0 %v8917
      %9322 = vmatmul.mubr.f32.gmra.mrb[0].mxu0 %v5106
      %v9323 = vpop.f32.mrb[0].mxu0
      %v9324 = vadd.f32 %v9099, %v9323
      %v9325 = vpop.f32.mrb[0].mxu0
      %9326 = vmatprep.mubr.f32.mxu0 %v8920
      %9327 = vmatmul.mubr.f32.gmra.mrb[0].mxu0 %v5107
      %v9328 = vpop.f32.mrb[0].mxu0
      %v9329 = vadd.f32 %v9104, %v9328
      %v9330 = vpop.f32.mrb[0].mxu0
      %9331 = vmatprep.mubr.f32.mxu0 %v8923
      %9332 = vmatmul.mubr.f32.gmra.mrb[0].mxu0 %v5108
      %v9333 = vpop.f32.mrb[0].mxu0
      %v9334 = vadd.f32 %v9109, %v9333
      %v9335 = vpop.f32.mrb[0].mxu0
      %9336 = vmatprep.mubr.f32.mxu0 %v8926
      %9337 = vmatmul.mubr.f32.gmra.mrb[0].mxu0 %v5109
      %v9338 = vpop.f32.mrb[0].mxu0
      %v9339 = vadd.f32 %v9114, %v9338
      %v9340 = vpop.f32.mrb[0].mxu0
      %9341 = vmatprep.mubr.f32.mxu0 %v8929
      %9342 = vmatmul.mubr.f32.gmra.mrb[0].mxu0 %v5110
      %v9343 = vpop.f32.mrb[0].mxu0
      %v9344 = vadd.f32 %v9119, %v9343
      %v9345 = vpop.f32.mrb[0].mxu0
      %9346 = vmatprep.mubr.f32.mxu0 %v8932
      %9347 = vmatmul.mubr.f32.gmra.mrb[0].mxu0 %v5111
      %v9348 = vpop.f32.mrb[0].mxu0
      %v9349 = vadd.f32 %v9124, %v9348
      %v9350 = vpop.f32.mrb[0].mxu0
      %9351 = vmatprep.mubr.f32.mxu0 %v8935
      %9352 = vmatmul.mubr.f32.gmra.mrb[0].mxu0 %v5112
      %v9353 = vpop.f32.mrb[0].mxu0
      %v9354 = vadd.f32 %v9129, %v9353
      %v9355 = vpop.f32.mrb[0].mxu0
      %9356 = vmatprep.mubr.f32.mxu0 %v8938
      %9357 = vmatmul.mubr.f32.gmra.mrb[0].mxu0 %v5113
      %v9358 = vpop.f32.mrb[0].mxu0
      %v9359 = vadd.f32 %v9134, %v9358
      %v9360 = vpop.f32.mrb[0].mxu0
      %9361 = vmatprep.mubr.f32.mxu0 %v8941
      %9362 = vmatmul.mubr.f32.gmra.mrb[0].mxu0 %v5114
      %v9363 = vpop.f32.mrb[0].mxu0
      %v9364 = vadd.f32 %v9139, %v9363
      %v9365 = vpop.f32.mrb[0].mxu0
      %9366 = vmatprep.mubr.f32.mxu0 %v8944
      %9367 = vmatmul.mubr.f32.gmra.mrb[0].mxu0 %v5115
      %v9368 = vpop.f32.mrb[0].mxu0
      %v9369 = vadd.f32 %v9144, %v9368
      %v9370 = vpop.f32.mrb[0].mxu0
      %9371 = vmatprep.mubr.f32.mxu0 %v8947
      %9372 = vmatmul.mubr.f32.gmra.mrb[0].mxu0 %v5116
      %v9373 = vpop.f32.mrb[0].mxu0
      %v9374 = vadd.f32 %v9149, %v9373
      %v9375 = vpop.f32.mrb[0].mxu0
      %9376 = vmatprep.mubr.f32.mxu0 %v8950
      %9377 = vmatmul.mubr.f32.gmra.mrb[0].mxu0 %v5117
      %v9378 = vpop.f32.mrb[0].mxu0
      %v9379 = vadd.f32 %v9154, %v9378
      %v9380 = vpop.f32.mrb[0].mxu0
      %9381 = vmatprep.mubr.f32.mxu0 %v8953
      %9382 = vmatmul.mubr.f32.gmra.mrb[0].mxu0 %v5118
      %v9383 = vpop.f32.mrb[0].mxu0
      %v9384 = vadd.f32 %v9159, %v9383
      %v9385 = vpop.f32.mrb[0].mxu0
      %9386 = vmatprep.mubr.f32.mxu0 %v8956
      %9387 = vmatmul.mubr.f32.gmra.mrb[0].mxu0 %v5119
      %v9388 = vpop.f32.mrb[0].mxu0
      %v9389 = vadd.f32 %v9164, %v9388
      %v9390 = vpop.f32.mrb[0].mxu0
      %9391 = vmatprep.mubr.f32.mxu0 %v8959
      %9392 = vmatmul.mubr.f32.gmra.mrb[0].mxu0 %v5120
      %v9393 = vpop.f32.mrb[0].mxu0
      %v9394 = vadd.f32 %v9169, %v9393
      %v9395 = vpop.f32.mrb[0].mxu0
      %9396 = vmatprep.mubr.f32.mxu0 %v8962
      %9397 = vmatmul.mubr.f32.gmra.mrb[0].mxu0 %v5121
      %v9398 = vpop.f32.mrb[0].mxu0
      %v9399 = vadd.f32 %v9174, %v9398
      %v9400 = vpop.f32.mrb[0].mxu0
      %9401 = vmatprep.mubr.f32.mxu0 %v8965
      %9402 = vmatmul.mubr.f32.gmra.mrb[0].mxu0 %v5122
      %v9403 = vpop.f32.mrb[0].mxu0
      %v9404 = vadd.f32 %v9179, %v9403
      %v9405 = vpop.f32.mrb[0].mxu0
      %9406 = vmatprep.mubr.f32.mxu0 %v8968
      %9407 = vmatmul.mubr.f32.gmra.mrb[0].mxu0 %v5123
      %v9408 = vpop.f32.mrb[0].mxu0
      %v9409 = vadd.f32 %v9184, %v9408
      %v9410 = vpop.f32.mrb[0].mxu0
      %9411 = vmatprep.mubr.f32.mxu0 %v8971
      %9412 = vmatmul.mubr.f32.gmra.mrb[0].mxu0 %v5124
      %v9413 = vpop.f32.mrb[0].mxu0
      %v9414 = vadd.f32 %v9189, %v9413
      %v9415 = vpop.f32.mrb[0].mxu0
      %9416 = vmatprep.mubr.f32.mxu0 %v8974
      %9417 = vmatmul.mubr.f32.gmra.mrb[0].mxu0 %v5125
      %v9418 = vpop.f32.mrb[0].mxu0
      %v9419 = vadd.f32 %v9194, %v9418
      %v9420 = vpop.f32.mrb[0].mxu0
      %9421 = vmatprep.mubr.f32.mxu0 %v8977
      %9422 = vmatmul.mubr.f32.gmra.mrb[0].mxu0 %v5126
      %v9423 = vpop.f32.mrb[0].mxu0
      %v9424 = vadd.f32 %v9199, %v9423
      %v9425 = vpop.f32.mrb[0].mxu0
      %9426 = vmatprep.mubr.f32.mxu0 %v8980
      %9427 = vmatmul.mubr.f32.gmra.mrb[0].mxu0 %v5127
      %v9428 = vpop.f32.mrb[0].mxu0
      %v9429 = vadd.f32 %v9204, %v9428
      %v9430 = vpop.f32.mrb[0].mxu0
      %9431 = vdwg.mxu0
      %v9432 = vadd.f32 %v8804, %v9274
      %v9433 = vadd.f32 %v8805, %v9279
      %v9434 = vadd.f32 %v8806, %v9284
      %v9435 = vadd.f32 %v8807, %v9289
      %v9436 = vadd.f32 %v8808, %v9294
      %v9437 = vadd.f32 %v8809, %v9299
      %v9438 = vadd.f32 %v8810, %v9304
      %v9439 = vadd.f32 %v8811, %v9309
      %v9440 = vadd.f32 %v8812, %v9314
      %v9441 = vadd.f32 %v8813, %v9319
      %v9442 = vadd.f32 %v8814, %v9324
      %v9443 = vadd.f32 %v8815, %v9329
      %v9444 = vadd.f32 %v8816, %v9334
      %v9445 = vadd.f32 %v8817, %v9339
      %v9446 = vadd.f32 %v8818, %v9344
      %v9447 = vadd.f32 %v8819, %v9349
      %v9448 = vadd.f32 %v8820, %v9354
      %v9449 = vadd.f32 %v8821, %v9359
      %v9450 = vadd.f32 %v8822, %v9364
      %v9451 = vadd.f32 %v8823, %v9369
      %v9452 = vadd.f32 %v8824, %v9374
      %v9453 = vadd.f32 %v8825, %v9379
      %v9454 = vadd.f32 %v8826, %v9384
      %v9455 = vadd.f32 %v8827, %v9389
      %v9456 = vadd.f32 %v8828, %v9394
      %v9457 = vadd.f32 %v8829, %v9399
      %v9458 = vadd.f32 %v8830, %v9404
      %v9459 = vadd.f32 %v8831, %v9409
      %v9460 = vadd.f32 %v8832, %v9414
      %v9461 = vadd.f32 %v8833, %v9419
      %v9462 = vadd.f32 %v8834, %v9424
      %v9463 = vadd.f32 %v8835, %v9429
      %v9464 = vld [vmem:[%s6] sm:$0xff]
      %v9465 = vld [vmem:[%s6 + $0x8] sm:$0xff]
      %v9466 = vld [vmem:[%s6 + $0x10] sm:$0xff]
      %v9467 = vld [vmem:[%s6 + $0x18] sm:$0xff]
      %v9468 = vld [vmem:[%s6 + $0x20] sm:$0xff]
      %v9469 = vld [vmem:[%s6 + $0x28] sm:$0xff]
      %v9470 = vld [vmem:[%s6 + $0x30] sm:$0xff]
      %v9471 = vld [vmem:[%s6 + $0x38] sm:$0xff]
      %v9472 = vld [vmem:[%s6 + $0x40] sm:$0xff]
      %v9473 = vld [vmem:[%s6 + $0x48] sm:$0xff]
      %v9474 = vld [vmem:[%s6 + $0x50] sm:$0xff]
      %v9475 = vld [vmem:[%s6 + $0x58] sm:$0xff]
      %v9476 = vld [vmem:[%s6 + $0x60] sm:$0xff]
      %v9477 = vld [vmem:[%s6 + $0x68] sm:$0xff]
      %v9478 = vld [vmem:[%s6 + $0x70] sm:$0xff]
      %v9479 = vld [vmem:[%s6 + $0x78] sm:$0xff]
      %v9480 = vld [vmem:[%s6 + $0x80] sm:$0xff]
      %v9481 = vld [vmem:[%s6 + $0x88] sm:$0xff]
      %v9482 = vld [vmem:[%s6 + $0x90] sm:$0xff]
      %v9483 = vld [vmem:[%s6 + $0x98] sm:$0xff]
      %v9484 = vld [vmem:[%s6 + $0xa0] sm:$0xff]
      %v9485 = vld [vmem:[%s6 + $0xa8] sm:$0xff]
      %v9486 = vld [vmem:[%s6 + $0xb0] sm:$0xff]
      %v9487 = vld [vmem:[%s6 + $0xb8] sm:$0xff]
      %v9488 = vld [vmem:[%s6 + $0xc0] sm:$0xff]
      %v9489 = vld [vmem:[%s6 + $0xc8] sm:$0xff]
      %v9490 = vld [vmem:[%s6 + $0xd0] sm:$0xff]
      %vm9491 = vcmask 719872
      %v9493 = vsel %vm9491, %v8038, 0
      %v9496 = vsel %vm9491, %v8039, 0
      %v9499 = vsel %vm9491, %v8040, 0
      %v9502 = vsel %vm9491, %v8041, 0
      %v9505 = vsel %vm9491, %v8042, 0
      %v9508 = vsel %vm9491, %v8043, 0
      %v9511 = vsel %vm9491, %v8044, 0
      %v9514 = vsel %vm9491, %v8045, 0
      %v9517 = vsel %vm9491, %v8046, 0
      %v9520 = vsel %vm9491, %v8047, 0
      %v9523 = vsel %vm9491, %v8048, 0
      %v9526 = vsel %vm9491, %v8049, 0
      %v9529 = vsel %vm9491, %v8050, 0
      %v9532 = vsel %vm9491, %v8051, 0
      %v9535 = vsel %vm9491, %v8052, 0
      %v9538 = vsel %vm9491, %v8053, 0
      %v9541 = vsel %vm9491, %v8054, 0
      %v9544 = vsel %vm9491, %v8055, 0
      %v9547 = vsel %vm9491, %v8056, 0
      %v9550 = vsel %vm9491, %v8057, 0
      %v9553 = vsel %vm9491, %v8058, 0
      %v9556 = vsel %vm9491, %v8059, 0
      %v9559 = vsel %vm9491, %v8060, 0
      %v9562 = vsel %vm9491, %v8061, 0
      %v9565 = vsel %vm9491, %v8062, 0
      %v9568 = vsel %vm9491, %v8063, 0
      %v9571 = vsel %vm9491, %v8064, 0
      %v9574 = vsel %vm9491, %v8065, 0
      %v9577 = vsel %vm9491, %v8066, 0
      %v9580 = vsel %vm9491, %v8067, 0
      %v9583 = vsel %vm9491, %v8068, 0
      %v9586 = vsel %vm9491, %v8069, 0
      %9588 = vmatprep.subr.mxu0 0.0
      %9589 = vmatpush1.msra.mxu0 %v9464
      %9590 = vmatprep.subr.mxu0 0.0
      %9591 = vmatpush1.msra.mxu0 %v9465
      %9592 = vmatprep.subr.mxu0 0.0
      %9593 = vmatpush1.msra.mxu0 %v9466
      %9594 = vmatprep.subr.mxu0 0.0
      %9595 = vmatpush1.msra.mxu0 %v9467
      %9596 = vmatprep.subr.mxu0 0.0
      %9597 = vmatpush1.msra.mxu0 %v9468
      %9598 = vmatprep.subr.mxu0 0.0
      %9599 = vmatpush1.msra.mxu0 %v9469
      %9600 = vmatprep.subr.mxu0 0.0
      %9601 = vmatpush1.msra.mxu0 %v9470
      %9602 = vmatprep.subr.mxu0 0.0
      %9603 = vmatpush1.msra.mxu0 %v9471
      %9604 = vmatprep.subr.mxu0 0.0
      %9605 = vmatpush1.msra.mxu0 %v9472
      %9606 = vmatprep.subr.mxu0 0.0
      %9607 = vmatpush1.msra.mxu0 %v9473
      %9608 = vmatprep.subr.mxu0 0.0
      %9609 = vmatpush1.msra.mxu0 %v9474
      %9610 = vmatprep.subr.mxu0 0.0
      %9611 = vmatpush1.msra.mxu0 %v9475
      %9612 = vmatprep.subr.mxu0 0.0
      %9613 = vmatpush1.msra.mxu0 %v9476
      %9614 = vmatprep.subr.mxu0 0.0
      %9615 = vmatpush1.msra.mxu0 %v9477
      %9616 = vmatprep.subr.mxu0 0.0
      %9617 = vmatpush1.msra.mxu0 %v9478
      %9618 = vmatprep.subr.mxu0 0.0
      %9619 = vmatpush1.msra.mxu0 %v9479
      %9620 = vmatprep.subr.mxu0 0.0
      %9621 = vmatpush1.msra.mxu0 %v9480
      %9622 = vmatprep.subr.mxu0 0.0
      %9623 = vmatpush1.msra.mxu0 %v9481
      %9624 = vmatprep.subr.mxu0 0.0
      %9625 = vmatpush1.msra.mxu0 %v9482
      %9626 = vmatprep.subr.mxu0 0.0
      %9627 = vmatpush1.msra.mxu0 %v9483
      %9628 = vmatprep.subr.mxu0 0.0
      %9629 = vmatpush1.msra.mxu0 %v9484
      %9630 = vmatprep.subr.mxu0 0.0
      %9631 = vmatpush1.msra.mxu0 %v9485
      %9632 = vmatprep.subr.mxu0 0.0
      %9633 = vmatpush1.msra.mxu0 %v9486
      %9634 = vmatprep.subr.mxu0 0.0
      %9635 = vmatpush1.msra.mxu0 %v9487
      %9636 = vmatprep.subr.mxu0 0.0
      %9637 = vmatpush1.msra.mxu0 %v9488
      %9638 = vmatprep.subr.mxu0 0.0
      %9639 = vmatpush1.msra.mxu0 %v9489
      %9640 = vmatprep.subr.mxu0 0.0
      %9641 = vmatpush1.msra.mxu0 %v9490
      %9642 = vmatprep.subr.mxu0 0.0
      %9643 = vmatpush1.msra.mxu0 0.0
      %9644 = vmatprep.subr.mxu0 0.0
      %9645 = vmatpush1.msra.mxu0 0.0
      %9646 = vmatprep.subr.mxu0 0.0
      %9647 = vmatpush1.msra.mxu0 0.0
      %9648 = vmatprep.subr.mxu0 0.0
      %9649 = vmatpush1.msra.mxu0 0.0
      %9650 = vmatprep.subr.mxu0 0.0
      %9651 = vmatpush1.msra.mxu0 0.0
      %9652 = vmatprep.mubr.f32.mxu0 %v9493
      %9653 = vmatmul.mubr.f32.gmra.mrb[0].mxu0 %v7941
      %v9654 = vpop.f32.mrb[0].mxu0
      %v9655 = vadd.f32 0.0, %v9654
      %v9656 = vpop.f32.mrb[0].mxu0
      %9657 = vmatprep.mubr.f32.mxu0 %v9496
      %9658 = vmatmul.mubr.f32.gmra.mrb[0].mxu0 %v7942
      %v9659 = vpop.f32.mrb[0].mxu0
      %v9660 = vadd.f32 0.0, %v9659
      %v9661 = vpop.f32.mrb[0].mxu0
      %9662 = vmatprep.mubr.f32.mxu0 %v9499
      %9663 = vmatmul.mubr.f32.gmra.mrb[0].mxu0 %v7943
      %v9664 = vpop.f32.mrb[0].mxu0
      %v9665 = vadd.f32 0.0, %v9664
      %v9666 = vpop.f32.mrb[0].mxu0
      %9667 = vmatprep.mubr.f32.mxu0 %v9502
      %9668 = vmatmul.mubr.f32.gmra.mrb[0].mxu0 %v7944
      %v9669 = vpop.f32.mrb[0].mxu0
      %v9670 = vadd.f32 0.0, %v9669
      %v9671 = vpop.f32.mrb[0].mxu0
      %9672 = vmatprep.mubr.f32.mxu0 %v9505
      %9673 = vmatmul.mubr.f32.gmra.mrb[0].mxu0 %v7945
      %v9674 = vpop.f32.mrb[0].mxu0
      %v9675 = vadd.f32 0.0, %v9674
      %v9676 = vpop.f32.mrb[0].mxu0
      %9677 = vmatprep.mubr.f32.mxu0 %v9508
      %9678 = vmatmul.mubr.f32.gmra.mrb[0].mxu0 %v7946
      %v9679 = vpop.f32.mrb[0].mxu0
      %v9680 = vadd.f32 0.0, %v9679
      %v9681 = vpop.f32.mrb[0].mxu0
      %9682 = vmatprep.mubr.f32.mxu0 %v9511
      %9683 = vmatmul.mubr.f32.gmra.mrb[0].mxu0 %v7947
      %v9684 = vpop.f32.mrb[0].mxu0
      %v9685 = vadd.f32 0.0, %v9684
      %v9686 = vpop.f32.mrb[0].mxu0
      %9687 = vmatprep.mubr.f32.mxu0 %v9514
      %9688 = vmatmul.mubr.f32.gmra.mrb[0].mxu0 %v7948
      %v9689 = vpop.f32.mrb[0].mxu0
      %v9690 = vadd.f32 0.0, %v9689
      %v9691 = vpop.f32.mrb[0].mxu0
      %9692 = vmatprep.mubr.f32.mxu0 %v9517
      %9693 = vmatmul.mubr.f32.gmra.mrb[0].mxu0 %v7949
      %v9694 = vpop.f32.mrb[0].mxu0
      %v9695 = vadd.f32 0.0, %v9694
      %v9696 = vpop.f32.mrb[0].mxu0
      %9697 = vmatprep.mubr.f32.mxu0 %v9520
      %9698 = vmatmul.mubr.f32.gmra.mrb[0].mxu0 %v7950
      %v9699 = vpop.f32.mrb[0].mxu0
      %v9700 = vadd.f32 0.0, %v9699
      %v9701 = vpop.f32.mrb[0].mxu0
      %9702 = vmatprep.mubr.f32.mxu0 %v9523
      %9703 = vmatmul.mubr.f32.gmra.mrb[0].mxu0 %v7951
      %v9704 = vpop.f32.mrb[0].mxu0
      %v9705 = vadd.f32 0.0, %v9704
      %v9706 = vpop.f32.mrb[0].mxu0
      %9707 = vmatprep.mubr.f32.mxu0 %v9526
      %9708 = vmatmul.mubr.f32.gmra.mrb[0].mxu0 %v7952
      %v9709 = vpop.f32.mrb[0].mxu0
      %v9710 = vadd.f32 0.0, %v9709
      %v9711 = vpop.f32.mrb[0].mxu0
      %9712 = vmatprep.mubr.f32.mxu0 %v9529
      %9713 = vmatmul.mubr.f32.gmra.mrb[0].mxu0 %v7953
      %v9714 = vpop.f32.mrb[0].mxu0
      %v9715 = vadd.f32 0.0, %v9714
      %v9716 = vpop.f32.mrb[0].mxu0
      %9717 = vmatprep.mubr.f32.mxu0 %v9532
      %9718 = vmatmul.mubr.f32.gmra.mrb[0].mxu0 %v7954
      %v9719 = vpop.f32.mrb[0].mxu0
      %v9720 = vadd.f32 0.0, %v9719
      %v9721 = vpop.f32.mrb[0].mxu0
      %9722 = vmatprep.mubr.f32.mxu0 %v9535
      %9723 = vmatmul.mubr.f32.gmra.mrb[0].mxu0 %v7955
      %v9724 = vpop.f32.mrb[0].mxu0
      %v9725 = vadd.f32 0.0, %v9724
      %v9726 = vpop.f32.mrb[0].mxu0
      %9727 = vmatprep.mubr.f32.mxu0 %v9538
      %9728 = vmatmul.mubr.f32.gmra.mrb[0].mxu0 %v7956
      %v9729 = vpop.f32.mrb[0].mxu0
      %v9730 = vadd.f32 0.0, %v9729
      %v9731 = vpop.f32.mrb[0].mxu0
      %9732 = vmatprep.mubr.f32.mxu0 %v9541
      %9733 = vmatmul.mubr.f32.gmra.mrb[0].mxu0 %v7957
      %v9734 = vpop.f32.mrb[0].mxu0
      %v9735 = vadd.f32 0.0, %v9734
      %v9736 = vpop.f32.mrb[0].mxu0
      %9737 = vmatprep.mubr.f32.mxu0 %v9544
      %9738 = vmatmul.mubr.f32.gmra.mrb[0].mxu0 %v7958
      %v9739 = vpop.f32.mrb[0].mxu0
      %v9740 = vadd.f32 0.0, %v9739
      %v9741 = vpop.f32.mrb[0].mxu0
      %9742 = vmatprep.mubr.f32.mxu0 %v9547
      %9743 = vmatmul.mubr.f32.gmra.mrb[0].mxu0 %v7959
      %v9744 = vpop.f32.mrb[0].mxu0
      %v9745 = vadd.f32 0.0, %v9744
      %v9746 = vpop.f32.mrb[0].mxu0
      %9747 = vmatprep.mubr.f32.mxu0 %v9550
      %9748 = vmatmul.mubr.f32.gmra.mrb[0].mxu0 %v7960
      %v9749 = vpop.f32.mrb[0].mxu0
      %v9750 = vadd.f32 0.0, %v9749
      %v9751 = vpop.f32.mrb[0].mxu0
      %9752 = vmatprep.mubr.f32.mxu0 %v9553
      %9753 = vmatmul.mubr.f32.gmra.mrb[0].mxu0 %v7961
      %v9754 = vpop.f32.mrb[0].mxu0
      %v9755 = vadd.f32 0.0, %v9754
      %v9756 = vpop.f32.mrb[0].mxu0
      %9757 = vmatprep.mubr.f32.mxu0 %v9556
      %9758 = vmatmul.mubr.f32.gmra.mrb[0].mxu0 %v7962
      %v9759 = vpop.f32.mrb[0].mxu0
      %v9760 = vadd.f32 0.0, %v9759
      %v9761 = vpop.f32.mrb[0].mxu0
      %9762 = vmatprep.mubr.f32.mxu0 %v9559
      %9763 = vmatmul.mubr.f32.gmra.mrb[0].mxu0 %v7963
      %v9764 = vpop.f32.mrb[0].mxu0
      %v9765 = vadd.f32 0.0, %v9764
      %v9766 = vpop.f32.mrb[0].mxu0
      %9767 = vmatprep.mubr.f32.mxu0 %v9562
      %9768 = vmatmul.mubr.f32.gmra.mrb[0].mxu0 %v7964
      %v9769 = vpop.f32.mrb[0].mxu0
      %v9770 = vadd.f32 0.0, %v9769
      %v9771 = vpop.f32.mrb[0].mxu0
      %9772 = vmatprep.mubr.f32.mxu0 %v9565
      %9773 = vmatmul.mubr.f32.gmra.mrb[0].mxu0 %v7965
      %v9774 = vpop.f32.mrb[0].mxu0
      %v9775 = vadd.f32 0.0, %v9774
      %v9776 = vpop.f32.mrb[0].mxu0
      %9777 = vmatprep.mubr.f32.mxu0 %v9568
      %9778 = vmatmul.mubr.f32.gmra.mrb[0].mxu0 %v7966
      %v9779 = vpop.f32.mrb[0].mxu0
      %v9780 = vadd.f32 0.0, %v9779
      %v9781 = vpop.f32.mrb[0].mxu0
      %9782 = vmatprep.mubr.f32.mxu0 %v9571
      %9783 = vmatmul.mubr.f32.gmra.mrb[0].mxu0 %v7967
      %v9784 = vpop.f32.mrb[0].mxu0
      %v9785 = vadd.f32 0.0, %v9784
      %v9786 = vpop.f32.mrb[0].mxu0
      %9787 = vmatprep.mubr.f32.mxu0 %v9574
      %9788 = vmatmul.mubr.f32.gmra.mrb[0].mxu0 %v7968
      %v9789 = vpop.f32.mrb[0].mxu0
      %v9790 = vadd.f32 0.0, %v9789
      %v9791 = vpop.f32.mrb[0].mxu0
      %9792 = vmatprep.mubr.f32.mxu0 %v9577
      %9793 = vmatmul.mubr.f32.gmra.mrb[0].mxu0 %v7969
      %v9794 = vpop.f32.mrb[0].mxu0
      %v9795 = vadd.f32 0.0, %v9794
      %v9796 = vpop.f32.mrb[0].mxu0
      %9797 = vmatprep.mubr.f32.mxu0 %v9580
      %9798 = vmatmul.mubr.f32.gmra.mrb[0].mxu0 %v7970
      %v9799 = vpop.f32.mrb[0].mxu0
      %v9800 = vadd.f32 0.0, %v9799
      %v9801 = vpop.f32.mrb[0].mxu0
      %9802 = vmatprep.mubr.f32.mxu0 %v9583
      %9803 = vmatmul.mubr.f32.gmra.mrb[0].mxu0 %v7971
      %v9804 = vpop.f32.mrb[0].mxu0
      %v9805 = vadd.f32 0.0, %v9804
      %v9806 = vpop.f32.mrb[0].mxu0
      %9807 = vmatprep.mubr.f32.mxu0 %v9586
      %9808 = vmatmul.mubr.f32.gmra.mrb[0].mxu0 %v7972
      %v9809 = vpop.f32.mrb[0].mxu0
      %v9810 = vadd.f32 0.0, %v9809
      %v9811 = vpop.f32.mrb[0].mxu0
      %9812 = vdwg.mxu0
      %v9813 = vadd.f32 %v9432, %v9655
      %v9814 = vadd.f32 %v9433, %v9660
      %v9815 = vadd.f32 %v9434, %v9665
      %v9816 = vadd.f32 %v9435, %v9670
      %v9817 = vadd.f32 %v9436, %v9675
      %v9818 = vadd.f32 %v9437, %v9680
      %v9819 = vadd.f32 %v9438, %v9685
      %v9820 = vadd.f32 %v9439, %v9690
      %v9821 = vadd.f32 %v9440, %v9695
      %v9822 = vadd.f32 %v9441, %v9700
      %v9823 = vadd.f32 %v9442, %v9705
      %v9824 = vadd.f32 %v9443, %v9710
      %v9825 = vadd.f32 %v9444, %v9715
      %v9826 = vadd.f32 %v9445, %v9720
      %v9827 = vadd.f32 %v9446, %v9725
      %v9828 = vadd.f32 %v9447, %v9730
      %v9829 = vadd.f32 %v9448, %v9735
      %v9830 = vadd.f32 %v9449, %v9740
      %v9831 = vadd.f32 %v9450, %v9745
      %v9832 = vadd.f32 %v9451, %v9750
      %v9833 = vadd.f32 %v9452, %v9755
      %v9834 = vadd.f32 %v9453, %v9760
      %v9835 = vadd.f32 %v9454, %v9765
      %v9836 = vadd.f32 %v9455, %v9770
      %v9837 = vadd.f32 %v9456, %v9775
      %v9838 = vadd.f32 %v9457, %v9780
      %v9839 = vadd.f32 %v9458, %v9785
      %v9840 = vadd.f32 %v9459, %v9790
      %v9841 = vadd.f32 %v9460, %v9795
      %v9842 = vadd.f32 %v9461, %v9800
      %v9843 = vadd.f32 %v9462, %v9805
      %v9844 = vadd.f32 %v9463, %v9810
      %9845 = vst [vmem:[%s334] sm:$0xff] %v9813
      %9846 = vst [vmem:[%s334 + $0x8] sm:$0xff] %v9814
      %9847 = vst [vmem:[%s334 + $0x10] sm:$0xff] %v9815
      %9848 = vst [vmem:[%s334 + $0x18] sm:$0xff] %v9816
      %9849 = vst [vmem:[%s334 + $0x20] sm:$0xff] %v9817
      %9850 = vst [vmem:[%s334 + $0x28] sm:$0xff] %v9818
      %9851 = vst [vmem:[%s334 + $0x30] sm:$0xff] %v9819
      %9852 = vst [vmem:[%s334 + $0x38] sm:$0xff] %v9820
      %9853 = vst [vmem:[%s334 + $0x40] sm:$0xff] %v9821
      %9854 = vst [vmem:[%s334 + $0x48] sm:$0xff] %v9822
      %9855 = vst [vmem:[%s334 + $0x50] sm:$0xff] %v9823
      %9856 = vst [vmem:[%s334 + $0x58] sm:$0xff] %v9824
      %9857 = vst [vmem:[%s334 + $0x60] sm:$0xff] %v9825
      %9858 = vst [vmem:[%s334 + $0x68] sm:$0xff] %v9826
      %9859 = vst [vmem:[%s334 + $0x70] sm:$0xff] %v9827
      %9860 = vst [vmem:[%s334 + $0x78] sm:$0xff] %v9828
      %9861 = vst [vmem:[%s334 + $0x80] sm:$0xff] %v9829
      %9862 = vst [vmem:[%s334 + $0x88] sm:$0xff] %v9830
      %9863 = vst [vmem:[%s334 + $0x90] sm:$0xff] %v9831
      %9864 = vst [vmem:[%s334 + $0x98] sm:$0xff] %v9832
      %9865 = vst [vmem:[%s334 + $0xa0] sm:$0xff] %v9833
      %9866 = vst [vmem:[%s334 + $0xa8] sm:$0xff] %v9834
      %9867 = vst [vmem:[%s334 + $0xb0] sm:$0xff] %v9835
      %9868 = vst [vmem:[%s334 + $0xb8] sm:$0xff] %v9836
      %9869 = vst [vmem:[%s334 + $0xc0] sm:$0xff] %v9837
      %9870 = vst [vmem:[%s334 + $0xc8] sm:$0xff] %v9838
      %9871 = vst [vmem:[%s334 + $0xd0] sm:$0xff] %v9839
      %9872 = vst [vmem:[%s334 + $0xd8] sm:$0xff] %v9840
      %9873 = vst [vmem:[%s334 + $0xe0] sm:$0xff] %v9841
      %9874 = vst [vmem:[%s334 + $0xe8] sm:$0xff] %v9842
      %9875 = vst [vmem:[%s334 + $0xf0] sm:$0xff] %v9843
      %9876 = vst [vmem:[%s334 + $0xf8] sm:$0xff] %v9844
      %s9877 = smul.u32 32, %s20
      %p9878 = scmp.lt.s32.totalorder %s9877, 63
      %s9879 = scalar_select %p9878, %s9877, 63
      %s9880 = smul.addr %s9879, 8
      %s9881 = scalar_lea.vmem %s9, %s9880
      // Predicated region
      $region57: #{inception_block_a.1} parent=55 // pred_check
        %p9882 = pneg %p232
      $region58: #{inception_block_a.1} parent=55 // pred_check_branch
        %9884 = sbr.rel (%p9882) target = $region60
      $region59: #{inception_block_a.1} parent=55 // pred_region
        %s9885 = smul.u32 32, %s20
      $region60: #{inception_block_a.1} parent=55 // pred_fallthru
        _
    $region56: #{inception_block_a.1} parent=5 // pred_fallthru
      _
    %p9886 = scmp.le.s32.totalorder 2, %s15
    // Predicated region
    $region61: #{inception_block_a.1} parent=5 // pred_check
      %p9887 = pneg %p9886
    $region62: #{inception_block_a.1} parent=5 // pred_check_branch
      %9889 = sbr.rel (%p9887) target = $region64
    $region63: #{inception_block_a.1} parent=5 // pred_region
      %s9890 = ssub.s32 %s15, 2
      // Predicated region
      $region65: #{inception_block_a.1} parent=63 // pred_check
        %p9891 = pneg %p238
      $region66: #{inception_block_a.1} parent=63 // pred_check_branch
        %9893 = sbr.rel (%p9891) target = $region68
      $region67: #{inception_block_a.1} parent=63 // pred_region
        %s9894 = smul.u32 32, %s21
        %p9895 = scmp.lt.s32.totalorder %s9894, 63
        %s9896 = scalar_select %p9895, %s9894, 63
        %s9897 = smul.addr %s9896, 8
        %s9898 = scalar_lea.vmem %s9, %s9897
      $region68: #{inception_block_a.1} parent=63 // pred_fallthru
        _
    $region64: #{inception_block_a.1} parent=5 // pred_fallthru
      _
  $region6: #{inception_block_a.1} parent=0 // loop_footer
    %s19 = sadd.s32 1, %s15
  $region7: #{inception_block_a.1} parent=0 // loop_footer_branch
    %14 = sbr.rel target = $region3
  $region8: #{inception_block_a.1} parent=0 // loop_exit
    _

</llo_original>
